<compile_context>
chip_gen: v7x
topology: tpu7x:2x2x1
jax: 0.10.0
libtpu: 0.0.40
codegen_flags: <defaults>
</compile_context>

<pallas_src>
import functools

import numpy as np

import jax
import jax.numpy as jnp
from jax.experimental import pallas as pl
from jax.experimental.pallas import tpu as pltpu

EPS = 1e-5          # nn.InstanceNorm2d default eps
NEG_SLOPE = 0.2     # nn.LeakyReLU(0.2)


# ----------------------------- Pallas kernel --------------------------------

def _discriminator_kernel(x_ref, w1_ref, b1_ref, s12_ref, w2_ref, s23_ref,
                          w3_ref, s34_ref, w4_ref, s4p_ref, wp_ref, bp_ref,
                          o_ref, *, cfg):
    """Whole Discriminator forward for one sample; activations stay in VMEM.

    x_ref : (Ho1*Wo1, 9*Cin_pad) bf16   stage-1 im2col (built in the wrapper)
    w1    : (9*Cin_pad, 64) bf16        K-folded stage-1 weight
    s*    : bf16 0/1 selection matrices (stride-2 phase-split / zero-pad
            re-layout done as exact matmuls on the MXU)
    w2..wp: (9, Cin, Cout) bf16 tap weights
    o_ref : (span_p, 128) f32           lane-dense patch-conv output
    """
    l2, l3, l4, (wpp, span_p) = cfg
    f32 = jnp.float32

    def leaky(v):
        return jnp.where(v > 0.0, v, NEG_SLOPE * v)

    def inorm(acc, wph, wo, count):
        # InstanceNorm2d (no affine, biased variance) over the valid rows of
        # the flat (span, Cout) conv output.  Junk rows (flat col index == wo)
        # are excluded via an iota-generated mask (no HBM mask input).
        span, cout = acc.shape
        row = jax.lax.broadcasted_iota(jnp.int32, (span, cout), 0)
        junk_rows = list(range(wo, span, wph))
        if junk_rows:
            valid = row != junk_rows[0]
            for j in junk_rows[1:]:
                valid = valid & (row != j)
            m = valid.astype(f32)
        else:
            m = jnp.ones((span, cout), f32)
        inv_n = 1.0 / float(count)
        mean = jnp.sum(acc * m, axis=0, keepdims=True) * inv_n
        cen = (acc - mean) * m
        var = jnp.sum(cen * cen, axis=0, keepdims=True) * inv_n
        return (acc - mean) * jax.lax.rsqrt(var + EPS)

    def conv3x3(ph, w9_ref, span, tap_base):
        # 3x3 conv as 9 tap matmuls over contiguous slabs of the flattened
        # (phase-split) input `ph`; bf16 MXU operands, f32 accumulation.
        cout = w9_ref.shape[-1]
        acc = jnp.zeros((span, cout), f32)
        for ki in range(3):
            for kj in range(3):
                base = tap_base(ki, kj)
                acc = acc + jnp.dot(ph[base:base + span, :],
                                    w9_ref[ki * 3 + kj],
                                    preferred_element_type=f32)
        return acc

    # ---- stage 1: single K-folded matmul + bias + LeakyReLU -----------------
    a = jnp.dot(x_ref[...], w1_ref[...], preferred_element_type=f32)
    a = leaky(a + b1_ref[...]).astype(jnp.bfloat16)           # (Ho1*Wo1, 64)

    # ---- stages 2..4: selection re-layout -> conv -> InstanceNorm -> LeakyReLU
    for s_ref, w_ref, (rph, wph, span, wo, count) in (
            (s12_ref, w2_ref, l2),
            (s23_ref, w3_ref, l3),
            (s34_ref, w4_ref, l4)):
        ph = jnp.dot(s_ref[...], a, preferred_element_type=f32)
        ph = ph.astype(jnp.bfloat16)                          # (4*rph, Cin)
        acc = conv3x3(
            ph, w_ref, span,
            lambda ki, kj, rph=rph, wph=wph:
                ((ki % 2) * 2 + (kj % 2)) * rph + (ki // 2) * wph + (kj // 2))
        a = leaky(inorm(acc, wph, wo, count)).astype(jnp.bfloat16)

    # ---- patch conv: zero-pad re-layout, stride-1 3x3, bias, exact sigmoid --
    php = jnp.dot(s4p_ref[...], a, preferred_element_type=f32)
    php = php.astype(jnp.bfloat16)                            # ((ho4+2)*(wo4+2), 512)
    accp = conv3x3(php, wp_ref, span_p, lambda ki, kj: ki * wpp + kj)
    accp = accp + bp_ref[...]
    o_ref[...] = 1.0 / (1.0 + jnp.exp(-accp))                 # exact sigmoid


# --------------------------- one-time weight packing -------------------------

def pack_discriminator(params, in_hw):
    """Hoisted out of the forward path: runs ONCE (eager / numpy).

    Returns (packed_arrays, static_cfg): bf16 tap weights, K-folded stage-1
    weight, lane-padded patch weight/bias, and the exact 0/1 selection
    matrices implementing the inter-layer stride-2 phase-split re-layouts.
    """
    H, W = in_hw
    assert H % 16 == 0 and W % 16 == 0, "input spatial dims must be multiples of 16"

    w1 = np.asarray(params["w1"], np.float32)            # (64, 2*in_ch, 3, 3)
    cin = w1.shape[1]
    cin_p = ((cin + 7) // 8) * 8

    # Stage-1 weight, K-folded to match the wrapper im2col layout
    # (tap-major, channel-minor), Cin zero-padded to a multiple of 8.
    w1f = np.zeros((3, 3, cin_p, w1.shape[0]), np.float32)
    w1f[:, :, :cin, :] = np.transpose(w1, (2, 3, 1, 0))
    w1f = w1f.reshape(9 * cin_p, w1.shape[0])

    def taps(w, pad_cout=None):
        w = np.asarray(w, np.float32)                    # (Cout, Cin, 3, 3)
        t = np.transpose(w, (2, 3, 1, 0)).reshape(9, w.shape[1], w.shape[0])
        if pad_cout is not None and pad_cout > w.shape[0]:
            t = np.pad(t, ((0, 0), (0, 0), (0, pad_cout - w.shape[0])))
        return jnp.asarray(t, jnp.bfloat16)

    # Layer geometry (stride-2 x4, then stride-1 patch conv).
    ho1, wo1 = H // 2, W // 2
    ho2, wo2 = ho1 // 2, wo1 // 2
    ho3, wo3 = ho2 // 2, wo2 // 2
    ho4, wo4 = ho3 // 2, wo3 // 2

    def geom(ho, wo):
        wph = wo + 1
        return (ho + 1) * wph, wph, (ho - 1) * wph + wo   # rph, wph, span

    rph2, wph2, span2 = geom(ho2, wo2)
    rph3, wph3, span3 = geom(ho3, wo3)
    rph4, wph4, span4 = geom(ho4, wo4)
    wpp = wo4 + 2
    span_p = (ho4 - 1) * wpp + wo4

    def sel_stride2(ho, wo, src_pitch, src_rows):
        # Flat prev-layer output (spatial 2ho x 2wo, row pitch src_pitch) ->
        # zero-padded 2x2 phase split, phases stacked: (4*(ho+1)*(wo+1), src).
        hph, wph = ho + 1, wo + 1
        S = np.zeros((4 * hph * wph, src_rows), np.float32)
        for pi in range(2):
            for pj in range(2):
                p = pi * 2 + pj
                for r in range(hph):
                    for c in range(wph):
                        si, sj = pi + 2 * r - 1, pj + 2 * c - 1
                        if 0 <= si < 2 * ho and 0 <= sj < 2 * wo:
                            S[p * hph * wph + r * wph + c,
                              si * src_pitch + sj] = 1.0
        return jnp.asarray(S, jnp.bfloat16)

    def sel_pad1(ho, wo, src_pitch, src_rows):
        # Flat prev-layer output (ho x wo) -> zero-padded (ho+2)x(wo+2) flat.
        S = np.zeros(((ho + 2) * (wo + 2), src_rows), np.float32)
        for i in range(ho + 2):
            for j in range(wo + 2):
                si, sj = i - 1, j - 1
                if 0 <= si < ho and 0 <= sj < wo:
                    S[i * (wo + 2) + j, si * src_pitch + sj] = 1.0
        return jnp.asarray(S, jnp.bfloat16)

    packed = {
        "w1": jnp.asarray(w1f, jnp.bfloat16),
        "b1": jnp.asarray(np.asarray(params["b1"], np.float32).reshape(1, -1)),
        "s12": sel_stride2(ho2, wo2, wo1, ho1 * wo1),
        "w2": taps(params["w2"]),                  # bias b2..b4 dropped: exact
        "s23": sel_stride2(ho3, wo3, wph2, span2), # no-op under InstanceNorm
        "w3": taps(params["w3"]),
        "s34": sel_stride2(ho4, wo4, wph3, span3),
        "w4": taps(params["w4"]),
        "s4p": sel_pad1(ho4, wo4, wph4, span4),
        "wp": taps(params["wp"], pad_cout=128),    # Cout 1 -> 128: lane-dense
        "bp": jnp.asarray(np.pad(np.asarray(params["bp"], np.float32)
                                 .reshape(1, -1), ((0, 0), (0, 127)))),
    }
    cfg = {
        "cin_p": cin_p, "ho1": ho1, "wo1": wo1,
        "l2": (rph2, wph2, span2, wo2, ho2 * wo2),
        "l3": (rph3, wph3, span3, wo3, ho3 * wo3),
        "l4": (rph4, wph4, span4, wo4, ho4 * wo4),
        "patch": (wpp, span_p, ho4, wo4),
    }
    return packed, cfg


# ------------------------------- JAX forward ----------------------------------

def discriminator_forward(a_nchw, b_nchw, packed, *, cfg):
    """Discriminator.forward: cat -> 4 Dis_blocks -> patch conv -> sigmoid."""
    x = jnp.concatenate([a_nchw, b_nchw], axis=1)          # (N, 2*Cin, H, W)
    x = jnp.transpose(x, (0, 2, 3, 1))                     # NCHW -> NHWC
    n, h, w, c = x.shape
    cin_p = cfg["cin_p"]
    ho1, wo1 = cfg["ho1"], cfg["wo1"]
    assert (h, w) == (2 * ho1, 2 * wo1), "input spatial size != packed size"

    # Stage-1 im2col (3x3 / stride 2 / pad 1) on the tiny raw input.
    xp = jnp.pad(x, ((0, 0), (1, 1), (1, 1), (0, cin_p - c)))
    cols = [xp[:, ki:ki + h:2, kj:kj + w:2, :]
            for ki in range(3) for kj in range(3)]
    xcol = (jnp.concatenate(cols, axis=-1)
            .reshape(n, ho1 * wo1, 9 * cin_p).astype(jnp.bfloat16))

    wpp, span_p, ho4, wo4 = cfg["patch"]
    kern = functools.partial(
        _discriminator_kernel,
        cfg=(cfg["l2"], cfg["l3"], cfg["l4"], (wpp, span_p)))

    def resident(arr):  # grid-invariant block: stays in VMEM across the grid
        return pl.BlockSpec(arr.shape, lambda *_: (0,) * arr.ndim)

    weight_names = ("w1", "b1", "s12", "w2", "s23", "w3", "s34", "w4",
                    "s4p", "wp", "bp")
    in_specs = ([pl.BlockSpec((None, ho1 * wo1, 9 * cin_p),
                              lambda i: (i, 0, 0))]
                + [resident(packed[k]) for k in weight_names])

    out = pl.pallas_call(
        kern,
        out_shape=jax.ShapeDtypeStruct((n, span_p, 128), jnp.float32),
        grid=(n,),
        in_specs=in_specs,
        out_specs=pl.BlockSpec((None, span_p, 128), lambda i: (i, 0, 0)),
        compiler_params=pltpu.CompilerParams(
            dimension_semantics=("parallel",),
            vmem_limit_bytes=32 * 1024 * 1024),
    )(xcol, *[packed[k] for k in weight_names])

    # Crop the valid patch-conv rows / real channel, back to NCHW.
    rows = np.asarray([i * wpp + j for i in range(ho4) for j in range(wo4)],
                      np.int32)
    return out[:, rows, 0].reshape(n, 1, ho4, wo4)


# ------------------------- pure-JAX references (check) -----------------------

def _ref_forward(a, b, params, matmul_dtype=jnp.float32):
    def conv(x, w, bias, stride):
        y = jax.lax.conv_general_dilated(
            x.astype(matmul_dtype), w.astype(matmul_dtype),
            (stride, stride), ((1, 1), (1, 1)),
            dimension_numbers=("NCHW", "OIHW", "NCHW"),
            preferred_element_type=jnp.float32)
        return y + bias.reshape(1, -1, 1, 1).astype(jnp.float32)

    def inorm(x):
        m = jnp.mean(x, axis=(2, 3), keepdims=True)
        v = jnp.mean((x - m) ** 2, axis=(2, 3), keepdims=True)
        return (x - m) * jax.lax.rsqrt(v + EPS)

    def lrelu(x):
        return jnp.where(x > 0, x, NEG_SLOPE * x)

    x = jnp.concatenate([a, b], axis=1)
    x = lrelu(conv(x, params["w1"], params["b1"], 2))
    x = lrelu(inorm(conv(x, params["w2"], params["b2"], 2)))
    x = lrelu(inorm(conv(x, params["w3"], params["b3"], 2)))
    x = lrelu(inorm(conv(x, params["w4"], params["b4"], 2)))
    x = conv(x, params["wp"], params["bp"], 1)
    return jax.nn.sigmoid(x)


# ----------------------------------- main ------------------------------------

if __name__ == "__main__":
    key = jax.random.PRNGKey(0)
    ks = jax.random.split(key, 12)

    N, CIN, H, W = 2, 3, 32, 32
    a = jax.random.normal(ks[0], (N, CIN, H, W), jnp.float32)
    b = jax.random.normal(ks[1], (N, CIN, H, W), jnp.float32)

    def winit(k, cout, cin):
        scale = 1.0 / jnp.sqrt(jnp.float32(cin * 9))
        return scale * jax.random.normal(k, (cout, cin, 3, 3), jnp.float32)

    params = {
        "w1": winit(ks[2], 64, 2 * CIN),
        "b1": 0.01 * jax.random.normal(ks[3], (64,), jnp.float32),
        "w2": winit(ks[4], 128, 64),
        "b2": 0.01 * jax.random.normal(ks[5], (128,), jnp.float32),
        "w3": winit(ks[6], 256, 128),
        "b3": 0.01 * jax.random.normal(ks[7], (256,), jnp.float32),
        "w4": winit(ks[8], 512, 256),
        "b4": 0.01 * jax.random.normal(ks[9], (512,), jnp.float32),
        "wp": winit(ks[10], 1, 512),
        "bp": 0.01 * jax.random.normal(ks[11], (1,), jnp.float32),
    }

    # One-time weight packing (outside the jitted forward path).
    packed, cfg = pack_discriminator(params, (H, W))
    fwd = jax.jit(functools.partial(discriminator_forward, cfg=cfg))
    out = jax.block_until_ready(fwd(a, b, packed))

    # Output spatial: 32 -> 16 -> 8 -> 4 -> 2 (stride-2 x4); patch conv keeps 2x2.
    assert out.shape == (N, 1, 2, 2), out.shape

    # Tight check vs a reference with matched bf16 matmul inputs (f32 accum/norm),
    # loose check vs the pure-f32 reference (bf16-level deviation expected).
    ref_bf16 = _ref_forward(a, b, params, matmul_dtype=jnp.bfloat16)
    ref_f32 = _ref_forward(a, b, params, matmul_dtype=jnp.float32)
    err_bf16 = float(jnp.max(jnp.abs(out - ref_bf16)))
    err_f32 = float(jnp.max(jnp.abs(out - ref_f32)))
    assert err_bf16 < 5e-3, f"max abs err vs bf16-matched reference: {err_bf16}"
    assert err_f32 < 5e-2, f"max abs err vs f32 reference: {err_f32}"

    print("KERNEL_OK")
</pallas_src>

<mosaic_0001>
module attributes {stable_mosaic.version = 11 : i64} {
  func.func @_discriminator_kernel(%arg0: i32, %arg1: memref<1x256x72xbf16, #tpu.memory_space<vmem>>, %arg2: memref<72x64xbf16, #tpu.memory_space<vmem>>, %arg3: memref<1x64xf32, #tpu.memory_space<vmem>>, %arg4: memref<324x256xbf16, #tpu.memory_space<vmem>>, %arg5: memref<9x64x128xbf16, #tpu.memory_space<vmem>>, %arg6: memref<100x71xbf16, #tpu.memory_space<vmem>>, %arg7: memref<9x128x256xbf16, #tpu.memory_space<vmem>>, %arg8: memref<36x19xbf16, #tpu.memory_space<vmem>>, %arg9: memref<9x256x512xbf16, #tpu.memory_space<vmem>>, %arg10: memref<16x5xbf16, #tpu.memory_space<vmem>>, %arg11: memref<9x512x128xbf16, #tpu.memory_space<vmem>>, %arg12: memref<1x128xf32, #tpu.memory_space<vmem>>, %arg13: memref<1x6x128xf32, #tpu.memory_space<vmem>>) attributes {dimension_semantics = [#tpu.dimension_semantics<parallel>], iteration_bounds = array<i64: 2>, scalar_prefetch = 0 : i64, scratch_operands = 0 : i64, tpu.core_type = #tpu.core_type<tc>, window_params = [{transform_indices = @transform_0, window_bounds = array<i64: 1, 256, 72>}, {pipeline_mode = #tpu.pipeline_mode<synchronous>, transform_indices = @transform_1, window_bounds = array<i64: 72, 64>}, {pipeline_mode = #tpu.pipeline_mode<synchronous>, transform_indices = @transform_2, window_bounds = array<i64: 1, 64>}, {pipeline_mode = #tpu.pipeline_mode<synchronous>, transform_indices = @transform_3, window_bounds = array<i64: 324, 256>}, {pipeline_mode = #tpu.pipeline_mode<synchronous>, transform_indices = @transform_4, window_bounds = array<i64: 9, 64, 128>}, {pipeline_mode = #tpu.pipeline_mode<synchronous>, transform_indices = @transform_5, window_bounds = array<i64: 100, 71>}, {pipeline_mode = #tpu.pipeline_mode<synchronous>, transform_indices = @transform_6, window_bounds = array<i64: 9, 128, 256>}, {pipeline_mode = #tpu.pipeline_mode<synchronous>, transform_indices = @transform_7, window_bounds = array<i64: 36, 19>}, {pipeline_mode = #tpu.pipeline_mode<synchronous>, transform_indices = @transform_8, window_bounds = array<i64: 9, 256, 512>}, {pipeline_mode = #tpu.pipeline_mode<synchronous>, transform_indices = @transform_9, window_bounds = array<i64: 16, 5>}, {pipeline_mode = #tpu.pipeline_mode<synchronous>, transform_indices = @transform_10, window_bounds = array<i64: 9, 512, 128>}, {pipeline_mode = #tpu.pipeline_mode<synchronous>, transform_indices = @transform_11, window_bounds = array<i64: 1, 128>}, {transform_indices = @transform_12, window_bounds = array<i64: 1, 6, 128>}]} {
    %c0 = arith.constant 0 : index
    %c0_0 = arith.constant 0 : index
    %c0_1 = arith.constant 0 : index
    %0 = vector.load %arg1[%c0, %c0_0, %c0_1] : memref<1x256x72xbf16, #tpu.memory_space<vmem>>, vector<1x256x72xbf16>
    %1 = vector.shape_cast %0 : vector<1x256x72xbf16> to vector<256x72xbf16>
    %c0_2 = arith.constant 0 : index
    %c0_3 = arith.constant 0 : index
    %2 = vector.load %arg2[%c0_2, %c0_3] : memref<72x64xbf16, #tpu.memory_space<vmem>>, vector<72x64xbf16>
    %cst = arith.constant dense<0.000000e+00> : vector<256x64xf32>
    %3 = tpu.matmul %1, %2, %cst {dimension_numbers = #tpu.dot_dimension_numbers<[1], [0], [0], [1], [0, 0, 1, 1], [], []>} : vector<256x72xbf16>, vector<72x64xbf16>, vector<256x64xf32> -> vector<256x64xf32>
    %c0_4 = arith.constant 0 : index
    %c0_5 = arith.constant 0 : index
    %4 = vector.load %arg3[%c0_4, %c0_5] : memref<1x64xf32, #tpu.memory_space<vmem>>, vector<1x64xf32>
    %5 = vector.broadcast %4 : vector<1x64xf32> to vector<256x64xf32>
    %6 = arith.addf %3, %5 : vector<256x64xf32>
    %cst_6 = arith.constant 0.000000e+00 : f32
    %7 = vector.broadcast %cst_6 : f32 to vector<256x64xf32>
    %8 = arith.cmpf ogt, %6, %7 : vector<256x64xf32>
    %cst_7 = arith.constant 2.000000e-01 : f32
    %9 = vector.broadcast %cst_7 : f32 to vector<256x64xf32>
    %10 = arith.mulf %9, %6 : vector<256x64xf32>
    %11 = arith.select %8, %6, %10 : vector<256x64xi1>, vector<256x64xf32>
    %12 = arith.truncf %11 : vector<256x64xf32> to vector<256x64xbf16>
    %c0_8 = arith.constant 0 : index
    %c0_9 = arith.constant 0 : index
    %13 = vector.load %arg4[%c0_8, %c0_9] : memref<324x256xbf16, #tpu.memory_space<vmem>>, vector<324x256xbf16>
    %cst_10 = arith.constant dense<0.000000e+00> : vector<324x64xf32>
    %14 = tpu.matmul %13, %12, %cst_10 {dimension_numbers = #tpu.dot_dimension_numbers<[1], [0], [0], [1], [0, 0, 1, 1], [], []>} : vector<324x256xbf16>, vector<256x64xbf16>, vector<324x64xf32> -> vector<324x64xf32>
    %15 = arith.truncf %14 : vector<324x64xf32> to vector<324x64xbf16>
    %cst_11 = arith.constant 0.000000e+00 : f32
    %16 = vector.broadcast %cst_11 : f32 to vector<71x128xf32>
    %17 = vector.extract_strided_slice %15 {offsets = [0, 0], sizes = [71, 64], strides = [1, 1]} : vector<324x64xbf16> to vector<71x64xbf16>
    %c0_12 = arith.constant 0 : index
    %c0_13 = arith.constant 0 : index
    %c0_14 = arith.constant 0 : index
    %18 = vector.load %arg5[%c0_12, %c0_13, %c0_14] : memref<9x64x128xbf16, #tpu.memory_space<vmem>>, vector<1x64x128xbf16>
    %19 = vector.shape_cast %18 : vector<1x64x128xbf16> to vector<64x128xbf16>
    %cst_15 = arith.constant dense<0.000000e+00> : vector<71x128xf32>
    %20 = tpu.matmul %17, %19, %cst_15 {dimension_numbers = #tpu.dot_dimension_numbers<[1], [0], [0], [1], [0, 0, 1, 1], [], []>} : vector<71x64xbf16>, vector<64x128xbf16>, vector<71x128xf32> -> vector<71x128xf32>
    %21 = arith.addf %16, %20 : vector<71x128xf32>
    %22 = vector.extract_strided_slice %15 {offsets = [81, 0], sizes = [71, 64], strides = [1, 1]} : vector<324x64xbf16> to vector<71x64xbf16>
    %c1 = arith.constant 1 : index
    %c0_16 = arith.constant 0 : index
    %c0_17 = arith.constant 0 : index
    %23 = vector.load %arg5[%c1, %c0_16, %c0_17] : memref<9x64x128xbf16, #tpu.memory_space<vmem>>, vector<1x64x128xbf16>
    %24 = vector.shape_cast %23 : vector<1x64x128xbf16> to vector<64x128xbf16>
    %cst_18 = arith.constant dense<0.000000e+00> : vector<71x128xf32>
    %25 = tpu.matmul %22, %24, %cst_18 {dimension_numbers = #tpu.dot_dimension_numbers<[1], [0], [0], [1], [0, 0, 1, 1], [], []>} : vector<71x64xbf16>, vector<64x128xbf16>, vector<71x128xf32> -> vector<71x128xf32>
    %26 = arith.addf %21, %25 : vector<71x128xf32>
    %27 = vector.extract_strided_slice %15 {offsets = [1, 0], sizes = [71, 64], strides = [1, 1]} : vector<324x64xbf16> to vector<71x64xbf16>
    %c2 = arith.constant 2 : index
    %c0_19 = arith.constant 0 : index
    %c0_20 = arith.constant 0 : index
    %28 = vector.load %arg5[%c2, %c0_19, %c0_20] : memref<9x64x128xbf16, #tpu.memory_space<vmem>>, vector<1x64x128xbf16>
    %29 = vector.shape_cast %28 : vector<1x64x128xbf16> to vector<64x128xbf16>
    %cst_21 = arith.constant dense<0.000000e+00> : vector<71x128xf32>
    %30 = tpu.matmul %27, %29, %cst_21 {dimension_numbers = #tpu.dot_dimension_numbers<[1], [0], [0], [1], [0, 0, 1, 1], [], []>} : vector<71x64xbf16>, vector<64x128xbf16>, vector<71x128xf32> -> vector<71x128xf32>
    %31 = arith.addf %26, %30 : vector<71x128xf32>
    %32 = vector.extract_strided_slice %15 {offsets = [162, 0], sizes = [71, 64], strides = [1, 1]} : vector<324x64xbf16> to vector<71x64xbf16>
    %c3 = arith.constant 3 : index
    %c0_22 = arith.constant 0 : index
    %c0_23 = arith.constant 0 : index
    %33 = vector.load %arg5[%c3, %c0_22, %c0_23] : memref<9x64x128xbf16, #tpu.memory_space<vmem>>, vector<1x64x128xbf16>
    %34 = vector.shape_cast %33 : vector<1x64x128xbf16> to vector<64x128xbf16>
    %cst_24 = arith.constant dense<0.000000e+00> : vector<71x128xf32>
    %35 = tpu.matmul %32, %34, %cst_24 {dimension_numbers = #tpu.dot_dimension_numbers<[1], [0], [0], [1], [0, 0, 1, 1], [], []>} : vector<71x64xbf16>, vector<64x128xbf16>, vector<71x128xf32> -> vector<71x128xf32>
    %36 = arith.addf %31, %35 : vector<71x128xf32>
    %37 = vector.extract_strided_slice %15 {offsets = [243, 0], sizes = [71, 64], strides = [1, 1]} : vector<324x64xbf16> to vector<71x64xbf16>
    %c4 = arith.constant 4 : index
    %c0_25 = arith.constant 0 : index
    %c0_26 = arith.constant 0 : index
    %38 = vector.load %arg5[%c4, %c0_25, %c0_26] : memref<9x64x128xbf16, #tpu.memory_space<vmem>>, vector<1x64x128xbf16>
    %39 = vector.shape_cast %38 : vector<1x64x128xbf16> to vector<64x128xbf16>
    %cst_27 = arith.constant dense<0.000000e+00> : vector<71x128xf32>
    %40 = tpu.matmul %37, %39, %cst_27 {dimension_numbers = #tpu.dot_dimension_numbers<[1], [0], [0], [1], [0, 0, 1, 1], [], []>} : vector<71x64xbf16>, vector<64x128xbf16>, vector<71x128xf32> -> vector<71x128xf32>
    %41 = arith.addf %36, %40 : vector<71x128xf32>
    %42 = vector.extract_strided_slice %15 {offsets = [163, 0], sizes = [71, 64], strides = [1, 1]} : vector<324x64xbf16> to vector<71x64xbf16>
    %c5 = arith.constant 5 : index
    %c0_28 = arith.constant 0 : index
    %c0_29 = arith.constant 0 : index
    %43 = vector.load %arg5[%c5, %c0_28, %c0_29] : memref<9x64x128xbf16, #tpu.memory_space<vmem>>, vector<1x64x128xbf16>
    %44 = vector.shape_cast %43 : vector<1x64x128xbf16> to vector<64x128xbf16>
    %cst_30 = arith.constant dense<0.000000e+00> : vector<71x128xf32>
    %45 = tpu.matmul %42, %44, %cst_30 {dimension_numbers = #tpu.dot_dimension_numbers<[1], [0], [0], [1], [0, 0, 1, 1], [], []>} : vector<71x64xbf16>, vector<64x128xbf16>, vector<71x128xf32> -> vector<71x128xf32>
    %46 = arith.addf %41, %45 : vector<71x128xf32>
    %47 = vector.extract_strided_slice %15 {offsets = [9, 0], sizes = [71, 64], strides = [1, 1]} : vector<324x64xbf16> to vector<71x64xbf16>
    %c6 = arith.constant 6 : index
    %c0_31 = arith.constant 0 : index
    %c0_32 = arith.constant 0 : index
    %48 = vector.load %arg5[%c6, %c0_31, %c0_32] : memref<9x64x128xbf16, #tpu.memory_space<vmem>>, vector<1x64x128xbf16>
    %49 = vector.shape_cast %48 : vector<1x64x128xbf16> to vector<64x128xbf16>
    %cst_33 = arith.constant dense<0.000000e+00> : vector<71x128xf32>
    %50 = tpu.matmul %47, %49, %cst_33 {dimension_numbers = #tpu.dot_dimension_numbers<[1], [0], [0], [1], [0, 0, 1, 1], [], []>} : vector<71x64xbf16>, vector<64x128xbf16>, vector<71x128xf32> -> vector<71x128xf32>
    %51 = arith.addf %46, %50 : vector<71x128xf32>
    %52 = vector.extract_strided_slice %15 {offsets = [90, 0], sizes = [71, 64], strides = [1, 1]} : vector<324x64xbf16> to vector<71x64xbf16>
    %c7 = arith.constant 7 : index
    %c0_34 = arith.constant 0 : index
    %c0_35 = arith.constant 0 : index
    %53 = vector.load %arg5[%c7, %c0_34, %c0_35] : memref<9x64x128xbf16, #tpu.memory_space<vmem>>, vector<1x64x128xbf16>
    %54 = vector.shape_cast %53 : vector<1x64x128xbf16> to vector<64x128xbf16>
    %cst_36 = arith.constant dense<0.000000e+00> : vector<71x128xf32>
    %55 = tpu.matmul %52, %54, %cst_36 {dimension_numbers = #tpu.dot_dimension_numbers<[1], [0], [0], [1], [0, 0, 1, 1], [], []>} : vector<71x64xbf16>, vector<64x128xbf16>, vector<71x128xf32> -> vector<71x128xf32>
    %56 = arith.addf %51, %55 : vector<71x128xf32>
    %57 = vector.extract_strided_slice %15 {offsets = [10, 0], sizes = [71, 64], strides = [1, 1]} : vector<324x64xbf16> to vector<71x64xbf16>
    %c8 = arith.constant 8 : index
    %c0_37 = arith.constant 0 : index
    %c0_38 = arith.constant 0 : index
    %58 = vector.load %arg5[%c8, %c0_37, %c0_38] : memref<9x64x128xbf16, #tpu.memory_space<vmem>>, vector<1x64x128xbf16>
    %59 = vector.shape_cast %58 : vector<1x64x128xbf16> to vector<64x128xbf16>
    %cst_39 = arith.constant dense<0.000000e+00> : vector<71x128xf32>
    %60 = tpu.matmul %57, %59, %cst_39 {dimension_numbers = #tpu.dot_dimension_numbers<[1], [0], [0], [1], [0, 0, 1, 1], [], []>} : vector<71x64xbf16>, vector<64x128xbf16>, vector<71x128xf32> -> vector<71x128xf32>
    %61 = arith.addf %56, %60 : vector<71x128xf32>
    %62 = tpu.iota {dimensions = array<i32: 0>} : vector<71x128xi32>
    %c8_i32 = arith.constant 8 : i32
    %63 = vector.broadcast %c8_i32 : i32 to vector<71x128xi32>
    %64 = arith.cmpi ne, %62, %63 : vector<71x128xi32>
    %c17_i32 = arith.constant 17 : i32
    %65 = vector.broadcast %c17_i32 : i32 to vector<71x128xi32>
    %66 = arith.cmpi ne, %62, %65 : vector<71x128xi32>
    %67 = arith.andi %64, %66 : vector<71x128xi1>
    %c26_i32 = arith.constant 26 : i32
    %68 = vector.broadcast %c26_i32 : i32 to vector<71x128xi32>
    %69 = arith.cmpi ne, %62, %68 : vector<71x128xi32>
    %70 = arith.andi %67, %69 : vector<71x128xi1>
    %c35_i32 = arith.constant 35 : i32
    %71 = vector.broadcast %c35_i32 : i32 to vector<71x128xi32>
    %72 = arith.cmpi ne, %62, %71 : vector<71x128xi32>
    %73 = arith.andi %70, %72 : vector<71x128xi1>
    %c44_i32 = arith.constant 44 : i32
    %74 = vector.broadcast %c44_i32 : i32 to vector<71x128xi32>
    %75 = arith.cmpi ne, %62, %74 : vector<71x128xi32>
    %76 = arith.andi %73, %75 : vector<71x128xi1>
    %c53_i32 = arith.constant 53 : i32
    %77 = vector.broadcast %c53_i32 : i32 to vector<71x128xi32>
    %78 = arith.cmpi ne, %62, %77 : vector<71x128xi32>
    %79 = arith.andi %76, %78 : vector<71x128xi1>
    %c62_i32 = arith.constant 62 : i32
    %80 = vector.broadcast %c62_i32 : i32 to vector<71x128xi32>
    %81 = arith.cmpi ne, %62, %80 : vector<71x128xi32>
    %82 = arith.andi %79, %81 : vector<71x128xi1>
    %83 = arith.extui %82 : vector<71x128xi1> to vector<71x128xi32>
    %84 = arith.sitofp %83 : vector<71x128xi32> to vector<71x128xf32>
    %85 = arith.mulf %61, %84 : vector<71x128xf32>
    %cst_40 = arith.constant dense<0.000000e+00> : vector<128xf32>
    %86 = vector.multi_reduction <add>, %85, %cst_40 [0] : vector<71x128xf32> to vector<128xf32>
    %87 = vector.shape_cast %86 : vector<128xf32> to vector<1x128xf32>
    %cst_41 = arith.constant 1.562500e-02 : f32
    %88 = vector.broadcast %cst_41 : f32 to vector<1x128xf32>
    %89 = arith.mulf %87, %88 : vector<1x128xf32>
    %90 = vector.broadcast %89 : vector<1x128xf32> to vector<71x128xf32>
    %91 = arith.subf %61, %90 : vector<71x128xf32>
    %92 = arith.mulf %91, %84 : vector<71x128xf32>
    %93 = arith.mulf %92, %92 : vector<71x128xf32>
    %cst_42 = arith.constant dense<0.000000e+00> : vector<128xf32>
    %94 = vector.multi_reduction <add>, %93, %cst_42 [0] : vector<71x128xf32> to vector<128xf32>
    %95 = vector.shape_cast %94 : vector<128xf32> to vector<1x128xf32>
    %cst_43 = arith.constant 1.562500e-02 : f32
    %96 = vector.broadcast %cst_43 : f32 to vector<1x128xf32>
    %97 = arith.mulf %95, %96 : vector<1x128xf32>
    %98 = vector.broadcast %89 : vector<1x128xf32> to vector<71x128xf32>
    %99 = arith.subf %61, %98 : vector<71x128xf32>
    %cst_44 = arith.constant 9.99999974E-6 : f32
    %100 = vector.broadcast %cst_44 : f32 to vector<1x128xf32>
    %101 = arith.addf %97, %100 : vector<1x128xf32>
    %102 = math.rsqrt %101 : vector<1x128xf32>
    %103 = vector.broadcast %102 : vector<1x128xf32> to vector<71x128xf32>
    %104 = arith.mulf %99, %103 : vector<71x128xf32>
    %cst_45 = arith.constant 0.000000e+00 : f32
    %105 = vector.broadcast %cst_45 : f32 to vector<71x128xf32>
    %106 = arith.cmpf ogt, %104, %105 : vector<71x128xf32>
    %cst_46 = arith.constant 2.000000e-01 : f32
    %107 = vector.broadcast %cst_46 : f32 to vector<71x128xf32>
    %108 = arith.mulf %107, %104 : vector<71x128xf32>
    %109 = arith.select %106, %104, %108 : vector<71x128xi1>, vector<71x128xf32>
    %110 = arith.truncf %109 : vector<71x128xf32> to vector<71x128xbf16>
    %c0_47 = arith.constant 0 : index
    %c0_48 = arith.constant 0 : index
    %111 = vector.load %arg6[%c0_47, %c0_48] : memref<100x71xbf16, #tpu.memory_space<vmem>>, vector<100x71xbf16>
    %cst_49 = arith.constant dense<0.000000e+00> : vector<100x128xf32>
    %112 = tpu.matmul %111, %110, %cst_49 {dimension_numbers = #tpu.dot_dimension_numbers<[1], [0], [0], [1], [0, 0, 1, 1], [], []>} : vector<100x71xbf16>, vector<71x128xbf16>, vector<100x128xf32> -> vector<100x128xf32>
    %113 = arith.truncf %112 : vector<100x128xf32> to vector<100x128xbf16>
    %cst_50 = arith.constant 0.000000e+00 : f32
    %114 = vector.broadcast %cst_50 : f32 to vector<19x256xf32>
    %115 = vector.extract_strided_slice %113 {offsets = [0, 0], sizes = [19, 128], strides = [1, 1]} : vector<100x128xbf16> to vector<19x128xbf16>
    %c0_51 = arith.constant 0 : index
    %c0_52 = arith.constant 0 : index
    %c0_53 = arith.constant 0 : index
    %116 = vector.load %arg7[%c0_51, %c0_52, %c0_53] : memref<9x128x256xbf16, #tpu.memory_space<vmem>>, vector<1x128x256xbf16>
    %117 = vector.shape_cast %116 : vector<1x128x256xbf16> to vector<128x256xbf16>
    %cst_54 = arith.constant dense<0.000000e+00> : vector<19x256xf32>
    %118 = tpu.matmul %115, %117, %cst_54 {dimension_numbers = #tpu.dot_dimension_numbers<[1], [0], [0], [1], [0, 0, 1, 1], [], []>} : vector<19x128xbf16>, vector<128x256xbf16>, vector<19x256xf32> -> vector<19x256xf32>
    %119 = arith.addf %114, %118 : vector<19x256xf32>
    %120 = vector.extract_strided_slice %113 {offsets = [25, 0], sizes = [19, 128], strides = [1, 1]} : vector<100x128xbf16> to vector<19x128xbf16>
    %c1_55 = arith.constant 1 : index
    %c0_56 = arith.constant 0 : index
    %c0_57 = arith.constant 0 : index
    %121 = vector.load %arg7[%c1_55, %c0_56, %c0_57] : memref<9x128x256xbf16, #tpu.memory_space<vmem>>, vector<1x128x256xbf16>
    %122 = vector.shape_cast %121 : vector<1x128x256xbf16> to vector<128x256xbf16>
    %cst_58 = arith.constant dense<0.000000e+00> : vector<19x256xf32>
    %123 = tpu.matmul %120, %122, %cst_58 {dimension_numbers = #tpu.dot_dimension_numbers<[1], [0], [0], [1], [0, 0, 1, 1], [], []>} : vector<19x128xbf16>, vector<128x256xbf16>, vector<19x256xf32> -> vector<19x256xf32>
    %124 = arith.addf %119, %123 : vector<19x256xf32>
    %125 = vector.extract_strided_slice %113 {offsets = [1, 0], sizes = [19, 128], strides = [1, 1]} : vector<100x128xbf16> to vector<19x128xbf16>
    %c2_59 = arith.constant 2 : index
    %c0_60 = arith.constant 0 : index
    %c0_61 = arith.constant 0 : index
    %126 = vector.load %arg7[%c2_59, %c0_60, %c0_61] : memref<9x128x256xbf16, #tpu.memory_space<vmem>>, vector<1x128x256xbf16>
    %127 = vector.shape_cast %126 : vector<1x128x256xbf16> to vector<128x256xbf16>
    %cst_62 = arith.constant dense<0.000000e+00> : vector<19x256xf32>
    %128 = tpu.matmul %125, %127, %cst_62 {dimension_numbers = #tpu.dot_dimension_numbers<[1], [0], [0], [1], [0, 0, 1, 1], [], []>} : vector<19x128xbf16>, vector<128x256xbf16>, vector<19x256xf32> -> vector<19x256xf32>
    %129 = arith.addf %124, %128 : vector<19x256xf32>
    %130 = vector.extract_strided_slice %113 {offsets = [50, 0], sizes = [19, 128], strides = [1, 1]} : vector<100x128xbf16> to vector<19x128xbf16>
    %c3_63 = arith.constant 3 : index
    %c0_64 = arith.constant 0 : index
    %c0_65 = arith.constant 0 : index
    %131 = vector.load %arg7[%c3_63, %c0_64, %c0_65] : memref<9x128x256xbf16, #tpu.memory_space<vmem>>, vector<1x128x256xbf16>
    %132 = vector.shape_cast %131 : vector<1x128x256xbf16> to vector<128x256xbf16>
    %cst_66 = arith.constant dense<0.000000e+00> : vector<19x256xf32>
    %133 = tpu.matmul %130, %132, %cst_66 {dimension_numbers = #tpu.dot_dimension_numbers<[1], [0], [0], [1], [0, 0, 1, 1], [], []>} : vector<19x128xbf16>, vector<128x256xbf16>, vector<19x256xf32> -> vector<19x256xf32>
    %134 = arith.addf %129, %133 : vector<19x256xf32>
    %135 = vector.extract_strided_slice %113 {offsets = [75, 0], sizes = [19, 128], strides = [1, 1]} : vector<100x128xbf16> to vector<19x128xbf16>
    %c4_67 = arith.constant 4 : index
    %c0_68 = arith.constant 0 : index
    %c0_69 = arith.constant 0 : index
    %136 = vector.load %arg7[%c4_67, %c0_68, %c0_69] : memref<9x128x256xbf16, #tpu.memory_space<vmem>>, vector<1x128x256xbf16>
    %137 = vector.shape_cast %136 : vector<1x128x256xbf16> to vector<128x256xbf16>
    %cst_70 = arith.constant dense<0.000000e+00> : vector<19x256xf32>
    %138 = tpu.matmul %135, %137, %cst_70 {dimension_numbers = #tpu.dot_dimension_numbers<[1], [0], [0], [1], [0, 0, 1, 1], [], []>} : vector<19x128xbf16>, vector<128x256xbf16>, vector<19x256xf32> -> vector<19x256xf32>
    %139 = arith.addf %134, %138 : vector<19x256xf32>
    %140 = vector.extract_strided_slice %113 {offsets = [51, 0], sizes = [19, 128], strides = [1, 1]} : vector<100x128xbf16> to vector<19x128xbf16>
    %c5_71 = arith.constant 5 : index
    %c0_72 = arith.constant 0 : index
    %c0_73 = arith.constant 0 : index
    %141 = vector.load %arg7[%c5_71, %c0_72, %c0_73] : memref<9x128x256xbf16, #tpu.memory_space<vmem>>, vector<1x128x256xbf16>
    %142 = vector.shape_cast %141 : vector<1x128x256xbf16> to vector<128x256xbf16>
    %cst_74 = arith.constant dense<0.000000e+00> : vector<19x256xf32>
    %143 = tpu.matmul %140, %142, %cst_74 {dimension_numbers = #tpu.dot_dimension_numbers<[1], [0], [0], [1], [0, 0, 1, 1], [], []>} : vector<19x128xbf16>, vector<128x256xbf16>, vector<19x256xf32> -> vector<19x256xf32>
    %144 = arith.addf %139, %143 : vector<19x256xf32>
    %145 = vector.extract_strided_slice %113 {offsets = [5, 0], sizes = [19, 128], strides = [1, 1]} : vector<100x128xbf16> to vector<19x128xbf16>
    %c6_75 = arith.constant 6 : index
    %c0_76 = arith.constant 0 : index
    %c0_77 = arith.constant 0 : index
    %146 = vector.load %arg7[%c6_75, %c0_76, %c0_77] : memref<9x128x256xbf16, #tpu.memory_space<vmem>>, vector<1x128x256xbf16>
    %147 = vector.shape_cast %146 : vector<1x128x256xbf16> to vector<128x256xbf16>
    %cst_78 = arith.constant dense<0.000000e+00> : vector<19x256xf32>
    %148 = tpu.matmul %145, %147, %cst_78 {dimension_numbers = #tpu.dot_dimension_numbers<[1], [0], [0], [1], [0, 0, 1, 1], [], []>} : vector<19x128xbf16>, vector<128x256xbf16>, vector<19x256xf32> -> vector<19x256xf32>
    %149 = arith.addf %144, %148 : vector<19x256xf32>
    %150 = vector.extract_strided_slice %113 {offsets = [30, 0], sizes = [19, 128], strides = [1, 1]} : vector<100x128xbf16> to vector<19x128xbf16>
    %c7_79 = arith.constant 7 : index
    %c0_80 = arith.constant 0 : index
    %c0_81 = arith.constant 0 : index
    %151 = vector.load %arg7[%c7_79, %c0_80, %c0_81] : memref<9x128x256xbf16, #tpu.memory_space<vmem>>, vector<1x128x256xbf16>
    %152 = vector.shape_cast %151 : vector<1x128x256xbf16> to vector<128x256xbf16>
    %cst_82 = arith.constant dense<0.000000e+00> : vector<19x256xf32>
    %153 = tpu.matmul %150, %152, %cst_82 {dimension_numbers = #tpu.dot_dimension_numbers<[1], [0], [0], [1], [0, 0, 1, 1], [], []>} : vector<19x128xbf16>, vector<128x256xbf16>, vector<19x256xf32> -> vector<19x256xf32>
    %154 = arith.addf %149, %153 : vector<19x256xf32>
    %155 = vector.extract_strided_slice %113 {offsets = [6, 0], sizes = [19, 128], strides = [1, 1]} : vector<100x128xbf16> to vector<19x128xbf16>
    %c8_83 = arith.constant 8 : index
    %c0_84 = arith.constant 0 : index
    %c0_85 = arith.constant 0 : index
    %156 = vector.load %arg7[%c8_83, %c0_84, %c0_85] : memref<9x128x256xbf16, #tpu.memory_space<vmem>>, vector<1x128x256xbf16>
    %157 = vector.shape_cast %156 : vector<1x128x256xbf16> to vector<128x256xbf16>
    %cst_86 = arith.constant dense<0.000000e+00> : vector<19x256xf32>
    %158 = tpu.matmul %155, %157, %cst_86 {dimension_numbers = #tpu.dot_dimension_numbers<[1], [0], [0], [1], [0, 0, 1, 1], [], []>} : vector<19x128xbf16>, vector<128x256xbf16>, vector<19x256xf32> -> vector<19x256xf32>
    %159 = arith.addf %154, %158 : vector<19x256xf32>
    %160 = tpu.iota {dimensions = array<i32: 0>} : vector<19x256xi32>
    %c4_i32 = arith.constant 4 : i32
    %161 = vector.broadcast %c4_i32 : i32 to vector<19x256xi32>
    %162 = arith.cmpi ne, %160, %161 : vector<19x256xi32>
    %c9_i32 = arith.constant 9 : i32
    %163 = vector.broadcast %c9_i32 : i32 to vector<19x256xi32>
    %164 = arith.cmpi ne, %160, %163 : vector<19x256xi32>
    %165 = arith.andi %162, %164 : vector<19x256xi1>
    %c14_i32 = arith.constant 14 : i32
    %166 = vector.broadcast %c14_i32 : i32 to vector<19x256xi32>
    %167 = arith.cmpi ne, %160, %166 : vector<19x256xi32>
    %168 = arith.andi %165, %167 : vector<19x256xi1>
    %169 = arith.extui %168 : vector<19x256xi1> to vector<19x256xi32>
    %170 = arith.sitofp %169 : vector<19x256xi32> to vector<19x256xf32>
    %171 = arith.mulf %159, %170 : vector<19x256xf32>
    %cst_87 = arith.constant dense<0.000000e+00> : vector<256xf32>
    %172 = vector.multi_reduction <add>, %171, %cst_87 [0] : vector<19x256xf32> to vector<256xf32>
    %173 = vector.shape_cast %172 : vector<256xf32> to vector<1x256xf32>
    %cst_88 = arith.constant 6.250000e-02 : f32
    %174 = vector.broadcast %cst_88 : f32 to vector<1x256xf32>
    %175 = arith.mulf %173, %174 : vector<1x256xf32>
    %176 = vector.broadcast %175 : vector<1x256xf32> to vector<19x256xf32>
    %177 = arith.subf %159, %176 : vector<19x256xf32>
    %178 = arith.mulf %177, %170 : vector<19x256xf32>
    %179 = arith.mulf %178, %178 : vector<19x256xf32>
    %cst_89 = arith.constant dense<0.000000e+00> : vector<256xf32>
    %180 = vector.multi_reduction <add>, %179, %cst_89 [0] : vector<19x256xf32> to vector<256xf32>
    %181 = vector.shape_cast %180 : vector<256xf32> to vector<1x256xf32>
    %cst_90 = arith.constant 6.250000e-02 : f32
    %182 = vector.broadcast %cst_90 : f32 to vector<1x256xf32>
    %183 = arith.mulf %181, %182 : vector<1x256xf32>
    %184 = vector.broadcast %175 : vector<1x256xf32> to vector<19x256xf32>
    %185 = arith.subf %159, %184 : vector<19x256xf32>
    %cst_91 = arith.constant 9.99999974E-6 : f32
    %186 = vector.broadcast %cst_91 : f32 to vector<1x256xf32>
    %187 = arith.addf %183, %186 : vector<1x256xf32>
    %188 = math.rsqrt %187 : vector<1x256xf32>
    %189 = vector.broadcast %188 : vector<1x256xf32> to vector<19x256xf32>
    %190 = arith.mulf %185, %189 : vector<19x256xf32>
    %cst_92 = arith.constant 0.000000e+00 : f32
    %191 = vector.broadcast %cst_92 : f32 to vector<19x256xf32>
    %192 = arith.cmpf ogt, %190, %191 : vector<19x256xf32>
    %cst_93 = arith.constant 2.000000e-01 : f32
    %193 = vector.broadcast %cst_93 : f32 to vector<19x256xf32>
    %194 = arith.mulf %193, %190 : vector<19x256xf32>
    %195 = arith.select %192, %190, %194 : vector<19x256xi1>, vector<19x256xf32>
    %196 = arith.truncf %195 : vector<19x256xf32> to vector<19x256xbf16>
    %c0_94 = arith.constant 0 : index
    %c0_95 = arith.constant 0 : index
    %197 = vector.load %arg8[%c0_94, %c0_95] : memref<36x19xbf16, #tpu.memory_space<vmem>>, vector<36x19xbf16>
    %cst_96 = arith.constant dense<0.000000e+00> : vector<36x256xf32>
    %198 = tpu.matmul %197, %196, %cst_96 {dimension_numbers = #tpu.dot_dimension_numbers<[1], [0], [0], [1], [0, 0, 1, 1], [], []>} : vector<36x19xbf16>, vector<19x256xbf16>, vector<36x256xf32> -> vector<36x256xf32>
    %199 = arith.truncf %198 : vector<36x256xf32> to vector<36x256xbf16>
    %cst_97 = arith.constant 0.000000e+00 : f32
    %200 = vector.broadcast %cst_97 : f32 to vector<5x512xf32>
    %201 = vector.extract_strided_slice %199 {offsets = [0, 0], sizes = [5, 256], strides = [1, 1]} : vector<36x256xbf16> to vector<5x256xbf16>
    %c0_98 = arith.constant 0 : index
    %c0_99 = arith.constant 0 : index
    %c0_100 = arith.constant 0 : index
    %202 = vector.load %arg9[%c0_98, %c0_99, %c0_100] : memref<9x256x512xbf16, #tpu.memory_space<vmem>>, vector<1x256x512xbf16>
    %203 = vector.shape_cast %202 : vector<1x256x512xbf16> to vector<256x512xbf16>
    %cst_101 = arith.constant dense<0.000000e+00> : vector<5x512xf32>
    %204 = tpu.matmul %201, %203, %cst_101 {dimension_numbers = #tpu.dot_dimension_numbers<[1], [0], [0], [1], [0, 0, 1, 1], [], []>} : vector<5x256xbf16>, vector<256x512xbf16>, vector<5x512xf32> -> vector<5x512xf32>
    %205 = arith.addf %200, %204 : vector<5x512xf32>
    %206 = vector.extract_strided_slice %199 {offsets = [9, 0], sizes = [5, 256], strides = [1, 1]} : vector<36x256xbf16> to vector<5x256xbf16>
    %c1_102 = arith.constant 1 : index
    %c0_103 = arith.constant 0 : index
    %c0_104 = arith.constant 0 : index
    %207 = vector.load %arg9[%c1_102, %c0_103, %c0_104] : memref<9x256x512xbf16, #tpu.memory_space<vmem>>, vector<1x256x512xbf16>
    %208 = vector.shape_cast %207 : vector<1x256x512xbf16> to vector<256x512xbf16>
    %cst_105 = arith.constant dense<0.000000e+00> : vector<5x512xf32>
    %209 = tpu.matmul %206, %208, %cst_105 {dimension_numbers = #tpu.dot_dimension_numbers<[1], [0], [0], [1], [0, 0, 1, 1], [], []>} : vector<5x256xbf16>, vector<256x512xbf16>, vector<5x512xf32> -> vector<5x512xf32>
    %210 = arith.addf %205, %209 : vector<5x512xf32>
    %211 = vector.extract_strided_slice %199 {offsets = [1, 0], sizes = [5, 256], strides = [1, 1]} : vector<36x256xbf16> to vector<5x256xbf16>
    %c2_106 = arith.constant 2 : index
    %c0_107 = arith.constant 0 : index
    %c0_108 = arith.constant 0 : index
    %212 = vector.load %arg9[%c2_106, %c0_107, %c0_108] : memref<9x256x512xbf16, #tpu.memory_space<vmem>>, vector<1x256x512xbf16>
    %213 = vector.shape_cast %212 : vector<1x256x512xbf16> to vector<256x512xbf16>
    %cst_109 = arith.constant dense<0.000000e+00> : vector<5x512xf32>
    %214 = tpu.matmul %211, %213, %cst_109 {dimension_numbers = #tpu.dot_dimension_numbers<[1], [0], [0], [1], [0, 0, 1, 1], [], []>} : vector<5x256xbf16>, vector<256x512xbf16>, vector<5x512xf32> -> vector<5x512xf32>
    %215 = arith.addf %210, %214 : vector<5x512xf32>
    %216 = vector.extract_strided_slice %199 {offsets = [18, 0], sizes = [5, 256], strides = [1, 1]} : vector<36x256xbf16> to vector<5x256xbf16>
    %c3_110 = arith.constant 3 : index
    %c0_111 = arith.constant 0 : index
    %c0_112 = arith.constant 0 : index
    %217 = vector.load %arg9[%c3_110, %c0_111, %c0_112] : memref<9x256x512xbf16, #tpu.memory_space<vmem>>, vector<1x256x512xbf16>
    %218 = vector.shape_cast %217 : vector<1x256x512xbf16> to vector<256x512xbf16>
    %cst_113 = arith.constant dense<0.000000e+00> : vector<5x512xf32>
    %219 = tpu.matmul %216, %218, %cst_113 {dimension_numbers = #tpu.dot_dimension_numbers<[1], [0], [0], [1], [0, 0, 1, 1], [], []>} : vector<5x256xbf16>, vector<256x512xbf16>, vector<5x512xf32> -> vector<5x512xf32>
    %220 = arith.addf %215, %219 : vector<5x512xf32>
    %221 = vector.extract_strided_slice %199 {offsets = [27, 0], sizes = [5, 256], strides = [1, 1]} : vector<36x256xbf16> to vector<5x256xbf16>
    %c4_114 = arith.constant 4 : index
    %c0_115 = arith.constant 0 : index
    %c0_116 = arith.constant 0 : index
    %222 = vector.load %arg9[%c4_114, %c0_115, %c0_116] : memref<9x256x512xbf16, #tpu.memory_space<vmem>>, vector<1x256x512xbf16>
    %223 = vector.shape_cast %222 : vector<1x256x512xbf16> to vector<256x512xbf16>
    %cst_117 = arith.constant dense<0.000000e+00> : vector<5x512xf32>
    %224 = tpu.matmul %221, %223, %cst_117 {dimension_numbers = #tpu.dot_dimension_numbers<[1], [0], [0], [1], [0, 0, 1, 1], [], []>} : vector<5x256xbf16>, vector<256x512xbf16>, vector<5x512xf32> -> vector<5x512xf32>
    %225 = arith.addf %220, %224 : vector<5x512xf32>
    %226 = vector.extract_strided_slice %199 {offsets = [19, 0], sizes = [5, 256], strides = [1, 1]} : vector<36x256xbf16> to vector<5x256xbf16>
    %c5_118 = arith.constant 5 : index
    %c0_119 = arith.constant 0 : index
    %c0_120 = arith.constant 0 : index
    %227 = vector.load %arg9[%c5_118, %c0_119, %c0_120] : memref<9x256x512xbf16, #tpu.memory_space<vmem>>, vector<1x256x512xbf16>
    %228 = vector.shape_cast %227 : vector<1x256x512xbf16> to vector<256x512xbf16>
    %cst_121 = arith.constant dense<0.000000e+00> : vector<5x512xf32>
    %229 = tpu.matmul %226, %228, %cst_121 {dimension_numbers = #tpu.dot_dimension_numbers<[1], [0], [0], [1], [0, 0, 1, 1], [], []>} : vector<5x256xbf16>, vector<256x512xbf16>, vector<5x512xf32> -> vector<5x512xf32>
    %230 = arith.addf %225, %229 : vector<5x512xf32>
    %231 = vector.extract_strided_slice %199 {offsets = [3, 0], sizes = [5, 256], strides = [1, 1]} : vector<36x256xbf16> to vector<5x256xbf16>
    %c6_122 = arith.constant 6 : index
    %c0_123 = arith.constant 0 : index
    %c0_124 = arith.constant 0 : index
    %232 = vector.load %arg9[%c6_122, %c0_123, %c0_124] : memref<9x256x512xbf16, #tpu.memory_space<vmem>>, vector<1x256x512xbf16>
    %233 = vector.shape_cast %232 : vector<1x256x512xbf16> to vector<256x512xbf16>
    %cst_125 = arith.constant dense<0.000000e+00> : vector<5x512xf32>
    %234 = tpu.matmul %231, %233, %cst_125 {dimension_numbers = #tpu.dot_dimension_numbers<[1], [0], [0], [1], [0, 0, 1, 1], [], []>} : vector<5x256xbf16>, vector<256x512xbf16>, vector<5x512xf32> -> vector<5x512xf32>
    %235 = arith.addf %230, %234 : vector<5x512xf32>
    %236 = vector.extract_strided_slice %199 {offsets = [12, 0], sizes = [5, 256], strides = [1, 1]} : vector<36x256xbf16> to vector<5x256xbf16>
    %c7_126 = arith.constant 7 : index
    %c0_127 = arith.constant 0 : index
    %c0_128 = arith.constant 0 : index
    %237 = vector.load %arg9[%c7_126, %c0_127, %c0_128] : memref<9x256x512xbf16, #tpu.memory_space<vmem>>, vector<1x256x512xbf16>
    %238 = vector.shape_cast %237 : vector<1x256x512xbf16> to vector<256x512xbf16>
    %cst_129 = arith.constant dense<0.000000e+00> : vector<5x512xf32>
    %239 = tpu.matmul %236, %238, %cst_129 {dimension_numbers = #tpu.dot_dimension_numbers<[1], [0], [0], [1], [0, 0, 1, 1], [], []>} : vector<5x256xbf16>, vector<256x512xbf16>, vector<5x512xf32> -> vector<5x512xf32>
    %240 = arith.addf %235, %239 : vector<5x512xf32>
    %241 = vector.extract_strided_slice %199 {offsets = [4, 0], sizes = [5, 256], strides = [1, 1]} : vector<36x256xbf16> to vector<5x256xbf16>
    %c8_130 = arith.constant 8 : index
    %c0_131 = arith.constant 0 : index
    %c0_132 = arith.constant 0 : index
    %242 = vector.load %arg9[%c8_130, %c0_131, %c0_132] : memref<9x256x512xbf16, #tpu.memory_space<vmem>>, vector<1x256x512xbf16>
    %243 = vector.shape_cast %242 : vector<1x256x512xbf16> to vector<256x512xbf16>
    %cst_133 = arith.constant dense<0.000000e+00> : vector<5x512xf32>
    %244 = tpu.matmul %241, %243, %cst_133 {dimension_numbers = #tpu.dot_dimension_numbers<[1], [0], [0], [1], [0, 0, 1, 1], [], []>} : vector<5x256xbf16>, vector<256x512xbf16>, vector<5x512xf32> -> vector<5x512xf32>
    %245 = arith.addf %240, %244 : vector<5x512xf32>
    %246 = tpu.iota {dimensions = array<i32: 0>} : vector<5x512xi32>
    %c2_i32 = arith.constant 2 : i32
    %247 = vector.broadcast %c2_i32 : i32 to vector<5x512xi32>
    %248 = arith.cmpi ne, %246, %247 : vector<5x512xi32>
    %249 = arith.extui %248 : vector<5x512xi1> to vector<5x512xi32>
    %250 = arith.sitofp %249 : vector<5x512xi32> to vector<5x512xf32>
    %251 = arith.mulf %245, %250 : vector<5x512xf32>
    %cst_134 = arith.constant dense<0.000000e+00> : vector<512xf32>
    %252 = vector.multi_reduction <add>, %251, %cst_134 [0] : vector<5x512xf32> to vector<512xf32>
    %253 = vector.shape_cast %252 : vector<512xf32> to vector<1x512xf32>
    %cst_135 = arith.constant 2.500000e-01 : f32
    %254 = vector.broadcast %cst_135 : f32 to vector<1x512xf32>
    %255 = arith.mulf %253, %254 : vector<1x512xf32>
    %256 = vector.broadcast %255 : vector<1x512xf32> to vector<5x512xf32>
    %257 = arith.subf %245, %256 : vector<5x512xf32>
    %258 = arith.mulf %257, %250 : vector<5x512xf32>
    %259 = arith.mulf %258, %258 : vector<5x512xf32>
    %cst_136 = arith.constant dense<0.000000e+00> : vector<512xf32>
    %260 = vector.multi_reduction <add>, %259, %cst_136 [0] : vector<5x512xf32> to vector<512xf32>
    %261 = vector.shape_cast %260 : vector<512xf32> to vector<1x512xf32>
    %cst_137 = arith.constant 2.500000e-01 : f32
    %262 = vector.broadcast %cst_137 : f32 to vector<1x512xf32>
    %263 = arith.mulf %261, %262 : vector<1x512xf32>
    %264 = vector.broadcast %255 : vector<1x512xf32> to vector<5x512xf32>
    %265 = arith.subf %245, %264 : vector<5x512xf32>
    %cst_138 = arith.constant 9.99999974E-6 : f32
    %266 = vector.broadcast %cst_138 : f32 to vector<1x512xf32>
    %267 = arith.addf %263, %266 : vector<1x512xf32>
    %268 = math.rsqrt %267 : vector<1x512xf32>
    %269 = vector.broadcast %268 : vector<1x512xf32> to vector<5x512xf32>
    %270 = arith.mulf %265, %269 : vector<5x512xf32>
    %cst_139 = arith.constant 0.000000e+00 : f32
    %271 = vector.broadcast %cst_139 : f32 to vector<5x512xf32>
    %272 = arith.cmpf ogt, %270, %271 : vector<5x512xf32>
    %cst_140 = arith.constant 2.000000e-01 : f32
    %273 = vector.broadcast %cst_140 : f32 to vector<5x512xf32>
    %274 = arith.mulf %273, %270 : vector<5x512xf32>
    %275 = arith.select %272, %270, %274 : vector<5x512xi1>, vector<5x512xf32>
    %276 = arith.truncf %275 : vector<5x512xf32> to vector<5x512xbf16>
    %c0_141 = arith.constant 0 : index
    %c0_142 = arith.constant 0 : index
    %277 = vector.load %arg10[%c0_141, %c0_142] : memref<16x5xbf16, #tpu.memory_space<vmem>>, vector<16x5xbf16>
    %cst_143 = arith.constant dense<0.000000e+00> : vector<16x512xf32>
    %278 = tpu.matmul %277, %276, %cst_143 {dimension_numbers = #tpu.dot_dimension_numbers<[1], [0], [0], [1], [0, 0, 1, 1], [], []>} : vector<16x5xbf16>, vector<5x512xbf16>, vector<16x512xf32> -> vector<16x512xf32>
    %279 = arith.truncf %278 : vector<16x512xf32> to vector<16x512xbf16>
    %cst_144 = arith.constant 0.000000e+00 : f32
    %280 = vector.broadcast %cst_144 : f32 to vector<6x128xf32>
    %281 = vector.extract_strided_slice %279 {offsets = [0, 0], sizes = [6, 512], strides = [1, 1]} : vector<16x512xbf16> to vector<6x512xbf16>
    %c0_145 = arith.constant 0 : index
    %c0_146 = arith.constant 0 : index
    %c0_147 = arith.constant 0 : index
    %282 = vector.load %arg11[%c0_145, %c0_146, %c0_147] : memref<9x512x128xbf16, #tpu.memory_space<vmem>>, vector<1x512x128xbf16>
    %283 = vector.shape_cast %282 : vector<1x512x128xbf16> to vector<512x128xbf16>
    %cst_148 = arith.constant dense<0.000000e+00> : vector<6x128xf32>
    %284 = tpu.matmul %281, %283, %cst_148 {dimension_numbers = #tpu.dot_dimension_numbers<[1], [0], [0], [1], [0, 0, 1, 1], [], []>} : vector<6x512xbf16>, vector<512x128xbf16>, vector<6x128xf32> -> vector<6x128xf32>
    %285 = arith.addf %280, %284 : vector<6x128xf32>
    %286 = vector.extract_strided_slice %279 {offsets = [1, 0], sizes = [6, 512], strides = [1, 1]} : vector<16x512xbf16> to vector<6x512xbf16>
    %c1_149 = arith.constant 1 : index
    %c0_150 = arith.constant 0 : index
    %c0_151 = arith.constant 0 : index
    %287 = vector.load %arg11[%c1_149, %c0_150, %c0_151] : memref<9x512x128xbf16, #tpu.memory_space<vmem>>, vector<1x512x128xbf16>
    %288 = vector.shape_cast %287 : vector<1x512x128xbf16> to vector<512x128xbf16>
    %cst_152 = arith.constant dense<0.000000e+00> : vector<6x128xf32>
    %289 = tpu.matmul %286, %288, %cst_152 {dimension_numbers = #tpu.dot_dimension_numbers<[1], [0], [0], [1], [0, 0, 1, 1], [], []>} : vector<6x512xbf16>, vector<512x128xbf16>, vector<6x128xf32> -> vector<6x128xf32>
    %290 = arith.addf %285, %289 : vector<6x128xf32>
    %291 = vector.extract_strided_slice %279 {offsets = [2, 0], sizes = [6, 512], strides = [1, 1]} : vector<16x512xbf16> to vector<6x512xbf16>
    %c2_153 = arith.constant 2 : index
    %c0_154 = arith.constant 0 : index
    %c0_155 = arith.constant 0 : index
    %292 = vector.load %arg11[%c2_153, %c0_154, %c0_155] : memref<9x512x128xbf16, #tpu.memory_space<vmem>>, vector<1x512x128xbf16>
    %293 = vector.shape_cast %292 : vector<1x512x128xbf16> to vector<512x128xbf16>
    %cst_156 = arith.constant dense<0.000000e+00> : vector<6x128xf32>
    %294 = tpu.matmul %291, %293, %cst_156 {dimension_numbers = #tpu.dot_dimension_numbers<[1], [0], [0], [1], [0, 0, 1, 1], [], []>} : vector<6x512xbf16>, vector<512x128xbf16>, vector<6x128xf32> -> vector<6x128xf32>
    %295 = arith.addf %290, %294 : vector<6x128xf32>
    %296 = vector.extract_strided_slice %279 {offsets = [4, 0], sizes = [6, 512], strides = [1, 1]} : vector<16x512xbf16> to vector<6x512xbf16>
    %c3_157 = arith.constant 3 : index
    %c0_158 = arith.constant 0 : index
    %c0_159 = arith.constant 0 : index
    %297 = vector.load %arg11[%c3_157, %c0_158, %c0_159] : memref<9x512x128xbf16, #tpu.memory_space<vmem>>, vector<1x512x128xbf16>
    %298 = vector.shape_cast %297 : vector<1x512x128xbf16> to vector<512x128xbf16>
    %cst_160 = arith.constant dense<0.000000e+00> : vector<6x128xf32>
    %299 = tpu.matmul %296, %298, %cst_160 {dimension_numbers = #tpu.dot_dimension_numbers<[1], [0], [0], [1], [0, 0, 1, 1], [], []>} : vector<6x512xbf16>, vector<512x128xbf16>, vector<6x128xf32> -> vector<6x128xf32>
    %300 = arith.addf %295, %299 : vector<6x128xf32>
    %301 = vector.extract_strided_slice %279 {offsets = [5, 0], sizes = [6, 512], strides = [1, 1]} : vector<16x512xbf16> to vector<6x512xbf16>
    %c4_161 = arith.constant 4 : index
    %c0_162 = arith.constant 0 : index
    %c0_163 = arith.constant 0 : index
    %302 = vector.load %arg11[%c4_161, %c0_162, %c0_163] : memref<9x512x128xbf16, #tpu.memory_space<vmem>>, vector<1x512x128xbf16>
    %303 = vector.shape_cast %302 : vector<1x512x128xbf16> to vector<512x128xbf16>
    %cst_164 = arith.constant dense<0.000000e+00> : vector<6x128xf32>
    %304 = tpu.matmul %301, %303, %cst_164 {dimension_numbers = #tpu.dot_dimension_numbers<[1], [0], [0], [1], [0, 0, 1, 1], [], []>} : vector<6x512xbf16>, vector<512x128xbf16>, vector<6x128xf32> -> vector<6x128xf32>
    %305 = arith.addf %300, %304 : vector<6x128xf32>
    %306 = vector.extract_strided_slice %279 {offsets = [6, 0], sizes = [6, 512], strides = [1, 1]} : vector<16x512xbf16> to vector<6x512xbf16>
    %c5_165 = arith.constant 5 : index
    %c0_166 = arith.constant 0 : index
    %c0_167 = arith.constant 0 : index
    %307 = vector.load %arg11[%c5_165, %c0_166, %c0_167] : memref<9x512x128xbf16, #tpu.memory_space<vmem>>, vector<1x512x128xbf16>
    %308 = vector.shape_cast %307 : vector<1x512x128xbf16> to vector<512x128xbf16>
    %cst_168 = arith.constant dense<0.000000e+00> : vector<6x128xf32>
    %309 = tpu.matmul %306, %308, %cst_168 {dimension_numbers = #tpu.dot_dimension_numbers<[1], [0], [0], [1], [0, 0, 1, 1], [], []>} : vector<6x512xbf16>, vector<512x128xbf16>, vector<6x128xf32> -> vector<6x128xf32>
    %310 = arith.addf %305, %309 : vector<6x128xf32>
    %311 = vector.extract_strided_slice %279 {offsets = [8, 0], sizes = [6, 512], strides = [1, 1]} : vector<16x512xbf16> to vector<6x512xbf16>
    %c6_169 = arith.constant 6 : index
    %c0_170 = arith.constant 0 : index
    %c0_171 = arith.constant 0 : index
    %312 = vector.load %arg11[%c6_169, %c0_170, %c0_171] : memref<9x512x128xbf16, #tpu.memory_space<vmem>>, vector<1x512x128xbf16>
    %313 = vector.shape_cast %312 : vector<1x512x128xbf16> to vector<512x128xbf16>
    %cst_172 = arith.constant dense<0.000000e+00> : vector<6x128xf32>
    %314 = tpu.matmul %311, %313, %cst_172 {dimension_numbers = #tpu.dot_dimension_numbers<[1], [0], [0], [1], [0, 0, 1, 1], [], []>} : vector<6x512xbf16>, vector<512x128xbf16>, vector<6x128xf32> -> vector<6x128xf32>
    %315 = arith.addf %310, %314 : vector<6x128xf32>
    %316 = vector.extract_strided_slice %279 {offsets = [9, 0], sizes = [6, 512], strides = [1, 1]} : vector<16x512xbf16> to vector<6x512xbf16>
    %c7_173 = arith.constant 7 : index
    %c0_174 = arith.constant 0 : index
    %c0_175 = arith.constant 0 : index
    %317 = vector.load %arg11[%c7_173, %c0_174, %c0_175] : memref<9x512x128xbf16, #tpu.memory_space<vmem>>, vector<1x512x128xbf16>
    %318 = vector.shape_cast %317 : vector<1x512x128xbf16> to vector<512x128xbf16>
    %cst_176 = arith.constant dense<0.000000e+00> : vector<6x128xf32>
    %319 = tpu.matmul %316, %318, %cst_176 {dimension_numbers = #tpu.dot_dimension_numbers<[1], [0], [0], [1], [0, 0, 1, 1], [], []>} : vector<6x512xbf16>, vector<512x128xbf16>, vector<6x128xf32> -> vector<6x128xf32>
    %320 = arith.addf %315, %319 : vector<6x128xf32>
    %321 = vector.extract_strided_slice %279 {offsets = [10, 0], sizes = [6, 512], strides = [1, 1]} : vector<16x512xbf16> to vector<6x512xbf16>
    %c8_177 = arith.constant 8 : index
    %c0_178 = arith.constant 0 : index
    %c0_179 = arith.constant 0 : index
    %322 = vector.load %arg11[%c8_177, %c0_178, %c0_179] : memref<9x512x128xbf16, #tpu.memory_space<vmem>>, vector<1x512x128xbf16>
    %323 = vector.shape_cast %322 : vector<1x512x128xbf16> to vector<512x128xbf16>
    %cst_180 = arith.constant dense<0.000000e+00> : vector<6x128xf32>
    %324 = tpu.matmul %321, %323, %cst_180 {dimension_numbers = #tpu.dot_dimension_numbers<[1], [0], [0], [1], [0, 0, 1, 1], [], []>} : vector<6x512xbf16>, vector<512x128xbf16>, vector<6x128xf32> -> vector<6x128xf32>
    %325 = arith.addf %320, %324 : vector<6x128xf32>
    %c0_181 = arith.constant 0 : index
    %c0_182 = arith.constant 0 : index
    %326 = vector.load %arg12[%c0_181, %c0_182] : memref<1x128xf32, #tpu.memory_space<vmem>>, vector<1x128xf32>
    %327 = vector.broadcast %326 : vector<1x128xf32> to vector<6x128xf32>
    %328 = arith.addf %325, %327 : vector<6x128xf32>
    %cst_183 = arith.constant 0.000000e+00 : f32
    %329 = vector.broadcast %cst_183 : f32 to vector<6x128xf32>
    %330 = arith.subf %329, %328 : vector<6x128xf32>
    %331 = math.exp %330 : vector<6x128xf32>
    %cst_184 = arith.constant 1.000000e+00 : f32
    %332 = vector.broadcast %cst_184 : f32 to vector<6x128xf32>
    %333 = arith.addf %332, %331 : vector<6x128xf32>
    %cst_185 = arith.constant 1.000000e+00 : f32
    %334 = vector.broadcast %cst_185 : f32 to vector<6x128xf32>
    %335 = arith.divf %334, %333 : vector<6x128xf32>
    %c0_186 = arith.constant 0 : index
    %c0_187 = arith.constant 0 : index
    %c0_188 = arith.constant 0 : index
    %336 = vector.load %arg13[%c0_186, %c0_187, %c0_188] : memref<1x6x128xf32, #tpu.memory_space<vmem>>, vector<1x6x128xf32>
    %337 = vector.shape_cast %336 : vector<1x6x128xf32> to vector<6x128xf32>
    %338 = vector.shape_cast %335 : vector<6x128xf32> to vector<1x6x128xf32>
    tpu.vector_store %arg13[%c0_186, %c0_187, %c0_188], %338 {strides = array<i32>} : memref<1x6x128xf32, #tpu.memory_space<vmem>>, vector<1x6x128xf32>,
    return
  }
  func.func @transform_0(%arg0: i32) -> (i32, i32, i32) {
    %c0_i32 = arith.constant 0 : i32
    %c0_i32_0 = arith.constant 0 : i32
    %c0_i32_1 = arith.constant 0 : i32
    return %arg0, %c0_i32, %c0_i32_0 : i32, i32, i32
  }
  func.func @transform_1(%arg0: i32) -> (i32, i32) {
    %c0_i32 = arith.constant 0 : i32
    %c0_i32_0 = arith.constant 0 : i32
    %c0_i32_1 = arith.constant 0 : i32
    return %c0_i32, %c0_i32_0 : i32, i32
  }
  func.func @transform_2(%arg0: i32) -> (i32, i32) {
    %c0_i32 = arith.constant 0 : i32
    %c0_i32_0 = arith.constant 0 : i32
    %c0_i32_1 = arith.constant 0 : i32
    return %c0_i32, %c0_i32_0 : i32, i32
  }
  func.func @transform_3(%arg0: i32) -> (i32, i32) {
    %c0_i32 = arith.constant 0 : i32
    %c0_i32_0 = arith.constant 0 : i32
    %c0_i32_1 = arith.constant 0 : i32
    return %c0_i32, %c0_i32_0 : i32, i32
  }
  func.func @transform_4(%arg0: i32) -> (i32, i32, i32) {
    %c0_i32 = arith.constant 0 : i32
    %c0_i32_0 = arith.constant 0 : i32
    %c0_i32_1 = arith.constant 0 : i32
    %c0_i32_2 = arith.constant 0 : i32
    return %c0_i32, %c0_i32_0, %c0_i32_1 : i32, i32, i32
  }
  func.func @transform_5(%arg0: i32) -> (i32, i32) {
    %c0_i32 = arith.constant 0 : i32
    %c0_i32_0 = arith.constant 0 : i32
    %c0_i32_1 = arith.constant 0 : i32
    return %c0_i32, %c0_i32_0 : i32, i32
  }
  func.func @transform_6(%arg0: i32) -> (i32, i32, i32) {
    %c0_i32 = arith.constant 0 : i32
    %c0_i32_0 = arith.constant 0 : i32
    %c0_i32_1 = arith.constant 0 : i32
    %c0_i32_2 = arith.constant 0 : i32
    return %c0_i32, %c0_i32_0, %c0_i32_1 : i32, i32, i32
  }
  func.func @transform_7(%arg0: i32) -> (i32, i32) {
    %c0_i32 = arith.constant 0 : i32
    %c0_i32_0 = arith.constant 0 : i32
    %c0_i32_1 = arith.constant 0 : i32
    return %c0_i32, %c0_i32_0 : i32, i32
  }
  func.func @transform_8(%arg0: i32) -> (i32, i32, i32) {
    %c0_i32 = arith.constant 0 : i32
    %c0_i32_0 = arith.constant 0 : i32
    %c0_i32_1 = arith.constant 0 : i32
    %c0_i32_2 = arith.constant 0 : i32
    return %c0_i32, %c0_i32_0, %c0_i32_1 : i32, i32, i32
  }
  func.func @transform_9(%arg0: i32) -> (i32, i32) {
    %c0_i32 = arith.constant 0 : i32
    %c0_i32_0 = arith.constant 0 : i32
    %c0_i32_1 = arith.constant 0 : i32
    return %c0_i32, %c0_i32_0 : i32, i32
  }
  func.func @transform_10(%arg0: i32) -> (i32, i32, i32) {
    %c0_i32 = arith.constant 0 : i32
    %c0_i32_0 = arith.constant 0 : i32
    %c0_i32_1 = arith.constant 0 : i32
    %c0_i32_2 = arith.constant 0 : i32
    return %c0_i32, %c0_i32_0, %c0_i32_1 : i32, i32, i32
  }
  func.func @transform_11(%arg0: i32) -> (i32, i32) {
    %c0_i32 = arith.constant 0 : i32
    %c0_i32_0 = arith.constant 0 : i32
    %c0_i32_1 = arith.constant 0 : i32
    return %c0_i32, %c0_i32_0 : i32, i32
  }
  func.func @transform_12(%arg0: i32) -> (i32, i32, i32) {
    %c0_i32 = arith.constant 0 : i32
    %c0_i32_0 = arith.constant 0 : i32
    %c0_i32_1 = arith.constant 0 : i32
    return %arg0, %c0_i32, %c0_i32_0 : i32, i32, i32
  }
}

</mosaic_0001>

<llo_original>
// kernel: discriminator_forward.1
$region0: #{discriminator_forward.1}
  #allocation0 [shape = 'u32[]', space=smem, size = 0x4, offset = 0x4, fixed_abs, tag = 'smem constant byte address 0x4 - core index']
  #allocation1 [shape = 'u32[144,128]{1,0:T(1,128)}', space=vmem, size = 0x12000, scoped, tag = 'internal scratch']
  %s0 = inlined_call_operand.vmem [shape: bf16[2,256,72], index: 0, kind: input, shape index: {}]
  %s1 = inlined_call_operand.vmem [shape: bf16[72,64], index: 1, kind: input, shape index: {}]
  %s2 = inlined_call_operand.vmem [shape: f32[1,64], index: 2, kind: input, shape index: {}]
  %s3 = inlined_call_operand.vmem [shape: bf16[324,256], index: 3, kind: input, shape index: {}]
  %s4 = inlined_call_operand.vmem [shape: bf16[9,64,128], index: 4, kind: input, shape index: {}]
  %s5 = inlined_call_operand.vmem [shape: bf16[100,71], index: 5, kind: input, shape index: {}]
  %s6 = inlined_call_operand.vmem [shape: bf16[9,128,256], index: 6, kind: input, shape index: {}]
  %s7 = inlined_call_operand.vmem [shape: bf16[36,19], index: 7, kind: input, shape index: {}]
  %s8 = inlined_call_operand.vmem [shape: bf16[9,256,512], index: 8, kind: input, shape index: {}]
  %s9 = inlined_call_operand.vmem [shape: bf16[16,5], index: 9, kind: input, shape index: {}]
  %s10 = inlined_call_operand.vmem [shape: bf16[9,512,128], index: 10, kind: input, shape index: {}]
  %s11 = inlined_call_operand.vmem [shape: f32[1,128], index: 11, kind: input, shape index: {}]
  %s12 = inlined_call_operand.vmem [shape: f32[2,6,128], index: 12, kind: output, shape index: {}]
  %s13 = sld [smem:[#allocation0]]
  $region81: #{discriminator_forward.1} parent=0
    _
  %s15 = ssub.s32 1, %s13
  %s16 = scalar_select 0, %s15, %s13
  loop: start=0, step=1, limit=4
  $region2: #{discriminator_forward.1} parent=0 // loop_pre_header
    _
  $region3: #{discriminator_forward.1} parent=0 // loop_header
    %s18 = sphi 0, %s22
    %p19 = scmp.ge.s32.totalorder %s18, 4
    %s28 = sphi 0, %s30
    %s31 = sphi 0, %s28
    %s32 = sphi 0, %s31
    %s48 = sphi 0, %s32
    %s52 = sphi 0, %s52
    %s54 = sphi 0, %s52
    %s55 = sphi 0, %s54
    %s69 = sphi 0, %s55
    %s73 = sphi 0, %s73
    %s75 = sphi 0, %s73
    %s76 = sphi 0, %s75
    %s90 = sphi 0, %s76
    %s94 = sphi 0, %s94
    %s96 = sphi 0, %s94
    %s97 = sphi 0, %s96
    %s111 = sphi 0, %s97
    %s115 = sphi 0, %s115
    %s117 = sphi 0, %s115
    %s118 = sphi 0, %s117
    %s132 = sphi 0, %s118
    %s136 = sphi 0, %s136
    %s138 = sphi 0, %s136
    %s139 = sphi 0, %s138
    %s153 = sphi 0, %s139
    %s157 = sphi 0, %s157
    %s159 = sphi 0, %s157
    %s160 = sphi 0, %s159
    %s174 = sphi 0, %s160
    %s178 = sphi 0, %s178
    %s180 = sphi 0, %s178
    %s181 = sphi 0, %s180
    %s195 = sphi 0, %s181
    %s199 = sphi 0, %s199
    %s201 = sphi 0, %s199
    %s202 = sphi 0, %s201
    %s216 = sphi 0, %s202
    %s220 = sphi 0, %s220
    %s222 = sphi 0, %s220
    %s223 = sphi 0, %s222
    %s237 = sphi 0, %s223
    %s241 = sphi 0, %s241
    %s243 = sphi 0, %s241
    %s244 = sphi 0, %s243
    %s258 = sphi 0, %s244
    %s262 = sphi 0, %s262
    %s264 = sphi 0, %s262
    %s265 = sphi 0, %s264
    %s279 = sphi 0, %s265
    %s285 = sphi 0, %s287
    %s288 = sphi 0, %s285
    %s289 = sphi 0, %s288
    %s305 = sphi 0, %s289
  $region4: #{discriminator_forward.1} parent=0 // loop_header_branch
    %21 = sbr.rel (%p19) target = $region8
  $region5: #{discriminator_forward.1} parent=0 // loop_body
    %s23 = ssub.s32 %s18, 1
    %s24 = ssub.s32 %s18, 2
    %s25 = sadd.s32 %s18, 1
    %s26 = ssub.s32 %s18, %s25
    %p27 = scmp.eq.s32.totalorder %s26, 0
    %s29 = sadd.s32 %s28, 1
    %s30 = scalar_select %p27, %s28, %s29
    %p33 = pneg %p27
    %p34 = scmp.eq.s32.totalorder %s18, 1
    %p35 = por %p33, %p34
    %p36 = scmp.ne.s32.totalorder %s28, %s31
    %p37 = scmp.eq.s32.totalorder %s18, 0
    %p38 = por %p36, %p37
    %p39 = scmp.ne.s32.totalorder %s28, %s31
    %p40 = scmp.eq.s32.totalorder %s23, 1
    %p41 = por %p39, %p40
    %p42 = scmp.ne.s32.totalorder %s31, %s32
    %p43 = scmp.eq.s32.totalorder %s23, 0
    %p44 = por %p42, %p43
    %p45 = scmp.ne.s32.totalorder %s31, %s32
    %p46 = scmp.eq.s32.totalorder %s24, 1
    %p47 = por %p45, %p46
    %p49 = scmp.ne.s32.totalorder %s32, %s48
    %p50 = scmp.eq.s32.totalorder %s24, 0
    %p51 = por %p49, %p50
    %s53 = sadd.s32 %s52, 1
    %p56 = scmp.eq.s32.totalorder %s18, 1
    %p57 = scmp.ne.s32.totalorder %s52, %s54
    %p58 = scmp.eq.s32.totalorder %s18, 0
    %p59 = por %p57, %p58
    %p60 = scmp.ne.s32.totalorder %s52, %s54
    %p61 = scmp.eq.s32.totalorder %s23, 1
    %p62 = por %p60, %p61
    %p63 = scmp.ne.s32.totalorder %s54, %s55
    %p64 = scmp.eq.s32.totalorder %s23, 0
    %p65 = por %p63, %p64
    %p66 = scmp.ne.s32.totalorder %s54, %s55
    %p67 = scmp.eq.s32.totalorder %s24, 1
    %p68 = por %p66, %p67
    %p70 = scmp.ne.s32.totalorder %s55, %s69
    %p71 = scmp.eq.s32.totalorder %s24, 0
    %p72 = por %p70, %p71
    %s74 = sadd.s32 %s73, 1
    %p77 = scmp.eq.s32.totalorder %s18, 1
    %p78 = scmp.ne.s32.totalorder %s73, %s75
    %p79 = scmp.eq.s32.totalorder %s18, 0
    %p80 = por %p78, %p79
    %p81 = scmp.ne.s32.totalorder %s73, %s75
    %p82 = scmp.eq.s32.totalorder %s23, 1
    %p83 = por %p81, %p82
    %p84 = scmp.ne.s32.totalorder %s75, %s76
    %p85 = scmp.eq.s32.totalorder %s23, 0
    %p86 = por %p84, %p85
    %p87 = scmp.ne.s32.totalorder %s75, %s76
    %p88 = scmp.eq.s32.totalorder %s24, 1
    %p89 = por %p87, %p88
    %p91 = scmp.ne.s32.totalorder %s76, %s90
    %p92 = scmp.eq.s32.totalorder %s24, 0
    %p93 = por %p91, %p92
    %s95 = sadd.s32 %s94, 1
    %p98 = scmp.eq.s32.totalorder %s18, 1
    %p99 = scmp.ne.s32.totalorder %s94, %s96
    %p100 = scmp.eq.s32.totalorder %s18, 0
    %p101 = por %p99, %p100
    %p102 = scmp.ne.s32.totalorder %s94, %s96
    %p103 = scmp.eq.s32.totalorder %s23, 1
    %p104 = por %p102, %p103
    %p105 = scmp.ne.s32.totalorder %s96, %s97
    %p106 = scmp.eq.s32.totalorder %s23, 0
    %p107 = por %p105, %p106
    %p108 = scmp.ne.s32.totalorder %s96, %s97
    %p109 = scmp.eq.s32.totalorder %s24, 1
    %p110 = por %p108, %p109
    %p112 = scmp.ne.s32.totalorder %s97, %s111
    %p113 = scmp.eq.s32.totalorder %s24, 0
    %p114 = por %p112, %p113
    %s116 = sadd.s32 %s115, 1
    %p119 = scmp.eq.s32.totalorder %s18, 1
    %p120 = scmp.ne.s32.totalorder %s115, %s117
    %p121 = scmp.eq.s32.totalorder %s18, 0
    %p122 = por %p120, %p121
    %p123 = scmp.ne.s32.totalorder %s115, %s117
    %p124 = scmp.eq.s32.totalorder %s23, 1
    %p125 = por %p123, %p124
    %p126 = scmp.ne.s32.totalorder %s117, %s118
    %p127 = scmp.eq.s32.totalorder %s23, 0
    %p128 = por %p126, %p127
    %p129 = scmp.ne.s32.totalorder %s117, %s118
    %p130 = scmp.eq.s32.totalorder %s24, 1
    %p131 = por %p129, %p130
    %p133 = scmp.ne.s32.totalorder %s118, %s132
    %p134 = scmp.eq.s32.totalorder %s24, 0
    %p135 = por %p133, %p134
    %s137 = sadd.s32 %s136, 1
    %p140 = scmp.eq.s32.totalorder %s18, 1
    %p141 = scmp.ne.s32.totalorder %s136, %s138
    %p142 = scmp.eq.s32.totalorder %s18, 0
    %p143 = por %p141, %p142
    %p144 = scmp.ne.s32.totalorder %s136, %s138
    %p145 = scmp.eq.s32.totalorder %s23, 1
    %p146 = por %p144, %p145
    %p147 = scmp.ne.s32.totalorder %s138, %s139
    %p148 = scmp.eq.s32.totalorder %s23, 0
    %p149 = por %p147, %p148
    %p150 = scmp.ne.s32.totalorder %s138, %s139
    %p151 = scmp.eq.s32.totalorder %s24, 1
    %p152 = por %p150, %p151
    %p154 = scmp.ne.s32.totalorder %s139, %s153
    %p155 = scmp.eq.s32.totalorder %s24, 0
    %p156 = por %p154, %p155
    %s158 = sadd.s32 %s157, 1
    %p161 = scmp.eq.s32.totalorder %s18, 1
    %p162 = scmp.ne.s32.totalorder %s157, %s159
    %p163 = scmp.eq.s32.totalorder %s18, 0
    %p164 = por %p162, %p163
    %p165 = scmp.ne.s32.totalorder %s157, %s159
    %p166 = scmp.eq.s32.totalorder %s23, 1
    %p167 = por %p165, %p166
    %p168 = scmp.ne.s32.totalorder %s159, %s160
    %p169 = scmp.eq.s32.totalorder %s23, 0
    %p170 = por %p168, %p169
    %p171 = scmp.ne.s32.totalorder %s159, %s160
    %p172 = scmp.eq.s32.totalorder %s24, 1
    %p173 = por %p171, %p172
    %p175 = scmp.ne.s32.totalorder %s160, %s174
    %p176 = scmp.eq.s32.totalorder %s24, 0
    %p177 = por %p175, %p176
    %s179 = sadd.s32 %s178, 1
    %p182 = scmp.eq.s32.totalorder %s18, 1
    %p183 = scmp.ne.s32.totalorder %s178, %s180
    %p184 = scmp.eq.s32.totalorder %s18, 0
    %p185 = por %p183, %p184
    %p186 = scmp.ne.s32.totalorder %s178, %s180
    %p187 = scmp.eq.s32.totalorder %s23, 1
    %p188 = por %p186, %p187
    %p189 = scmp.ne.s32.totalorder %s180, %s181
    %p190 = scmp.eq.s32.totalorder %s23, 0
    %p191 = por %p189, %p190
    %p192 = scmp.ne.s32.totalorder %s180, %s181
    %p193 = scmp.eq.s32.totalorder %s24, 1
    %p194 = por %p192, %p193
    %p196 = scmp.ne.s32.totalorder %s181, %s195
    %p197 = scmp.eq.s32.totalorder %s24, 0
    %p198 = por %p196, %p197
    %s200 = sadd.s32 %s199, 1
    %p203 = scmp.eq.s32.totalorder %s18, 1
    %p204 = scmp.ne.s32.totalorder %s199, %s201
    %p205 = scmp.eq.s32.totalorder %s18, 0
    %p206 = por %p204, %p205
    %p207 = scmp.ne.s32.totalorder %s199, %s201
    %p208 = scmp.eq.s32.totalorder %s23, 1
    %p209 = por %p207, %p208
    %p210 = scmp.ne.s32.totalorder %s201, %s202
    %p211 = scmp.eq.s32.totalorder %s23, 0
    %p212 = por %p210, %p211
    %p213 = scmp.ne.s32.totalorder %s201, %s202
    %p214 = scmp.eq.s32.totalorder %s24, 1
    %p215 = por %p213, %p214
    %p217 = scmp.ne.s32.totalorder %s202, %s216
    %p218 = scmp.eq.s32.totalorder %s24, 0
    %p219 = por %p217, %p218
    %s221 = sadd.s32 %s220, 1
    %p224 = scmp.eq.s32.totalorder %s18, 1
    %p225 = scmp.ne.s32.totalorder %s220, %s222
    %p226 = scmp.eq.s32.totalorder %s18, 0
    %p227 = por %p225, %p226
    %p228 = scmp.ne.s32.totalorder %s220, %s222
    %p229 = scmp.eq.s32.totalorder %s23, 1
    %p230 = por %p228, %p229
    %p231 = scmp.ne.s32.totalorder %s222, %s223
    %p232 = scmp.eq.s32.totalorder %s23, 0
    %p233 = por %p231, %p232
    %p234 = scmp.ne.s32.totalorder %s222, %s223
    %p235 = scmp.eq.s32.totalorder %s24, 1
    %p236 = por %p234, %p235
    %p238 = scmp.ne.s32.totalorder %s223, %s237
    %p239 = scmp.eq.s32.totalorder %s24, 0
    %p240 = por %p238, %p239
    %s242 = sadd.s32 %s241, 1
    %p245 = scmp.eq.s32.totalorder %s18, 1
    %p246 = scmp.ne.s32.totalorder %s241, %s243
    %p247 = scmp.eq.s32.totalorder %s18, 0
    %p248 = por %p246, %p247
    %p249 = scmp.ne.s32.totalorder %s241, %s243
    %p250 = scmp.eq.s32.totalorder %s23, 1
    %p251 = por %p249, %p250
    %p252 = scmp.ne.s32.totalorder %s243, %s244
    %p253 = scmp.eq.s32.totalorder %s23, 0
    %p254 = por %p252, %p253
    %p255 = scmp.ne.s32.totalorder %s243, %s244
    %p256 = scmp.eq.s32.totalorder %s24, 1
    %p257 = por %p255, %p256
    %p259 = scmp.ne.s32.totalorder %s244, %s258
    %p260 = scmp.eq.s32.totalorder %s24, 0
    %p261 = por %p259, %p260
    %s263 = sadd.s32 %s262, 1
    %p266 = scmp.eq.s32.totalorder %s18, 1
    %p267 = scmp.ne.s32.totalorder %s262, %s264
    %p268 = scmp.eq.s32.totalorder %s18, 0
    %p269 = por %p267, %p268
    %p270 = scmp.ne.s32.totalorder %s262, %s264
    %p271 = scmp.eq.s32.totalorder %s23, 1
    %p272 = por %p270, %p271
    %p273 = scmp.ne.s32.totalorder %s264, %s265
    %p274 = scmp.eq.s32.totalorder %s23, 0
    %p275 = por %p273, %p274
    %p276 = scmp.ne.s32.totalorder %s264, %s265
    %p277 = scmp.eq.s32.totalorder %s24, 1
    %p278 = por %p276, %p277
    %p280 = scmp.ne.s32.totalorder %s265, %s279
    %p281 = scmp.eq.s32.totalorder %s24, 0
    %p282 = por %p280, %p281
    %s283 = ssub.s32 %s18, %s25
    %p284 = scmp.eq.s32.totalorder %s283, 0
    %s286 = sadd.s32 %s285, 1
    %s287 = scalar_select %p284, %s285, %s286
    %p290 = pneg %p284
    %p291 = scmp.eq.s32.totalorder %s18, 1
    %p292 = por %p290, %p291
    %p293 = scmp.ne.s32.totalorder %s285, %s288
    %p294 = scmp.eq.s32.totalorder %s18, 0
    %p295 = por %p293, %p294
    %p296 = scmp.ne.s32.totalorder %s285, %s288
    %p297 = scmp.eq.s32.totalorder %s23, 1
    %p298 = por %p296, %p297
    %p299 = scmp.ne.s32.totalorder %s288, %s289
    %p300 = scmp.eq.s32.totalorder %s23, 0
    %p301 = por %p299, %p300
    %p302 = scmp.ne.s32.totalorder %s288, %s289
    %p303 = scmp.eq.s32.totalorder %s24, 1
    %p304 = por %p302, %p303
    %p306 = scmp.ne.s32.totalorder %s289, %s305
    %p307 = scmp.eq.s32.totalorder %s24, 0
    %p308 = por %p306, %p307
    %p309 = scmp.le.s32.totalorder 1, %s18
    %p310 = scmp.lt.s32.totalorder %s18, 3
    %p311 = pnand %p309, %p310
    %p312 = pneg %p311
    // Predicated region
    $region9: #{discriminator_forward.1} parent=5 // pred_check
      _
    $region10: #{discriminator_forward.1} parent=5 // pred_check_branch
      %314 = sbr.rel (%p311) target = $region12
    $region11: #{discriminator_forward.1} parent=5 // pred_region
      %s315 = ssub.s32 %s18, 1
      // Predicated region
      $region13: #{discriminator_forward.1} parent=11 // pred_check
        %p316 = pneg %p65
      $region14: #{discriminator_forward.1} parent=11 // pred_check_branch
        %318 = sbr.rel (%p316) target = $region16
      $region15: #{discriminator_forward.1} parent=11 // pred_region
        _
      $region16: #{discriminator_forward.1} parent=11 // pred_fallthru
        _
      // Predicated region
      $region17: #{discriminator_forward.1} parent=11 // pred_check
        %p319 = pneg %p86
      $region18: #{discriminator_forward.1} parent=11 // pred_check_branch
        %321 = sbr.rel (%p319) target = $region20
      $region19: #{discriminator_forward.1} parent=11 // pred_region
        _
      $region20: #{discriminator_forward.1} parent=11 // pred_fallthru
        _
      // Predicated region
      $region21: #{discriminator_forward.1} parent=11 // pred_check
        %p322 = pneg %p107
      $region22: #{discriminator_forward.1} parent=11 // pred_check_branch
        %324 = sbr.rel (%p322) target = $region24
      $region23: #{discriminator_forward.1} parent=11 // pred_region
        _
      $region24: #{discriminator_forward.1} parent=11 // pred_fallthru
        _
      // Predicated region
      $region25: #{discriminator_forward.1} parent=11 // pred_check
        %p325 = pneg %p128
      $region26: #{discriminator_forward.1} parent=11 // pred_check_branch
        %327 = sbr.rel (%p325) target = $region28
      $region27: #{discriminator_forward.1} parent=11 // pred_region
        _
      $region28: #{discriminator_forward.1} parent=11 // pred_fallthru
        _
      // Predicated region
      $region29: #{discriminator_forward.1} parent=11 // pred_check
        %p328 = pneg %p149
      $region30: #{discriminator_forward.1} parent=11 // pred_check_branch
        %330 = sbr.rel (%p328) target = $region32
      $region31: #{discriminator_forward.1} parent=11 // pred_region
        _
      $region32: #{discriminator_forward.1} parent=11 // pred_fallthru
        _
      // Predicated region
      $region33: #{discriminator_forward.1} parent=11 // pred_check
        %p331 = pneg %p170
      $region34: #{discriminator_forward.1} parent=11 // pred_check_branch
        %333 = sbr.rel (%p331) target = $region36
      $region35: #{discriminator_forward.1} parent=11 // pred_region
        _
      $region36: #{discriminator_forward.1} parent=11 // pred_fallthru
        _
      // Predicated region
      $region37: #{discriminator_forward.1} parent=11 // pred_check
        %p334 = pneg %p191
      $region38: #{discriminator_forward.1} parent=11 // pred_check_branch
        %336 = sbr.rel (%p334) target = $region40
      $region39: #{discriminator_forward.1} parent=11 // pred_region
        _
      $region40: #{discriminator_forward.1} parent=11 // pred_fallthru
        _
      // Predicated region
      $region41: #{discriminator_forward.1} parent=11 // pred_check
        %p337 = pneg %p212
      $region42: #{discriminator_forward.1} parent=11 // pred_check_branch
        %339 = sbr.rel (%p337) target = $region44
      $region43: #{discriminator_forward.1} parent=11 // pred_region
        _
      $region44: #{discriminator_forward.1} parent=11 // pred_fallthru
        _
      // Predicated region
      $region45: #{discriminator_forward.1} parent=11 // pred_check
        %p340 = pneg %p233
      $region46: #{discriminator_forward.1} parent=11 // pred_check_branch
        %342 = sbr.rel (%p340) target = $region48
      $region47: #{discriminator_forward.1} parent=11 // pred_region
        _
      $region48: #{discriminator_forward.1} parent=11 // pred_fallthru
        _
      // Predicated region
      $region49: #{discriminator_forward.1} parent=11 // pred_check
        %p343 = pneg %p254
      $region50: #{discriminator_forward.1} parent=11 // pred_check_branch
        %345 = sbr.rel (%p343) target = $region52
      $region51: #{discriminator_forward.1} parent=11 // pred_region
        _
      $region52: #{discriminator_forward.1} parent=11 // pred_fallthru
        _
      // Predicated region
      $region53: #{discriminator_forward.1} parent=11 // pred_check
        %p346 = pneg %p275
      $region54: #{discriminator_forward.1} parent=11 // pred_check_branch
        %348 = sbr.rel (%p346) target = $region56
      $region55: #{discriminator_forward.1} parent=11 // pred_region
        _
      $region56: #{discriminator_forward.1} parent=11 // pred_fallthru
        _
    $region12: #{discriminator_forward.1} parent=5 // pred_fallthru
      _
    %p349 = scmp.lt.s32.totalorder %s18, 2
    // Predicated region
    $region57: #{discriminator_forward.1} parent=5 // pred_check
      %p350 = pneg %p349
    $region58: #{discriminator_forward.1} parent=5 // pred_check_branch
      %352 = sbr.rel (%p350) target = $region60
    $region59: #{discriminator_forward.1} parent=5 // pred_region
      // Predicated region
      $region61: #{discriminator_forward.1} parent=59 // pred_check
        %p353 = pneg %p38
      $region62: #{discriminator_forward.1} parent=59 // pred_check_branch
        %355 = sbr.rel (%p353) target = $region64
      $region63: #{discriminator_forward.1} parent=59 // pred_region
        %p356 = scmp.lt.s32.totalorder %s18, 1
        %s357 = scalar_select %p356, %s18, 1
        %s358 = smul.addr %s357, 32
        %s359 = smul.addr %s358, 4
        %s360 = scalar_lea.vmem %s0, %s359
      $region64: #{discriminator_forward.1} parent=59 // pred_fallthru
        _
    $region60: #{discriminator_forward.1} parent=5 // pred_fallthru
      _
    %p361 = scmp.le.s32.totalorder 1, %s18
    %p362 = scmp.lt.s32.totalorder %s18, 3
    %p363 = pnand %p361, %p362
    %p364 = pneg %p363
    // Predicated region
    $region65: #{discriminator_forward.1} parent=5 // pred_check
      _
    $region66: #{discriminator_forward.1} parent=5 // pred_check_branch
      %366 = sbr.rel (%p363) target = $region68
    $region67: #{discriminator_forward.1} parent=5 // pred_region
      %s367 = ssub.s32 %s18, 1
      %p368 = scmp.lt.s32.totalorder %s23, 1
      %s369 = scalar_select %p368, %s23, 1
      %s370 = smul.addr %s369, 32
      %s371 = smul.addr %s370, 4
      %s372 = scalar_lea.vmem %s0, %s371
      %p373 = pneg %p44
      %p374 = pneg %p41
      %p375 = pneg %p65
      %p376 = pneg %p62
      %p377 = pneg %p86
      %p378 = pneg %p83
      %p379 = pneg %p107
      %p380 = pneg %p104
      %p381 = pneg %p128
      %p382 = pneg %p125
      %p383 = pneg %p149
      %p384 = pneg %p146
      %p385 = pneg %p170
      %p386 = pneg %p167
      %p387 = pneg %p191
      %p388 = pneg %p188
      %p389 = pneg %p212
      %p390 = pneg %p209
      %p391 = pneg %p233
      %p392 = pneg %p230
      %p393 = pneg %p254
      %p394 = pneg %p251
      %p395 = pneg %p275
      %p396 = pneg %p272
      %p397 = pneg %p301
      %p398 = pneg %p298
      %p399 = scmp.lt.s32.totalorder %s23, 1
      %s400 = scalar_select %p399, %s23, 1
      %s401 = smul.addr %s400, 8
      %s402 = scalar_lea.vmem %s12, %s401
      %p403 = scmp.lt.s32.totalorder %s23, 1
      %s404 = scalar_select %p403, %s23, 1
      %s405 = smul.addr %s404, 32
      %s406 = smul.addr %s405, 4
      %s407 = scalar_lea.vmem %s0, %s406
      %p408 = scmp.lt.s32.totalorder %s23, 1
      %s409 = scalar_select %p408, %s23, 1
      %s410 = smul.addr %s409, 8
      %s411 = scalar_lea.vmem %s12, %s410
      %v413 = vld [vmem:[%s407] sm:$0xf]
      %v414 = vld [vmem:[%s407 + $0x4] sm:$0xf]
      %v415 = vld [vmem:[%s407 + $0x8] sm:$0xf]
      %v416 = vld [vmem:[%s407 + $0xc] sm:$0xf]
      %v417 = vld [vmem:[%s407 + $0x10] sm:$0xf]
      %v418 = vld [vmem:[%s407 + $0x14] sm:$0xf]
      %v419 = vld [vmem:[%s407 + $0x18] sm:$0xf]
      %v420 = vld [vmem:[%s407 + $0x1c] sm:$0xf]
      %v421 = vld [vmem:[%s407 + $0x20] sm:$0xf]
      %v422 = vld [vmem:[%s407 + $0x24] sm:$0xf]
      %v423 = vld [vmem:[%s407 + $0x28] sm:$0xf]
      %v424 = vld [vmem:[%s407 + $0x2c] sm:$0xf]
      %v425 = vld [vmem:[%s407 + $0x30] sm:$0xf]
      %v426 = vld [vmem:[%s407 + $0x34] sm:$0xf]
      %v427 = vld [vmem:[%s407 + $0x38] sm:$0xf]
      %v428 = vld [vmem:[%s407 + $0x3c] sm:$0xf]
      %v429 = vld [vmem:[%s407 + $0x40] sm:$0xf]
      %v430 = vld [vmem:[%s407 + $0x44] sm:$0xf]
      %v431 = vld [vmem:[%s407 + $0x48] sm:$0xf]
      %v432 = vld [vmem:[%s407 + $0x4c] sm:$0xf]
      %v433 = vld [vmem:[%s407 + $0x50] sm:$0xf]
      %v434 = vld [vmem:[%s407 + $0x54] sm:$0xf]
      %v435 = vld [vmem:[%s407 + $0x58] sm:$0xf]
      %v436 = vld [vmem:[%s407 + $0x5c] sm:$0xf]
      %v437 = vld [vmem:[%s407 + $0x60] sm:$0xf]
      %v438 = vld [vmem:[%s407 + $0x64] sm:$0xf]
      %v439 = vld [vmem:[%s407 + $0x68] sm:$0xf]
      %v440 = vld [vmem:[%s407 + $0x6c] sm:$0xf]
      %v441 = vld [vmem:[%s407 + $0x70] sm:$0xf]
      %v442 = vld [vmem:[%s407 + $0x74] sm:$0xf]
      %v443 = vld [vmem:[%s407 + $0x78] sm:$0xf]
      %v444 = vld [vmem:[%s407 + $0x7c] sm:$0xf]
      %v445 = vld [vmem:[%s1] sm:$0xf]
      %v446 = vld [vmem:[%s1 + $0x4] sm:$0xf]
      %v447 = vld [vmem:[%s1 + $0x8] sm:$0xf]
      %v448 = vld [vmem:[%s1 + $0xc] sm:$0xf]
      %v449 = vld [vmem:[%s1 + $0x10] sm:$0xf]
      %v450 = vld [vmem:[%s1 + $0x14] sm:$0xf]
      %v451 = vld [vmem:[%s1 + $0x18] sm:$0xf]
      %v452 = vld [vmem:[%s1 + $0x1c] sm:$0xf]
      %v453 = vld [vmem:[%s1 + $0x20] sm:$0xf]
      %v454 = vld [vmem:[%s2] sm:$0x1]
      %v456 = vlaneseq
      %v457 = vshrl.u32 %v456, 7
      %v458 = vsub.s32 0, %v457
      %v459 = vrot.slane %v454, %v458
      %v493 = vunpack.c.l.b16 %v413
      %v494 = vunpack.c.l.b16 %v414
      %v495 = vunpack.c.l.b16 %v415
      %v496 = vunpack.c.l.b16 %v416
      %v497 = vunpack.c.l.b16 %v417
      %v498 = vunpack.c.l.b16 %v418
      %v499 = vunpack.c.l.b16 %v419
      %v500 = vunpack.c.l.b16 %v420
      %v501 = vunpack.c.l.b16 %v421
      %v502 = vunpack.c.l.b16 %v422
      %v503 = vunpack.c.l.b16 %v423
      %v504 = vunpack.c.l.b16 %v424
      %v505 = vunpack.c.l.b16 %v425
      %v506 = vunpack.c.l.b16 %v426
      %v507 = vunpack.c.l.b16 %v427
      %v508 = vunpack.c.l.b16 %v428
      %v509 = vunpack.c.l.b16 %v429
      %v510 = vunpack.c.l.b16 %v430
      %v511 = vunpack.c.l.b16 %v431
      %v512 = vunpack.c.l.b16 %v432
      %v513 = vunpack.c.l.b16 %v433
      %v514 = vunpack.c.l.b16 %v434
      %v515 = vunpack.c.l.b16 %v435
      %v516 = vunpack.c.l.b16 %v436
      %v517 = vunpack.c.l.b16 %v437
      %v518 = vunpack.c.l.b16 %v438
      %v519 = vunpack.c.l.b16 %v439
      %v520 = vunpack.c.l.b16 %v440
      %v521 = vunpack.c.l.b16 %v441
      %v522 = vunpack.c.l.b16 %v442
      %v523 = vunpack.c.l.b16 %v443
      %v524 = vunpack.c.l.b16 %v444
      %v525 = vpack.c.b16 %v494, %v493
      %v526 = vpack.c.b16 %v496, %v495
      %v527 = vpack.c.b16 %v498, %v497
      %v528 = vpack.c.b16 %v500, %v499
      %v529 = vpack.c.b16 %v502, %v501
      %v530 = vpack.c.b16 %v504, %v503
      %v531 = vpack.c.b16 %v506, %v505
      %v532 = vpack.c.b16 %v508, %v507
      %v533 = vpack.c.b16 %v510, %v509
      %v534 = vpack.c.b16 %v512, %v511
      %v535 = vpack.c.b16 %v514, %v513
      %v536 = vpack.c.b16 %v516, %v515
      %v537 = vpack.c.b16 %v518, %v517
      %v538 = vpack.c.b16 %v520, %v519
      %v539 = vpack.c.b16 %v522, %v521
      %v540 = vpack.c.b16 %v524, %v523
      %v550 = vunpack.c.l.b16 %v445
      %v551 = vunpack.c.l.b16 %v446
      %v552 = vunpack.c.l.b16 %v447
      %v553 = vunpack.c.l.b16 %v448
      %v554 = vunpack.c.l.b16 %v449
      %v555 = vunpack.c.l.b16 %v450
      %v556 = vunpack.c.l.b16 %v451
      %v557 = vunpack.c.l.b16 %v452
      %v558 = vunpack.c.l.b16 %v453
      %v559 = vpack.c.b16 %v551, %v550
      %v560 = vpack.c.b16 %v553, %v552
      %v561 = vpack.c.b16 %v555, %v554
      %v562 = vpack.c.b16 %v557, %v556
      %v563 = vpack.c.b16 %v558, %v558
      %vm568 = vcmask 588800
      %v570 = vsel %vm568, %v525, 0
      %v573 = vsel %vm568, %v526, 0
      %v576 = vsel %vm568, %v527, 0
      %v579 = vsel %vm568, %v528, 0
      %v582 = vsel %vm568, %v529, 0
      %v585 = vsel %vm568, %v530, 0
      %v588 = vsel %vm568, %v531, 0
      %v591 = vsel %vm568, %v532, 0
      %v594 = vsel %vm568, %v533, 0
      %v597 = vsel %vm568, %v534, 0
      %v600 = vsel %vm568, %v535, 0
      %v603 = vsel %vm568, %v536, 0
      %v606 = vsel %vm568, %v537, 0
      %v609 = vsel %vm568, %v538, 0
      %v612 = vsel %vm568, %v539, 0
      %v615 = vsel %vm568, %v540, 0
      %vm617 = vcmask 1043456
      %v619 = vsel %vm617, %v563, 0
      %621 = vmatprep.subr.bf16.mxu0 0
      %622 = vmatpush1.bf16.msra.mxu0 %v559
      %623 = vmatprep.subr.bf16.mxu0 0
      %624 = vmatpush1.bf16.msra.mxu0 %v560
      %625 = vmatprep.subr.bf16.mxu0 0
      %626 = vmatpush1.bf16.msra.mxu0 %v561
      %627 = vmatprep.subr.bf16.mxu0 0
      %628 = vmatpush1.bf16.msra.mxu0 %v562
      %629 = vmatprep.subr.bf16.mxu0 0
      %630 = vmatpush1.bf16.msra.mxu0 %v619
      %631 = vmatprep.subr.bf16.mxu0 0
      %632 = vmatpush1.bf16.msra.mxu0 0
      %633 = vmatprep.subr.bf16.mxu0 0
      %634 = vmatpush1.bf16.msra.mxu0 0
      %635 = vmatprep.subr.bf16.mxu0 0
      %636 = vmatpush1.bf16.msra.mxu0 0
      %637 = vmatprep.subr.bf16.mxu0 0
      %638 = vmatpush1.bf16.msra.mxu0 0
      %639 = vmatprep.subr.bf16.mxu0 0
      %640 = vmatpush1.bf16.msra.mxu0 0
      %641 = vmatprep.subr.bf16.mxu0 0
      %642 = vmatpush1.bf16.msra.mxu0 0
      %643 = vmatprep.subr.bf16.mxu0 0
      %644 = vmatpush1.bf16.msra.mxu0 0
      %645 = vmatprep.subr.bf16.mxu0 0
      %646 = vmatpush1.bf16.msra.mxu0 0
      %647 = vmatprep.subr.bf16.mxu0 0
      %648 = vmatpush1.bf16.msra.mxu0 0
      %649 = vmatprep.subr.bf16.mxu0 0
      %650 = vmatpush1.bf16.msra.mxu0 0
      %651 = vmatprep.subr.bf16.mxu0 0
      %652 = vmatpush1.bf16.msra.mxu0 0
      %653 = vmatprep.mubr.bf16.mxu0 0
      %654 = vmatmul.mubr.bf16.gmra.mrb[0].mxu0 %v570
      %v655 = vpop.f32.mrb[0].mxu0
      %v656 = vadd.f32 %v459, %v655
      %v657 = vpop.f32.mrb[0].mxu0
      %v658 = vpop.f32.mrb[0].mxu0
      %v659 = vadd.f32 %v459, %v658
      %v660 = vpop.f32.mrb[0].mxu0
      %661 = vmatprep.mubr.bf16.mxu0 0
      %662 = vmatmul.mubr.bf16.gmra.mrb[0].mxu0 %v573
      %v663 = vpop.f32.mrb[0].mxu0
      %v664 = vadd.f32 %v459, %v663
      %v665 = vpop.f32.mrb[0].mxu0
      %v666 = vpop.f32.mrb[0].mxu0
      %v667 = vadd.f32 %v459, %v666
      %v668 = vpop.f32.mrb[0].mxu0
      %669 = vmatprep.mubr.bf16.mxu0 0
      %670 = vmatmul.mubr.bf16.gmra.mrb[0].mxu0 %v576
      %v671 = vpop.f32.mrb[0].mxu0
      %v672 = vadd.f32 %v459, %v671
      %v673 = vpop.f32.mrb[0].mxu0
      %v674 = vpop.f32.mrb[0].mxu0
      %v675 = vadd.f32 %v459, %v674
      %v676 = vpop.f32.mrb[0].mxu0
      %677 = vmatprep.mubr.bf16.mxu0 0
      %678 = vmatmul.mubr.bf16.gmra.mrb[0].mxu0 %v579
      %v679 = vpop.f32.mrb[0].mxu0
      %v680 = vadd.f32 %v459, %v679
      %v681 = vpop.f32.mrb[0].mxu0
      %v682 = vpop.f32.mrb[0].mxu0
      %v683 = vadd.f32 %v459, %v682
      %v684 = vpop.f32.mrb[0].mxu0
      %685 = vmatprep.mubr.bf16.mxu0 0
      %686 = vmatmul.mubr.bf16.gmra.mrb[0].mxu0 %v582
      %v687 = vpop.f32.mrb[0].mxu0
      %v688 = vadd.f32 %v459, %v687
      %v689 = vpop.f32.mrb[0].mxu0
      %v690 = vpop.f32.mrb[0].mxu0
      %v691 = vadd.f32 %v459, %v690
      %v692 = vpop.f32.mrb[0].mxu0
      %693 = vmatprep.mubr.bf16.mxu0 0
      %694 = vmatmul.mubr.bf16.gmra.mrb[0].mxu0 %v585
      %v695 = vpop.f32.mrb[0].mxu0
      %v696 = vadd.f32 %v459, %v695
      %v697 = vpop.f32.mrb[0].mxu0
      %v698 = vpop.f32.mrb[0].mxu0
      %v699 = vadd.f32 %v459, %v698
      %v700 = vpop.f32.mrb[0].mxu0
      %701 = vmatprep.mubr.bf16.mxu0 0
      %702 = vmatmul.mubr.bf16.gmra.mrb[0].mxu0 %v588
      %v703 = vpop.f32.mrb[0].mxu0
      %v704 = vadd.f32 %v459, %v703
      %v705 = vpop.f32.mrb[0].mxu0
      %v706 = vpop.f32.mrb[0].mxu0
      %v707 = vadd.f32 %v459, %v706
      %v708 = vpop.f32.mrb[0].mxu0
      %709 = vmatprep.mubr.bf16.mxu0 0
      %710 = vmatmul.mubr.bf16.gmra.mrb[0].mxu0 %v591
      %v711 = vpop.f32.mrb[0].mxu0
      %v712 = vadd.f32 %v459, %v711
      %v713 = vpop.f32.mrb[0].mxu0
      %v714 = vpop.f32.mrb[0].mxu0
      %v715 = vadd.f32 %v459, %v714
      %v716 = vpop.f32.mrb[0].mxu0
      %717 = vmatprep.mubr.bf16.mxu0 0
      %718 = vmatmul.mubr.bf16.gmra.mrb[0].mxu0 %v594
      %v719 = vpop.f32.mrb[0].mxu0
      %v720 = vadd.f32 %v459, %v719
      %v721 = vpop.f32.mrb[0].mxu0
      %v722 = vpop.f32.mrb[0].mxu0
      %v723 = vadd.f32 %v459, %v722
      %v724 = vpop.f32.mrb[0].mxu0
      %725 = vmatprep.mubr.bf16.mxu0 0
      %726 = vmatmul.mubr.bf16.gmra.mrb[0].mxu0 %v597
      %v727 = vpop.f32.mrb[0].mxu0
      %v728 = vadd.f32 %v459, %v727
      %v729 = vpop.f32.mrb[0].mxu0
      %v730 = vpop.f32.mrb[0].mxu0
      %v731 = vadd.f32 %v459, %v730
      %v732 = vpop.f32.mrb[0].mxu0
      %733 = vmatprep.mubr.bf16.mxu0 0
      %734 = vmatmul.mubr.bf16.gmra.mrb[0].mxu0 %v600
      %v735 = vpop.f32.mrb[0].mxu0
      %v736 = vadd.f32 %v459, %v735
      %v737 = vpop.f32.mrb[0].mxu0
      %v738 = vpop.f32.mrb[0].mxu0
      %v739 = vadd.f32 %v459, %v738
      %v740 = vpop.f32.mrb[0].mxu0
      %741 = vmatprep.mubr.bf16.mxu0 0
      %742 = vmatmul.mubr.bf16.gmra.mrb[0].mxu0 %v603
      %v743 = vpop.f32.mrb[0].mxu0
      %v744 = vadd.f32 %v459, %v743
      %v745 = vpop.f32.mrb[0].mxu0
      %v746 = vpop.f32.mrb[0].mxu0
      %v747 = vadd.f32 %v459, %v746
      %v748 = vpop.f32.mrb[0].mxu0
      %749 = vmatprep.mubr.bf16.mxu0 0
      %750 = vmatmul.mubr.bf16.gmra.mrb[0].mxu0 %v606
      %v751 = vpop.f32.mrb[0].mxu0
      %v752 = vadd.f32 %v459, %v751
      %v753 = vpop.f32.mrb[0].mxu0
      %v754 = vpop.f32.mrb[0].mxu0
      %v755 = vadd.f32 %v459, %v754
      %v756 = vpop.f32.mrb[0].mxu0
      %757 = vmatprep.mubr.bf16.mxu0 0
      %758 = vmatmul.mubr.bf16.gmra.mrb[0].mxu0 %v609
      %v759 = vpop.f32.mrb[0].mxu0
      %v760 = vadd.f32 %v459, %v759
      %v761 = vpop.f32.mrb[0].mxu0
      %v762 = vpop.f32.mrb[0].mxu0
      %v763 = vadd.f32 %v459, %v762
      %v764 = vpop.f32.mrb[0].mxu0
      %765 = vmatprep.mubr.bf16.mxu0 0
      %766 = vmatmul.mubr.bf16.gmra.mrb[0].mxu0 %v612
      %v767 = vpop.f32.mrb[0].mxu0
      %v768 = vadd.f32 %v459, %v767
      %v769 = vpop.f32.mrb[0].mxu0
      %v770 = vpop.f32.mrb[0].mxu0
      %v771 = vadd.f32 %v459, %v770
      %v772 = vpop.f32.mrb[0].mxu0
      %773 = vmatprep.mubr.bf16.mxu0 0
      %774 = vmatmul.mubr.bf16.gmra.mrb[0].mxu0 %v615
      %v775 = vpop.f32.mrb[0].mxu0
      %v776 = vadd.f32 %v459, %v775
      %v777 = vpop.f32.mrb[0].mxu0
      %v778 = vpop.f32.mrb[0].mxu0
      %v779 = vadd.f32 %v459, %v778
      %v780 = vpop.f32.mrb[0].mxu0
      %781 = vdwg.mxu0
      %vm782 = vcmp.gt.f32.partialorder %v656, 0.0
      %vm783 = vcmp.gt.f32.partialorder %v659, 0.0
      %vm784 = vcmp.gt.f32.partialorder %v664, 0.0
      %vm785 = vcmp.gt.f32.partialorder %v667, 0.0
      %vm786 = vcmp.gt.f32.partialorder %v672, 0.0
      %vm787 = vcmp.gt.f32.partialorder %v675, 0.0
      %vm788 = vcmp.gt.f32.partialorder %v680, 0.0
      %vm789 = vcmp.gt.f32.partialorder %v683, 0.0
      %vm790 = vcmp.gt.f32.partialorder %v688, 0.0
      %vm791 = vcmp.gt.f32.partialorder %v691, 0.0
      %vm792 = vcmp.gt.f32.partialorder %v696, 0.0
      %vm793 = vcmp.gt.f32.partialorder %v699, 0.0
      %vm794 = vcmp.gt.f32.partialorder %v704, 0.0
      %vm795 = vcmp.gt.f32.partialorder %v707, 0.0
      %vm796 = vcmp.gt.f32.partialorder %v712, 0.0
      %vm797 = vcmp.gt.f32.partialorder %v715, 0.0
      %vm798 = vcmp.gt.f32.partialorder %v720, 0.0
      %vm799 = vcmp.gt.f32.partialorder %v723, 0.0
      %vm800 = vcmp.gt.f32.partialorder %v728, 0.0
      %vm801 = vcmp.gt.f32.partialorder %v731, 0.0
      %vm802 = vcmp.gt.f32.partialorder %v736, 0.0
      %vm803 = vcmp.gt.f32.partialorder %v739, 0.0
      %vm804 = vcmp.gt.f32.partialorder %v744, 0.0
      %vm805 = vcmp.gt.f32.partialorder %v747, 0.0
      %vm806 = vcmp.gt.f32.partialorder %v752, 0.0
      %vm807 = vcmp.gt.f32.partialorder %v755, 0.0
      %vm808 = vcmp.gt.f32.partialorder %v760, 0.0
      %vm809 = vcmp.gt.f32.partialorder %v763, 0.0
      %vm810 = vcmp.gt.f32.partialorder %v768, 0.0
      %vm811 = vcmp.gt.f32.partialorder %v771, 0.0
      %vm812 = vcmp.gt.f32.partialorder %v776, 0.0
      %vm813 = vcmp.gt.f32.partialorder %v779, 0.0
      %v814 = vmul.f32 %v656, 0.2
      %v815 = vmul.f32 %v659, 0.2
      %v816 = vmul.f32 %v664, 0.2
      %v817 = vmul.f32 %v667, 0.2
      %v818 = vmul.f32 %v672, 0.2
      %v819 = vmul.f32 %v675, 0.2
      %v820 = vmul.f32 %v680, 0.2
      %v821 = vmul.f32 %v683, 0.2
      %v822 = vmul.f32 %v688, 0.2
      %v823 = vmul.f32 %v691, 0.2
      %v824 = vmul.f32 %v696, 0.2
      %v825 = vmul.f32 %v699, 0.2
      %v826 = vmul.f32 %v704, 0.2
      %v827 = vmul.f32 %v707, 0.2
      %v828 = vmul.f32 %v712, 0.2
      %v829 = vmul.f32 %v715, 0.2
      %v830 = vmul.f32 %v720, 0.2
      %v831 = vmul.f32 %v723, 0.2
      %v832 = vmul.f32 %v728, 0.2
      %v833 = vmul.f32 %v731, 0.2
      %v834 = vmul.f32 %v736, 0.2
      %v835 = vmul.f32 %v739, 0.2
      %v836 = vmul.f32 %v744, 0.2
      %v837 = vmul.f32 %v747, 0.2
      %v838 = vmul.f32 %v752, 0.2
      %v839 = vmul.f32 %v755, 0.2
      %v840 = vmul.f32 %v760, 0.2
      %v841 = vmul.f32 %v763, 0.2
      %v842 = vmul.f32 %v768, 0.2
      %v843 = vmul.f32 %v771, 0.2
      %v844 = vmul.f32 %v776, 0.2
      %v845 = vmul.f32 %v779, 0.2
      %v846 = vsel %vm782, %v656, %v814
      %v847 = vsel %vm783, %v659, %v815
      %v848 = vsel %vm784, %v664, %v816
      %v849 = vsel %vm785, %v667, %v817
      %v850 = vsel %vm786, %v672, %v818
      %v851 = vsel %vm787, %v675, %v819
      %v852 = vsel %vm788, %v680, %v820
      %v853 = vsel %vm789, %v683, %v821
      %v854 = vsel %vm790, %v688, %v822
      %v855 = vsel %vm791, %v691, %v823
      %v856 = vsel %vm792, %v696, %v824
      %v857 = vsel %vm793, %v699, %v825
      %v858 = vsel %vm794, %v704, %v826
      %v859 = vsel %vm795, %v707, %v827
      %v860 = vsel %vm796, %v712, %v828
      %v861 = vsel %vm797, %v715, %v829
      %v862 = vsel %vm798, %v720, %v830
      %v863 = vsel %vm799, %v723, %v831
      %v864 = vsel %vm800, %v728, %v832
      %v865 = vsel %vm801, %v731, %v833
      %v866 = vsel %vm802, %v736, %v834
      %v867 = vsel %vm803, %v739, %v835
      %v868 = vsel %vm804, %v744, %v836
      %v869 = vsel %vm805, %v747, %v837
      %v870 = vsel %vm806, %v752, %v838
      %v871 = vsel %vm807, %v755, %v839
      %v872 = vsel %vm808, %v760, %v840
      %v873 = vsel %vm809, %v763, %v841
      %v874 = vsel %vm810, %v768, %v842
      %v875 = vsel %vm811, %v771, %v843
      %v876 = vsel %vm812, %v776, %v844
      %v877 = vsel %vm813, %v779, %v845
      %v878 = vpack.c.bf16 %v847, %v846
      %v879 = vpack.c.bf16 %v849, %v848
      %v880 = vpack.c.bf16 %v851, %v850
      %v881 = vpack.c.bf16 %v853, %v852
      %v882 = vpack.c.bf16 %v855, %v854
      %v883 = vpack.c.bf16 %v857, %v856
      %v884 = vpack.c.bf16 %v859, %v858
      %v885 = vpack.c.bf16 %v861, %v860
      %v886 = vpack.c.bf16 %v863, %v862
      %v887 = vpack.c.bf16 %v865, %v864
      %v888 = vpack.c.bf16 %v867, %v866
      %v889 = vpack.c.bf16 %v869, %v868
      %v890 = vpack.c.bf16 %v871, %v870
      %v891 = vpack.c.bf16 %v873, %v872
      %v892 = vpack.c.bf16 %v875, %v874
      %v893 = vpack.c.bf16 %v877, %v876
      %v894 = vld [vmem:[%s3] sm:$0xff]
      %v895 = vld [vmem:[%s3 + $0x8] sm:$0xff]
      %v896 = vld [vmem:[%s3 + $0x10] sm:$0xff]
      %v897 = vld [vmem:[%s3 + $0x18] sm:$0xff]
      %v898 = vld [vmem:[%s3 + $0x20] sm:$0xff]
      %v899 = vld [vmem:[%s3 + $0x28] sm:$0xff]
      %v900 = vld [vmem:[%s3 + $0x30] sm:$0xff]
      %v901 = vld [vmem:[%s3 + $0x38] sm:$0xff]
      %v902 = vld [vmem:[%s3 + $0x40] sm:$0xff]
      %v903 = vld [vmem:[%s3 + $0x48] sm:$0xff]
      %v904 = vld [vmem:[%s3 + $0x50] sm:$0xff]
      %v905 = vld [vmem:[%s3 + $0x58] sm:$0xff]
      %v906 = vld [vmem:[%s3 + $0x60] sm:$0xff]
      %v907 = vld [vmem:[%s3 + $0x68] sm:$0xff]
      %v908 = vld [vmem:[%s3 + $0x70] sm:$0xff]
      %v909 = vld [vmem:[%s3 + $0x78] sm:$0xff]
      %v910 = vld [vmem:[%s3 + $0x80] sm:$0xff]
      %v911 = vld [vmem:[%s3 + $0x88] sm:$0xff]
      %v912 = vld [vmem:[%s3 + $0x90] sm:$0xff]
      %v913 = vld [vmem:[%s3 + $0x98] sm:$0xff]
      %v914 = vld [vmem:[%s3 + $0xa0] sm:$0xff]
      %v915 = vld [vmem:[%s3 + $0xa8] sm:$0xff]
      %v916 = vld [vmem:[%s3 + $0xb0] sm:$0xff]
      %v917 = vld [vmem:[%s3 + $0xb8] sm:$0xff]
      %v918 = vld [vmem:[%s3 + $0xc0] sm:$0xff]
      %v919 = vld [vmem:[%s3 + $0xc8] sm:$0xff]
      %v920 = vld [vmem:[%s3 + $0xd0] sm:$0xff]
      %v921 = vld [vmem:[%s3 + $0xd8] sm:$0xff]
      %v922 = vld [vmem:[%s3 + $0xe0] sm:$0xff]
      %v923 = vld [vmem:[%s3 + $0xe8] sm:$0xff]
      %v924 = vld [vmem:[%s3 + $0xf0] sm:$0xff]
      %v925 = vld [vmem:[%s3 + $0xf8] sm:$0xff]
      %v926 = vld [vmem:[%s3 + $0x100] sm:$0xff]
      %v927 = vld [vmem:[%s3 + $0x108] sm:$0xff]
      %v928 = vld [vmem:[%s3 + $0x110] sm:$0xff]
      %v929 = vld [vmem:[%s3 + $0x118] sm:$0xff]
      %v930 = vld [vmem:[%s3 + $0x120] sm:$0xff]
      %v931 = vld [vmem:[%s3 + $0x128] sm:$0xff]
      %v932 = vld [vmem:[%s3 + $0x130] sm:$0xff]
      %v933 = vld [vmem:[%s3 + $0x138] sm:$0xff]
      %v934 = vld [vmem:[%s3 + $0x140] sm:$0x33]
      %v976 = vunpack.c.l.b16 %v894
      %v977 = vunpack.c.h.b16 %v894
      %v978 = vunpack.c.l.b16 %v895
      %v979 = vunpack.c.h.b16 %v895
      %v980 = vunpack.c.l.b16 %v896
      %v981 = vunpack.c.h.b16 %v896
      %v982 = vunpack.c.l.b16 %v897
      %v983 = vunpack.c.h.b16 %v897
      %v984 = vunpack.c.l.b16 %v898
      %v985 = vunpack.c.h.b16 %v898
      %v986 = vunpack.c.l.b16 %v899
      %v987 = vunpack.c.h.b16 %v899
      %v988 = vunpack.c.l.b16 %v900
      %v989 = vunpack.c.h.b16 %v900
      %v990 = vunpack.c.l.b16 %v901
      %v991 = vunpack.c.h.b16 %v901
      %v992 = vunpack.c.l.b16 %v902
      %v993 = vunpack.c.h.b16 %v902
      %v994 = vunpack.c.l.b16 %v903
      %v995 = vunpack.c.h.b16 %v903
      %v996 = vunpack.c.l.b16 %v904
      %v997 = vunpack.c.h.b16 %v904
      %v998 = vunpack.c.l.b16 %v905
      %v999 = vunpack.c.h.b16 %v905
      %v1000 = vunpack.c.l.b16 %v906
      %v1001 = vunpack.c.h.b16 %v906
      %v1002 = vunpack.c.l.b16 %v907
      %v1003 = vunpack.c.h.b16 %v907
      %v1004 = vunpack.c.l.b16 %v908
      %v1005 = vunpack.c.h.b16 %v908
      %v1006 = vunpack.c.l.b16 %v909
      %v1007 = vunpack.c.h.b16 %v909
      %v1008 = vunpack.c.l.b16 %v910
      %v1009 = vunpack.c.h.b16 %v910
      %v1010 = vunpack.c.l.b16 %v911
      %v1011 = vunpack.c.h.b16 %v911
      %v1012 = vunpack.c.l.b16 %v912
      %v1013 = vunpack.c.h.b16 %v912
      %v1014 = vunpack.c.l.b16 %v913
      %v1015 = vunpack.c.h.b16 %v913
      %v1016 = vunpack.c.l.b16 %v914
      %v1017 = vunpack.c.h.b16 %v914
      %v1018 = vunpack.c.l.b16 %v915
      %v1019 = vunpack.c.h.b16 %v915
      %v1020 = vunpack.c.l.b16 %v916
      %v1021 = vunpack.c.h.b16 %v916
      %v1022 = vunpack.c.l.b16 %v917
      %v1023 = vunpack.c.h.b16 %v917
      %v1024 = vunpack.c.l.b16 %v918
      %v1025 = vunpack.c.h.b16 %v918
      %v1026 = vunpack.c.l.b16 %v919
      %v1027 = vunpack.c.h.b16 %v919
      %v1028 = vunpack.c.l.b16 %v920
      %v1029 = vunpack.c.h.b16 %v920
      %v1030 = vunpack.c.l.b16 %v921
      %v1031 = vunpack.c.h.b16 %v921
      %v1032 = vunpack.c.l.b16 %v922
      %v1033 = vunpack.c.h.b16 %v922
      %v1034 = vunpack.c.l.b16 %v923
      %v1035 = vunpack.c.h.b16 %v923
      %v1036 = vunpack.c.l.b16 %v924
      %v1037 = vunpack.c.h.b16 %v924
      %v1038 = vunpack.c.l.b16 %v925
      %v1039 = vunpack.c.h.b16 %v925
      %v1040 = vunpack.c.l.b16 %v926
      %v1041 = vunpack.c.h.b16 %v926
      %v1042 = vunpack.c.l.b16 %v927
      %v1043 = vunpack.c.h.b16 %v927
      %v1044 = vunpack.c.l.b16 %v928
      %v1045 = vunpack.c.h.b16 %v928
      %v1046 = vunpack.c.l.b16 %v929
      %v1047 = vunpack.c.h.b16 %v929
      %v1048 = vunpack.c.l.b16 %v930
      %v1049 = vunpack.c.h.b16 %v930
      %v1050 = vunpack.c.l.b16 %v931
      %v1051 = vunpack.c.h.b16 %v931
      %v1052 = vunpack.c.l.b16 %v932
      %v1053 = vunpack.c.h.b16 %v932
      %v1054 = vunpack.c.l.b16 %v933
      %v1055 = vunpack.c.h.b16 %v933
      %v1056 = vunpack.c.l.b16 %v934
      %v1057 = vunpack.c.h.b16 %v934
      %v1058 = vpack.c.b16 %v978, %v976
      %v1059 = vpack.c.b16 %v979, %v977
      %v1060 = vpack.c.b16 %v982, %v980
      %v1061 = vpack.c.b16 %v983, %v981
      %v1062 = vpack.c.b16 %v986, %v984
      %v1063 = vpack.c.b16 %v987, %v985
      %v1064 = vpack.c.b16 %v990, %v988
      %v1065 = vpack.c.b16 %v991, %v989
      %v1066 = vpack.c.b16 %v994, %v992
      %v1067 = vpack.c.b16 %v995, %v993
      %v1068 = vpack.c.b16 %v998, %v996
      %v1069 = vpack.c.b16 %v999, %v997
      %v1070 = vpack.c.b16 %v1002, %v1000
      %v1071 = vpack.c.b16 %v1003, %v1001
      %v1072 = vpack.c.b16 %v1006, %v1004
      %v1073 = vpack.c.b16 %v1007, %v1005
      %v1074 = vpack.c.b16 %v1010, %v1008
      %v1075 = vpack.c.b16 %v1011, %v1009
      %v1076 = vpack.c.b16 %v1014, %v1012
      %v1077 = vpack.c.b16 %v1015, %v1013
      %v1078 = vpack.c.b16 %v1018, %v1016
      %v1079 = vpack.c.b16 %v1019, %v1017
      %v1080 = vpack.c.b16 %v1022, %v1020
      %v1081 = vpack.c.b16 %v1023, %v1021
      %v1082 = vpack.c.b16 %v1026, %v1024
      %v1083 = vpack.c.b16 %v1027, %v1025
      %v1084 = vpack.c.b16 %v1030, %v1028
      %v1085 = vpack.c.b16 %v1031, %v1029
      %v1086 = vpack.c.b16 %v1034, %v1032
      %v1087 = vpack.c.b16 %v1035, %v1033
      %v1088 = vpack.c.b16 %v1038, %v1036
      %v1089 = vpack.c.b16 %v1039, %v1037
      %v1090 = vpack.c.b16 %v1042, %v1040
      %v1091 = vpack.c.b16 %v1043, %v1041
      %v1092 = vpack.c.b16 %v1046, %v1044
      %v1093 = vpack.c.b16 %v1047, %v1045
      %v1094 = vpack.c.b16 %v1050, %v1048
      %v1095 = vpack.c.b16 %v1051, %v1049
      %v1096 = vpack.c.b16 %v1054, %v1052
      %v1097 = vpack.c.b16 %v1055, %v1053
      %v1098 = vpack.c.b16 %v1056, %v1056
      %v1099 = vpack.c.b16 %v1057, %v1057
      %1142 = vmatprep.subr.bf16.mxu0 0
      %1143 = vmatpush1.bf16.msra.mxu0 %v878
      %1144 = vmatprep.subr.bf16.mxu0 0
      %1145 = vmatpush1.bf16.msra.mxu0 %v879
      %1146 = vmatprep.subr.bf16.mxu0 0
      %1147 = vmatpush1.bf16.msra.mxu0 %v880
      %1148 = vmatprep.subr.bf16.mxu0 0
      %1149 = vmatpush1.bf16.msra.mxu0 %v881
      %1150 = vmatprep.subr.bf16.mxu0 0
      %1151 = vmatpush1.bf16.msra.mxu0 %v882
      %1152 = vmatprep.subr.bf16.mxu0 0
      %1153 = vmatpush1.bf16.msra.mxu0 %v883
      %1154 = vmatprep.subr.bf16.mxu0 0
      %1155 = vmatpush1.bf16.msra.mxu0 %v884
      %1156 = vmatprep.subr.bf16.mxu0 0
      %1157 = vmatpush1.bf16.msra.mxu0 %v885
      %1158 = vmatprep.subr.bf16.mxu0 0
      %1159 = vmatpush1.bf16.msra.mxu0 %v886
      %1160 = vmatprep.subr.bf16.mxu0 0
      %1161 = vmatpush1.bf16.msra.mxu0 %v887
      %1162 = vmatprep.subr.bf16.mxu0 0
      %1163 = vmatpush1.bf16.msra.mxu0 %v888
      %1164 = vmatprep.subr.bf16.mxu0 0
      %1165 = vmatpush1.bf16.msra.mxu0 %v889
      %1166 = vmatprep.subr.bf16.mxu0 0
      %1167 = vmatpush1.bf16.msra.mxu0 %v890
      %1168 = vmatprep.subr.bf16.mxu0 0
      %1169 = vmatpush1.bf16.msra.mxu0 %v891
      %1170 = vmatprep.subr.bf16.mxu0 0
      %1171 = vmatpush1.bf16.msra.mxu0 %v892
      %1172 = vmatprep.subr.bf16.mxu0 0
      %1173 = vmatpush1.bf16.msra.mxu0 %v893
      %1174 = vmatprep.mubr.bf16.mxu0 %v1059
      %1175 = vmatmul.mubr.bf16.gmra.mrb[0].mxu0 %v1058
      %v1176 = vpop.f32.mrb[0].mxu0
      %v1177 = vadd.f32 0.0, %v1176
      %v1178 = vpop.f32.mrb[0].mxu0
      %v1179 = vpop.f32.mrb[0].mxu0
      %v1180 = vadd.f32 0.0, %v1179
      %v1181 = vpop.f32.mrb[0].mxu0
      %1182 = vmatprep.mubr.bf16.mxu0 %v1061
      %1183 = vmatmul.mubr.bf16.gmra.mrb[0].mxu0 %v1060
      %v1184 = vpop.f32.mrb[0].mxu0
      %v1185 = vadd.f32 0.0, %v1184
      %v1186 = vpop.f32.mrb[0].mxu0
      %v1187 = vpop.f32.mrb[0].mxu0
      %v1188 = vadd.f32 0.0, %v1187
      %v1189 = vpop.f32.mrb[0].mxu0
      %1190 = vmatprep.mubr.bf16.mxu0 %v1063
      %1191 = vmatmul.mubr.bf16.gmra.mrb[0].mxu0 %v1062
      %v1192 = vpop.f32.mrb[0].mxu0
      %v1193 = vadd.f32 0.0, %v1192
      %v1194 = vpop.f32.mrb[0].mxu0
      %v1195 = vpop.f32.mrb[0].mxu0
      %v1196 = vadd.f32 0.0, %v1195
      %v1197 = vpop.f32.mrb[0].mxu0
      %1198 = vmatprep.mubr.bf16.mxu0 %v1065
      %1199 = vmatmul.mubr.bf16.gmra.mrb[0].mxu0 %v1064
      %v1200 = vpop.f32.mrb[0].mxu0
      %v1201 = vadd.f32 0.0, %v1200
      %v1202 = vpop.f32.mrb[0].mxu0
      %v1203 = vpop.f32.mrb[0].mxu0
      %v1204 = vadd.f32 0.0, %v1203
      %v1205 = vpop.f32.mrb[0].mxu0
      %1206 = vmatprep.mubr.bf16.mxu0 %v1067
      %1207 = vmatmul.mubr.bf16.gmra.mrb[0].mxu0 %v1066
      %v1208 = vpop.f32.mrb[0].mxu0
      %v1209 = vadd.f32 0.0, %v1208
      %v1210 = vpop.f32.mrb[0].mxu0
      %v1211 = vpop.f32.mrb[0].mxu0
      %v1212 = vadd.f32 0.0, %v1211
      %v1213 = vpop.f32.mrb[0].mxu0
      %1214 = vmatprep.mubr.bf16.mxu0 %v1069
      %1215 = vmatmul.mubr.bf16.gmra.mrb[0].mxu0 %v1068
      %v1216 = vpop.f32.mrb[0].mxu0
      %v1217 = vadd.f32 0.0, %v1216
      %v1218 = vpop.f32.mrb[0].mxu0
      %v1219 = vpop.f32.mrb[0].mxu0
      %v1220 = vadd.f32 0.0, %v1219
      %v1221 = vpop.f32.mrb[0].mxu0
      %1222 = vmatprep.mubr.bf16.mxu0 %v1071
      %1223 = vmatmul.mubr.bf16.gmra.mrb[0].mxu0 %v1070
      %v1224 = vpop.f32.mrb[0].mxu0
      %v1225 = vadd.f32 0.0, %v1224
      %v1226 = vpop.f32.mrb[0].mxu0
      %v1227 = vpop.f32.mrb[0].mxu0
      %v1228 = vadd.f32 0.0, %v1227
      %v1229 = vpop.f32.mrb[0].mxu0
      %1230 = vmatprep.mubr.bf16.mxu0 %v1073
      %1231 = vmatmul.mubr.bf16.gmra.mrb[0].mxu0 %v1072
      %v1232 = vpop.f32.mrb[0].mxu0
      %v1233 = vadd.f32 0.0, %v1232
      %v1234 = vpop.f32.mrb[0].mxu0
      %v1235 = vpop.f32.mrb[0].mxu0
      %v1236 = vadd.f32 0.0, %v1235
      %v1237 = vpop.f32.mrb[0].mxu0
      %1238 = vmatprep.mubr.bf16.mxu0 %v1075
      %1239 = vmatmul.mubr.bf16.gmra.mrb[0].mxu0 %v1074
      %v1240 = vpop.f32.mrb[0].mxu0
      %v1241 = vadd.f32 0.0, %v1240
      %v1242 = vpop.f32.mrb[0].mxu0
      %v1243 = vpop.f32.mrb[0].mxu0
      %v1244 = vadd.f32 0.0, %v1243
      %v1245 = vpop.f32.mrb[0].mxu0
      %1246 = vmatprep.mubr.bf16.mxu0 %v1077
      %1247 = vmatmul.mubr.bf16.gmra.mrb[0].mxu0 %v1076
      %v1248 = vpop.f32.mrb[0].mxu0
      %v1249 = vadd.f32 0.0, %v1248
      %v1250 = vpop.f32.mrb[0].mxu0
      %v1251 = vpop.f32.mrb[0].mxu0
      %v1252 = vadd.f32 0.0, %v1251
      %v1253 = vpop.f32.mrb[0].mxu0
      %1254 = vmatprep.mubr.bf16.mxu0 %v1079
      %1255 = vmatmul.mubr.bf16.gmra.mrb[0].mxu0 %v1078
      %v1256 = vpop.f32.mrb[0].mxu0
      %v1257 = vadd.f32 0.0, %v1256
      %v1258 = vpop.f32.mrb[0].mxu0
      %v1259 = vpop.f32.mrb[0].mxu0
      %v1260 = vadd.f32 0.0, %v1259
      %v1261 = vpop.f32.mrb[0].mxu0
      %1262 = vmatprep.mubr.bf16.mxu0 %v1081
      %1263 = vmatmul.mubr.bf16.gmra.mrb[0].mxu0 %v1080
      %v1264 = vpop.f32.mrb[0].mxu0
      %v1265 = vadd.f32 0.0, %v1264
      %v1266 = vpop.f32.mrb[0].mxu0
      %v1267 = vpop.f32.mrb[0].mxu0
      %v1268 = vadd.f32 0.0, %v1267
      %v1269 = vpop.f32.mrb[0].mxu0
      %1270 = vmatprep.mubr.bf16.mxu0 %v1083
      %1271 = vmatmul.mubr.bf16.gmra.mrb[0].mxu0 %v1082
      %v1272 = vpop.f32.mrb[0].mxu0
      %v1273 = vadd.f32 0.0, %v1272
      %v1274 = vpop.f32.mrb[0].mxu0
      %v1275 = vpop.f32.mrb[0].mxu0
      %v1276 = vadd.f32 0.0, %v1275
      %v1277 = vpop.f32.mrb[0].mxu0
      %1278 = vmatprep.mubr.bf16.mxu0 %v1085
      %1279 = vmatmul.mubr.bf16.gmra.mrb[0].mxu0 %v1084
      %v1280 = vpop.f32.mrb[0].mxu0
      %v1281 = vadd.f32 0.0, %v1280
      %v1282 = vpop.f32.mrb[0].mxu0
      %v1283 = vpop.f32.mrb[0].mxu0
      %v1284 = vadd.f32 0.0, %v1283
      %v1285 = vpop.f32.mrb[0].mxu0
      %1286 = vmatprep.mubr.bf16.mxu0 %v1087
      %1287 = vmatmul.mubr.bf16.gmra.mrb[0].mxu0 %v1086
      %v1288 = vpop.f32.mrb[0].mxu0
      %v1289 = vadd.f32 0.0, %v1288
      %v1290 = vpop.f32.mrb[0].mxu0
      %v1291 = vpop.f32.mrb[0].mxu0
      %v1292 = vadd.f32 0.0, %v1291
      %v1293 = vpop.f32.mrb[0].mxu0
      %1294 = vmatprep.mubr.bf16.mxu0 %v1089
      %1295 = vmatmul.mubr.bf16.gmra.mrb[0].mxu0 %v1088
      %v1296 = vpop.f32.mrb[0].mxu0
      %v1297 = vadd.f32 0.0, %v1296
      %v1298 = vpop.f32.mrb[0].mxu0
      %v1299 = vpop.f32.mrb[0].mxu0
      %v1300 = vadd.f32 0.0, %v1299
      %v1301 = vpop.f32.mrb[0].mxu0
      %1302 = vmatprep.mubr.bf16.mxu0 %v1091
      %1303 = vmatmul.mubr.bf16.gmra.mrb[0].mxu0 %v1090
      %v1304 = vpop.f32.mrb[0].mxu0
      %v1305 = vadd.f32 0.0, %v1304
      %v1306 = vpop.f32.mrb[0].mxu0
      %v1307 = vpop.f32.mrb[0].mxu0
      %v1308 = vadd.f32 0.0, %v1307
      %v1309 = vpop.f32.mrb[0].mxu0
      %1310 = vmatprep.mubr.bf16.mxu0 %v1093
      %1311 = vmatmul.mubr.bf16.gmra.mrb[0].mxu0 %v1092
      %v1312 = vpop.f32.mrb[0].mxu0
      %v1313 = vadd.f32 0.0, %v1312
      %v1314 = vpop.f32.mrb[0].mxu0
      %v1315 = vpop.f32.mrb[0].mxu0
      %v1316 = vadd.f32 0.0, %v1315
      %v1317 = vpop.f32.mrb[0].mxu0
      %1318 = vmatprep.mubr.bf16.mxu0 %v1095
      %1319 = vmatmul.mubr.bf16.gmra.mrb[0].mxu0 %v1094
      %v1320 = vpop.f32.mrb[0].mxu0
      %v1321 = vadd.f32 0.0, %v1320
      %v1322 = vpop.f32.mrb[0].mxu0
      %v1323 = vpop.f32.mrb[0].mxu0
      %v1324 = vadd.f32 0.0, %v1323
      %v1325 = vpop.f32.mrb[0].mxu0
      %1326 = vmatprep.mubr.bf16.mxu0 %v1097
      %1327 = vmatmul.mubr.bf16.gmra.mrb[0].mxu0 %v1096
      %v1328 = vpop.f32.mrb[0].mxu0
      %v1329 = vadd.f32 0.0, %v1328
      %v1330 = vpop.f32.mrb[0].mxu0
      %v1331 = vpop.f32.mrb[0].mxu0
      %v1332 = vadd.f32 0.0, %v1331
      %v1333 = vpop.f32.mrb[0].mxu0
      %1334 = vmatprep.mubr.bf16.mxu0 %v1099
      %1335 = vmatmul.mubr.bf16.gmra.mrb[0].mxu0 %v1098
      %v1336 = vpop.f32.mrb[0].mxu0
      %v1337 = vpop.f32.mrb[0].mxu0
      %v1338 = vpop.f32.mrb[0].mxu0
      %v1339 = vpop.f32.mrb[0].mxu0
      %1340 = vdwg.mxu0
      %v1341 = vpack.c.bf16 %v1180, %v1177
      %v1342 = vpack.c.bf16 %v1188, %v1185
      %v1343 = vpack.c.bf16 %v1196, %v1193
      %v1344 = vpack.c.bf16 %v1204, %v1201
      %v1345 = vpack.c.bf16 %v1212, %v1209
      %v1346 = vpack.c.bf16 %v1220, %v1217
      %v1347 = vpack.c.bf16 %v1228, %v1225
      %v1348 = vpack.c.bf16 %v1236, %v1233
      %v1349 = vpack.c.bf16 %v1244, %v1241
      %v1350 = vpack.c.bf16 %v1252, %v1249
      %v1351 = vpack.c.bf16 %v1260, %v1257
      %v1352 = vpack.c.bf16 %v1268, %v1265
      %v1353 = vpack.c.bf16 %v1276, %v1273
      %v1354 = vpack.c.bf16 %v1284, %v1281
      %v1355 = vpack.c.bf16 %v1292, %v1289
      %v1356 = vpack.c.bf16 %v1300, %v1297
      %v1357 = vpack.c.bf16 %v1308, %v1305
      %v1358 = vpack.c.bf16 %v1316, %v1313
      %v1359 = vpack.c.bf16 %v1324, %v1321
      %v1360 = vpack.c.bf16 %v1332, %v1329
      %v1361 = vld [vmem:[%s4] sm:$0xf]
      %v1362 = vld [vmem:[%s4 + $0x4] sm:$0xf]
      %v1363 = vld [vmem:[%s4 + $0x8] sm:$0xf]
      %v1364 = vld [vmem:[%s4 + $0xc] sm:$0xf]
      %v1365 = vld [vmem:[%s4 + $0x10] sm:$0xf]
      %v1366 = vld [vmem:[%s4 + $0x14] sm:$0xf]
      %v1367 = vld [vmem:[%s4 + $0x18] sm:$0xf]
      %v1368 = vld [vmem:[%s4 + $0x1c] sm:$0xf]
      %s1369 = scalar_lea.vmem %s4, 32
      %v1370 = vld [vmem:[%s1369] sm:$0xf]
      %v1371 = vld [vmem:[%s1369 + $0x4] sm:$0xf]
      %v1372 = vld [vmem:[%s1369 + $0x8] sm:$0xf]
      %v1373 = vld [vmem:[%s1369 + $0xc] sm:$0xf]
      %v1374 = vld [vmem:[%s1369 + $0x10] sm:$0xf]
      %v1375 = vld [vmem:[%s1369 + $0x14] sm:$0xf]
      %v1376 = vld [vmem:[%s1369 + $0x18] sm:$0xf]
      %v1377 = vld [vmem:[%s1369 + $0x1c] sm:$0xf]
      %vm1378 = vsmask.f32 7424
      %v1380 = vshrl.u32 %v1346, 16
      %v1382 = vshll.u32 %v1346, 16
      %v1384 = vrot.slane %v1382, 1
      %v1385 = vor.u32 %v1380, %v1384
      %v1387 = vshll.u32 %v1347, 16
      %v1389 = vrot.slane %v1387, 1
      %v1390 = vsel %vm1378, %v1385, %v1389
      %v1391 = vshrl.u32 %v1347, 16
      %v1393 = vor.u32 %v1391, %v1389
      %v1395 = vshll.u32 %v1348, 16
      %v1397 = vrot.slane %v1395, 1
      %v1398 = vsel %vm1378, %v1393, %v1397
      %v1399 = vshrl.u32 %v1348, 16
      %v1401 = vor.u32 %v1399, %v1397
      %v1403 = vshll.u32 %v1349, 16
      %v1405 = vrot.slane %v1403, 1
      %v1406 = vsel %vm1378, %v1401, %v1405
      %v1407 = vshrl.u32 %v1349, 16
      %v1409 = vor.u32 %v1407, %v1405
      %v1411 = vshll.u32 %v1350, 16
      %v1413 = vrot.slane %v1411, 1
      %v1414 = vsel %vm1378, %v1409, %v1413
      %v1415 = vshrl.u32 %v1350, 16
      %v1417 = vor.u32 %v1415, %v1413
      %v1426 = vunpack.c.l.b16 %v1370
      %v1427 = vunpack.c.l.b16 %v1371
      %v1428 = vunpack.c.l.b16 %v1372
      %v1429 = vunpack.c.l.b16 %v1373
      %v1430 = vunpack.c.l.b16 %v1374
      %v1431 = vunpack.c.l.b16 %v1375
      %v1432 = vunpack.c.l.b16 %v1376
      %v1433 = vunpack.c.l.b16 %v1377
      %v1434 = vpack.c.b16 %v1427, %v1426
      %v1435 = vpack.c.b16 %v1429, %v1428
      %v1436 = vpack.c.b16 %v1431, %v1430
      %v1437 = vpack.c.b16 %v1433, %v1432
      %vm1442 = vcmask 523264
      %v1444 = vsel %vm1442, %v1390, 0
      %v1447 = vsel %vm1442, %v1398, 0
      %v1450 = vsel %vm1442, %v1406, 0
      %v1453 = vsel %vm1442, %v1414, 0
      %v1456 = vsel %vm1442, %v1417, 0
      %1458 = vmatprep.subr.bf16.mxu0 0
      %1459 = vmatpush1.bf16.msra.mxu0 %v1434
      %1460 = vmatprep.subr.bf16.mxu0 0
      %1461 = vmatpush1.bf16.msra.mxu0 %v1435
      %1462 = vmatprep.subr.bf16.mxu0 0
      %1463 = vmatpush1.bf16.msra.mxu0 %v1436
      %1464 = vmatprep.subr.bf16.mxu0 0
      %1465 = vmatpush1.bf16.msra.mxu0 %v1437
      %1466 = vmatprep.subr.bf16.mxu0 0
      %1467 = vmatpush1.bf16.msra.mxu0 0
      %1468 = vmatprep.subr.bf16.mxu0 0
      %1469 = vmatpush1.bf16.msra.mxu0 0
      %1470 = vmatprep.subr.bf16.mxu0 0
      %1471 = vmatpush1.bf16.msra.mxu0 0
      %1472 = vmatprep.subr.bf16.mxu0 0
      %1473 = vmatpush1.bf16.msra.mxu0 0
      %1474 = vmatprep.subr.bf16.mxu0 0
      %1475 = vmatpush1.bf16.msra.mxu0 0
      %1476 = vmatprep.subr.bf16.mxu0 0
      %1477 = vmatpush1.bf16.msra.mxu0 0
      %1478 = vmatprep.subr.bf16.mxu0 0
      %1479 = vmatpush1.bf16.msra.mxu0 0
      %1480 = vmatprep.subr.bf16.mxu0 0
      %1481 = vmatpush1.bf16.msra.mxu0 0
      %1482 = vmatprep.subr.bf16.mxu0 0
      %1483 = vmatpush1.bf16.msra.mxu0 0
      %1484 = vmatprep.subr.bf16.mxu0 0
      %1485 = vmatpush1.bf16.msra.mxu0 0
      %1486 = vmatprep.subr.bf16.mxu0 0
      %1487 = vmatpush1.bf16.msra.mxu0 0
      %1488 = vmatprep.subr.bf16.mxu0 0
      %1489 = vmatpush1.bf16.msra.mxu0 0
      %1490 = vmatprep.mubr.bf16.mxu0 0
      %1491 = vmatmul.mubr.bf16.gmra.mrb[0].mxu0 %v1444
      %v1492 = vpop.f32.mrb[0].mxu0
      %v1493 = vadd.f32 0.0, %v1492
      %v1494 = vpop.f32.mrb[0].mxu0
      %v1495 = vpop.f32.mrb[0].mxu0
      %v1496 = vadd.f32 0.0, %v1495
      %v1497 = vpop.f32.mrb[0].mxu0
      %1498 = vmatprep.mubr.bf16.mxu0 0
      %1499 = vmatmul.mubr.bf16.gmra.mrb[0].mxu0 %v1447
      %v1500 = vpop.f32.mrb[0].mxu0
      %v1501 = vadd.f32 0.0, %v1500
      %v1502 = vpop.f32.mrb[0].mxu0
      %v1503 = vpop.f32.mrb[0].mxu0
      %v1504 = vadd.f32 0.0, %v1503
      %v1505 = vpop.f32.mrb[0].mxu0
      %1506 = vmatprep.mubr.bf16.mxu0 0
      %1507 = vmatmul.mubr.bf16.gmra.mrb[0].mxu0 %v1450
      %v1508 = vpop.f32.mrb[0].mxu0
      %v1509 = vadd.f32 0.0, %v1508
      %v1510 = vpop.f32.mrb[0].mxu0
      %v1511 = vpop.f32.mrb[0].mxu0
      %v1512 = vadd.f32 0.0, %v1511
      %v1513 = vpop.f32.mrb[0].mxu0
      %1514 = vmatprep.mubr.bf16.mxu0 0
      %1515 = vmatmul.mubr.bf16.gmra.mrb[0].mxu0 %v1453
      %v1516 = vpop.f32.mrb[0].mxu0
      %v1517 = vadd.f32 0.0, %v1516
      %v1518 = vpop.f32.mrb[0].mxu0
      %v1519 = vpop.f32.mrb[0].mxu0
      %v1520 = vadd.f32 0.0, %v1519
      %v1521 = vpop.f32.mrb[0].mxu0
      %1522 = vmatprep.mubr.bf16.mxu0 0
      %1523 = vmatmul.mubr.bf16.gmra.mrb[0].mxu0 %v1456
      %v1524 = vpop.f32.mrb[0].mxu0
      %v1525 = vadd.f32 0.0, %v1524
      %v1526 = vpop.f32.mrb[0].mxu0
      %v1527 = vpop.f32.mrb[0].mxu0
      %v1528 = vpop.f32.mrb[0].mxu0
      %1529 = vdwg.mxu0
      %v1538 = vunpack.c.l.b16 %v1361
      %v1539 = vunpack.c.l.b16 %v1362
      %v1540 = vunpack.c.l.b16 %v1363
      %v1541 = vunpack.c.l.b16 %v1364
      %v1542 = vunpack.c.l.b16 %v1365
      %v1543 = vunpack.c.l.b16 %v1366
      %v1544 = vunpack.c.l.b16 %v1367
      %v1545 = vunpack.c.l.b16 %v1368
      %v1546 = vpack.c.b16 %v1539, %v1538
      %v1547 = vpack.c.b16 %v1541, %v1540
      %v1548 = vpack.c.b16 %v1543, %v1542
      %v1549 = vpack.c.b16 %v1545, %v1544
      %v1555 = vsel %vm1442, %v1341, 0
      %v1558 = vsel %vm1442, %v1342, 0
      %v1561 = vsel %vm1442, %v1343, 0
      %v1564 = vsel %vm1442, %v1344, 0
      %v1567 = vsel %vm1442, %v1345, 0
      %1569 = vmatprep.subr.bf16.mxu0 0
      %1570 = vmatpush1.bf16.msra.mxu0 %v1546
      %1571 = vmatprep.subr.bf16.mxu0 0
      %1572 = vmatpush1.bf16.msra.mxu0 %v1547
      %1573 = vmatprep.subr.bf16.mxu0 0
      %1574 = vmatpush1.bf16.msra.mxu0 %v1548
      %1575 = vmatprep.subr.bf16.mxu0 0
      %1576 = vmatpush1.bf16.msra.mxu0 %v1549
      %1577 = vmatprep.subr.bf16.mxu0 0
      %1578 = vmatpush1.bf16.msra.mxu0 0
      %1579 = vmatprep.subr.bf16.mxu0 0
      %1580 = vmatpush1.bf16.msra.mxu0 0
      %1581 = vmatprep.subr.bf16.mxu0 0
      %1582 = vmatpush1.bf16.msra.mxu0 0
      %1583 = vmatprep.subr.bf16.mxu0 0
      %1584 = vmatpush1.bf16.msra.mxu0 0
      %1585 = vmatprep.subr.bf16.mxu0 0
      %1586 = vmatpush1.bf16.msra.mxu0 0
      %1587 = vmatprep.subr.bf16.mxu0 0
      %1588 = vmatpush1.bf16.msra.mxu0 0
      %1589 = vmatprep.subr.bf16.mxu0 0
      %1590 = vmatpush1.bf16.msra.mxu0 0
      %1591 = vmatprep.subr.bf16.mxu0 0
      %1592 = vmatpush1.bf16.msra.mxu0 0
      %1593 = vmatprep.subr.bf16.mxu0 0
      %1594 = vmatpush1.bf16.msra.mxu0 0
      %1595 = vmatprep.subr.bf16.mxu0 0
      %1596 = vmatpush1.bf16.msra.mxu0 0
      %1597 = vmatprep.subr.bf16.mxu0 0
      %1598 = vmatpush1.bf16.msra.mxu0 0
      %1599 = vmatprep.subr.bf16.mxu0 0
      %1600 = vmatpush1.bf16.msra.mxu0 0
      %1601 = vmatprep.mubr.bf16.mxu0 0
      %1602 = vmatmul.mubr.bf16.gmra.mrb[0].mxu0 %v1555
      %v1603 = vpop.f32.mrb[0].mxu0
      %v1604 = vadd.f32 %v1493, %v1603
      %v1605 = vpop.f32.mrb[0].mxu0
      %v1606 = vpop.f32.mrb[0].mxu0
      %v1607 = vadd.f32 %v1496, %v1606
      %v1608 = vpop.f32.mrb[0].mxu0
      %1609 = vmatprep.mubr.bf16.mxu0 0
      %1610 = vmatmul.mubr.bf16.gmra.mrb[0].mxu0 %v1558
      %v1611 = vpop.f32.mrb[0].mxu0
      %v1612 = vadd.f32 %v1501, %v1611
      %v1613 = vpop.f32.mrb[0].mxu0
      %v1614 = vpop.f32.mrb[0].mxu0
      %v1615 = vadd.f32 %v1504, %v1614
      %v1616 = vpop.f32.mrb[0].mxu0
      %1617 = vmatprep.mubr.bf16.mxu0 0
      %1618 = vmatmul.mubr.bf16.gmra.mrb[0].mxu0 %v1561
      %v1619 = vpop.f32.mrb[0].mxu0
      %v1620 = vadd.f32 %v1509, %v1619
      %v1621 = vpop.f32.mrb[0].mxu0
      %v1622 = vpop.f32.mrb[0].mxu0
      %v1623 = vadd.f32 %v1512, %v1622
      %v1624 = vpop.f32.mrb[0].mxu0
      %1625 = vmatprep.mubr.bf16.mxu0 0
      %1626 = vmatmul.mubr.bf16.gmra.mrb[0].mxu0 %v1564
      %v1627 = vpop.f32.mrb[0].mxu0
      %v1628 = vadd.f32 %v1517, %v1627
      %v1629 = vpop.f32.mrb[0].mxu0
      %v1630 = vpop.f32.mrb[0].mxu0
      %v1631 = vadd.f32 %v1520, %v1630
      %v1632 = vpop.f32.mrb[0].mxu0
      %1633 = vmatprep.mubr.bf16.mxu0 0
      %1634 = vmatmul.mubr.bf16.gmra.mrb[0].mxu0 %v1567
      %v1635 = vpop.f32.mrb[0].mxu0
      %v1636 = vadd.f32 %v1525, %v1635
      %v1637 = vpop.f32.mrb[0].mxu0
      %v1638 = vpop.f32.mrb[0].mxu0
      %v1639 = vpop.f32.mrb[0].mxu0
      %1640 = vdwg.mxu0
      %s1641 = scalar_lea.vmem %s4, 64
      %v1642 = vld [vmem:[%s1641] sm:$0xf]
      %v1643 = vld [vmem:[%s1641 + $0x4] sm:$0xf]
      %v1644 = vld [vmem:[%s1641 + $0x8] sm:$0xf]
      %v1645 = vld [vmem:[%s1641 + $0xc] sm:$0xf]
      %v1646 = vld [vmem:[%s1641 + $0x10] sm:$0xf]
      %v1647 = vld [vmem:[%s1641 + $0x14] sm:$0xf]
      %v1648 = vld [vmem:[%s1641 + $0x18] sm:$0xf]
      %v1649 = vld [vmem:[%s1641 + $0x1c] sm:$0xf]
      %v1650 = vshrl.u32 %v1341, 16
      %v1652 = vshll.u32 %v1341, 16
      %v1654 = vrot.slane %v1652, 1
      %v1655 = vor.u32 %v1650, %v1654
      %v1656 = vshll.u32 %v1342, 16
      %v1658 = vrot.slane %v1656, 1
      %v1659 = vsel %vm1378, %v1655, %v1658
      %v1660 = vshrl.u32 %v1342, 16
      %v1662 = vor.u32 %v1660, %v1658
      %v1663 = vshll.u32 %v1343, 16
      %v1665 = vrot.slane %v1663, 1
      %v1666 = vsel %vm1378, %v1662, %v1665
      %v1667 = vshrl.u32 %v1343, 16
      %v1669 = vor.u32 %v1667, %v1665
      %v1670 = vshll.u32 %v1344, 16
      %v1672 = vrot.slane %v1670, 1
      %v1673 = vsel %vm1378, %v1669, %v1672
      %v1674 = vshrl.u32 %v1344, 16
      %v1676 = vor.u32 %v1674, %v1672
      %v1677 = vshll.u32 %v1345, 16
      %v1679 = vrot.slane %v1677, 1
      %v1680 = vsel %vm1378, %v1676, %v1679
      %v1681 = vshrl.u32 %v1345, 16
      %v1683 = vor.u32 %v1681, %v1679
      %v1692 = vunpack.c.l.b16 %v1642
      %v1693 = vunpack.c.l.b16 %v1643
      %v1694 = vunpack.c.l.b16 %v1644
      %v1695 = vunpack.c.l.b16 %v1645
      %v1696 = vunpack.c.l.b16 %v1646
      %v1697 = vunpack.c.l.b16 %v1647
      %v1698 = vunpack.c.l.b16 %v1648
      %v1699 = vunpack.c.l.b16 %v1649
      %v1700 = vpack.c.b16 %v1693, %v1692
      %v1701 = vpack.c.b16 %v1695, %v1694
      %v1702 = vpack.c.b16 %v1697, %v1696
      %v1703 = vpack.c.b16 %v1699, %v1698
      %v1709 = vsel %vm1442, %v1659, 0
      %v1712 = vsel %vm1442, %v1666, 0
      %v1715 = vsel %vm1442, %v1673, 0
      %v1718 = vsel %vm1442, %v1680, 0
      %v1721 = vsel %vm1442, %v1683, 0
      %1723 = vmatprep.subr.bf16.mxu0 0
      %1724 = vmatpush1.bf16.msra.mxu0 %v1700
      %1725 = vmatprep.subr.bf16.mxu0 0
      %1726 = vmatpush1.bf16.msra.mxu0 %v1701
      %1727 = vmatprep.subr.bf16.mxu0 0
      %1728 = vmatpush1.bf16.msra.mxu0 %v1702
      %1729 = vmatprep.subr.bf16.mxu0 0
      %1730 = vmatpush1.bf16.msra.mxu0 %v1703
      %1731 = vmatprep.subr.bf16.mxu0 0
      %1732 = vmatpush1.bf16.msra.mxu0 0
      %1733 = vmatprep.subr.bf16.mxu0 0
      %1734 = vmatpush1.bf16.msra.mxu0 0
      %1735 = vmatprep.subr.bf16.mxu0 0
      %1736 = vmatpush1.bf16.msra.mxu0 0
      %1737 = vmatprep.subr.bf16.mxu0 0
      %1738 = vmatpush1.bf16.msra.mxu0 0
      %1739 = vmatprep.subr.bf16.mxu0 0
      %1740 = vmatpush1.bf16.msra.mxu0 0
      %1741 = vmatprep.subr.bf16.mxu0 0
      %1742 = vmatpush1.bf16.msra.mxu0 0
      %1743 = vmatprep.subr.bf16.mxu0 0
      %1744 = vmatpush1.bf16.msra.mxu0 0
      %1745 = vmatprep.subr.bf16.mxu0 0
      %1746 = vmatpush1.bf16.msra.mxu0 0
      %1747 = vmatprep.subr.bf16.mxu0 0
      %1748 = vmatpush1.bf16.msra.mxu0 0
      %1749 = vmatprep.subr.bf16.mxu0 0
      %1750 = vmatpush1.bf16.msra.mxu0 0
      %1751 = vmatprep.subr.bf16.mxu0 0
      %1752 = vmatpush1.bf16.msra.mxu0 0
      %1753 = vmatprep.subr.bf16.mxu0 0
      %1754 = vmatpush1.bf16.msra.mxu0 0
      %1755 = vmatprep.mubr.bf16.mxu0 0
      %1756 = vmatmul.mubr.bf16.gmra.mrb[0].mxu0 %v1709
      %v1757 = vpop.f32.mrb[0].mxu0
      %v1758 = vadd.f32 0.0, %v1757
      %v1759 = vpop.f32.mrb[0].mxu0
      %v1760 = vpop.f32.mrb[0].mxu0
      %v1761 = vadd.f32 0.0, %v1760
      %v1762 = vpop.f32.mrb[0].mxu0
      %1763 = vmatprep.mubr.bf16.mxu0 0
      %1764 = vmatmul.mubr.bf16.gmra.mrb[0].mxu0 %v1712
      %v1765 = vpop.f32.mrb[0].mxu0
      %v1766 = vadd.f32 0.0, %v1765
      %v1767 = vpop.f32.mrb[0].mxu0
      %v1768 = vpop.f32.mrb[0].mxu0
      %v1769 = vadd.f32 0.0, %v1768
      %v1770 = vpop.f32.mrb[0].mxu0
      %1771 = vmatprep.mubr.bf16.mxu0 0
      %1772 = vmatmul.mubr.bf16.gmra.mrb[0].mxu0 %v1715
      %v1773 = vpop.f32.mrb[0].mxu0
      %v1774 = vadd.f32 0.0, %v1773
      %v1775 = vpop.f32.mrb[0].mxu0
      %v1776 = vpop.f32.mrb[0].mxu0
      %v1777 = vadd.f32 0.0, %v1776
      %v1778 = vpop.f32.mrb[0].mxu0
      %1779 = vmatprep.mubr.bf16.mxu0 0
      %1780 = vmatmul.mubr.bf16.gmra.mrb[0].mxu0 %v1718
      %v1781 = vpop.f32.mrb[0].mxu0
      %v1782 = vadd.f32 0.0, %v1781
      %v1783 = vpop.f32.mrb[0].mxu0
      %v1784 = vpop.f32.mrb[0].mxu0
      %v1785 = vadd.f32 0.0, %v1784
      %v1786 = vpop.f32.mrb[0].mxu0
      %1787 = vmatprep.mubr.bf16.mxu0 0
      %1788 = vmatmul.mubr.bf16.gmra.mrb[0].mxu0 %v1721
      %v1789 = vpop.f32.mrb[0].mxu0
      %v1790 = vadd.f32 0.0, %v1789
      %v1791 = vpop.f32.mrb[0].mxu0
      %v1792 = vpop.f32.mrb[0].mxu0
      %v1793 = vpop.f32.mrb[0].mxu0
      %1794 = vdwg.mxu0
      %v1795 = vadd.f32 %v1604, %v1758
      %v1796 = vadd.f32 %v1607, %v1761
      %v1797 = vadd.f32 %v1612, %v1766
      %v1798 = vadd.f32 %v1615, %v1769
      %v1799 = vadd.f32 %v1620, %v1774
      %v1800 = vadd.f32 %v1623, %v1777
      %v1801 = vadd.f32 %v1628, %v1782
      %v1802 = vadd.f32 %v1631, %v1785
      %v1803 = vadd.f32 %v1636, %v1790
      %s1804 = scalar_lea.vmem %s4, 96
      %v1805 = vld [vmem:[%s1804] sm:$0xf]
      %v1806 = vld [vmem:[%s1804 + $0x4] sm:$0xf]
      %v1807 = vld [vmem:[%s1804 + $0x8] sm:$0xf]
      %v1808 = vld [vmem:[%s1804 + $0xc] sm:$0xf]
      %v1809 = vld [vmem:[%s1804 + $0x10] sm:$0xf]
      %v1810 = vld [vmem:[%s1804 + $0x14] sm:$0xf]
      %v1811 = vld [vmem:[%s1804 + $0x18] sm:$0xf]
      %v1812 = vld [vmem:[%s1804 + $0x1c] sm:$0xf]
      %vm1818 = vcmask 1046528
      %v1819 = vrot.slane %v1351, 1
      %v1820 = vrot.slane %v1352, 1
      %v1821 = vsel %vm1818, %v1819, %v1820
      %v1822 = vrot.slane %v1353, 1
      %v1823 = vsel %vm1818, %v1820, %v1822
      %v1824 = vrot.slane %v1354, 1
      %v1825 = vsel %vm1818, %v1822, %v1824
      %v1826 = vrot.slane %v1355, 1
      %v1827 = vsel %vm1818, %v1824, %v1826
      %v1836 = vunpack.c.l.b16 %v1805
      %v1837 = vunpack.c.l.b16 %v1806
      %v1838 = vunpack.c.l.b16 %v1807
      %v1839 = vunpack.c.l.b16 %v1808
      %v1840 = vunpack.c.l.b16 %v1809
      %v1841 = vunpack.c.l.b16 %v1810
      %v1842 = vunpack.c.l.b16 %v1811
      %v1843 = vunpack.c.l.b16 %v1812
      %v1844 = vpack.c.b16 %v1837, %v1836
      %v1845 = vpack.c.b16 %v1839, %v1838
      %v1846 = vpack.c.b16 %v1841, %v1840
      %v1847 = vpack.c.b16 %v1843, %v1842
      %v1853 = vsel %vm1442, %v1821, 0
      %v1856 = vsel %vm1442, %v1823, 0
      %v1859 = vsel %vm1442, %v1825, 0
      %v1862 = vsel %vm1442, %v1827, 0
      %v1865 = vsel %vm1442, %v1826, 0
      %1867 = vmatprep.subr.bf16.mxu0 0
      %1868 = vmatpush1.bf16.msra.mxu0 %v1844
      %1869 = vmatprep.subr.bf16.mxu0 0
      %1870 = vmatpush1.bf16.msra.mxu0 %v1845
      %1871 = vmatprep.subr.bf16.mxu0 0
      %1872 = vmatpush1.bf16.msra.mxu0 %v1846
      %1873 = vmatprep.subr.bf16.mxu0 0
      %1874 = vmatpush1.bf16.msra.mxu0 %v1847
      %1875 = vmatprep.subr.bf16.mxu0 0
      %1876 = vmatpush1.bf16.msra.mxu0 0
      %1877 = vmatprep.subr.bf16.mxu0 0
      %1878 = vmatpush1.bf16.msra.mxu0 0
      %1879 = vmatprep.subr.bf16.mxu0 0
      %1880 = vmatpush1.bf16.msra.mxu0 0
      %1881 = vmatprep.subr.bf16.mxu0 0
      %1882 = vmatpush1.bf16.msra.mxu0 0
      %1883 = vmatprep.subr.bf16.mxu0 0
      %1884 = vmatpush1.bf16.msra.mxu0 0
      %1885 = vmatprep.subr.bf16.mxu0 0
      %1886 = vmatpush1.bf16.msra.mxu0 0
      %1887 = vmatprep.subr.bf16.mxu0 0
      %1888 = vmatpush1.bf16.msra.mxu0 0
      %1889 = vmatprep.subr.bf16.mxu0 0
      %1890 = vmatpush1.bf16.msra.mxu0 0
      %1891 = vmatprep.subr.bf16.mxu0 0
      %1892 = vmatpush1.bf16.msra.mxu0 0
      %1893 = vmatprep.subr.bf16.mxu0 0
      %1894 = vmatpush1.bf16.msra.mxu0 0
      %1895 = vmatprep.subr.bf16.mxu0 0
      %1896 = vmatpush1.bf16.msra.mxu0 0
      %1897 = vmatprep.subr.bf16.mxu0 0
      %1898 = vmatpush1.bf16.msra.mxu0 0
      %1899 = vmatprep.mubr.bf16.mxu0 0
      %1900 = vmatmul.mubr.bf16.gmra.mrb[0].mxu0 %v1853
      %v1901 = vpop.f32.mrb[0].mxu0
      %v1902 = vadd.f32 0.0, %v1901
      %v1903 = vpop.f32.mrb[0].mxu0
      %v1904 = vpop.f32.mrb[0].mxu0
      %v1905 = vadd.f32 0.0, %v1904
      %v1906 = vpop.f32.mrb[0].mxu0
      %1907 = vmatprep.mubr.bf16.mxu0 0
      %1908 = vmatmul.mubr.bf16.gmra.mrb[0].mxu0 %v1856
      %v1909 = vpop.f32.mrb[0].mxu0
      %v1910 = vadd.f32 0.0, %v1909
      %v1911 = vpop.f32.mrb[0].mxu0
      %v1912 = vpop.f32.mrb[0].mxu0
      %v1913 = vadd.f32 0.0, %v1912
      %v1914 = vpop.f32.mrb[0].mxu0
      %1915 = vmatprep.mubr.bf16.mxu0 0
      %1916 = vmatmul.mubr.bf16.gmra.mrb[0].mxu0 %v1859
      %v1917 = vpop.f32.mrb[0].mxu0
      %v1918 = vadd.f32 0.0, %v1917
      %v1919 = vpop.f32.mrb[0].mxu0
      %v1920 = vpop.f32.mrb[0].mxu0
      %v1921 = vadd.f32 0.0, %v1920
      %v1922 = vpop.f32.mrb[0].mxu0
      %1923 = vmatprep.mubr.bf16.mxu0 0
      %1924 = vmatmul.mubr.bf16.gmra.mrb[0].mxu0 %v1862
      %v1925 = vpop.f32.mrb[0].mxu0
      %v1926 = vadd.f32 0.0, %v1925
      %v1927 = vpop.f32.mrb[0].mxu0
      %v1928 = vpop.f32.mrb[0].mxu0
      %v1929 = vadd.f32 0.0, %v1928
      %v1930 = vpop.f32.mrb[0].mxu0
      %1931 = vmatprep.mubr.bf16.mxu0 0
      %1932 = vmatmul.mubr.bf16.gmra.mrb[0].mxu0 %v1865
      %v1933 = vpop.f32.mrb[0].mxu0
      %v1934 = vadd.f32 0.0, %v1933
      %v1935 = vpop.f32.mrb[0].mxu0
      %v1936 = vpop.f32.mrb[0].mxu0
      %v1937 = vpop.f32.mrb[0].mxu0
      %1938 = vdwg.mxu0
      %v1939 = vadd.f32 %v1795, %v1902
      %v1940 = vadd.f32 %v1796, %v1905
      %v1941 = vadd.f32 %v1797, %v1910
      %v1942 = vadd.f32 %v1798, %v1913
      %v1943 = vadd.f32 %v1799, %v1918
      %v1944 = vadd.f32 %v1800, %v1921
      %v1945 = vadd.f32 %v1801, %v1926
      %v1946 = vadd.f32 %v1802, %v1929
      %v1947 = vadd.f32 %v1803, %v1934
      %s1948 = scalar_lea.vmem %s4, 128
      %v1949 = vld [vmem:[%s1948] sm:$0xf]
      %v1950 = vld [vmem:[%s1948 + $0x4] sm:$0xf]
      %v1951 = vld [vmem:[%s1948 + $0x8] sm:$0xf]
      %v1952 = vld [vmem:[%s1948 + $0xc] sm:$0xf]
      %v1953 = vld [vmem:[%s1948 + $0x10] sm:$0xf]
      %v1954 = vld [vmem:[%s1948 + $0x14] sm:$0xf]
      %v1955 = vld [vmem:[%s1948 + $0x18] sm:$0xf]
      %v1956 = vld [vmem:[%s1948 + $0x1c] sm:$0xf]
      %vm1957 = vsmask.f32 6400
      %v1959 = vshrl.u32 %v1356, 16
      %v1961 = vrot.slane %v1959, 1
      %v1962 = vshll.u32 %v1356, 16
      %v1964 = vrot.slane %v1962, 2
      %v1965 = vor.u32 %v1961, %v1964
      %v1967 = vshrl.u32 %v1357, 16
      %v1969 = vrot.slane %v1967, 1
      %v1970 = vshll.u32 %v1357, 16
      %v1972 = vrot.slane %v1970, 2
      %v1973 = vor.u32 %v1969, %v1972
      %v1974 = vsel %vm1957, %v1965, %v1973
      %v1976 = vshrl.u32 %v1358, 16
      %v1978 = vrot.slane %v1976, 1
      %v1979 = vshll.u32 %v1358, 16
      %v1981 = vrot.slane %v1979, 2
      %v1982 = vor.u32 %v1978, %v1981
      %v1983 = vsel %vm1957, %v1973, %v1982
      %v1985 = vshrl.u32 %v1359, 16
      %v1987 = vrot.slane %v1985, 1
      %v1988 = vshll.u32 %v1359, 16
      %v1990 = vrot.slane %v1988, 2
      %v1991 = vor.u32 %v1987, %v1990
      %v1992 = vsel %vm1957, %v1982, %v1991
      %v1994 = vshrl.u32 %v1360, 16
      %v1996 = vrot.slane %v1994, 1
      %v1997 = vshll.u32 %v1360, 16
      %v1999 = vrot.slane %v1997, 2
      %v2000 = vor.u32 %v1996, %v1999
      %v2001 = vsel %vm1957, %v1991, %v2000
      %v2010 = vunpack.c.l.b16 %v1949
      %v2011 = vunpack.c.l.b16 %v1950
      %v2012 = vunpack.c.l.b16 %v1951
      %v2013 = vunpack.c.l.b16 %v1952
      %v2014 = vunpack.c.l.b16 %v1953
      %v2015 = vunpack.c.l.b16 %v1954
      %v2016 = vunpack.c.l.b16 %v1955
      %v2017 = vunpack.c.l.b16 %v1956
      %v2018 = vpack.c.b16 %v2011, %v2010
      %v2019 = vpack.c.b16 %v2013, %v2012
      %v2020 = vpack.c.b16 %v2015, %v2014
      %v2021 = vpack.c.b16 %v2017, %v2016
      %v2027 = vsel %vm1442, %v1974, 0
      %v2030 = vsel %vm1442, %v1983, 0
      %v2033 = vsel %vm1442, %v1992, 0
      %v2036 = vsel %vm1442, %v2001, 0
      %v2039 = vsel %vm1442, %v2000, 0
      %2041 = vmatprep.subr.bf16.mxu0 0
      %2042 = vmatpush1.bf16.msra.mxu0 %v2018
      %2043 = vmatprep.subr.bf16.mxu0 0
      %2044 = vmatpush1.bf16.msra.mxu0 %v2019
      %2045 = vmatprep.subr.bf16.mxu0 0
      %2046 = vmatpush1.bf16.msra.mxu0 %v2020
      %2047 = vmatprep.subr.bf16.mxu0 0
      %2048 = vmatpush1.bf16.msra.mxu0 %v2021
      %2049 = vmatprep.subr.bf16.mxu0 0
      %2050 = vmatpush1.bf16.msra.mxu0 0
      %2051 = vmatprep.subr.bf16.mxu0 0
      %2052 = vmatpush1.bf16.msra.mxu0 0
      %2053 = vmatprep.subr.bf16.mxu0 0
      %2054 = vmatpush1.bf16.msra.mxu0 0
      %2055 = vmatprep.subr.bf16.mxu0 0
      %2056 = vmatpush1.bf16.msra.mxu0 0
      %2057 = vmatprep.subr.bf16.mxu0 0
      %2058 = vmatpush1.bf16.msra.mxu0 0
      %2059 = vmatprep.subr.bf16.mxu0 0
      %2060 = vmatpush1.bf16.msra.mxu0 0
      %2061 = vmatprep.subr.bf16.mxu0 0
      %2062 = vmatpush1.bf16.msra.mxu0 0
      %2063 = vmatprep.subr.bf16.mxu0 0
      %2064 = vmatpush1.bf16.msra.mxu0 0
      %2065 = vmatprep.subr.bf16.mxu0 0
      %2066 = vmatpush1.bf16.msra.mxu0 0
      %2067 = vmatprep.subr.bf16.mxu0 0
      %2068 = vmatpush1.bf16.msra.mxu0 0
      %2069 = vmatprep.subr.bf16.mxu0 0
      %2070 = vmatpush1.bf16.msra.mxu0 0
      %2071 = vmatprep.subr.bf16.mxu0 0
      %2072 = vmatpush1.bf16.msra.mxu0 0
      %2073 = vmatprep.mubr.bf16.mxu0 0
      %2074 = vmatmul.mubr.bf16.gmra.mrb[0].mxu0 %v2027
      %v2075 = vpop.f32.mrb[0].mxu0
      %v2076 = vadd.f32 0.0, %v2075
      %v2077 = vpop.f32.mrb[0].mxu0
      %v2078 = vpop.f32.mrb[0].mxu0
      %v2079 = vadd.f32 0.0, %v2078
      %v2080 = vpop.f32.mrb[0].mxu0
      %2081 = vmatprep.mubr.bf16.mxu0 0
      %2082 = vmatmul.mubr.bf16.gmra.mrb[0].mxu0 %v2030
      %v2083 = vpop.f32.mrb[0].mxu0
      %v2084 = vadd.f32 0.0, %v2083
      %v2085 = vpop.f32.mrb[0].mxu0
      %v2086 = vpop.f32.mrb[0].mxu0
      %v2087 = vadd.f32 0.0, %v2086
      %v2088 = vpop.f32.mrb[0].mxu0
      %2089 = vmatprep.mubr.bf16.mxu0 0
      %2090 = vmatmul.mubr.bf16.gmra.mrb[0].mxu0 %v2033
      %v2091 = vpop.f32.mrb[0].mxu0
      %v2092 = vadd.f32 0.0, %v2091
      %v2093 = vpop.f32.mrb[0].mxu0
      %v2094 = vpop.f32.mrb[0].mxu0
      %v2095 = vadd.f32 0.0, %v2094
      %v2096 = vpop.f32.mrb[0].mxu0
      %2097 = vmatprep.mubr.bf16.mxu0 0
      %2098 = vmatmul.mubr.bf16.gmra.mrb[0].mxu0 %v2036
      %v2099 = vpop.f32.mrb[0].mxu0
      %v2100 = vadd.f32 0.0, %v2099
      %v2101 = vpop.f32.mrb[0].mxu0
      %v2102 = vpop.f32.mrb[0].mxu0
      %v2103 = vadd.f32 0.0, %v2102
      %v2104 = vpop.f32.mrb[0].mxu0
      %2105 = vmatprep.mubr.bf16.mxu0 0
      %2106 = vmatmul.mubr.bf16.gmra.mrb[0].mxu0 %v2039
      %v2107 = vpop.f32.mrb[0].mxu0
      %v2108 = vadd.f32 0.0, %v2107
      %v2109 = vpop.f32.mrb[0].mxu0
      %v2110 = vpop.f32.mrb[0].mxu0
      %v2111 = vpop.f32.mrb[0].mxu0
      %2112 = vdwg.mxu0
      %v2113 = vadd.f32 %v1939, %v2076
      %v2114 = vadd.f32 %v1940, %v2079
      %v2115 = vadd.f32 %v1941, %v2084
      %v2116 = vadd.f32 %v1942, %v2087
      %v2117 = vadd.f32 %v1943, %v2092
      %v2118 = vadd.f32 %v1944, %v2095
      %v2119 = vadd.f32 %v1945, %v2100
      %v2120 = vadd.f32 %v1946, %v2103
      %v2121 = vadd.f32 %v1947, %v2108
      %s2122 = scalar_lea.vmem %s4, 160
      %v2123 = vld [vmem:[%s2122] sm:$0xf]
      %v2124 = vld [vmem:[%s2122 + $0x4] sm:$0xf]
      %v2125 = vld [vmem:[%s2122 + $0x8] sm:$0xf]
      %v2126 = vld [vmem:[%s2122 + $0xc] sm:$0xf]
      %v2127 = vld [vmem:[%s2122 + $0x10] sm:$0xf]
      %v2128 = vld [vmem:[%s2122 + $0x14] sm:$0xf]
      %v2129 = vld [vmem:[%s2122 + $0x18] sm:$0xf]
      %v2130 = vld [vmem:[%s2122 + $0x1c] sm:$0xf]
      %v2132 = vshrl.u32 %v1351, 16
      %v2134 = vrot.slane %v2132, 1
      %v2135 = vshll.u32 %v1351, 16
      %v2137 = vrot.slane %v2135, 2
      %v2138 = vor.u32 %v2134, %v2137
      %v2140 = vshrl.u32 %v1352, 16
      %v2142 = vrot.slane %v2140, 1
      %v2143 = vshll.u32 %v1352, 16
      %v2145 = vrot.slane %v2143, 2
      %v2146 = vor.u32 %v2142, %v2145
      %v2147 = vsel %vm1957, %v2138, %v2146
      %v2149 = vshrl.u32 %v1353, 16
      %v2151 = vrot.slane %v2149, 1
      %v2152 = vshll.u32 %v1353, 16
      %v2154 = vrot.slane %v2152, 2
      %v2155 = vor.u32 %v2151, %v2154
      %v2156 = vsel %vm1957, %v2146, %v2155
      %v2158 = vshrl.u32 %v1354, 16
      %v2160 = vrot.slane %v2158, 1
      %v2161 = vshll.u32 %v1354, 16
      %v2163 = vrot.slane %v2161, 2
      %v2164 = vor.u32 %v2160, %v2163
      %v2165 = vsel %vm1957, %v2155, %v2164
      %v2167 = vshrl.u32 %v1355, 16
      %v2169 = vrot.slane %v2167, 1
      %v2170 = vshll.u32 %v1355, 16
      %v2172 = vrot.slane %v2170, 2
      %v2173 = vor.u32 %v2169, %v2172
      %v2174 = vsel %vm1957, %v2164, %v2173
      %v2183 = vunpack.c.l.b16 %v2123
      %v2184 = vunpack.c.l.b16 %v2124
      %v2185 = vunpack.c.l.b16 %v2125
      %v2186 = vunpack.c.l.b16 %v2126
      %v2187 = vunpack.c.l.b16 %v2127
      %v2188 = vunpack.c.l.b16 %v2128
      %v2189 = vunpack.c.l.b16 %v2129
      %v2190 = vunpack.c.l.b16 %v2130
      %v2191 = vpack.c.b16 %v2184, %v2183
      %v2192 = vpack.c.b16 %v2186, %v2185
      %v2193 = vpack.c.b16 %v2188, %v2187
      %v2194 = vpack.c.b16 %v2190, %v2189
      %v2200 = vsel %vm1442, %v2147, 0
      %v2203 = vsel %vm1442, %v2156, 0
      %v2206 = vsel %vm1442, %v2165, 0
      %v2209 = vsel %vm1442, %v2174, 0
      %v2212 = vsel %vm1442, %v2173, 0
      %2214 = vmatprep.subr.bf16.mxu0 0
      %2215 = vmatpush1.bf16.msra.mxu0 %v2191
      %2216 = vmatprep.subr.bf16.mxu0 0
      %2217 = vmatpush1.bf16.msra.mxu0 %v2192
      %2218 = vmatprep.subr.bf16.mxu0 0
      %2219 = vmatpush1.bf16.msra.mxu0 %v2193
      %2220 = vmatprep.subr.bf16.mxu0 0
      %2221 = vmatpush1.bf16.msra.mxu0 %v2194
      %2222 = vmatprep.subr.bf16.mxu0 0
      %2223 = vmatpush1.bf16.msra.mxu0 0
      %2224 = vmatprep.subr.bf16.mxu0 0
      %2225 = vmatpush1.bf16.msra.mxu0 0
      %2226 = vmatprep.subr.bf16.mxu0 0
      %2227 = vmatpush1.bf16.msra.mxu0 0
      %2228 = vmatprep.subr.bf16.mxu0 0
      %2229 = vmatpush1.bf16.msra.mxu0 0
      %2230 = vmatprep.subr.bf16.mxu0 0
      %2231 = vmatpush1.bf16.msra.mxu0 0
      %2232 = vmatprep.subr.bf16.mxu0 0
      %2233 = vmatpush1.bf16.msra.mxu0 0
      %2234 = vmatprep.subr.bf16.mxu0 0
      %2235 = vmatpush1.bf16.msra.mxu0 0
      %2236 = vmatprep.subr.bf16.mxu0 0
      %2237 = vmatpush1.bf16.msra.mxu0 0
      %2238 = vmatprep.subr.bf16.mxu0 0
      %2239 = vmatpush1.bf16.msra.mxu0 0
      %2240 = vmatprep.subr.bf16.mxu0 0
      %2241 = vmatpush1.bf16.msra.mxu0 0
      %2242 = vmatprep.subr.bf16.mxu0 0
      %2243 = vmatpush1.bf16.msra.mxu0 0
      %2244 = vmatprep.subr.bf16.mxu0 0
      %2245 = vmatpush1.bf16.msra.mxu0 0
      %2246 = vmatprep.mubr.bf16.mxu0 0
      %2247 = vmatmul.mubr.bf16.gmra.mrb[0].mxu0 %v2200
      %v2248 = vpop.f32.mrb[0].mxu0
      %v2249 = vadd.f32 0.0, %v2248
      %v2250 = vpop.f32.mrb[0].mxu0
      %v2251 = vpop.f32.mrb[0].mxu0
      %v2252 = vadd.f32 0.0, %v2251
      %v2253 = vpop.f32.mrb[0].mxu0
      %2254 = vmatprep.mubr.bf16.mxu0 0
      %2255 = vmatmul.mubr.bf16.gmra.mrb[0].mxu0 %v2203
      %v2256 = vpop.f32.mrb[0].mxu0
      %v2257 = vadd.f32 0.0, %v2256
      %v2258 = vpop.f32.mrb[0].mxu0
      %v2259 = vpop.f32.mrb[0].mxu0
      %v2260 = vadd.f32 0.0, %v2259
      %v2261 = vpop.f32.mrb[0].mxu0
      %2262 = vmatprep.mubr.bf16.mxu0 0
      %2263 = vmatmul.mubr.bf16.gmra.mrb[0].mxu0 %v2206
      %v2264 = vpop.f32.mrb[0].mxu0
      %v2265 = vadd.f32 0.0, %v2264
      %v2266 = vpop.f32.mrb[0].mxu0
      %v2267 = vpop.f32.mrb[0].mxu0
      %v2268 = vadd.f32 0.0, %v2267
      %v2269 = vpop.f32.mrb[0].mxu0
      %2270 = vmatprep.mubr.bf16.mxu0 0
      %2271 = vmatmul.mubr.bf16.gmra.mrb[0].mxu0 %v2209
      %v2272 = vpop.f32.mrb[0].mxu0
      %v2273 = vadd.f32 0.0, %v2272
      %v2274 = vpop.f32.mrb[0].mxu0
      %v2275 = vpop.f32.mrb[0].mxu0
      %v2276 = vadd.f32 0.0, %v2275
      %v2277 = vpop.f32.mrb[0].mxu0
      %2278 = vmatprep.mubr.bf16.mxu0 0
      %2279 = vmatmul.mubr.bf16.gmra.mrb[0].mxu0 %v2212
      %v2280 = vpop.f32.mrb[0].mxu0
      %v2281 = vadd.f32 0.0, %v2280
      %v2282 = vpop.f32.mrb[0].mxu0
      %v2283 = vpop.f32.mrb[0].mxu0
      %v2284 = vpop.f32.mrb[0].mxu0
      %2285 = vdwg.mxu0
      %v2286 = vadd.f32 %v2113, %v2249
      %v2287 = vadd.f32 %v2114, %v2252
      %v2288 = vadd.f32 %v2115, %v2257
      %v2289 = vadd.f32 %v2116, %v2260
      %v2290 = vadd.f32 %v2117, %v2265
      %v2291 = vadd.f32 %v2118, %v2268
      %v2292 = vadd.f32 %v2119, %v2273
      %v2293 = vadd.f32 %v2120, %v2276
      %v2294 = vadd.f32 %v2121, %v2281
      %s2295 = scalar_lea.vmem %s4, 192
      %v2296 = vld [vmem:[%s2295] sm:$0xf]
      %v2297 = vld [vmem:[%s2295 + $0x4] sm:$0xf]
      %v2298 = vld [vmem:[%s2295 + $0x8] sm:$0xf]
      %v2299 = vld [vmem:[%s2295 + $0xc] sm:$0xf]
      %v2300 = vld [vmem:[%s2295 + $0x10] sm:$0xf]
      %v2301 = vld [vmem:[%s2295 + $0x14] sm:$0xf]
      %v2302 = vld [vmem:[%s2295 + $0x18] sm:$0xf]
      %v2303 = vld [vmem:[%s2295 + $0x1c] sm:$0xf]
      %vm2304 = vsmask.f32 3328
      %v2305 = vrot.slane %v1650, 4
      %v2306 = vrot.slane %v1652, 5
      %v2307 = vor.u32 %v2305, %v2306
      %v2308 = vrot.slane %v1660, 4
      %v2309 = vrot.slane %v1656, 5
      %v2310 = vor.u32 %v2308, %v2309
      %v2311 = vsel %vm2304, %v2307, %v2310
      %v2312 = vrot.slane %v1667, 4
      %v2313 = vrot.slane %v1663, 5
      %v2314 = vor.u32 %v2312, %v2313
      %v2315 = vsel %vm2304, %v2310, %v2314
      %v2316 = vrot.slane %v1674, 4
      %v2317 = vrot.slane %v1670, 5
      %v2318 = vor.u32 %v2316, %v2317
      %v2319 = vsel %vm2304, %v2314, %v2318
      %v2320 = vrot.slane %v1681, 4
      %v2321 = vrot.slane %v1677, 5
      %v2322 = vor.u32 %v2320, %v2321
      %v2323 = vsel %vm2304, %v2318, %v2322
      %v2332 = vunpack.c.l.b16 %v2296
      %v2333 = vunpack.c.l.b16 %v2297
      %v2334 = vunpack.c.l.b16 %v2298
      %v2335 = vunpack.c.l.b16 %v2299
      %v2336 = vunpack.c.l.b16 %v2300
      %v2337 = vunpack.c.l.b16 %v2301
      %v2338 = vunpack.c.l.b16 %v2302
      %v2339 = vunpack.c.l.b16 %v2303
      %v2340 = vpack.c.b16 %v2333, %v2332
      %v2341 = vpack.c.b16 %v2335, %v2334
      %v2342 = vpack.c.b16 %v2337, %v2336
      %v2343 = vpack.c.b16 %v2339, %v2338
      %v2349 = vsel %vm1442, %v2311, 0
      %v2352 = vsel %vm1442, %v2315, 0
      %v2355 = vsel %vm1442, %v2319, 0
      %v2358 = vsel %vm1442, %v2323, 0
      %v2361 = vsel %vm1442, %v2322, 0
      %2363 = vmatprep.subr.bf16.mxu0 0
      %2364 = vmatpush1.bf16.msra.mxu0 %v2340
      %2365 = vmatprep.subr.bf16.mxu0 0
      %2366 = vmatpush1.bf16.msra.mxu0 %v2341
      %2367 = vmatprep.subr.bf16.mxu0 0
      %2368 = vmatpush1.bf16.msra.mxu0 %v2342
      %2369 = vmatprep.subr.bf16.mxu0 0
      %2370 = vmatpush1.bf16.msra.mxu0 %v2343
      %2371 = vmatprep.subr.bf16.mxu0 0
      %2372 = vmatpush1.bf16.msra.mxu0 0
      %2373 = vmatprep.subr.bf16.mxu0 0
      %2374 = vmatpush1.bf16.msra.mxu0 0
      %2375 = vmatprep.subr.bf16.mxu0 0
      %2376 = vmatpush1.bf16.msra.mxu0 0
      %2377 = vmatprep.subr.bf16.mxu0 0
      %2378 = vmatpush1.bf16.msra.mxu0 0
      %2379 = vmatprep.subr.bf16.mxu0 0
      %2380 = vmatpush1.bf16.msra.mxu0 0
      %2381 = vmatprep.subr.bf16.mxu0 0
      %2382 = vmatpush1.bf16.msra.mxu0 0
      %2383 = vmatprep.subr.bf16.mxu0 0
      %2384 = vmatpush1.bf16.msra.mxu0 0
      %2385 = vmatprep.subr.bf16.mxu0 0
      %2386 = vmatpush1.bf16.msra.mxu0 0
      %2387 = vmatprep.subr.bf16.mxu0 0
      %2388 = vmatpush1.bf16.msra.mxu0 0
      %2389 = vmatprep.subr.bf16.mxu0 0
      %2390 = vmatpush1.bf16.msra.mxu0 0
      %2391 = vmatprep.subr.bf16.mxu0 0
      %2392 = vmatpush1.bf16.msra.mxu0 0
      %2393 = vmatprep.subr.bf16.mxu0 0
      %2394 = vmatpush1.bf16.msra.mxu0 0
      %2395 = vmatprep.mubr.bf16.mxu0 0
      %2396 = vmatmul.mubr.bf16.gmra.mrb[0].mxu0 %v2349
      %v2397 = vpop.f32.mrb[0].mxu0
      %v2398 = vadd.f32 0.0, %v2397
      %v2399 = vpop.f32.mrb[0].mxu0
      %v2400 = vpop.f32.mrb[0].mxu0
      %v2401 = vadd.f32 0.0, %v2400
      %v2402 = vpop.f32.mrb[0].mxu0
      %2403 = vmatprep.mubr.bf16.mxu0 0
      %2404 = vmatmul.mubr.bf16.gmra.mrb[0].mxu0 %v2352
      %v2405 = vpop.f32.mrb[0].mxu0
      %v2406 = vadd.f32 0.0, %v2405
      %v2407 = vpop.f32.mrb[0].mxu0
      %v2408 = vpop.f32.mrb[0].mxu0
      %v2409 = vadd.f32 0.0, %v2408
      %v2410 = vpop.f32.mrb[0].mxu0
      %2411 = vmatprep.mubr.bf16.mxu0 0
      %2412 = vmatmul.mubr.bf16.gmra.mrb[0].mxu0 %v2355
      %v2413 = vpop.f32.mrb[0].mxu0
      %v2414 = vadd.f32 0.0, %v2413
      %v2415 = vpop.f32.mrb[0].mxu0
      %v2416 = vpop.f32.mrb[0].mxu0
      %v2417 = vadd.f32 0.0, %v2416
      %v2418 = vpop.f32.mrb[0].mxu0
      %2419 = vmatprep.mubr.bf16.mxu0 0
      %2420 = vmatmul.mubr.bf16.gmra.mrb[0].mxu0 %v2358
      %v2421 = vpop.f32.mrb[0].mxu0
      %v2422 = vadd.f32 0.0, %v2421
      %v2423 = vpop.f32.mrb[0].mxu0
      %v2424 = vpop.f32.mrb[0].mxu0
      %v2425 = vadd.f32 0.0, %v2424
      %v2426 = vpop.f32.mrb[0].mxu0
      %2427 = vmatprep.mubr.bf16.mxu0 0
      %2428 = vmatmul.mubr.bf16.gmra.mrb[0].mxu0 %v2361
      %v2429 = vpop.f32.mrb[0].mxu0
      %v2430 = vadd.f32 0.0, %v2429
      %v2431 = vpop.f32.mrb[0].mxu0
      %v2432 = vpop.f32.mrb[0].mxu0
      %v2433 = vpop.f32.mrb[0].mxu0
      %2434 = vdwg.mxu0
      %v2435 = vadd.f32 %v2286, %v2398
      %v2436 = vadd.f32 %v2287, %v2401
      %v2437 = vadd.f32 %v2288, %v2406
      %v2438 = vadd.f32 %v2289, %v2409
      %v2439 = vadd.f32 %v2290, %v2414
      %v2440 = vadd.f32 %v2291, %v2417
      %v2441 = vadd.f32 %v2292, %v2422
      %v2442 = vadd.f32 %v2293, %v2425
      %v2443 = vadd.f32 %v2294, %v2430
      %s2444 = scalar_lea.vmem %s4, 224
      %v2445 = vld [vmem:[%s2444] sm:$0xf]
      %v2446 = vld [vmem:[%s2444 + $0x4] sm:$0xf]
      %v2447 = vld [vmem:[%s2444 + $0x8] sm:$0xf]
      %v2448 = vld [vmem:[%s2444 + $0xc] sm:$0xf]
      %v2449 = vld [vmem:[%s2444 + $0x10] sm:$0xf]
      %v2450 = vld [vmem:[%s2444 + $0x14] sm:$0xf]
      %v2451 = vld [vmem:[%s2444 + $0x18] sm:$0xf]
      %v2452 = vld [vmem:[%s2444 + $0x1c] sm:$0xf]
      %vm2458 = vcmask 1042432
      %v2459 = vrot.slane %v1346, 5
      %v2460 = vrot.slane %v1347, 5
      %v2461 = vsel %vm2458, %v2459, %v2460
      %v2462 = vrot.slane %v1348, 5
      %v2463 = vsel %vm2458, %v2460, %v2462
      %v2464 = vrot.slane %v1349, 5
      %v2465 = vsel %vm2458, %v2462, %v2464
      %v2466 = vrot.slane %v1350, 5
      %v2467 = vsel %vm2458, %v2464, %v2466
      %v2468 = vrot.slane %v1351, 5
      %v2469 = vsel %vm2458, %v2466, %v2468
      %v2478 = vunpack.c.l.b16 %v2445
      %v2479 = vunpack.c.l.b16 %v2446
      %v2480 = vunpack.c.l.b16 %v2447
      %v2481 = vunpack.c.l.b16 %v2448
      %v2482 = vunpack.c.l.b16 %v2449
      %v2483 = vunpack.c.l.b16 %v2450
      %v2484 = vunpack.c.l.b16 %v2451
      %v2485 = vunpack.c.l.b16 %v2452
      %v2486 = vpack.c.b16 %v2479, %v2478
      %v2487 = vpack.c.b16 %v2481, %v2480
      %v2488 = vpack.c.b16 %v2483, %v2482
      %v2489 = vpack.c.b16 %v2485, %v2484
      %v2495 = vsel %vm1442, %v2461, 0
      %v2498 = vsel %vm1442, %v2463, 0
      %v2501 = vsel %vm1442, %v2465, 0
      %v2504 = vsel %vm1442, %v2467, 0
      %v2507 = vsel %vm1442, %v2469, 0
      %2509 = vmatprep.subr.bf16.mxu0 0
      %2510 = vmatpush1.bf16.msra.mxu0 %v2486
      %2511 = vmatprep.subr.bf16.mxu0 0
      %2512 = vmatpush1.bf16.msra.mxu0 %v2487
      %2513 = vmatprep.subr.bf16.mxu0 0
      %2514 = vmatpush1.bf16.msra.mxu0 %v2488
      %2515 = vmatprep.subr.bf16.mxu0 0
      %2516 = vmatpush1.bf16.msra.mxu0 %v2489
      %2517 = vmatprep.subr.bf16.mxu0 0
      %2518 = vmatpush1.bf16.msra.mxu0 0
      %2519 = vmatprep.subr.bf16.mxu0 0
      %2520 = vmatpush1.bf16.msra.mxu0 0
      %2521 = vmatprep.subr.bf16.mxu0 0
      %2522 = vmatpush1.bf16.msra.mxu0 0
      %2523 = vmatprep.subr.bf16.mxu0 0
      %2524 = vmatpush1.bf16.msra.mxu0 0
      %2525 = vmatprep.subr.bf16.mxu0 0
      %2526 = vmatpush1.bf16.msra.mxu0 0
      %2527 = vmatprep.subr.bf16.mxu0 0
      %2528 = vmatpush1.bf16.msra.mxu0 0
      %2529 = vmatprep.subr.bf16.mxu0 0
      %2530 = vmatpush1.bf16.msra.mxu0 0
      %2531 = vmatprep.subr.bf16.mxu0 0
      %2532 = vmatpush1.bf16.msra.mxu0 0
      %2533 = vmatprep.subr.bf16.mxu0 0
      %2534 = vmatpush1.bf16.msra.mxu0 0
      %2535 = vmatprep.subr.bf16.mxu0 0
      %2536 = vmatpush1.bf16.msra.mxu0 0
      %2537 = vmatprep.subr.bf16.mxu0 0
      %2538 = vmatpush1.bf16.msra.mxu0 0
      %2539 = vmatprep.subr.bf16.mxu0 0
      %2540 = vmatpush1.bf16.msra.mxu0 0
      %2541 = vmatprep.mubr.bf16.mxu0 0
      %2542 = vmatmul.mubr.bf16.gmra.mrb[0].mxu0 %v2495
      %v2543 = vpop.f32.mrb[0].mxu0
      %v2544 = vadd.f32 0.0, %v2543
      %v2545 = vpop.f32.mrb[0].mxu0
      %v2546 = vpop.f32.mrb[0].mxu0
      %v2547 = vadd.f32 0.0, %v2546
      %v2548 = vpop.f32.mrb[0].mxu0
      %2549 = vmatprep.mubr.bf16.mxu0 0
      %2550 = vmatmul.mubr.bf16.gmra.mrb[0].mxu0 %v2498
      %v2551 = vpop.f32.mrb[0].mxu0
      %v2552 = vadd.f32 0.0, %v2551
      %v2553 = vpop.f32.mrb[0].mxu0
      %v2554 = vpop.f32.mrb[0].mxu0
      %v2555 = vadd.f32 0.0, %v2554
      %v2556 = vpop.f32.mrb[0].mxu0
      %2557 = vmatprep.mubr.bf16.mxu0 0
      %2558 = vmatmul.mubr.bf16.gmra.mrb[0].mxu0 %v2501
      %v2559 = vpop.f32.mrb[0].mxu0
      %v2560 = vadd.f32 0.0, %v2559
      %v2561 = vpop.f32.mrb[0].mxu0
      %v2562 = vpop.f32.mrb[0].mxu0
      %v2563 = vadd.f32 0.0, %v2562
      %v2564 = vpop.f32.mrb[0].mxu0
      %2565 = vmatprep.mubr.bf16.mxu0 0
      %2566 = vmatmul.mubr.bf16.gmra.mrb[0].mxu0 %v2504
      %v2567 = vpop.f32.mrb[0].mxu0
      %v2568 = vadd.f32 0.0, %v2567
      %v2569 = vpop.f32.mrb[0].mxu0
      %v2570 = vpop.f32.mrb[0].mxu0
      %v2571 = vadd.f32 0.0, %v2570
      %v2572 = vpop.f32.mrb[0].mxu0
      %2573 = vmatprep.mubr.bf16.mxu0 0
      %2574 = vmatmul.mubr.bf16.gmra.mrb[0].mxu0 %v2507
      %v2575 = vpop.f32.mrb[0].mxu0
      %v2576 = vadd.f32 0.0, %v2575
      %v2577 = vpop.f32.mrb[0].mxu0
      %v2578 = vpop.f32.mrb[0].mxu0
      %v2579 = vpop.f32.mrb[0].mxu0
      %2580 = vdwg.mxu0
      %v2581 = vadd.f32 %v2435, %v2544
      %v2582 = vadd.f32 %v2436, %v2547
      %v2583 = vadd.f32 %v2437, %v2552
      %v2584 = vadd.f32 %v2438, %v2555
      %v2585 = vadd.f32 %v2439, %v2560
      %v2586 = vadd.f32 %v2440, %v2563
      %v2587 = vadd.f32 %v2441, %v2568
      %v2588 = vadd.f32 %v2442, %v2571
      %v2589 = vadd.f32 %v2443, %v2576
      %s2590 = scalar_lea.vmem %s4, 256
      %v2591 = vld [vmem:[%s2590] sm:$0xf]
      %v2592 = vld [vmem:[%s2590 + $0x4] sm:$0xf]
      %v2593 = vld [vmem:[%s2590 + $0x8] sm:$0xf]
      %v2594 = vld [vmem:[%s2590 + $0xc] sm:$0xf]
      %v2595 = vld [vmem:[%s2590 + $0x10] sm:$0xf]
      %v2596 = vld [vmem:[%s2590 + $0x14] sm:$0xf]
      %v2597 = vld [vmem:[%s2590 + $0x18] sm:$0xf]
      %v2598 = vld [vmem:[%s2590 + $0x1c] sm:$0xf]
      %v2604 = vrot.slane %v1341, 5
      %v2605 = vrot.slane %v1342, 5
      %v2606 = vsel %vm2458, %v2604, %v2605
      %v2607 = vrot.slane %v1343, 5
      %v2608 = vsel %vm2458, %v2605, %v2607
      %v2609 = vrot.slane %v1344, 5
      %v2610 = vsel %vm2458, %v2607, %v2609
      %v2611 = vrot.slane %v1345, 5
      %v2612 = vsel %vm2458, %v2609, %v2611
      %v2613 = vsel %vm2458, %v2611, %v2459
      %v2622 = vunpack.c.l.b16 %v2591
      %v2623 = vunpack.c.l.b16 %v2592
      %v2624 = vunpack.c.l.b16 %v2593
      %v2625 = vunpack.c.l.b16 %v2594
      %v2626 = vunpack.c.l.b16 %v2595
      %v2627 = vunpack.c.l.b16 %v2596
      %v2628 = vunpack.c.l.b16 %v2597
      %v2629 = vunpack.c.l.b16 %v2598
      %v2630 = vpack.c.b16 %v2623, %v2622
      %v2631 = vpack.c.b16 %v2625, %v2624
      %v2632 = vpack.c.b16 %v2627, %v2626
      %v2633 = vpack.c.b16 %v2629, %v2628
      %v2639 = vsel %vm1442, %v2606, 0
      %v2642 = vsel %vm1442, %v2608, 0
      %v2645 = vsel %vm1442, %v2610, 0
      %v2648 = vsel %vm1442, %v2612, 0
      %v2651 = vsel %vm1442, %v2613, 0
      %2653 = vmatprep.subr.bf16.mxu0 0
      %2654 = vmatpush1.bf16.msra.mxu0 %v2630
      %2655 = vmatprep.subr.bf16.mxu0 0
      %2656 = vmatpush1.bf16.msra.mxu0 %v2631
      %2657 = vmatprep.subr.bf16.mxu0 0
      %2658 = vmatpush1.bf16.msra.mxu0 %v2632
      %2659 = vmatprep.subr.bf16.mxu0 0
      %2660 = vmatpush1.bf16.msra.mxu0 %v2633
      %2661 = vmatprep.subr.bf16.mxu0 0
      %2662 = vmatpush1.bf16.msra.mxu0 0
      %2663 = vmatprep.subr.bf16.mxu0 0
      %2664 = vmatpush1.bf16.msra.mxu0 0
      %2665 = vmatprep.subr.bf16.mxu0 0
      %2666 = vmatpush1.bf16.msra.mxu0 0
      %2667 = vmatprep.subr.bf16.mxu0 0
      %2668 = vmatpush1.bf16.msra.mxu0 0
      %2669 = vmatprep.subr.bf16.mxu0 0
      %2670 = vmatpush1.bf16.msra.mxu0 0
      %2671 = vmatprep.subr.bf16.mxu0 0
      %2672 = vmatpush1.bf16.msra.mxu0 0
      %2673 = vmatprep.subr.bf16.mxu0 0
      %2674 = vmatpush1.bf16.msra.mxu0 0
      %2675 = vmatprep.subr.bf16.mxu0 0
      %2676 = vmatpush1.bf16.msra.mxu0 0
      %2677 = vmatprep.subr.bf16.mxu0 0
      %2678 = vmatpush1.bf16.msra.mxu0 0
      %2679 = vmatprep.subr.bf16.mxu0 0
      %2680 = vmatpush1.bf16.msra.mxu0 0
      %2681 = vmatprep.subr.bf16.mxu0 0
      %2682 = vmatpush1.bf16.msra.mxu0 0
      %2683 = vmatprep.subr.bf16.mxu0 0
      %2684 = vmatpush1.bf16.msra.mxu0 0
      %2685 = vmatprep.mubr.bf16.mxu0 0
      %2686 = vmatmul.mubr.bf16.gmra.mrb[0].mxu0 %v2639
      %v2687 = vpop.f32.mrb[0].mxu0
      %v2688 = vadd.f32 0.0, %v2687
      %v2689 = vpop.f32.mrb[0].mxu0
      %v2690 = vpop.f32.mrb[0].mxu0
      %v2691 = vadd.f32 0.0, %v2690
      %v2692 = vpop.f32.mrb[0].mxu0
      %2693 = vmatprep.mubr.bf16.mxu0 0
      %2694 = vmatmul.mubr.bf16.gmra.mrb[0].mxu0 %v2642
      %v2695 = vpop.f32.mrb[0].mxu0
      %v2696 = vadd.f32 0.0, %v2695
      %v2697 = vpop.f32.mrb[0].mxu0
      %v2698 = vpop.f32.mrb[0].mxu0
      %v2699 = vadd.f32 0.0, %v2698
      %v2700 = vpop.f32.mrb[0].mxu0
      %2701 = vmatprep.mubr.bf16.mxu0 0
      %2702 = vmatmul.mubr.bf16.gmra.mrb[0].mxu0 %v2645
      %v2703 = vpop.f32.mrb[0].mxu0
      %v2704 = vadd.f32 0.0, %v2703
      %v2705 = vpop.f32.mrb[0].mxu0
      %v2706 = vpop.f32.mrb[0].mxu0
      %v2707 = vadd.f32 0.0, %v2706
      %v2708 = vpop.f32.mrb[0].mxu0
      %2709 = vmatprep.mubr.bf16.mxu0 0
      %2710 = vmatmul.mubr.bf16.gmra.mrb[0].mxu0 %v2648
      %v2711 = vpop.f32.mrb[0].mxu0
      %v2712 = vadd.f32 0.0, %v2711
      %v2713 = vpop.f32.mrb[0].mxu0
      %v2714 = vpop.f32.mrb[0].mxu0
      %v2715 = vadd.f32 0.0, %v2714
      %v2716 = vpop.f32.mrb[0].mxu0
      %2717 = vmatprep.mubr.bf16.mxu0 0
      %2718 = vmatmul.mubr.bf16.gmra.mrb[0].mxu0 %v2651
      %v2719 = vpop.f32.mrb[0].mxu0
      %v2720 = vadd.f32 0.0, %v2719
      %v2721 = vpop.f32.mrb[0].mxu0
      %v2722 = vpop.f32.mrb[0].mxu0
      %v2723 = vpop.f32.mrb[0].mxu0
      %2724 = vdwg.mxu0
      %v2725 = vadd.f32 %v2581, %v2688
      %v2726 = vadd.f32 %v2582, %v2691
      %v2727 = vadd.f32 %v2583, %v2696
      %v2728 = vadd.f32 %v2584, %v2699
      %v2729 = vadd.f32 %v2585, %v2704
      %v2730 = vadd.f32 %v2586, %v2707
      %v2731 = vadd.f32 %v2587, %v2712
      %v2732 = vadd.f32 %v2588, %v2715
      %v2733 = vadd.f32 %v2589, %v2720
      %v2734 = vlaneseq
      %v2735 = vshrl.u32 %v2734, 7
      %v2736 = vadd.s32 %v2735, 8
      %v2737 = vadd.s32 %v2735, 16
      %v2738 = vadd.s32 %v2735, 24
      %v2739 = vadd.s32 %v2735, 32
      %v2740 = vadd.s32 %v2735, 40
      %v2741 = vadd.s32 %v2735, 48
      %v2742 = vadd.s32 %v2735, 56
      %v2743 = vadd.s32 %v2735, 64
      %vm2744 = vcmp.ne.s32.totalorder %v2735, 8
      %vm2745 = vcmp.ne.s32.totalorder %v2736, 8
      %vm2746 = vcmp.ne.s32.totalorder %v2737, 8
      %vm2747 = vcmp.ne.s32.totalorder %v2738, 8
      %vm2748 = vcmp.ne.s32.totalorder %v2739, 8
      %vm2749 = vcmp.ne.s32.totalorder %v2740, 8
      %vm2750 = vcmp.ne.s32.totalorder %v2741, 8
      %vm2751 = vcmp.ne.s32.totalorder %v2742, 8
      %vm2752 = vcmp.ne.s32.totalorder %v2743, 8
      %vm2753 = vcmp.ne.s32.totalorder %v2735, 17
      %vm2754 = vcmp.ne.s32.totalorder %v2736, 17
      %vm2755 = vcmp.ne.s32.totalorder %v2737, 17
      %vm2756 = vcmp.ne.s32.totalorder %v2738, 17
      %vm2757 = vcmp.ne.s32.totalorder %v2739, 17
      %vm2758 = vcmp.ne.s32.totalorder %v2740, 17
      %vm2759 = vcmp.ne.s32.totalorder %v2741, 17
      %vm2760 = vcmp.ne.s32.totalorder %v2742, 17
      %vm2761 = vcmp.ne.s32.totalorder %v2743, 17
      %vm2762 = vmand %vm2744, %vm2753
      %vm2763 = vmand %vm2745, %vm2754
      %vm2764 = vmand %vm2746, %vm2755
      %vm2765 = vmand %vm2747, %vm2756
      %vm2766 = vmand %vm2748, %vm2757
      %vm2767 = vmand %vm2749, %vm2758
      %vm2768 = vmand %vm2750, %vm2759
      %vm2769 = vmand %vm2751, %vm2760
      %vm2770 = vmand %vm2752, %vm2761
      %vm2771 = vcmp.ne.s32.totalorder %v2735, 26
      %vm2772 = vcmp.ne.s32.totalorder %v2736, 26
      %vm2773 = vcmp.ne.s32.totalorder %v2737, 26
      %vm2774 = vcmp.ne.s32.totalorder %v2738, 26
      %vm2775 = vcmp.ne.s32.totalorder %v2739, 26
      %vm2776 = vcmp.ne.s32.totalorder %v2740, 26
      %vm2777 = vcmp.ne.s32.totalorder %v2741, 26
      %vm2778 = vcmp.ne.s32.totalorder %v2742, 26
      %vm2779 = vcmp.ne.s32.totalorder %v2743, 26
      %vm2780 = vmand %vm2762, %vm2771
      %vm2781 = vmand %vm2763, %vm2772
      %vm2782 = vmand %vm2764, %vm2773
      %vm2783 = vmand %vm2765, %vm2774
      %vm2784 = vmand %vm2766, %vm2775
      %vm2785 = vmand %vm2767, %vm2776
      %vm2786 = vmand %vm2768, %vm2777
      %vm2787 = vmand %vm2769, %vm2778
      %vm2788 = vmand %vm2770, %vm2779
      %vm2789 = vcmp.ne.s32.totalorder %v2735, 35
      %vm2790 = vcmp.ne.s32.totalorder %v2736, 35
      %vm2791 = vcmp.ne.s32.totalorder %v2737, 35
      %vm2792 = vcmp.ne.s32.totalorder %v2738, 35
      %vm2793 = vcmp.ne.s32.totalorder %v2739, 35
      %vm2794 = vcmp.ne.s32.totalorder %v2740, 35
      %vm2795 = vcmp.ne.s32.totalorder %v2741, 35
      %vm2796 = vcmp.ne.s32.totalorder %v2742, 35
      %vm2797 = vcmp.ne.s32.totalorder %v2743, 35
      %vm2798 = vmand %vm2780, %vm2789
      %vm2799 = vmand %vm2781, %vm2790
      %vm2800 = vmand %vm2782, %vm2791
      %vm2801 = vmand %vm2783, %vm2792
      %vm2802 = vmand %vm2784, %vm2793
      %vm2803 = vmand %vm2785, %vm2794
      %vm2804 = vmand %vm2786, %vm2795
      %vm2805 = vmand %vm2787, %vm2796
      %vm2806 = vmand %vm2788, %vm2797
      %vm2807 = vcmp.ne.s32.totalorder %v2735, 44
      %vm2808 = vcmp.ne.s32.totalorder %v2736, 44
      %vm2809 = vcmp.ne.s32.totalorder %v2737, 44
      %vm2810 = vcmp.ne.s32.totalorder %v2738, 44
      %vm2811 = vcmp.ne.s32.totalorder %v2739, 44
      %vm2812 = vcmp.ne.s32.totalorder %v2740, 44
      %vm2813 = vcmp.ne.s32.totalorder %v2741, 44
      %vm2814 = vcmp.ne.s32.totalorder %v2742, 44
      %vm2815 = vcmp.ne.s32.totalorder %v2743, 44
      %vm2816 = vmand %vm2798, %vm2807
      %vm2817 = vmand %vm2799, %vm2808
      %vm2818 = vmand %vm2800, %vm2809
      %vm2819 = vmand %vm2801, %vm2810
      %vm2820 = vmand %vm2802, %vm2811
      %vm2821 = vmand %vm2803, %vm2812
      %vm2822 = vmand %vm2804, %vm2813
      %vm2823 = vmand %vm2805, %vm2814
      %vm2824 = vmand %vm2806, %vm2815
      %vm2825 = vcmp.ne.s32.totalorder %v2735, 53
      %vm2826 = vcmp.ne.s32.totalorder %v2736, 53
      %vm2827 = vcmp.ne.s32.totalorder %v2737, 53
      %vm2828 = vcmp.ne.s32.totalorder %v2738, 53
      %vm2829 = vcmp.ne.s32.totalorder %v2739, 53
      %vm2830 = vcmp.ne.s32.totalorder %v2740, 53
      %vm2831 = vcmp.ne.s32.totalorder %v2741, 53
      %vm2832 = vcmp.ne.s32.totalorder %v2742, 53
      %vm2833 = vcmp.ne.s32.totalorder %v2743, 53
      %vm2834 = vmand %vm2816, %vm2825
      %vm2835 = vmand %vm2817, %vm2826
      %vm2836 = vmand %vm2818, %vm2827
      %vm2837 = vmand %vm2819, %vm2828
      %vm2838 = vmand %vm2820, %vm2829
      %vm2839 = vmand %vm2821, %vm2830
      %vm2840 = vmand %vm2822, %vm2831
      %vm2841 = vmand %vm2823, %vm2832
      %vm2842 = vmand %vm2824, %vm2833
      %vm2843 = vcmp.ne.s32.totalorder %v2735, 62
      %vm2844 = vcmp.ne.s32.totalorder %v2736, 62
      %vm2845 = vcmp.ne.s32.totalorder %v2737, 62
      %vm2846 = vcmp.ne.s32.totalorder %v2738, 62
      %vm2847 = vcmp.ne.s32.totalorder %v2739, 62
      %vm2848 = vcmp.ne.s32.totalorder %v2740, 62
      %vm2849 = vcmp.ne.s32.totalorder %v2741, 62
      %vm2850 = vcmp.ne.s32.totalorder %v2742, 62
      %vm2851 = vcmp.ne.s32.totalorder %v2743, 62
      %vm2852 = vmand %vm2834, %vm2843
      %vm2853 = vmand %vm2835, %vm2844
      %vm2854 = vmand %vm2836, %vm2845
      %vm2855 = vmand %vm2837, %vm2846
      %vm2856 = vmand %vm2838, %vm2847
      %vm2857 = vmand %vm2839, %vm2848
      %vm2858 = vmand %vm2840, %vm2849
      %vm2859 = vmand %vm2841, %vm2850
      %vm2860 = vmand %vm2842, %vm2851
      %v2861 = vsel %vm2852, 1, 0
      %v2862 = vsel %vm2853, 1, 0
      %v2863 = vsel %vm2854, 1, 0
      %v2864 = vsel %vm2855, 1, 0
      %v2865 = vsel %vm2856, 1, 0
      %v2866 = vsel %vm2857, 1, 0
      %v2867 = vsel %vm2858, 1, 0
      %v2868 = vsel %vm2859, 1, 0
      %v2869 = vsel %vm2860, 1, 0
      %v2870 = vcvt.s32.f32 %v2861
      %v2871 = vcvt.s32.f32 %v2862
      %v2872 = vcvt.s32.f32 %v2863
      %v2873 = vcvt.s32.f32 %v2864
      %v2874 = vcvt.s32.f32 %v2865
      %v2875 = vcvt.s32.f32 %v2866
      %v2876 = vcvt.s32.f32 %v2867
      %v2877 = vcvt.s32.f32 %v2868
      %v2878 = vcvt.s32.f32 %v2869
      %v2879 = vmul.f32 %v2725, %v2870
      %v2880 = vmul.f32 %v2726, %v2871
      %v2881 = vmul.f32 %v2727, %v2872
      %v2882 = vmul.f32 %v2728, %v2873
      %v2883 = vmul.f32 %v2729, %v2874
      %v2884 = vmul.f32 %v2730, %v2875
      %v2885 = vmul.f32 %v2731, %v2876
      %v2886 = vmul.f32 %v2732, %v2877
      %v2887 = vmul.f32 %v2733, %v2878
      %v2888 = vadd.f32 %v2879, %v2880
      %v2889 = vadd.f32 %v2888, %v2881
      %v2890 = vadd.f32 %v2889, %v2882
      %v2891 = vadd.f32 %v2890, %v2883
      %v2892 = vadd.f32 %v2891, %v2884
      %v2893 = vadd.f32 %v2892, %v2885
      %v2894 = vadd.f32 %v2893, %v2886
      %vm2895 = vcmask 1046528
      %v2896 = vsel %vm2895, %v2887, 0.0
      %v2897 = vadd.f32 %v2894, %v2896
      %v2898 = vrot.slane %v2897, 4
      %v2899 = vadd.f32 %v2897, %v2898
      %v2900 = vrot.slane %v2899, 2
      %v2901 = vadd.f32 %v2899, %v2900
      %v2902 = vrot.slane %v2901, 1
      %v2903 = vadd.f32 %v2901, %v2902
      %v2904 = vmul.f32 %v2903, 0.015625
      %v2905 = vsub.f32 %v2725, %v2904
      %v2906 = vsub.f32 %v2726, %v2904
      %v2907 = vsub.f32 %v2727, %v2904
      %v2908 = vsub.f32 %v2728, %v2904
      %v2909 = vsub.f32 %v2729, %v2904
      %v2910 = vsub.f32 %v2730, %v2904
      %v2911 = vsub.f32 %v2731, %v2904
      %v2912 = vsub.f32 %v2732, %v2904
      %v2913 = vsub.f32 %v2733, %v2904
      %v2914 = vmul.f32 %v2905, %v2870
      %v2915 = vmul.f32 %v2906, %v2871
      %v2916 = vmul.f32 %v2907, %v2872
      %v2917 = vmul.f32 %v2908, %v2873
      %v2918 = vmul.f32 %v2909, %v2874
      %v2919 = vmul.f32 %v2910, %v2875
      %v2920 = vmul.f32 %v2911, %v2876
      %v2921 = vmul.f32 %v2912, %v2877
      %v2922 = vmul.f32 %v2913, %v2878
      %v2923 = vmul.f32 %v2914, %v2914
      %v2924 = vmul.f32 %v2915, %v2915
      %v2925 = vmul.f32 %v2916, %v2916
      %v2926 = vmul.f32 %v2917, %v2917
      %v2927 = vmul.f32 %v2918, %v2918
      %v2928 = vmul.f32 %v2919, %v2919
      %v2929 = vmul.f32 %v2920, %v2920
      %v2930 = vmul.f32 %v2921, %v2921
      %v2931 = vmul.f32 %v2922, %v2922
      %v2932 = vadd.f32 %v2923, %v2924
      %v2933 = vadd.f32 %v2932, %v2925
      %v2934 = vadd.f32 %v2933, %v2926
      %v2935 = vadd.f32 %v2934, %v2927
      %v2936 = vadd.f32 %v2935, %v2928
      %v2937 = vadd.f32 %v2936, %v2929
      %v2938 = vadd.f32 %v2937, %v2930
      %v2939 = vsel %vm2895, %v2931, 0.0
      %v2940 = vadd.f32 %v2938, %v2939
      %v2941 = vrot.slane %v2940, 4
      %v2942 = vadd.f32 %v2940, %v2941
      %v2943 = vrot.slane %v2942, 2
      %v2944 = vadd.f32 %v2942, %v2943
      %v2945 = vrot.slane %v2944, 1
      %v2946 = vadd.f32 %v2944, %v2945
      %v2947 = vmul.f32 %v2946, 0.015625
      %v2948 = vadd.f32 %v2947, 1e-05
      %v2949 = vrsqrt.pop %v2948
      %v2950 = vmul.f32 %v2905, %v2949
      %v2951 = vmul.f32 %v2906, %v2949
      %v2952 = vmul.f32 %v2907, %v2949
      %v2953 = vmul.f32 %v2908, %v2949
      %v2954 = vmul.f32 %v2909, %v2949
      %v2955 = vmul.f32 %v2910, %v2949
      %v2956 = vmul.f32 %v2911, %v2949
      %v2957 = vmul.f32 %v2912, %v2949
      %v2958 = vmul.f32 %v2913, %v2949
      %vm2959 = vcmp.gt.f32.partialorder %v2950, 0.0
      %vm2960 = vcmp.gt.f32.partialorder %v2951, 0.0
      %vm2961 = vcmp.gt.f32.partialorder %v2952, 0.0
      %vm2962 = vcmp.gt.f32.partialorder %v2953, 0.0
      %vm2963 = vcmp.gt.f32.partialorder %v2954, 0.0
      %vm2964 = vcmp.gt.f32.partialorder %v2955, 0.0
      %vm2965 = vcmp.gt.f32.partialorder %v2956, 0.0
      %vm2966 = vcmp.gt.f32.partialorder %v2957, 0.0
      %vm2967 = vcmp.gt.f32.partialorder %v2958, 0.0
      %v2968 = vmul.f32 %v2950, 0.2
      %v2969 = vmul.f32 %v2951, 0.2
      %v2970 = vmul.f32 %v2952, 0.2
      %v2971 = vmul.f32 %v2953, 0.2
      %v2972 = vmul.f32 %v2954, 0.2
      %v2973 = vmul.f32 %v2955, 0.2
      %v2974 = vmul.f32 %v2956, 0.2
      %v2975 = vmul.f32 %v2957, 0.2
      %v2976 = vmul.f32 %v2958, 0.2
      %v2977 = vsel %vm2959, %v2950, %v2968
      %v2978 = vsel %vm2960, %v2951, %v2969
      %v2979 = vsel %vm2961, %v2952, %v2970
      %v2980 = vsel %vm2962, %v2953, %v2971
      %v2981 = vsel %vm2963, %v2954, %v2972
      %v2982 = vsel %vm2964, %v2955, %v2973
      %v2983 = vsel %vm2965, %v2956, %v2974
      %v2984 = vsel %vm2966, %v2957, %v2975
      %v2985 = vsel %vm2967, %v2958, %v2976
      %v2986 = vpack.c.bf16 %v2978, %v2977
      %v2987 = vpack.c.bf16 %v2980, %v2979
      %v2988 = vpack.c.bf16 %v2982, %v2981
      %v2989 = vpack.c.bf16 %v2984, %v2983
      %v2990 = vpack.c.bf16 %v2985, %v2985
      %v2991 = vld [vmem:[%s5] sm:$0xf]
      %v2992 = vld [vmem:[%s5 + $0x4] sm:$0xf]
      %v2993 = vld [vmem:[%s5 + $0x8] sm:$0xf]
      %v2994 = vld [vmem:[%s5 + $0xc] sm:$0xf]
      %v2995 = vld [vmem:[%s5 + $0x10] sm:$0xf]
      %v2996 = vld [vmem:[%s5 + $0x14] sm:$0xf]
      %v2997 = vld [vmem:[%s5 + $0x18] sm:$0xf]
      %v2998 = vld [vmem:[%s5 + $0x1c] sm:$0xf]
      %v2999 = vld [vmem:[%s5 + $0x20] sm:$0xf]
      %v3000 = vld [vmem:[%s5 + $0x24] sm:$0xf]
      %v3001 = vld [vmem:[%s5 + $0x28] sm:$0xf]
      %v3002 = vld [vmem:[%s5 + $0x2c] sm:$0xf]
      %v3003 = vld [vmem:[%s5 + $0x30] sm:$0x3]
      %v3017 = vunpack.c.l.b16 %v2991
      %v3018 = vunpack.c.l.b16 %v2992
      %v3019 = vunpack.c.l.b16 %v2993
      %v3020 = vunpack.c.l.b16 %v2994
      %v3021 = vunpack.c.l.b16 %v2995
      %v3022 = vunpack.c.l.b16 %v2996
      %v3023 = vunpack.c.l.b16 %v2997
      %v3024 = vunpack.c.l.b16 %v2998
      %v3025 = vunpack.c.l.b16 %v2999
      %v3026 = vunpack.c.l.b16 %v3000
      %v3027 = vunpack.c.l.b16 %v3001
      %v3028 = vunpack.c.l.b16 %v3002
      %v3029 = vunpack.c.l.b16 %v3003
      %v3030 = vpack.c.b16 %v3018, %v3017
      %v3031 = vpack.c.b16 %v3020, %v3019
      %v3032 = vpack.c.b16 %v3022, %v3021
      %v3033 = vpack.c.b16 %v3024, %v3023
      %v3034 = vpack.c.b16 %v3026, %v3025
      %v3035 = vpack.c.b16 %v3028, %v3027
      %v3036 = vpack.c.b16 %v3029, %v3029
      %vm3037 = vcmask 580608
      %v3039 = vsel %vm3037, %v3030, 0
      %v3042 = vsel %vm3037, %v3031, 0
      %v3045 = vsel %vm3037, %v3032, 0
      %v3048 = vsel %vm3037, %v3033, 0
      %v3051 = vsel %vm3037, %v3034, 0
      %v3054 = vsel %vm3037, %v3035, 0
      %v3057 = vsel %vm3037, %v3036, 0
      %vm3059 = vcmask 1042432
      %v3060 = vsel %vm3059, 4294967295, 65535
      %v3061 = vsel %vm617, %v3060, 0
      %v3063 = vand.u32 %v2990, %v3061
      %3065 = vmatprep.subr.bf16.mxu0 0
      %3066 = vmatpush1.bf16.msra.mxu0 %v2986
      %3067 = vmatprep.subr.bf16.mxu0 0
      %3068 = vmatpush1.bf16.msra.mxu0 %v2987
      %3069 = vmatprep.subr.bf16.mxu0 0
      %3070 = vmatpush1.bf16.msra.mxu0 %v2988
      %3071 = vmatprep.subr.bf16.mxu0 0
      %3072 = vmatpush1.bf16.msra.mxu0 %v2989
      %3073 = vmatprep.subr.bf16.mxu0 0
      %3074 = vmatpush1.bf16.msra.mxu0 %v3063
      %3075 = vmatprep.subr.bf16.mxu0 0
      %3076 = vmatpush1.bf16.msra.mxu0 0
      %3077 = vmatprep.subr.bf16.mxu0 0
      %3078 = vmatpush1.bf16.msra.mxu0 0
      %3079 = vmatprep.subr.bf16.mxu0 0
      %3080 = vmatpush1.bf16.msra.mxu0 0
      %3081 = vmatprep.subr.bf16.mxu0 0
      %3082 = vmatpush1.bf16.msra.mxu0 0
      %3083 = vmatprep.subr.bf16.mxu0 0
      %3084 = vmatpush1.bf16.msra.mxu0 0
      %3085 = vmatprep.subr.bf16.mxu0 0
      %3086 = vmatpush1.bf16.msra.mxu0 0
      %3087 = vmatprep.subr.bf16.mxu0 0
      %3088 = vmatpush1.bf16.msra.mxu0 0
      %3089 = vmatprep.subr.bf16.mxu0 0
      %3090 = vmatpush1.bf16.msra.mxu0 0
      %3091 = vmatprep.subr.bf16.mxu0 0
      %3092 = vmatpush1.bf16.msra.mxu0 0
      %3093 = vmatprep.subr.bf16.mxu0 0
      %3094 = vmatpush1.bf16.msra.mxu0 0
      %3095 = vmatprep.subr.bf16.mxu0 0
      %3096 = vmatpush1.bf16.msra.mxu0 0
      %3097 = vmatprep.mubr.bf16.mxu0 0
      %3098 = vmatmul.mubr.bf16.gmra.mrb[0].mxu0 %v3039
      %v3099 = vpop.f32.mrb[0].mxu0
      %v3100 = vadd.f32 0.0, %v3099
      %v3101 = vpop.f32.mrb[0].mxu0
      %v3102 = vpop.f32.mrb[0].mxu0
      %v3103 = vadd.f32 0.0, %v3102
      %v3104 = vpop.f32.mrb[0].mxu0
      %3105 = vmatprep.mubr.bf16.mxu0 0
      %3106 = vmatmul.mubr.bf16.gmra.mrb[0].mxu0 %v3042
      %v3107 = vpop.f32.mrb[0].mxu0
      %v3108 = vadd.f32 0.0, %v3107
      %v3109 = vpop.f32.mrb[0].mxu0
      %v3110 = vpop.f32.mrb[0].mxu0
      %v3111 = vadd.f32 0.0, %v3110
      %v3112 = vpop.f32.mrb[0].mxu0
      %3113 = vmatprep.mubr.bf16.mxu0 0
      %3114 = vmatmul.mubr.bf16.gmra.mrb[0].mxu0 %v3045
      %v3115 = vpop.f32.mrb[0].mxu0
      %v3116 = vadd.f32 0.0, %v3115
      %v3117 = vpop.f32.mrb[0].mxu0
      %v3118 = vpop.f32.mrb[0].mxu0
      %v3119 = vadd.f32 0.0, %v3118
      %v3120 = vpop.f32.mrb[0].mxu0
      %3121 = vmatprep.mubr.bf16.mxu0 0
      %3122 = vmatmul.mubr.bf16.gmra.mrb[0].mxu0 %v3048
      %v3123 = vpop.f32.mrb[0].mxu0
      %v3124 = vadd.f32 0.0, %v3123
      %v3125 = vpop.f32.mrb[0].mxu0
      %v3126 = vpop.f32.mrb[0].mxu0
      %v3127 = vadd.f32 0.0, %v3126
      %v3128 = vpop.f32.mrb[0].mxu0
      %3129 = vmatprep.mubr.bf16.mxu0 0
      %3130 = vmatmul.mubr.bf16.gmra.mrb[0].mxu0 %v3051
      %v3131 = vpop.f32.mrb[0].mxu0
      %v3132 = vadd.f32 0.0, %v3131
      %v3133 = vpop.f32.mrb[0].mxu0
      %v3134 = vpop.f32.mrb[0].mxu0
      %v3135 = vadd.f32 0.0, %v3134
      %v3136 = vpop.f32.mrb[0].mxu0
      %3137 = vmatprep.mubr.bf16.mxu0 0
      %3138 = vmatmul.mubr.bf16.gmra.mrb[0].mxu0 %v3054
      %v3139 = vpop.f32.mrb[0].mxu0
      %v3140 = vadd.f32 0.0, %v3139
      %v3141 = vpop.f32.mrb[0].mxu0
      %v3142 = vpop.f32.mrb[0].mxu0
      %v3143 = vadd.f32 0.0, %v3142
      %v3144 = vpop.f32.mrb[0].mxu0
      %3145 = vmatprep.mubr.bf16.mxu0 0
      %3146 = vmatmul.mubr.bf16.gmra.mrb[0].mxu0 %v3057
      %v3147 = vpop.f32.mrb[0].mxu0
      %v3148 = vpop.f32.mrb[0].mxu0
      %v3149 = vpop.f32.mrb[0].mxu0
      %v3150 = vpop.f32.mrb[0].mxu0
      %3151 = vdwg.mxu0
      %v3152 = vpack.c.bf16 %v3103, %v3100
      %v3153 = vpack.c.bf16 %v3111, %v3108
      %v3154 = vpack.c.bf16 %v3119, %v3116
      %v3155 = vpack.c.bf16 %v3127, %v3124
      %v3156 = vpack.c.bf16 %v3135, %v3132
      %v3157 = vpack.c.bf16 %v3143, %v3140
      %v3158 = vld [vmem:[%s6] sm:$0xff]
      %v3159 = vld [vmem:[%s6 + $0x8] sm:$0xff]
      %v3160 = vld [vmem:[%s6 + $0x10] sm:$0xff]
      %v3161 = vld [vmem:[%s6 + $0x18] sm:$0xff]
      %v3162 = vld [vmem:[%s6 + $0x20] sm:$0xff]
      %v3163 = vld [vmem:[%s6 + $0x28] sm:$0xff]
      %v3164 = vld [vmem:[%s6 + $0x30] sm:$0xff]
      %v3165 = vld [vmem:[%s6 + $0x38] sm:$0xff]
      %v3166 = vld [vmem:[%s6 + $0x40] sm:$0xff]
      %v3167 = vld [vmem:[%s6 + $0x48] sm:$0xff]
      %v3168 = vld [vmem:[%s6 + $0x50] sm:$0xff]
      %v3169 = vld [vmem:[%s6 + $0x58] sm:$0xff]
      %v3170 = vld [vmem:[%s6 + $0x60] sm:$0xff]
      %v3171 = vld [vmem:[%s6 + $0x68] sm:$0xff]
      %v3172 = vld [vmem:[%s6 + $0x70] sm:$0xff]
      %v3173 = vld [vmem:[%s6 + $0x78] sm:$0xff]
      %s3174 = scalar_lea.vmem %s6, 128
      %v3175 = vld [vmem:[%s3174] sm:$0xff]
      %v3176 = vld [vmem:[%s3174 + $0x8] sm:$0xff]
      %v3177 = vld [vmem:[%s3174 + $0x10] sm:$0xff]
      %v3178 = vld [vmem:[%s3174 + $0x18] sm:$0xff]
      %v3179 = vld [vmem:[%s3174 + $0x20] sm:$0xff]
      %v3180 = vld [vmem:[%s3174 + $0x28] sm:$0xff]
      %v3181 = vld [vmem:[%s3174 + $0x30] sm:$0xff]
      %v3182 = vld [vmem:[%s3174 + $0x38] sm:$0xff]
      %v3183 = vld [vmem:[%s3174 + $0x40] sm:$0xff]
      %v3184 = vld [vmem:[%s3174 + $0x48] sm:$0xff]
      %v3185 = vld [vmem:[%s3174 + $0x50] sm:$0xff]
      %v3186 = vld [vmem:[%s3174 + $0x58] sm:$0xff]
      %v3187 = vld [vmem:[%s3174 + $0x60] sm:$0xff]
      %v3188 = vld [vmem:[%s3174 + $0x68] sm:$0xff]
      %v3189 = vld [vmem:[%s3174 + $0x70] sm:$0xff]
      %v3190 = vld [vmem:[%s3174 + $0x78] sm:$0xff]
      %v3192 = vshrl.u32 %v3153, 16
      %v3194 = vrot.slane %v3192, 4
      %v3195 = vshll.u32 %v3153, 16
      %v3197 = vrot.slane %v3195, 5
      %v3198 = vor.u32 %v3194, %v3197
      %v3200 = vshrl.u32 %v3154, 16
      %v3202 = vrot.slane %v3200, 4
      %v3203 = vshll.u32 %v3154, 16
      %v3205 = vrot.slane %v3203, 5
      %v3206 = vor.u32 %v3202, %v3205
      %v3207 = vsel %vm2304, %v3198, %v3206
      %v3226 = vunpack.c.l.b16 %v3175
      %v3227 = vunpack.c.h.b16 %v3175
      %v3228 = vunpack.c.l.b16 %v3176
      %v3229 = vunpack.c.h.b16 %v3176
      %v3230 = vunpack.c.l.b16 %v3177
      %v3231 = vunpack.c.h.b16 %v3177
      %v3232 = vunpack.c.l.b16 %v3178
      %v3233 = vunpack.c.h.b16 %v3178
      %v3234 = vunpack.c.l.b16 %v3179
      %v3235 = vunpack.c.h.b16 %v3179
      %v3236 = vunpack.c.l.b16 %v3180
      %v3237 = vunpack.c.h.b16 %v3180
      %v3238 = vunpack.c.l.b16 %v3181
      %v3239 = vunpack.c.h.b16 %v3181
      %v3240 = vunpack.c.l.b16 %v3182
      %v3241 = vunpack.c.h.b16 %v3182
      %v3242 = vunpack.c.l.b16 %v3183
      %v3243 = vunpack.c.h.b16 %v3183
      %v3244 = vunpack.c.l.b16 %v3184
      %v3245 = vunpack.c.h.b16 %v3184
      %v3246 = vunpack.c.l.b16 %v3185
      %v3247 = vunpack.c.h.b16 %v3185
      %v3248 = vunpack.c.l.b16 %v3186
      %v3249 = vunpack.c.h.b16 %v3186
      %v3250 = vunpack.c.l.b16 %v3187
      %v3251 = vunpack.c.h.b16 %v3187
      %v3252 = vunpack.c.l.b16 %v3188
      %v3253 = vunpack.c.h.b16 %v3188
      %v3254 = vunpack.c.l.b16 %v3189
      %v3255 = vunpack.c.h.b16 %v3189
      %v3256 = vunpack.c.l.b16 %v3190
      %v3257 = vunpack.c.h.b16 %v3190
      %v3258 = vpack.c.b16 %v3228, %v3226
      %v3259 = vpack.c.b16 %v3229, %v3227
      %v3260 = vpack.c.b16 %v3232, %v3230
      %v3261 = vpack.c.b16 %v3233, %v3231
      %v3262 = vpack.c.b16 %v3236, %v3234
      %v3263 = vpack.c.b16 %v3237, %v3235
      %v3264 = vpack.c.b16 %v3240, %v3238
      %v3265 = vpack.c.b16 %v3241, %v3239
      %v3266 = vpack.c.b16 %v3244, %v3242
      %v3267 = vpack.c.b16 %v3245, %v3243
      %v3268 = vpack.c.b16 %v3248, %v3246
      %v3269 = vpack.c.b16 %v3249, %v3247
      %v3270 = vpack.c.b16 %v3252, %v3250
      %v3271 = vpack.c.b16 %v3253, %v3251
      %v3272 = vpack.c.b16 %v3256, %v3254
      %v3273 = vpack.c.b16 %v3257, %v3255
      %3290 = vmatprep.subr.bf16.mxu0 %v3259
      %3291 = vmatpush1.bf16.msra.mxu0 %v3258
      %3292 = vmatprep.subr.bf16.mxu0 %v3261
      %3293 = vmatpush1.bf16.msra.mxu0 %v3260
      %3294 = vmatprep.subr.bf16.mxu0 %v3263
      %3295 = vmatpush1.bf16.msra.mxu0 %v3262
      %3296 = vmatprep.subr.bf16.mxu0 %v3265
      %3297 = vmatpush1.bf16.msra.mxu0 %v3264
      %3298 = vmatprep.subr.bf16.mxu0 %v3267
      %3299 = vmatpush1.bf16.msra.mxu0 %v3266
      %3300 = vmatprep.subr.bf16.mxu0 %v3269
      %3301 = vmatpush1.bf16.msra.mxu0 %v3268
      %3302 = vmatprep.subr.bf16.mxu0 %v3271
      %3303 = vmatpush1.bf16.msra.mxu0 %v3270
      %3304 = vmatprep.subr.bf16.mxu0 %v3273
      %3305 = vmatpush1.bf16.msra.mxu0 %v3272
      %3306 = vmatprep.subr.bf16.mxu0 0
      %3307 = vmatpush1.bf16.msra.mxu0 0
      %3308 = vmatprep.subr.bf16.mxu0 0
      %3309 = vmatpush1.bf16.msra.mxu0 0
      %3310 = vmatprep.subr.bf16.mxu0 0
      %3311 = vmatpush1.bf16.msra.mxu0 0
      %3312 = vmatprep.subr.bf16.mxu0 0
      %3313 = vmatpush1.bf16.msra.mxu0 0
      %3314 = vmatprep.subr.bf16.mxu0 0
      %3315 = vmatpush1.bf16.msra.mxu0 0
      %3316 = vmatprep.subr.bf16.mxu0 0
      %3317 = vmatpush1.bf16.msra.mxu0 0
      %3318 = vmatprep.subr.bf16.mxu0 0
      %3319 = vmatpush1.bf16.msra.mxu0 0
      %3320 = vmatprep.subr.bf16.mxu0 0
      %3321 = vmatpush1.bf16.msra.mxu0 0
      %3322 = vmatprep.mubr.bf16.mxu0 0
      %3323 = vmatmul.mubr.bf16.gmra.mrb[0].mxu0 %v3207
      %v3324 = vpop.f32.mrb[0].mxu0
      %v3325 = vadd.f32 0.0, %v3324
      %v3326 = vpop.f32.mrb[0].mxu0
      %v3327 = vadd.f32 0.0, %v3326
      %v3328 = vpop.f32.mrb[0].mxu0
      %v3329 = vadd.f32 0.0, %v3328
      %v3330 = vpop.f32.mrb[0].mxu0
      %v3331 = vadd.f32 0.0, %v3330
      %3332 = vmatprep.mubr.bf16.mxu0 0
      %3333 = vmatmul.mubr.bf16.gmra.mrb[0].mxu0 %v3206
      %v3334 = vpop.f32.mrb[0].mxu0
      %v3335 = vadd.f32 0.0, %v3334
      %v3336 = vpop.f32.mrb[0].mxu0
      %v3337 = vadd.f32 0.0, %v3336
      %v3338 = vpop.f32.mrb[0].mxu0
      %v3339 = vpop.f32.mrb[0].mxu0
      %3340 = vdwg.mxu0
      %v3357 = vunpack.c.l.b16 %v3158
      %v3358 = vunpack.c.h.b16 %v3158
      %v3359 = vunpack.c.l.b16 %v3159
      %v3360 = vunpack.c.h.b16 %v3159
      %v3361 = vunpack.c.l.b16 %v3160
      %v3362 = vunpack.c.h.b16 %v3160
      %v3363 = vunpack.c.l.b16 %v3161
      %v3364 = vunpack.c.h.b16 %v3161
      %v3365 = vunpack.c.l.b16 %v3162
      %v3366 = vunpack.c.h.b16 %v3162
      %v3367 = vunpack.c.l.b16 %v3163
      %v3368 = vunpack.c.h.b16 %v3163
      %v3369 = vunpack.c.l.b16 %v3164
      %v3370 = vunpack.c.h.b16 %v3164
      %v3371 = vunpack.c.l.b16 %v3165
      %v3372 = vunpack.c.h.b16 %v3165
      %v3373 = vunpack.c.l.b16 %v3166
      %v3374 = vunpack.c.h.b16 %v3166
      %v3375 = vunpack.c.l.b16 %v3167
      %v3376 = vunpack.c.h.b16 %v3167
      %v3377 = vunpack.c.l.b16 %v3168
      %v3378 = vunpack.c.h.b16 %v3168
      %v3379 = vunpack.c.l.b16 %v3169
      %v3380 = vunpack.c.h.b16 %v3169
      %v3381 = vunpack.c.l.b16 %v3170
      %v3382 = vunpack.c.h.b16 %v3170
      %v3383 = vunpack.c.l.b16 %v3171
      %v3384 = vunpack.c.h.b16 %v3171
      %v3385 = vunpack.c.l.b16 %v3172
      %v3386 = vunpack.c.h.b16 %v3172
      %v3387 = vunpack.c.l.b16 %v3173
      %v3388 = vunpack.c.h.b16 %v3173
      %v3389 = vpack.c.b16 %v3359, %v3357
      %v3390 = vpack.c.b16 %v3360, %v3358
      %v3391 = vpack.c.b16 %v3363, %v3361
      %v3392 = vpack.c.b16 %v3364, %v3362
      %v3393 = vpack.c.b16 %v3367, %v3365
      %v3394 = vpack.c.b16 %v3368, %v3366
      %v3395 = vpack.c.b16 %v3371, %v3369
      %v3396 = vpack.c.b16 %v3372, %v3370
      %v3397 = vpack.c.b16 %v3375, %v3373
      %v3398 = vpack.c.b16 %v3376, %v3374
      %v3399 = vpack.c.b16 %v3379, %v3377
      %v3400 = vpack.c.b16 %v3380, %v3378
      %v3401 = vpack.c.b16 %v3383, %v3381
      %v3402 = vpack.c.b16 %v3384, %v3382
      %v3403 = vpack.c.b16 %v3387, %v3385
      %v3404 = vpack.c.b16 %v3388, %v3386
      %3421 = vmatprep.subr.bf16.mxu0 %v3390
      %3422 = vmatpush1.bf16.msra.mxu0 %v3389
      %3423 = vmatprep.subr.bf16.mxu0 %v3392
      %3424 = vmatpush1.bf16.msra.mxu0 %v3391
      %3425 = vmatprep.subr.bf16.mxu0 %v3394
      %3426 = vmatpush1.bf16.msra.mxu0 %v3393
      %3427 = vmatprep.subr.bf16.mxu0 %v3396
      %3428 = vmatpush1.bf16.msra.mxu0 %v3395
      %3429 = vmatprep.subr.bf16.mxu0 %v3398
      %3430 = vmatpush1.bf16.msra.mxu0 %v3397
      %3431 = vmatprep.subr.bf16.mxu0 %v3400
      %3432 = vmatpush1.bf16.msra.mxu0 %v3399
      %3433 = vmatprep.subr.bf16.mxu0 %v3402
      %3434 = vmatpush1.bf16.msra.mxu0 %v3401
      %3435 = vmatprep.subr.bf16.mxu0 %v3404
      %3436 = vmatpush1.bf16.msra.mxu0 %v3403
      %3437 = vmatprep.subr.bf16.mxu0 0
      %3438 = vmatpush1.bf16.msra.mxu0 0
      %3439 = vmatprep.subr.bf16.mxu0 0
      %3440 = vmatpush1.bf16.msra.mxu0 0
      %3441 = vmatprep.subr.bf16.mxu0 0
      %3442 = vmatpush1.bf16.msra.mxu0 0
      %3443 = vmatprep.subr.bf16.mxu0 0
      %3444 = vmatpush1.bf16.msra.mxu0 0
      %3445 = vmatprep.subr.bf16.mxu0 0
      %3446 = vmatpush1.bf16.msra.mxu0 0
      %3447 = vmatprep.subr.bf16.mxu0 0
      %3448 = vmatpush1.bf16.msra.mxu0 0
      %3449 = vmatprep.subr.bf16.mxu0 0
      %3450 = vmatpush1.bf16.msra.mxu0 0
      %3451 = vmatprep.subr.bf16.mxu0 0
      %3452 = vmatpush1.bf16.msra.mxu0 0
      %3453 = vmatprep.mubr.bf16.mxu0 0
      %3454 = vmatmul.mubr.bf16.gmra.mrb[0].mxu0 %v3152
      %v3455 = vpop.f32.mrb[0].mxu0
      %v3456 = vadd.f32 %v3325, %v3455
      %v3457 = vpop.f32.mrb[0].mxu0
      %v3458 = vadd.f32 %v3327, %v3457
      %v3459 = vpop.f32.mrb[0].mxu0
      %v3460 = vadd.f32 %v3329, %v3459
      %v3461 = vpop.f32.mrb[0].mxu0
      %v3462 = vadd.f32 %v3331, %v3461
      %3463 = vmatprep.mubr.bf16.mxu0 0
      %3464 = vmatmul.mubr.bf16.gmra.mrb[0].mxu0 %v3153
      %v3465 = vpop.f32.mrb[0].mxu0
      %v3466 = vadd.f32 %v3335, %v3465
      %v3467 = vpop.f32.mrb[0].mxu0
      %v3468 = vadd.f32 %v3337, %v3467
      %v3469 = vpop.f32.mrb[0].mxu0
      %v3470 = vpop.f32.mrb[0].mxu0
      %3471 = vdwg.mxu0
      %s3472 = scalar_lea.vmem %s6, 256
      %v3473 = vld [vmem:[%s3472] sm:$0xff]
      %v3474 = vld [vmem:[%s3472 + $0x8] sm:$0xff]
      %v3475 = vld [vmem:[%s3472 + $0x10] sm:$0xff]
      %v3476 = vld [vmem:[%s3472 + $0x18] sm:$0xff]
      %v3477 = vld [vmem:[%s3472 + $0x20] sm:$0xff]
      %v3478 = vld [vmem:[%s3472 + $0x28] sm:$0xff]
      %v3479 = vld [vmem:[%s3472 + $0x30] sm:$0xff]
      %v3480 = vld [vmem:[%s3472 + $0x38] sm:$0xff]
      %v3481 = vld [vmem:[%s3472 + $0x40] sm:$0xff]
      %v3482 = vld [vmem:[%s3472 + $0x48] sm:$0xff]
      %v3483 = vld [vmem:[%s3472 + $0x50] sm:$0xff]
      %v3484 = vld [vmem:[%s3472 + $0x58] sm:$0xff]
      %v3485 = vld [vmem:[%s3472 + $0x60] sm:$0xff]
      %v3486 = vld [vmem:[%s3472 + $0x68] sm:$0xff]
      %v3487 = vld [vmem:[%s3472 + $0x70] sm:$0xff]
      %v3488 = vld [vmem:[%s3472 + $0x78] sm:$0xff]
      %v3490 = vshrl.u32 %v3152, 16
      %v3492 = vshll.u32 %v3152, 16
      %v3494 = vrot.slane %v3492, 1
      %v3495 = vor.u32 %v3490, %v3494
      %v3496 = vrot.slane %v3195, 1
      %v3497 = vsel %vm1378, %v3495, %v3496
      %v3498 = vor.u32 %v3192, %v3496
      %v3517 = vunpack.c.l.b16 %v3473
      %v3518 = vunpack.c.h.b16 %v3473
      %v3519 = vunpack.c.l.b16 %v3474
      %v3520 = vunpack.c.h.b16 %v3474
      %v3521 = vunpack.c.l.b16 %v3475
      %v3522 = vunpack.c.h.b16 %v3475
      %v3523 = vunpack.c.l.b16 %v3476
      %v3524 = vunpack.c.h.b16 %v3476
      %v3525 = vunpack.c.l.b16 %v3477
      %v3526 = vunpack.c.h.b16 %v3477
      %v3527 = vunpack.c.l.b16 %v3478
      %v3528 = vunpack.c.h.b16 %v3478
      %v3529 = vunpack.c.l.b16 %v3479
      %v3530 = vunpack.c.h.b16 %v3479
      %v3531 = vunpack.c.l.b16 %v3480
      %v3532 = vunpack.c.h.b16 %v3480
      %v3533 = vunpack.c.l.b16 %v3481
      %v3534 = vunpack.c.h.b16 %v3481
      %v3535 = vunpack.c.l.b16 %v3482
      %v3536 = vunpack.c.h.b16 %v3482
      %v3537 = vunpack.c.l.b16 %v3483
      %v3538 = vunpack.c.h.b16 %v3483
      %v3539 = vunpack.c.l.b16 %v3484
      %v3540 = vunpack.c.h.b16 %v3484
      %v3541 = vunpack.c.l.b16 %v3485
      %v3542 = vunpack.c.h.b16 %v3485
      %v3543 = vunpack.c.l.b16 %v3486
      %v3544 = vunpack.c.h.b16 %v3486
      %v3545 = vunpack.c.l.b16 %v3487
      %v3546 = vunpack.c.h.b16 %v3487
      %v3547 = vunpack.c.l.b16 %v3488
      %v3548 = vunpack.c.h.b16 %v3488
      %v3549 = vpack.c.b16 %v3519, %v3517
      %v3550 = vpack.c.b16 %v3520, %v3518
      %v3551 = vpack.c.b16 %v3523, %v3521
      %v3552 = vpack.c.b16 %v3524, %v3522
      %v3553 = vpack.c.b16 %v3527, %v3525
      %v3554 = vpack.c.b16 %v3528, %v3526
      %v3555 = vpack.c.b16 %v3531, %v3529
      %v3556 = vpack.c.b16 %v3532, %v3530
      %v3557 = vpack.c.b16 %v3535, %v3533
      %v3558 = vpack.c.b16 %v3536, %v3534
      %v3559 = vpack.c.b16 %v3539, %v3537
      %v3560 = vpack.c.b16 %v3540, %v3538
      %v3561 = vpack.c.b16 %v3543, %v3541
      %v3562 = vpack.c.b16 %v3544, %v3542
      %v3563 = vpack.c.b16 %v3547, %v3545
      %v3564 = vpack.c.b16 %v3548, %v3546
      %3581 = vmatprep.subr.bf16.mxu0 %v3550
      %3582 = vmatpush1.bf16.msra.mxu0 %v3549
      %3583 = vmatprep.subr.bf16.mxu0 %v3552
      %3584 = vmatpush1.bf16.msra.mxu0 %v3551
      %3585 = vmatprep.subr.bf16.mxu0 %v3554
      %3586 = vmatpush1.bf16.msra.mxu0 %v3553
      %3587 = vmatprep.subr.bf16.mxu0 %v3556
      %3588 = vmatpush1.bf16.msra.mxu0 %v3555
      %3589 = vmatprep.subr.bf16.mxu0 %v3558
      %3590 = vmatpush1.bf16.msra.mxu0 %v3557
      %3591 = vmatprep.subr.bf16.mxu0 %v3560
      %3592 = vmatpush1.bf16.msra.mxu0 %v3559
      %3593 = vmatprep.subr.bf16.mxu0 %v3562
      %3594 = vmatpush1.bf16.msra.mxu0 %v3561
      %3595 = vmatprep.subr.bf16.mxu0 %v3564
      %3596 = vmatpush1.bf16.msra.mxu0 %v3563
      %3597 = vmatprep.subr.bf16.mxu0 0
      %3598 = vmatpush1.bf16.msra.mxu0 0
      %3599 = vmatprep.subr.bf16.mxu0 0
      %3600 = vmatpush1.bf16.msra.mxu0 0
      %3601 = vmatprep.subr.bf16.mxu0 0
      %3602 = vmatpush1.bf16.msra.mxu0 0
      %3603 = vmatprep.subr.bf16.mxu0 0
      %3604 = vmatpush1.bf16.msra.mxu0 0
      %3605 = vmatprep.subr.bf16.mxu0 0
      %3606 = vmatpush1.bf16.msra.mxu0 0
      %3607 = vmatprep.subr.bf16.mxu0 0
      %3608 = vmatpush1.bf16.msra.mxu0 0
      %3609 = vmatprep.subr.bf16.mxu0 0
      %3610 = vmatpush1.bf16.msra.mxu0 0
      %3611 = vmatprep.subr.bf16.mxu0 0
      %3612 = vmatpush1.bf16.msra.mxu0 0
      %3613 = vmatprep.mubr.bf16.mxu0 0
      %3614 = vmatmul.mubr.bf16.gmra.mrb[0].mxu0 %v3497
      %v3615 = vpop.f32.mrb[0].mxu0
      %v3616 = vadd.f32 0.0, %v3615
      %v3617 = vpop.f32.mrb[0].mxu0
      %v3618 = vadd.f32 0.0, %v3617
      %v3619 = vpop.f32.mrb[0].mxu0
      %v3620 = vadd.f32 0.0, %v3619
      %v3621 = vpop.f32.mrb[0].mxu0
      %v3622 = vadd.f32 0.0, %v3621
      %3623 = vmatprep.mubr.bf16.mxu0 0
      %3624 = vmatmul.mubr.bf16.gmra.mrb[0].mxu0 %v3498
      %v3625 = vpop.f32.mrb[0].mxu0
      %v3626 = vadd.f32 0.0, %v3625
      %v3627 = vpop.f32.mrb[0].mxu0
      %v3628 = vadd.f32 0.0, %v3627
      %v3629 = vpop.f32.mrb[0].mxu0
      %v3630 = vpop.f32.mrb[0].mxu0
      %3631 = vdwg.mxu0
      %v3632 = vadd.f32 %v3456, %v3616
      %v3633 = vadd.f32 %v3458, %v3618
      %v3634 = vadd.f32 %v3460, %v3620
      %v3635 = vadd.f32 %v3462, %v3622
      %v3636 = vadd.f32 %v3466, %v3626
      %v3637 = vadd.f32 %v3468, %v3628
      %s3638 = scalar_lea.vmem %s6, 384
      %v3639 = vld [vmem:[%s3638] sm:$0xff]
      %v3640 = vld [vmem:[%s3638 + $0x8] sm:$0xff]
      %v3641 = vld [vmem:[%s3638 + $0x10] sm:$0xff]
      %v3642 = vld [vmem:[%s3638 + $0x18] sm:$0xff]
      %v3643 = vld [vmem:[%s3638 + $0x20] sm:$0xff]
      %v3644 = vld [vmem:[%s3638 + $0x28] sm:$0xff]
      %v3645 = vld [vmem:[%s3638 + $0x30] sm:$0xff]
      %v3646 = vld [vmem:[%s3638 + $0x38] sm:$0xff]
      %v3647 = vld [vmem:[%s3638 + $0x40] sm:$0xff]
      %v3648 = vld [vmem:[%s3638 + $0x48] sm:$0xff]
      %v3649 = vld [vmem:[%s3638 + $0x50] sm:$0xff]
      %v3650 = vld [vmem:[%s3638 + $0x58] sm:$0xff]
      %v3651 = vld [vmem:[%s3638 + $0x60] sm:$0xff]
      %v3652 = vld [vmem:[%s3638 + $0x68] sm:$0xff]
      %v3653 = vld [vmem:[%s3638 + $0x70] sm:$0xff]
      %v3654 = vld [vmem:[%s3638 + $0x78] sm:$0xff]
      %v3657 = vrot.slane %v3155, 1
      %v3658 = vrot.slane %v3156, 1
      %v3659 = vsel %vm1818, %v3657, %v3658
      %v3678 = vunpack.c.l.b16 %v3639
      %v3679 = vunpack.c.h.b16 %v3639
      %v3680 = vunpack.c.l.b16 %v3640
      %v3681 = vunpack.c.h.b16 %v3640
      %v3682 = vunpack.c.l.b16 %v3641
      %v3683 = vunpack.c.h.b16 %v3641
      %v3684 = vunpack.c.l.b16 %v3642
      %v3685 = vunpack.c.h.b16 %v3642
      %v3686 = vunpack.c.l.b16 %v3643
      %v3687 = vunpack.c.h.b16 %v3643
      %v3688 = vunpack.c.l.b16 %v3644
      %v3689 = vunpack.c.h.b16 %v3644
      %v3690 = vunpack.c.l.b16 %v3645
      %v3691 = vunpack.c.h.b16 %v3645
      %v3692 = vunpack.c.l.b16 %v3646
      %v3693 = vunpack.c.h.b16 %v3646
      %v3694 = vunpack.c.l.b16 %v3647
      %v3695 = vunpack.c.h.b16 %v3647
      %v3696 = vunpack.c.l.b16 %v3648
      %v3697 = vunpack.c.h.b16 %v3648
      %v3698 = vunpack.c.l.b16 %v3649
      %v3699 = vunpack.c.h.b16 %v3649
      %v3700 = vunpack.c.l.b16 %v3650
      %v3701 = vunpack.c.h.b16 %v3650
      %v3702 = vunpack.c.l.b16 %v3651
      %v3703 = vunpack.c.h.b16 %v3651
      %v3704 = vunpack.c.l.b16 %v3652
      %v3705 = vunpack.c.h.b16 %v3652
      %v3706 = vunpack.c.l.b16 %v3653
      %v3707 = vunpack.c.h.b16 %v3653
      %v3708 = vunpack.c.l.b16 %v3654
      %v3709 = vunpack.c.h.b16 %v3654
      %v3710 = vpack.c.b16 %v3680, %v3678
      %v3711 = vpack.c.b16 %v3681, %v3679
      %v3712 = vpack.c.b16 %v3684, %v3682
      %v3713 = vpack.c.b16 %v3685, %v3683
      %v3714 = vpack.c.b16 %v3688, %v3686
      %v3715 = vpack.c.b16 %v3689, %v3687
      %v3716 = vpack.c.b16 %v3692, %v3690
      %v3717 = vpack.c.b16 %v3693, %v3691
      %v3718 = vpack.c.b16 %v3696, %v3694
      %v3719 = vpack.c.b16 %v3697, %v3695
      %v3720 = vpack.c.b16 %v3700, %v3698
      %v3721 = vpack.c.b16 %v3701, %v3699
      %v3722 = vpack.c.b16 %v3704, %v3702
      %v3723 = vpack.c.b16 %v3705, %v3703
      %v3724 = vpack.c.b16 %v3708, %v3706
      %v3725 = vpack.c.b16 %v3709, %v3707
      %3742 = vmatprep.subr.bf16.mxu0 %v3711
      %3743 = vmatpush1.bf16.msra.mxu0 %v3710
      %3744 = vmatprep.subr.bf16.mxu0 %v3713
      %3745 = vmatpush1.bf16.msra.mxu0 %v3712
      %3746 = vmatprep.subr.bf16.mxu0 %v3715
      %3747 = vmatpush1.bf16.msra.mxu0 %v3714
      %3748 = vmatprep.subr.bf16.mxu0 %v3717
      %3749 = vmatpush1.bf16.msra.mxu0 %v3716
      %3750 = vmatprep.subr.bf16.mxu0 %v3719
      %3751 = vmatpush1.bf16.msra.mxu0 %v3718
      %3752 = vmatprep.subr.bf16.mxu0 %v3721
      %3753 = vmatpush1.bf16.msra.mxu0 %v3720
      %3754 = vmatprep.subr.bf16.mxu0 %v3723
      %3755 = vmatpush1.bf16.msra.mxu0 %v3722
      %3756 = vmatprep.subr.bf16.mxu0 %v3725
      %3757 = vmatpush1.bf16.msra.mxu0 %v3724
      %3758 = vmatprep.subr.bf16.mxu0 0
      %3759 = vmatpush1.bf16.msra.mxu0 0
      %3760 = vmatprep.subr.bf16.mxu0 0
      %3761 = vmatpush1.bf16.msra.mxu0 0
      %3762 = vmatprep.subr.bf16.mxu0 0
      %3763 = vmatpush1.bf16.msra.mxu0 0
      %3764 = vmatprep.subr.bf16.mxu0 0
      %3765 = vmatpush1.bf16.msra.mxu0 0
      %3766 = vmatprep.subr.bf16.mxu0 0
      %3767 = vmatpush1.bf16.msra.mxu0 0
      %3768 = vmatprep.subr.bf16.mxu0 0
      %3769 = vmatpush1.bf16.msra.mxu0 0
      %3770 = vmatprep.subr.bf16.mxu0 0
      %3771 = vmatpush1.bf16.msra.mxu0 0
      %3772 = vmatprep.subr.bf16.mxu0 0
      %3773 = vmatpush1.bf16.msra.mxu0 0
      %3774 = vmatprep.mubr.bf16.mxu0 0
      %3775 = vmatmul.mubr.bf16.gmra.mrb[0].mxu0 %v3659
      %v3776 = vpop.f32.mrb[0].mxu0
      %v3777 = vadd.f32 0.0, %v3776
      %v3778 = vpop.f32.mrb[0].mxu0
      %v3779 = vadd.f32 0.0, %v3778
      %v3780 = vpop.f32.mrb[0].mxu0
      %v3781 = vadd.f32 0.0, %v3780
      %v3782 = vpop.f32.mrb[0].mxu0
      %v3783 = vadd.f32 0.0, %v3782
      %3784 = vmatprep.mubr.bf16.mxu0 0
      %3785 = vmatmul.mubr.bf16.gmra.mrb[0].mxu0 %v3658
      %v3786 = vpop.f32.mrb[0].mxu0
      %v3787 = vadd.f32 0.0, %v3786
      %v3788 = vpop.f32.mrb[0].mxu0
      %v3789 = vadd.f32 0.0, %v3788
      %v3790 = vpop.f32.mrb[0].mxu0
      %v3791 = vpop.f32.mrb[0].mxu0
      %3792 = vdwg.mxu0
      %v3793 = vadd.f32 %v3632, %v3777
      %v3794 = vadd.f32 %v3633, %v3779
      %v3795 = vadd.f32 %v3634, %v3781
      %v3796 = vadd.f32 %v3635, %v3783
      %v3797 = vadd.f32 %v3636, %v3787
      %v3798 = vadd.f32 %v3637, %v3789
      %s3799 = scalar_lea.vmem %s6, 512
      %v3800 = vld [vmem:[%s3799] sm:$0xff]
      %v3801 = vld [vmem:[%s3799 + $0x8] sm:$0xff]
      %v3802 = vld [vmem:[%s3799 + $0x10] sm:$0xff]
      %v3803 = vld [vmem:[%s3799 + $0x18] sm:$0xff]
      %v3804 = vld [vmem:[%s3799 + $0x20] sm:$0xff]
      %v3805 = vld [vmem:[%s3799 + $0x28] sm:$0xff]
      %v3806 = vld [vmem:[%s3799 + $0x30] sm:$0xff]
      %v3807 = vld [vmem:[%s3799 + $0x38] sm:$0xff]
      %v3808 = vld [vmem:[%s3799 + $0x40] sm:$0xff]
      %v3809 = vld [vmem:[%s3799 + $0x48] sm:$0xff]
      %v3810 = vld [vmem:[%s3799 + $0x50] sm:$0xff]
      %v3811 = vld [vmem:[%s3799 + $0x58] sm:$0xff]
      %v3812 = vld [vmem:[%s3799 + $0x60] sm:$0xff]
      %v3813 = vld [vmem:[%s3799 + $0x68] sm:$0xff]
      %v3814 = vld [vmem:[%s3799 + $0x70] sm:$0xff]
      %v3815 = vld [vmem:[%s3799 + $0x78] sm:$0xff]
      %vm3816 = vsmask.f32 2304
      %v3818 = vshrl.u32 %v3156, 16
      %v3820 = vrot.slane %v3818, 5
      %v3821 = vshll.u32 %v3156, 16
      %v3823 = vrot.slane %v3821, 6
      %v3824 = vor.u32 %v3820, %v3823
      %v3826 = vshrl.u32 %v3157, 16
      %v3828 = vrot.slane %v3826, 5
      %v3829 = vshll.u32 %v3157, 16
      %v3831 = vrot.slane %v3829, 6
      %v3832 = vor.u32 %v3828, %v3831
      %v3833 = vsel %vm3816, %v3824, %v3832
      %v3852 = vunpack.c.l.b16 %v3800
      %v3853 = vunpack.c.h.b16 %v3800
      %v3854 = vunpack.c.l.b16 %v3801
      %v3855 = vunpack.c.h.b16 %v3801
      %v3856 = vunpack.c.l.b16 %v3802
      %v3857 = vunpack.c.h.b16 %v3802
      %v3858 = vunpack.c.l.b16 %v3803
      %v3859 = vunpack.c.h.b16 %v3803
      %v3860 = vunpack.c.l.b16 %v3804
      %v3861 = vunpack.c.h.b16 %v3804
      %v3862 = vunpack.c.l.b16 %v3805
      %v3863 = vunpack.c.h.b16 %v3805
      %v3864 = vunpack.c.l.b16 %v3806
      %v3865 = vunpack.c.h.b16 %v3806
      %v3866 = vunpack.c.l.b16 %v3807
      %v3867 = vunpack.c.h.b16 %v3807
      %v3868 = vunpack.c.l.b16 %v3808
      %v3869 = vunpack.c.h.b16 %v3808
      %v3870 = vunpack.c.l.b16 %v3809
      %v3871 = vunpack.c.h.b16 %v3809
      %v3872 = vunpack.c.l.b16 %v3810
      %v3873 = vunpack.c.h.b16 %v3810
      %v3874 = vunpack.c.l.b16 %v3811
      %v3875 = vunpack.c.h.b16 %v3811
      %v3876 = vunpack.c.l.b16 %v3812
      %v3877 = vunpack.c.h.b16 %v3812
      %v3878 = vunpack.c.l.b16 %v3813
      %v3879 = vunpack.c.h.b16 %v3813
      %v3880 = vunpack.c.l.b16 %v3814
      %v3881 = vunpack.c.h.b16 %v3814
      %v3882 = vunpack.c.l.b16 %v3815
      %v3883 = vunpack.c.h.b16 %v3815
      %v3884 = vpack.c.b16 %v3854, %v3852
      %v3885 = vpack.c.b16 %v3855, %v3853
      %v3886 = vpack.c.b16 %v3858, %v3856
      %v3887 = vpack.c.b16 %v3859, %v3857
      %v3888 = vpack.c.b16 %v3862, %v3860
      %v3889 = vpack.c.b16 %v3863, %v3861
      %v3890 = vpack.c.b16 %v3866, %v3864
      %v3891 = vpack.c.b16 %v3867, %v3865
      %v3892 = vpack.c.b16 %v3870, %v3868
      %v3893 = vpack.c.b16 %v3871, %v3869
      %v3894 = vpack.c.b16 %v3874, %v3872
      %v3895 = vpack.c.b16 %v3875, %v3873
      %v3896 = vpack.c.b16 %v3878, %v3876
      %v3897 = vpack.c.b16 %v3879, %v3877
      %v3898 = vpack.c.b16 %v3882, %v3880
      %v3899 = vpack.c.b16 %v3883, %v3881
      %3916 = vmatprep.subr.bf16.mxu0 %v3885
      %3917 = vmatpush1.bf16.msra.mxu0 %v3884
      %3918 = vmatprep.subr.bf16.mxu0 %v3887
      %3919 = vmatpush1.bf16.msra.mxu0 %v3886
      %3920 = vmatprep.subr.bf16.mxu0 %v3889
      %3921 = vmatpush1.bf16.msra.mxu0 %v3888
      %3922 = vmatprep.subr.bf16.mxu0 %v3891
      %3923 = vmatpush1.bf16.msra.mxu0 %v3890
      %3924 = vmatprep.subr.bf16.mxu0 %v3893
      %3925 = vmatpush1.bf16.msra.mxu0 %v3892
      %3926 = vmatprep.subr.bf16.mxu0 %v3895
      %3927 = vmatpush1.bf16.msra.mxu0 %v3894
      %3928 = vmatprep.subr.bf16.mxu0 %v3897
      %3929 = vmatpush1.bf16.msra.mxu0 %v3896
      %3930 = vmatprep.subr.bf16.mxu0 %v3899
      %3931 = vmatpush1.bf16.msra.mxu0 %v3898
      %3932 = vmatprep.subr.bf16.mxu0 0
      %3933 = vmatpush1.bf16.msra.mxu0 0
      %3934 = vmatprep.subr.bf16.mxu0 0
      %3935 = vmatpush1.bf16.msra.mxu0 0
      %3936 = vmatprep.subr.bf16.mxu0 0
      %3937 = vmatpush1.bf16.msra.mxu0 0
      %3938 = vmatprep.subr.bf16.mxu0 0
      %3939 = vmatpush1.bf16.msra.mxu0 0
      %3940 = vmatprep.subr.bf16.mxu0 0
      %3941 = vmatpush1.bf16.msra.mxu0 0
      %3942 = vmatprep.subr.bf16.mxu0 0
      %3943 = vmatpush1.bf16.msra.mxu0 0
      %3944 = vmatprep.subr.bf16.mxu0 0
      %3945 = vmatpush1.bf16.msra.mxu0 0
      %3946 = vmatprep.subr.bf16.mxu0 0
      %3947 = vmatpush1.bf16.msra.mxu0 0
      %3948 = vmatprep.mubr.bf16.mxu0 0
      %3949 = vmatmul.mubr.bf16.gmra.mrb[0].mxu0 %v3833
      %v3950 = vpop.f32.mrb[0].mxu0
      %v3951 = vadd.f32 0.0, %v3950
      %v3952 = vpop.f32.mrb[0].mxu0
      %v3953 = vadd.f32 0.0, %v3952
      %v3954 = vpop.f32.mrb[0].mxu0
      %v3955 = vadd.f32 0.0, %v3954
      %v3956 = vpop.f32.mrb[0].mxu0
      %v3957 = vadd.f32 0.0, %v3956
      %3958 = vmatprep.mubr.bf16.mxu0 0
      %3959 = vmatmul.mubr.bf16.gmra.mrb[0].mxu0 %v3832
      %v3960 = vpop.f32.mrb[0].mxu0
      %v3961 = vadd.f32 0.0, %v3960
      %v3962 = vpop.f32.mrb[0].mxu0
      %v3963 = vadd.f32 0.0, %v3962
      %v3964 = vpop.f32.mrb[0].mxu0
      %v3965 = vpop.f32.mrb[0].mxu0
      %3966 = vdwg.mxu0
      %v3967 = vadd.f32 %v3793, %v3951
      %v3968 = vadd.f32 %v3794, %v3953
      %v3969 = vadd.f32 %v3795, %v3955
      %v3970 = vadd.f32 %v3796, %v3957
      %v3971 = vadd.f32 %v3797, %v3961
      %v3972 = vadd.f32 %v3798, %v3963
      %s3973 = scalar_lea.vmem %s6, 640
      %v3974 = vld [vmem:[%s3973] sm:$0xff]
      %v3975 = vld [vmem:[%s3973 + $0x8] sm:$0xff]
      %v3976 = vld [vmem:[%s3973 + $0x10] sm:$0xff]
      %v3977 = vld [vmem:[%s3973 + $0x18] sm:$0xff]
      %v3978 = vld [vmem:[%s3973 + $0x20] sm:$0xff]
      %v3979 = vld [vmem:[%s3973 + $0x28] sm:$0xff]
      %v3980 = vld [vmem:[%s3973 + $0x30] sm:$0xff]
      %v3981 = vld [vmem:[%s3973 + $0x38] sm:$0xff]
      %v3982 = vld [vmem:[%s3973 + $0x40] sm:$0xff]
      %v3983 = vld [vmem:[%s3973 + $0x48] sm:$0xff]
      %v3984 = vld [vmem:[%s3973 + $0x50] sm:$0xff]
      %v3985 = vld [vmem:[%s3973 + $0x58] sm:$0xff]
      %v3986 = vld [vmem:[%s3973 + $0x60] sm:$0xff]
      %v3987 = vld [vmem:[%s3973 + $0x68] sm:$0xff]
      %v3988 = vld [vmem:[%s3973 + $0x70] sm:$0xff]
      %v3989 = vld [vmem:[%s3973 + $0x78] sm:$0xff]
      %v3991 = vshrl.u32 %v3155, 16
      %v3993 = vrot.slane %v3991, 1
      %v3994 = vshll.u32 %v3155, 16
      %v3996 = vrot.slane %v3994, 2
      %v3997 = vor.u32 %v3993, %v3996
      %v3998 = vrot.slane %v3818, 1
      %v3999 = vrot.slane %v3821, 2
      %v4000 = vor.u32 %v3998, %v3999
      %v4001 = vsel %vm1957, %v3997, %v4000
      %v4020 = vunpack.c.l.b16 %v3974
      %v4021 = vunpack.c.h.b16 %v3974
      %v4022 = vunpack.c.l.b16 %v3975
      %v4023 = vunpack.c.h.b16 %v3975
      %v4024 = vunpack.c.l.b16 %v3976
      %v4025 = vunpack.c.h.b16 %v3976
      %v4026 = vunpack.c.l.b16 %v3977
      %v4027 = vunpack.c.h.b16 %v3977
      %v4028 = vunpack.c.l.b16 %v3978
      %v4029 = vunpack.c.h.b16 %v3978
      %v4030 = vunpack.c.l.b16 %v3979
      %v4031 = vunpack.c.h.b16 %v3979
      %v4032 = vunpack.c.l.b16 %v3980
      %v4033 = vunpack.c.h.b16 %v3980
      %v4034 = vunpack.c.l.b16 %v3981
      %v4035 = vunpack.c.h.b16 %v3981
      %v4036 = vunpack.c.l.b16 %v3982
      %v4037 = vunpack.c.h.b16 %v3982
      %v4038 = vunpack.c.l.b16 %v3983
      %v4039 = vunpack.c.h.b16 %v3983
      %v4040 = vunpack.c.l.b16 %v3984
      %v4041 = vunpack.c.h.b16 %v3984
      %v4042 = vunpack.c.l.b16 %v3985
      %v4043 = vunpack.c.h.b16 %v3985
      %v4044 = vunpack.c.l.b16 %v3986
      %v4045 = vunpack.c.h.b16 %v3986
      %v4046 = vunpack.c.l.b16 %v3987
      %v4047 = vunpack.c.h.b16 %v3987
      %v4048 = vunpack.c.l.b16 %v3988
      %v4049 = vunpack.c.h.b16 %v3988
      %v4050 = vunpack.c.l.b16 %v3989
      %v4051 = vunpack.c.h.b16 %v3989
      %v4052 = vpack.c.b16 %v4022, %v4020
      %v4053 = vpack.c.b16 %v4023, %v4021
      %v4054 = vpack.c.b16 %v4026, %v4024
      %v4055 = vpack.c.b16 %v4027, %v4025
      %v4056 = vpack.c.b16 %v4030, %v4028
      %v4057 = vpack.c.b16 %v4031, %v4029
      %v4058 = vpack.c.b16 %v4034, %v4032
      %v4059 = vpack.c.b16 %v4035, %v4033
      %v4060 = vpack.c.b16 %v4038, %v4036
      %v4061 = vpack.c.b16 %v4039, %v4037
      %v4062 = vpack.c.b16 %v4042, %v4040
      %v4063 = vpack.c.b16 %v4043, %v4041
      %v4064 = vpack.c.b16 %v4046, %v4044
      %v4065 = vpack.c.b16 %v4047, %v4045
      %v4066 = vpack.c.b16 %v4050, %v4048
      %v4067 = vpack.c.b16 %v4051, %v4049
      %4084 = vmatprep.subr.bf16.mxu0 %v4053
      %4085 = vmatpush1.bf16.msra.mxu0 %v4052
      %4086 = vmatprep.subr.bf16.mxu0 %v4055
      %4087 = vmatpush1.bf16.msra.mxu0 %v4054
      %4088 = vmatprep.subr.bf16.mxu0 %v4057
      %4089 = vmatpush1.bf16.msra.mxu0 %v4056
      %4090 = vmatprep.subr.bf16.mxu0 %v4059
      %4091 = vmatpush1.bf16.msra.mxu0 %v4058
      %4092 = vmatprep.subr.bf16.mxu0 %v4061
      %4093 = vmatpush1.bf16.msra.mxu0 %v4060
      %4094 = vmatprep.subr.bf16.mxu0 %v4063
      %4095 = vmatpush1.bf16.msra.mxu0 %v4062
      %4096 = vmatprep.subr.bf16.mxu0 %v4065
      %4097 = vmatpush1.bf16.msra.mxu0 %v4064
      %4098 = vmatprep.subr.bf16.mxu0 %v4067
      %4099 = vmatpush1.bf16.msra.mxu0 %v4066
      %4100 = vmatprep.subr.bf16.mxu0 0
      %4101 = vmatpush1.bf16.msra.mxu0 0
      %4102 = vmatprep.subr.bf16.mxu0 0
      %4103 = vmatpush1.bf16.msra.mxu0 0
      %4104 = vmatprep.subr.bf16.mxu0 0
      %4105 = vmatpush1.bf16.msra.mxu0 0
      %4106 = vmatprep.subr.bf16.mxu0 0
      %4107 = vmatpush1.bf16.msra.mxu0 0
      %4108 = vmatprep.subr.bf16.mxu0 0
      %4109 = vmatpush1.bf16.msra.mxu0 0
      %4110 = vmatprep.subr.bf16.mxu0 0
      %4111 = vmatpush1.bf16.msra.mxu0 0
      %4112 = vmatprep.subr.bf16.mxu0 0
      %4113 = vmatpush1.bf16.msra.mxu0 0
      %4114 = vmatprep.subr.bf16.mxu0 0
      %4115 = vmatpush1.bf16.msra.mxu0 0
      %4116 = vmatprep.mubr.bf16.mxu0 0
      %4117 = vmatmul.mubr.bf16.gmra.mrb[0].mxu0 %v4001
      %v4118 = vpop.f32.mrb[0].mxu0
      %v4119 = vadd.f32 0.0, %v4118
      %v4120 = vpop.f32.mrb[0].mxu0
      %v4121 = vadd.f32 0.0, %v4120
      %v4122 = vpop.f32.mrb[0].mxu0
      %v4123 = vadd.f32 0.0, %v4122
      %v4124 = vpop.f32.mrb[0].mxu0
      %v4125 = vadd.f32 0.0, %v4124
      %4126 = vmatprep.mubr.bf16.mxu0 0
      %4127 = vmatmul.mubr.bf16.gmra.mrb[0].mxu0 %v4000
      %v4128 = vpop.f32.mrb[0].mxu0
      %v4129 = vadd.f32 0.0, %v4128
      %v4130 = vpop.f32.mrb[0].mxu0
      %v4131 = vadd.f32 0.0, %v4130
      %v4132 = vpop.f32.mrb[0].mxu0
      %v4133 = vpop.f32.mrb[0].mxu0
      %4134 = vdwg.mxu0
      %v4135 = vadd.f32 %v3967, %v4119
      %v4136 = vadd.f32 %v3968, %v4121
      %v4137 = vadd.f32 %v3969, %v4123
      %v4138 = vadd.f32 %v3970, %v4125
      %v4139 = vadd.f32 %v3971, %v4129
      %v4140 = vadd.f32 %v3972, %v4131
      %s4141 = scalar_lea.vmem %s6, 768
      %v4142 = vld [vmem:[%s4141] sm:$0xff]
      %v4143 = vld [vmem:[%s4141 + $0x8] sm:$0xff]
      %v4144 = vld [vmem:[%s4141 + $0x10] sm:$0xff]
      %v4145 = vld [vmem:[%s4141 + $0x18] sm:$0xff]
      %v4146 = vld [vmem:[%s4141 + $0x20] sm:$0xff]
      %v4147 = vld [vmem:[%s4141 + $0x28] sm:$0xff]
      %v4148 = vld [vmem:[%s4141 + $0x30] sm:$0xff]
      %v4149 = vld [vmem:[%s4141 + $0x38] sm:$0xff]
      %v4150 = vld [vmem:[%s4141 + $0x40] sm:$0xff]
      %v4151 = vld [vmem:[%s4141 + $0x48] sm:$0xff]
      %v4152 = vld [vmem:[%s4141 + $0x50] sm:$0xff]
      %v4153 = vld [vmem:[%s4141 + $0x58] sm:$0xff]
      %v4154 = vld [vmem:[%s4141 + $0x60] sm:$0xff]
      %v4155 = vld [vmem:[%s4141 + $0x68] sm:$0xff]
      %v4156 = vld [vmem:[%s4141 + $0x70] sm:$0xff]
      %v4157 = vld [vmem:[%s4141 + $0x78] sm:$0xff]
      %vm4158 = vsmask.f32 5376
      %v4159 = vrot.slane %v3490, 2
      %v4160 = vrot.slane %v3492, 3
      %v4161 = vor.u32 %v4159, %v4160
      %v4162 = vrot.slane %v3192, 2
      %v4163 = vrot.slane %v3195, 3
      %v4164 = vor.u32 %v4162, %v4163
      %v4165 = vsel %vm4158, %v4161, %v4164
      %v4184 = vunpack.c.l.b16 %v4142
      %v4185 = vunpack.c.h.b16 %v4142
      %v4186 = vunpack.c.l.b16 %v4143
      %v4187 = vunpack.c.h.b16 %v4143
      %v4188 = vunpack.c.l.b16 %v4144
      %v4189 = vunpack.c.h.b16 %v4144
      %v4190 = vunpack.c.l.b16 %v4145
      %v4191 = vunpack.c.h.b16 %v4145
      %v4192 = vunpack.c.l.b16 %v4146
      %v4193 = vunpack.c.h.b16 %v4146
      %v4194 = vunpack.c.l.b16 %v4147
      %v4195 = vunpack.c.h.b16 %v4147
      %v4196 = vunpack.c.l.b16 %v4148
      %v4197 = vunpack.c.h.b16 %v4148
      %v4198 = vunpack.c.l.b16 %v4149
      %v4199 = vunpack.c.h.b16 %v4149
      %v4200 = vunpack.c.l.b16 %v4150
      %v4201 = vunpack.c.h.b16 %v4150
      %v4202 = vunpack.c.l.b16 %v4151
      %v4203 = vunpack.c.h.b16 %v4151
      %v4204 = vunpack.c.l.b16 %v4152
      %v4205 = vunpack.c.h.b16 %v4152
      %v4206 = vunpack.c.l.b16 %v4153
      %v4207 = vunpack.c.h.b16 %v4153
      %v4208 = vunpack.c.l.b16 %v4154
      %v4209 = vunpack.c.h.b16 %v4154
      %v4210 = vunpack.c.l.b16 %v4155
      %v4211 = vunpack.c.h.b16 %v4155
      %v4212 = vunpack.c.l.b16 %v4156
      %v4213 = vunpack.c.h.b16 %v4156
      %v4214 = vunpack.c.l.b16 %v4157
      %v4215 = vunpack.c.h.b16 %v4157
      %v4216 = vpack.c.b16 %v4186, %v4184
      %v4217 = vpack.c.b16 %v4187, %v4185
      %v4218 = vpack.c.b16 %v4190, %v4188
      %v4219 = vpack.c.b16 %v4191, %v4189
      %v4220 = vpack.c.b16 %v4194, %v4192
      %v4221 = vpack.c.b16 %v4195, %v4193
      %v4222 = vpack.c.b16 %v4198, %v4196
      %v4223 = vpack.c.b16 %v4199, %v4197
      %v4224 = vpack.c.b16 %v4202, %v4200
      %v4225 = vpack.c.b16 %v4203, %v4201
      %v4226 = vpack.c.b16 %v4206, %v4204
      %v4227 = vpack.c.b16 %v4207, %v4205
      %v4228 = vpack.c.b16 %v4210, %v4208
      %v4229 = vpack.c.b16 %v4211, %v4209
      %v4230 = vpack.c.b16 %v4214, %v4212
      %v4231 = vpack.c.b16 %v4215, %v4213
      %4248 = vmatprep.subr.bf16.mxu0 %v4217
      %4249 = vmatpush1.bf16.msra.mxu0 %v4216
      %4250 = vmatprep.subr.bf16.mxu0 %v4219
      %4251 = vmatpush1.bf16.msra.mxu0 %v4218
      %4252 = vmatprep.subr.bf16.mxu0 %v4221
      %4253 = vmatpush1.bf16.msra.mxu0 %v4220
      %4254 = vmatprep.subr.bf16.mxu0 %v4223
      %4255 = vmatpush1.bf16.msra.mxu0 %v4222
      %4256 = vmatprep.subr.bf16.mxu0 %v4225
      %4257 = vmatpush1.bf16.msra.mxu0 %v4224
      %4258 = vmatprep.subr.bf16.mxu0 %v4227
      %4259 = vmatpush1.bf16.msra.mxu0 %v4226
      %4260 = vmatprep.subr.bf16.mxu0 %v4229
      %4261 = vmatpush1.bf16.msra.mxu0 %v4228
      %4262 = vmatprep.subr.bf16.mxu0 %v4231
      %4263 = vmatpush1.bf16.msra.mxu0 %v4230
      %4264 = vmatprep.subr.bf16.mxu0 0
      %4265 = vmatpush1.bf16.msra.mxu0 0
      %4266 = vmatprep.subr.bf16.mxu0 0
      %4267 = vmatpush1.bf16.msra.mxu0 0
      %4268 = vmatprep.subr.bf16.mxu0 0
      %4269 = vmatpush1.bf16.msra.mxu0 0
      %4270 = vmatprep.subr.bf16.mxu0 0
      %4271 = vmatpush1.bf16.msra.mxu0 0
      %4272 = vmatprep.subr.bf16.mxu0 0
      %4273 = vmatpush1.bf16.msra.mxu0 0
      %4274 = vmatprep.subr.bf16.mxu0 0
      %4275 = vmatpush1.bf16.msra.mxu0 0
      %4276 = vmatprep.subr.bf16.mxu0 0
      %4277 = vmatpush1.bf16.msra.mxu0 0
      %4278 = vmatprep.subr.bf16.mxu0 0
      %4279 = vmatpush1.bf16.msra.mxu0 0
      %4280 = vmatprep.mubr.bf16.mxu0 0
      %4281 = vmatmul.mubr.bf16.gmra.mrb[0].mxu0 %v4165
      %v4282 = vpop.f32.mrb[0].mxu0
      %v4283 = vadd.f32 0.0, %v4282
      %v4284 = vpop.f32.mrb[0].mxu0
      %v4285 = vadd.f32 0.0, %v4284
      %v4286 = vpop.f32.mrb[0].mxu0
      %v4287 = vadd.f32 0.0, %v4286
      %v4288 = vpop.f32.mrb[0].mxu0
      %v4289 = vadd.f32 0.0, %v4288
      %4290 = vmatprep.mubr.bf16.mxu0 0
      %4291 = vmatmul.mubr.bf16.gmra.mrb[0].mxu0 %v4164
      %v4292 = vpop.f32.mrb[0].mxu0
      %v4293 = vadd.f32 0.0, %v4292
      %v4294 = vpop.f32.mrb[0].mxu0
      %v4295 = vadd.f32 0.0, %v4294
      %v4296 = vpop.f32.mrb[0].mxu0
      %v4297 = vpop.f32.mrb[0].mxu0
      %4298 = vdwg.mxu0
      %v4299 = vadd.f32 %v4135, %v4283
      %v4300 = vadd.f32 %v4136, %v4285
      %v4301 = vadd.f32 %v4137, %v4287
      %v4302 = vadd.f32 %v4138, %v4289
      %v4303 = vadd.f32 %v4139, %v4293
      %v4304 = vadd.f32 %v4140, %v4295
      %s4305 = scalar_lea.vmem %s6, 896
      %v4306 = vld [vmem:[%s4305] sm:$0xff]
      %v4307 = vld [vmem:[%s4305 + $0x8] sm:$0xff]
      %v4308 = vld [vmem:[%s4305 + $0x10] sm:$0xff]
      %v4309 = vld [vmem:[%s4305 + $0x18] sm:$0xff]
      %v4310 = vld [vmem:[%s4305 + $0x20] sm:$0xff]
      %v4311 = vld [vmem:[%s4305 + $0x28] sm:$0xff]
      %v4312 = vld [vmem:[%s4305 + $0x30] sm:$0xff]
      %v4313 = vld [vmem:[%s4305 + $0x38] sm:$0xff]
      %v4314 = vld [vmem:[%s4305 + $0x40] sm:$0xff]
      %v4315 = vld [vmem:[%s4305 + $0x48] sm:$0xff]
      %v4316 = vld [vmem:[%s4305 + $0x50] sm:$0xff]
      %v4317 = vld [vmem:[%s4305 + $0x58] sm:$0xff]
      %v4318 = vld [vmem:[%s4305 + $0x60] sm:$0xff]
      %v4319 = vld [vmem:[%s4305 + $0x68] sm:$0xff]
      %v4320 = vld [vmem:[%s4305 + $0x70] sm:$0xff]
      %v4321 = vld [vmem:[%s4305 + $0x78] sm:$0xff]
      %vm4324 = vcmask 1040384
      %v4325 = vrot.slane %v3153, 7
      %v4326 = vrot.slane %v3154, 7
      %v4327 = vsel %vm4324, %v4325, %v4326
      %v4328 = vrot.slane %v3155, 7
      %v4329 = vsel %vm4324, %v4326, %v4328
      %v4348 = vunpack.c.l.b16 %v4306
      %v4349 = vunpack.c.h.b16 %v4306
      %v4350 = vunpack.c.l.b16 %v4307
      %v4351 = vunpack.c.h.b16 %v4307
      %v4352 = vunpack.c.l.b16 %v4308
      %v4353 = vunpack.c.h.b16 %v4308
      %v4354 = vunpack.c.l.b16 %v4309
      %v4355 = vunpack.c.h.b16 %v4309
      %v4356 = vunpack.c.l.b16 %v4310
      %v4357 = vunpack.c.h.b16 %v4310
      %v4358 = vunpack.c.l.b16 %v4311
      %v4359 = vunpack.c.h.b16 %v4311
      %v4360 = vunpack.c.l.b16 %v4312
      %v4361 = vunpack.c.h.b16 %v4312
      %v4362 = vunpack.c.l.b16 %v4313
      %v4363 = vunpack.c.h.b16 %v4313
      %v4364 = vunpack.c.l.b16 %v4314
      %v4365 = vunpack.c.h.b16 %v4314
      %v4366 = vunpack.c.l.b16 %v4315
      %v4367 = vunpack.c.h.b16 %v4315
      %v4368 = vunpack.c.l.b16 %v4316
      %v4369 = vunpack.c.h.b16 %v4316
      %v4370 = vunpack.c.l.b16 %v4317
      %v4371 = vunpack.c.h.b16 %v4317
      %v4372 = vunpack.c.l.b16 %v4318
      %v4373 = vunpack.c.h.b16 %v4318
      %v4374 = vunpack.c.l.b16 %v4319
      %v4375 = vunpack.c.h.b16 %v4319
      %v4376 = vunpack.c.l.b16 %v4320
      %v4377 = vunpack.c.h.b16 %v4320
      %v4378 = vunpack.c.l.b16 %v4321
      %v4379 = vunpack.c.h.b16 %v4321
      %v4380 = vpack.c.b16 %v4350, %v4348
      %v4381 = vpack.c.b16 %v4351, %v4349
      %v4382 = vpack.c.b16 %v4354, %v4352
      %v4383 = vpack.c.b16 %v4355, %v4353
      %v4384 = vpack.c.b16 %v4358, %v4356
      %v4385 = vpack.c.b16 %v4359, %v4357
      %v4386 = vpack.c.b16 %v4362, %v4360
      %v4387 = vpack.c.b16 %v4363, %v4361
      %v4388 = vpack.c.b16 %v4366, %v4364
      %v4389 = vpack.c.b16 %v4367, %v4365
      %v4390 = vpack.c.b16 %v4370, %v4368
      %v4391 = vpack.c.b16 %v4371, %v4369
      %v4392 = vpack.c.b16 %v4374, %v4372
      %v4393 = vpack.c.b16 %v4375, %v4373
      %v4394 = vpack.c.b16 %v4378, %v4376
      %v4395 = vpack.c.b16 %v4379, %v4377
      %4412 = vmatprep.subr.bf16.mxu0 %v4381
      %4413 = vmatpush1.bf16.msra.mxu0 %v4380
      %4414 = vmatprep.subr.bf16.mxu0 %v4383
      %4415 = vmatpush1.bf16.msra.mxu0 %v4382
      %4416 = vmatprep.subr.bf16.mxu0 %v4385
      %4417 = vmatpush1.bf16.msra.mxu0 %v4384
      %4418 = vmatprep.subr.bf16.mxu0 %v4387
      %4419 = vmatpush1.bf16.msra.mxu0 %v4386
      %4420 = vmatprep.subr.bf16.mxu0 %v4389
      %4421 = vmatpush1.bf16.msra.mxu0 %v4388
      %4422 = vmatprep.subr.bf16.mxu0 %v4391
      %4423 = vmatpush1.bf16.msra.mxu0 %v4390
      %4424 = vmatprep.subr.bf16.mxu0 %v4393
      %4425 = vmatpush1.bf16.msra.mxu0 %v4392
      %4426 = vmatprep.subr.bf16.mxu0 %v4395
      %4427 = vmatpush1.bf16.msra.mxu0 %v4394
      %4428 = vmatprep.subr.bf16.mxu0 0
      %4429 = vmatpush1.bf16.msra.mxu0 0
      %4430 = vmatprep.subr.bf16.mxu0 0
      %4431 = vmatpush1.bf16.msra.mxu0 0
      %4432 = vmatprep.subr.bf16.mxu0 0
      %4433 = vmatpush1.bf16.msra.mxu0 0
      %4434 = vmatprep.subr.bf16.mxu0 0
      %4435 = vmatpush1.bf16.msra.mxu0 0
      %4436 = vmatprep.subr.bf16.mxu0 0
      %4437 = vmatpush1.bf16.msra.mxu0 0
      %4438 = vmatprep.subr.bf16.mxu0 0
      %4439 = vmatpush1.bf16.msra.mxu0 0
      %4440 = vmatprep.subr.bf16.mxu0 0
      %4441 = vmatpush1.bf16.msra.mxu0 0
      %4442 = vmatprep.subr.bf16.mxu0 0
      %4443 = vmatpush1.bf16.msra.mxu0 0
      %4444 = vmatprep.mubr.bf16.mxu0 0
      %4445 = vmatmul.mubr.bf16.gmra.mrb[0].mxu0 %v4327
      %v4446 = vpop.f32.mrb[0].mxu0
      %v4447 = vadd.f32 0.0, %v4446
      %v4448 = vpop.f32.mrb[0].mxu0
      %v4449 = vadd.f32 0.0, %v4448
      %v4450 = vpop.f32.mrb[0].mxu0
      %v4451 = vadd.f32 0.0, %v4450
      %v4452 = vpop.f32.mrb[0].mxu0
      %v4453 = vadd.f32 0.0, %v4452
      %4454 = vmatprep.mubr.bf16.mxu0 0
      %4455 = vmatmul.mubr.bf16.gmra.mrb[0].mxu0 %v4329
      %v4456 = vpop.f32.mrb[0].mxu0
      %v4457 = vadd.f32 0.0, %v4456
      %v4458 = vpop.f32.mrb[0].mxu0
      %v4459 = vadd.f32 0.0, %v4458
      %v4460 = vpop.f32.mrb[0].mxu0
      %v4461 = vpop.f32.mrb[0].mxu0
      %4462 = vdwg.mxu0
      %v4463 = vadd.f32 %v4299, %v4447
      %v4464 = vadd.f32 %v4300, %v4449
      %v4465 = vadd.f32 %v4301, %v4451
      %v4466 = vadd.f32 %v4302, %v4453
      %v4467 = vadd.f32 %v4303, %v4457
      %v4468 = vadd.f32 %v4304, %v4459
      %s4469 = scalar_lea.vmem %s6, 1024
      %v4470 = vld [vmem:[%s4469] sm:$0xff]
      %v4471 = vld [vmem:[%s4469 + $0x8] sm:$0xff]
      %v4472 = vld [vmem:[%s4469 + $0x10] sm:$0xff]
      %v4473 = vld [vmem:[%s4469 + $0x18] sm:$0xff]
      %v4474 = vld [vmem:[%s4469 + $0x20] sm:$0xff]
      %v4475 = vld [vmem:[%s4469 + $0x28] sm:$0xff]
      %v4476 = vld [vmem:[%s4469 + $0x30] sm:$0xff]
      %v4477 = vld [vmem:[%s4469 + $0x38] sm:$0xff]
      %v4478 = vld [vmem:[%s4469 + $0x40] sm:$0xff]
      %v4479 = vld [vmem:[%s4469 + $0x48] sm:$0xff]
      %v4480 = vld [vmem:[%s4469 + $0x50] sm:$0xff]
      %v4481 = vld [vmem:[%s4469 + $0x58] sm:$0xff]
      %v4482 = vld [vmem:[%s4469 + $0x60] sm:$0xff]
      %v4483 = vld [vmem:[%s4469 + $0x68] sm:$0xff]
      %v4484 = vld [vmem:[%s4469 + $0x70] sm:$0xff]
      %v4485 = vld [vmem:[%s4469 + $0x78] sm:$0xff]
      %vm4487 = vcmask 1044480
      %v4488 = vrot.slane %v3152, 3
      %v4489 = vrot.slane %v3153, 3
      %v4490 = vsel %vm4487, %v4488, %v4489
      %v4509 = vunpack.c.l.b16 %v4470
      %v4510 = vunpack.c.h.b16 %v4470
      %v4511 = vunpack.c.l.b16 %v4471
      %v4512 = vunpack.c.h.b16 %v4471
      %v4513 = vunpack.c.l.b16 %v4472
      %v4514 = vunpack.c.h.b16 %v4472
      %v4515 = vunpack.c.l.b16 %v4473
      %v4516 = vunpack.c.h.b16 %v4473
      %v4517 = vunpack.c.l.b16 %v4474
      %v4518 = vunpack.c.h.b16 %v4474
      %v4519 = vunpack.c.l.b16 %v4475
      %v4520 = vunpack.c.h.b16 %v4475
      %v4521 = vunpack.c.l.b16 %v4476
      %v4522 = vunpack.c.h.b16 %v4476
      %v4523 = vunpack.c.l.b16 %v4477
      %v4524 = vunpack.c.h.b16 %v4477
      %v4525 = vunpack.c.l.b16 %v4478
      %v4526 = vunpack.c.h.b16 %v4478
      %v4527 = vunpack.c.l.b16 %v4479
      %v4528 = vunpack.c.h.b16 %v4479
      %v4529 = vunpack.c.l.b16 %v4480
      %v4530 = vunpack.c.h.b16 %v4480
      %v4531 = vunpack.c.l.b16 %v4481
      %v4532 = vunpack.c.h.b16 %v4481
      %v4533 = vunpack.c.l.b16 %v4482
      %v4534 = vunpack.c.h.b16 %v4482
      %v4535 = vunpack.c.l.b16 %v4483
      %v4536 = vunpack.c.h.b16 %v4483
      %v4537 = vunpack.c.l.b16 %v4484
      %v4538 = vunpack.c.h.b16 %v4484
      %v4539 = vunpack.c.l.b16 %v4485
      %v4540 = vunpack.c.h.b16 %v4485
      %v4541 = vpack.c.b16 %v4511, %v4509
      %v4542 = vpack.c.b16 %v4512, %v4510
      %v4543 = vpack.c.b16 %v4515, %v4513
      %v4544 = vpack.c.b16 %v4516, %v4514
      %v4545 = vpack.c.b16 %v4519, %v4517
      %v4546 = vpack.c.b16 %v4520, %v4518
      %v4547 = vpack.c.b16 %v4523, %v4521
      %v4548 = vpack.c.b16 %v4524, %v4522
      %v4549 = vpack.c.b16 %v4527, %v4525
      %v4550 = vpack.c.b16 %v4528, %v4526
      %v4551 = vpack.c.b16 %v4531, %v4529
      %v4552 = vpack.c.b16 %v4532, %v4530
      %v4553 = vpack.c.b16 %v4535, %v4533
      %v4554 = vpack.c.b16 %v4536, %v4534
      %v4555 = vpack.c.b16 %v4539, %v4537
      %v4556 = vpack.c.b16 %v4540, %v4538
      %4573 = vmatprep.subr.bf16.mxu0 %v4542
      %4574 = vmatpush1.bf16.msra.mxu0 %v4541
      %4575 = vmatprep.subr.bf16.mxu0 %v4544
      %4576 = vmatpush1.bf16.msra.mxu0 %v4543
      %4577 = vmatprep.subr.bf16.mxu0 %v4546
      %4578 = vmatpush1.bf16.msra.mxu0 %v4545
      %4579 = vmatprep.subr.bf16.mxu0 %v4548
      %4580 = vmatpush1.bf16.msra.mxu0 %v4547
      %4581 = vmatprep.subr.bf16.mxu0 %v4550
      %4582 = vmatpush1.bf16.msra.mxu0 %v4549
      %4583 = vmatprep.subr.bf16.mxu0 %v4552
      %4584 = vmatpush1.bf16.msra.mxu0 %v4551
      %4585 = vmatprep.subr.bf16.mxu0 %v4554
      %4586 = vmatpush1.bf16.msra.mxu0 %v4553
      %4587 = vmatprep.subr.bf16.mxu0 %v4556
      %4588 = vmatpush1.bf16.msra.mxu0 %v4555
      %4589 = vmatprep.subr.bf16.mxu0 0
      %4590 = vmatpush1.bf16.msra.mxu0 0
      %4591 = vmatprep.subr.bf16.mxu0 0
      %4592 = vmatpush1.bf16.msra.mxu0 0
      %4593 = vmatprep.subr.bf16.mxu0 0
      %4594 = vmatpush1.bf16.msra.mxu0 0
      %4595 = vmatprep.subr.bf16.mxu0 0
      %4596 = vmatpush1.bf16.msra.mxu0 0
      %4597 = vmatprep.subr.bf16.mxu0 0
      %4598 = vmatpush1.bf16.msra.mxu0 0
      %4599 = vmatprep.subr.bf16.mxu0 0
      %4600 = vmatpush1.bf16.msra.mxu0 0
      %4601 = vmatprep.subr.bf16.mxu0 0
      %4602 = vmatpush1.bf16.msra.mxu0 0
      %4603 = vmatprep.subr.bf16.mxu0 0
      %4604 = vmatpush1.bf16.msra.mxu0 0
      %4605 = vmatprep.mubr.bf16.mxu0 0
      %4606 = vmatmul.mubr.bf16.gmra.mrb[0].mxu0 %v4490
      %v4607 = vpop.f32.mrb[0].mxu0
      %v4608 = vadd.f32 0.0, %v4607
      %v4609 = vpop.f32.mrb[0].mxu0
      %v4610 = vadd.f32 0.0, %v4609
      %v4611 = vpop.f32.mrb[0].mxu0
      %v4612 = vadd.f32 0.0, %v4611
      %v4613 = vpop.f32.mrb[0].mxu0
      %v4614 = vadd.f32 0.0, %v4613
      %4615 = vmatprep.mubr.bf16.mxu0 0
      %4616 = vmatmul.mubr.bf16.gmra.mrb[0].mxu0 %v4489
      %v4617 = vpop.f32.mrb[0].mxu0
      %v4618 = vadd.f32 0.0, %v4617
      %v4619 = vpop.f32.mrb[0].mxu0
      %v4620 = vadd.f32 0.0, %v4619
      %v4621 = vpop.f32.mrb[0].mxu0
      %v4622 = vpop.f32.mrb[0].mxu0
      %4623 = vdwg.mxu0
      %v4624 = vadd.f32 %v4463, %v4608
      %v4625 = vadd.f32 %v4464, %v4610
      %v4626 = vadd.f32 %v4465, %v4612
      %v4627 = vadd.f32 %v4466, %v4614
      %v4628 = vadd.f32 %v4467, %v4618
      %v4629 = vadd.f32 %v4468, %v4620
      %vm4630 = vcmp.ne.s32.totalorder %v2735, 4
      %vm4631 = vcmp.ne.s32.totalorder %v2736, 4
      %vm4632 = vcmp.ne.s32.totalorder %v2737, 4
      %vm4633 = vcmp.ne.s32.totalorder %v2735, 9
      %vm4634 = vcmp.ne.s32.totalorder %v2736, 9
      %vm4635 = vcmp.ne.s32.totalorder %v2737, 9
      %vm4636 = vmand %vm4630, %vm4633
      %vm4637 = vmand %vm4631, %vm4634
      %vm4638 = vmand %vm4632, %vm4635
      %vm4639 = vcmp.ne.s32.totalorder %v2735, 14
      %vm4640 = vcmp.ne.s32.totalorder %v2736, 14
      %vm4641 = vcmp.ne.s32.totalorder %v2737, 14
      %vm4642 = vmand %vm4636, %vm4639
      %vm4643 = vmand %vm4637, %vm4640
      %vm4644 = vmand %vm4638, %vm4641
      %v4645 = vsel %vm4642, 1, 0
      %v4646 = vsel %vm4643, 1, 0
      %v4647 = vsel %vm4644, 1, 0
      %v4648 = vcvt.s32.f32 %v4645
      %v4649 = vcvt.s32.f32 %v4646
      %v4650 = vcvt.s32.f32 %v4647
      %v4651 = vmul.f32 %v4624, %v4648
      %v4652 = vmul.f32 %v4625, %v4648
      %v4653 = vmul.f32 %v4626, %v4649
      %v4654 = vmul.f32 %v4627, %v4649
      %v4655 = vmul.f32 %v4628, %v4650
      %v4656 = vmul.f32 %v4629, %v4650
      %v4657 = vadd.f32 %v4651, %v4653
      %v4658 = vsel %vm3059, %v4655, 0.0
      %v4659 = vadd.f32 %v4657, %v4658
      %v4660 = vrot.slane %v4659, 4
      %v4661 = vadd.f32 %v4659, %v4660
      %v4662 = vrot.slane %v4661, 2
      %v4663 = vadd.f32 %v4661, %v4662
      %v4664 = vrot.slane %v4663, 1
      %v4665 = vadd.f32 %v4663, %v4664
      %v4666 = vadd.f32 %v4652, %v4654
      %v4667 = vsel %vm3059, %v4656, 0.0
      %v4668 = vadd.f32 %v4666, %v4667
      %v4669 = vrot.slane %v4668, 4
      %v4670 = vadd.f32 %v4668, %v4669
      %v4671 = vrot.slane %v4670, 2
      %v4672 = vadd.f32 %v4670, %v4671
      %v4673 = vrot.slane %v4672, 1
      %v4674 = vadd.f32 %v4672, %v4673
      %v4675 = vmul.f32 %v4665, 0.0625
      %v4676 = vmul.f32 %v4674, 0.0625
      %v4677 = vsub.f32 %v4624, %v4675
      %v4678 = vsub.f32 %v4625, %v4676
      %v4679 = vsub.f32 %v4626, %v4675
      %v4680 = vsub.f32 %v4627, %v4676
      %v4681 = vsub.f32 %v4628, %v4675
      %v4682 = vsub.f32 %v4629, %v4676
      %v4683 = vmul.f32 %v4677, %v4648
      %v4684 = vmul.f32 %v4678, %v4648
      %v4685 = vmul.f32 %v4679, %v4649
      %v4686 = vmul.f32 %v4680, %v4649
      %v4687 = vmul.f32 %v4681, %v4650
      %v4688 = vmul.f32 %v4682, %v4650
      %v4689 = vmul.f32 %v4683, %v4683
      %v4690 = vmul.f32 %v4684, %v4684
      %v4691 = vmul.f32 %v4685, %v4685
      %v4692 = vmul.f32 %v4686, %v4686
      %v4693 = vmul.f32 %v4687, %v4687
      %v4694 = vmul.f32 %v4688, %v4688
      %v4695 = vadd.f32 %v4689, %v4691
      %v4696 = vsel %vm3059, %v4693, 0.0
      %v4697 = vadd.f32 %v4695, %v4696
      %v4698 = vrot.slane %v4697, 4
      %v4699 = vadd.f32 %v4697, %v4698
      %v4700 = vrot.slane %v4699, 2
      %v4701 = vadd.f32 %v4699, %v4700
      %v4702 = vrot.slane %v4701, 1
      %v4703 = vadd.f32 %v4701, %v4702
      %v4704 = vadd.f32 %v4690, %v4692
      %v4705 = vsel %vm3059, %v4694, 0.0
      %v4706 = vadd.f32 %v4704, %v4705
      %v4707 = vrot.slane %v4706, 4
      %v4708 = vadd.f32 %v4706, %v4707
      %v4709 = vrot.slane %v4708, 2
      %v4710 = vadd.f32 %v4708, %v4709
      %v4711 = vrot.slane %v4710, 1
      %v4712 = vadd.f32 %v4710, %v4711
      %v4713 = vmul.f32 %v4703, 0.0625
      %v4714 = vmul.f32 %v4712, 0.0625
      %v4715 = vadd.f32 %v4713, 1e-05
      %v4716 = vadd.f32 %v4714, 1e-05
      %v4717 = vrsqrt.pop %v4715
      %v4718 = vrsqrt.pop %v4716
      %v4719 = vmul.f32 %v4677, %v4717
      %v4720 = vmul.f32 %v4678, %v4718
      %v4721 = vmul.f32 %v4679, %v4717
      %v4722 = vmul.f32 %v4680, %v4718
      %v4723 = vmul.f32 %v4681, %v4717
      %v4724 = vmul.f32 %v4682, %v4718
      %vm4725 = vcmp.gt.f32.partialorder %v4719, 0.0
      %vm4726 = vcmp.gt.f32.partialorder %v4720, 0.0
      %vm4727 = vcmp.gt.f32.partialorder %v4721, 0.0
      %vm4728 = vcmp.gt.f32.partialorder %v4722, 0.0
      %vm4729 = vcmp.gt.f32.partialorder %v4723, 0.0
      %vm4730 = vcmp.gt.f32.partialorder %v4724, 0.0
      %v4731 = vmul.f32 %v4719, 0.2
      %v4732 = vmul.f32 %v4720, 0.2
      %v4733 = vmul.f32 %v4721, 0.2
      %v4734 = vmul.f32 %v4722, 0.2
      %v4735 = vmul.f32 %v4723, 0.2
      %v4736 = vmul.f32 %v4724, 0.2
      %v4737 = vsel %vm4725, %v4719, %v4731
      %v4738 = vsel %vm4726, %v4720, %v4732
      %v4739 = vsel %vm4727, %v4721, %v4733
      %v4740 = vsel %vm4728, %v4722, %v4734
      %v4741 = vsel %vm4729, %v4723, %v4735
      %v4742 = vsel %vm4730, %v4724, %v4736
      %v4743 = vpack.c.bf16 %v4739, %v4737
      %v4744 = vpack.c.bf16 %v4740, %v4738
      %v4745 = vpack.c.bf16 %v4741, %v4741
      %v4746 = vpack.c.bf16 %v4742, %v4742
      %v4747 = vld [vmem:[%s7] sm:$0xf]
      %v4748 = vld [vmem:[%s7 + $0x4] sm:$0xf]
      %v4749 = vld [vmem:[%s7 + $0x8] sm:$0xf]
      %v4750 = vld [vmem:[%s7 + $0xc] sm:$0xf]
      %v4751 = vld [vmem:[%s7 + $0x10] sm:$0x3]
      %v4757 = vunpack.c.l.b16 %v4747
      %v4758 = vunpack.c.l.b16 %v4748
      %v4759 = vunpack.c.l.b16 %v4749
      %v4760 = vunpack.c.l.b16 %v4750
      %v4761 = vunpack.c.l.b16 %v4751
      %v4762 = vpack.c.b16 %v4758, %v4757
      %v4763 = vpack.c.b16 %v4760, %v4759
      %v4764 = vpack.c.b16 %v4761, %v4761
      %vm4765 = vcmask 154624
      %v4767 = vsel %vm4765, %v4762, 0
      %v4770 = vsel %vm4765, %v4763, 0
      %v4773 = vsel %vm4765, %v4764, 0
      %vm4775 = vcmask 1040384
      %vm4776 = vcmask 1041408
      %v4777 = vsel %vm4775, 4294967295, 65535
      %v4778 = vsel %vm4776, %v4777, 0
      %v4780 = vand.u32 %v4745, %v4778
      %v4783 = vand.u32 %v4746, %v4778
      %4785 = vmatprep.subr.bf16.mxu0 %v4744
      %4786 = vmatpush1.bf16.msra.mxu0 %v4743
      %4787 = vmatprep.subr.bf16.mxu0 %v4783
      %4788 = vmatpush1.bf16.msra.mxu0 %v4780
      %4789 = vmatprep.subr.bf16.mxu0 0
      %4790 = vmatpush1.bf16.msra.mxu0 0
      %4791 = vmatprep.subr.bf16.mxu0 0
      %4792 = vmatpush1.bf16.msra.mxu0 0
      %4793 = vmatprep.subr.bf16.mxu0 0
      %4794 = vmatpush1.bf16.msra.mxu0 0
      %4795 = vmatprep.subr.bf16.mxu0 0
      %4796 = vmatpush1.bf16.msra.mxu0 0
      %4797 = vmatprep.subr.bf16.mxu0 0
      %4798 = vmatpush1.bf16.msra.mxu0 0
      %4799 = vmatprep.subr.bf16.mxu0 0
      %4800 = vmatpush1.bf16.msra.mxu0 0
      %4801 = vmatprep.subr.bf16.mxu0 0
      %4802 = vmatpush1.bf16.msra.mxu0 0
      %4803 = vmatprep.subr.bf16.mxu0 0
      %4804 = vmatpush1.bf16.msra.mxu0 0
      %4805 = vmatprep.subr.bf16.mxu0 0
      %4806 = vmatpush1.bf16.msra.mxu0 0
      %4807 = vmatprep.subr.bf16.mxu0 0
      %4808 = vmatpush1.bf16.msra.mxu0 0
      %4809 = vmatprep.subr.bf16.mxu0 0
      %4810 = vmatpush1.bf16.msra.mxu0 0
      %4811 = vmatprep.subr.bf16.mxu0 0
      %4812 = vmatpush1.bf16.msra.mxu0 0
      %4813 = vmatprep.subr.bf16.mxu0 0
      %4814 = vmatpush1.bf16.msra.mxu0 0
      %4815 = vmatprep.subr.bf16.mxu0 0
      %4816 = vmatpush1.bf16.msra.mxu0 0
      %4817 = vmatprep.mubr.bf16.mxu0 0
      %4818 = vmatmul.mubr.bf16.gmra.mrb[0].mxu0 %v4767
      %v4819 = vpop.f32.mrb[0].mxu0
      %v4820 = vadd.f32 0.0, %v4819
      %v4821 = vpop.f32.mrb[0].mxu0
      %v4822 = vadd.f32 0.0, %v4821
      %v4823 = vpop.f32.mrb[0].mxu0
      %v4824 = vadd.f32 0.0, %v4823
      %v4825 = vpop.f32.mrb[0].mxu0
      %v4826 = vadd.f32 0.0, %v4825
      %4827 = vmatprep.mubr.bf16.mxu0 0
      %4828 = vmatmul.mubr.bf16.gmra.mrb[0].mxu0 %v4770
      %v4829 = vpop.f32.mrb[0].mxu0
      %v4830 = vadd.f32 0.0, %v4829
      %v4831 = vpop.f32.mrb[0].mxu0
      %v4832 = vadd.f32 0.0, %v4831
      %v4833 = vpop.f32.mrb[0].mxu0
      %v4834 = vadd.f32 0.0, %v4833
      %v4835 = vpop.f32.mrb[0].mxu0
      %v4836 = vadd.f32 0.0, %v4835
      %4837 = vmatprep.mubr.bf16.mxu0 0
      %4838 = vmatmul.mubr.bf16.gmra.mrb[0].mxu0 %v4773
      %v4839 = vpop.f32.mrb[0].mxu0
      %v4840 = vpop.f32.mrb[0].mxu0
      %v4841 = vpop.f32.mrb[0].mxu0
      %v4842 = vpop.f32.mrb[0].mxu0
      %4843 = vdwg.mxu0
      %v4844 = vpack.c.bf16 %v4824, %v4820
      %v4845 = vpack.c.bf16 %v4826, %v4822
      %v4846 = vpack.c.bf16 %v4834, %v4830
      %v4847 = vpack.c.bf16 %v4836, %v4832
      %v4848 = vld [vmem:[%s8] sm:$0xff]
      %v4849 = vld [vmem:[%s8 + $0x8] sm:$0xff]
      %v4850 = vld [vmem:[%s8 + $0x10] sm:$0xff]
      %v4851 = vld [vmem:[%s8 + $0x18] sm:$0xff]
      %v4852 = vld [vmem:[%s8 + $0x20] sm:$0xff]
      %v4853 = vld [vmem:[%s8 + $0x28] sm:$0xff]
      %v4854 = vld [vmem:[%s8 + $0x30] sm:$0xff]
      %v4855 = vld [vmem:[%s8 + $0x38] sm:$0xff]
      %v4856 = vld [vmem:[%s8 + $0x40] sm:$0xff]
      %v4857 = vld [vmem:[%s8 + $0x48] sm:$0xff]
      %v4858 = vld [vmem:[%s8 + $0x50] sm:$0xff]
      %v4859 = vld [vmem:[%s8 + $0x58] sm:$0xff]
      %v4860 = vld [vmem:[%s8 + $0x60] sm:$0xff]
      %v4861 = vld [vmem:[%s8 + $0x68] sm:$0xff]
      %v4862 = vld [vmem:[%s8 + $0x70] sm:$0xff]
      %v4863 = vld [vmem:[%s8 + $0x78] sm:$0xff]
      %v4864 = vld [vmem:[%s8 + $0x80] sm:$0xff]
      %v4865 = vld [vmem:[%s8 + $0x88] sm:$0xff]
      %v4866 = vld [vmem:[%s8 + $0x90] sm:$0xff]
      %v4867 = vld [vmem:[%s8 + $0x98] sm:$0xff]
      %v4868 = vld [vmem:[%s8 + $0xa0] sm:$0xff]
      %v4869 = vld [vmem:[%s8 + $0xa8] sm:$0xff]
      %v4870 = vld [vmem:[%s8 + $0xb0] sm:$0xff]
      %v4871 = vld [vmem:[%s8 + $0xb8] sm:$0xff]
      %v4872 = vld [vmem:[%s8 + $0xc0] sm:$0xff]
      %v4873 = vld [vmem:[%s8 + $0xc8] sm:$0xff]
      %v4874 = vld [vmem:[%s8 + $0xd0] sm:$0xff]
      %v4875 = vld [vmem:[%s8 + $0xd8] sm:$0xff]
      %v4876 = vld [vmem:[%s8 + $0xe0] sm:$0xff]
      %v4877 = vld [vmem:[%s8 + $0xe8] sm:$0xff]
      %v4878 = vld [vmem:[%s8 + $0xf0] sm:$0xff]
      %v4879 = vld [vmem:[%s8 + $0xf8] sm:$0xff]
      %v4880 = vld [vmem:[%s8 + $0x100] sm:$0xff]
      %v4881 = vld [vmem:[%s8 + $0x108] sm:$0xff]
      %v4882 = vld [vmem:[%s8 + $0x110] sm:$0xff]
      %v4883 = vld [vmem:[%s8 + $0x118] sm:$0xff]
      %v4884 = vld [vmem:[%s8 + $0x120] sm:$0xff]
      %v4885 = vld [vmem:[%s8 + $0x128] sm:$0xff]
      %v4886 = vld [vmem:[%s8 + $0x130] sm:$0xff]
      %v4887 = vld [vmem:[%s8 + $0x138] sm:$0xff]
      %v4888 = vld [vmem:[%s8 + $0x140] sm:$0xff]
      %v4889 = vld [vmem:[%s8 + $0x148] sm:$0xff]
      %v4890 = vld [vmem:[%s8 + $0x150] sm:$0xff]
      %v4891 = vld [vmem:[%s8 + $0x158] sm:$0xff]
      %v4892 = vld [vmem:[%s8 + $0x160] sm:$0xff]
      %v4893 = vld [vmem:[%s8 + $0x168] sm:$0xff]
      %v4894 = vld [vmem:[%s8 + $0x170] sm:$0xff]
      %v4895 = vld [vmem:[%s8 + $0x178] sm:$0xff]
      %v4896 = vld [vmem:[%s8 + $0x180] sm:$0xff]
      %v4897 = vld [vmem:[%s8 + $0x188] sm:$0xff]
      %v4898 = vld [vmem:[%s8 + $0x190] sm:$0xff]
      %v4899 = vld [vmem:[%s8 + $0x198] sm:$0xff]
      %v4900 = vld [vmem:[%s8 + $0x1a0] sm:$0xff]
      %v4901 = vld [vmem:[%s8 + $0x1a8] sm:$0xff]
      %v4902 = vld [vmem:[%s8 + $0x1b0] sm:$0xff]
      %v4903 = vld [vmem:[%s8 + $0x1b8] sm:$0xff]
      %v4904 = vld [vmem:[%s8 + $0x1c0] sm:$0xff]
      %v4905 = vld [vmem:[%s8 + $0x1c8] sm:$0xff]
      %v4906 = vld [vmem:[%s8 + $0x1d0] sm:$0xff]
      %v4907 = vld [vmem:[%s8 + $0x1d8] sm:$0xff]
      %v4908 = vld [vmem:[%s8 + $0x1e0] sm:$0xff]
      %v4909 = vld [vmem:[%s8 + $0x1e8] sm:$0xff]
      %v4910 = vld [vmem:[%s8 + $0x1f0] sm:$0xff]
      %v4911 = vld [vmem:[%s8 + $0x1f8] sm:$0xff]
      %s4912 = scalar_lea.vmem %s8, 512
      %v4913 = vld [vmem:[%s4912] sm:$0xff]
      %v4914 = vld [vmem:[%s4912 + $0x8] sm:$0xff]
      %v4915 = vld [vmem:[%s4912 + $0x10] sm:$0xff]
      %v4916 = vld [vmem:[%s4912 + $0x18] sm:$0xff]
      %v4917 = vld [vmem:[%s4912 + $0x20] sm:$0xff]
      %v4918 = vld [vmem:[%s4912 + $0x28] sm:$0xff]
      %v4919 = vld [vmem:[%s4912 + $0x30] sm:$0xff]
      %v4920 = vld [vmem:[%s4912 + $0x38] sm:$0xff]
      %v4921 = vld [vmem:[%s4912 + $0x40] sm:$0xff]
      %v4922 = vld [vmem:[%s4912 + $0x48] sm:$0xff]
      %v4923 = vld [vmem:[%s4912 + $0x50] sm:$0xff]
      %v4924 = vld [vmem:[%s4912 + $0x58] sm:$0xff]
      %v4925 = vld [vmem:[%s4912 + $0x60] sm:$0xff]
      %v4926 = vld [vmem:[%s4912 + $0x68] sm:$0xff]
      %v4927 = vld [vmem:[%s4912 + $0x70] sm:$0xff]
      %v4928 = vld [vmem:[%s4912 + $0x78] sm:$0xff]
      %v4929 = vld [vmem:[%s4912 + $0x80] sm:$0xff]
      %v4930 = vld [vmem:[%s4912 + $0x88] sm:$0xff]
      %v4931 = vld [vmem:[%s4912 + $0x90] sm:$0xff]
      %v4932 = vld [vmem:[%s4912 + $0x98] sm:$0xff]
      %v4933 = vld [vmem:[%s4912 + $0xa0] sm:$0xff]
      %v4934 = vld [vmem:[%s4912 + $0xa8] sm:$0xff]
      %v4935 = vld [vmem:[%s4912 + $0xb0] sm:$0xff]
      %v4936 = vld [vmem:[%s4912 + $0xb8] sm:$0xff]
      %v4937 = vld [vmem:[%s4912 + $0xc0] sm:$0xff]
      %v4938 = vld [vmem:[%s4912 + $0xc8] sm:$0xff]
      %v4939 = vld [vmem:[%s4912 + $0xd0] sm:$0xff]
      %v4940 = vld [vmem:[%s4912 + $0xd8] sm:$0xff]
      %v4941 = vld [vmem:[%s4912 + $0xe0] sm:$0xff]
      %v4942 = vld [vmem:[%s4912 + $0xe8] sm:$0xff]
      %v4943 = vld [vmem:[%s4912 + $0xf0] sm:$0xff]
      %v4944 = vld [vmem:[%s4912 + $0xf8] sm:$0xff]
      %v4945 = vld [vmem:[%s4912 + $0x100] sm:$0xff]
      %v4946 = vld [vmem:[%s4912 + $0x108] sm:$0xff]
      %v4947 = vld [vmem:[%s4912 + $0x110] sm:$0xff]
      %v4948 = vld [vmem:[%s4912 + $0x118] sm:$0xff]
      %v4949 = vld [vmem:[%s4912 + $0x120] sm:$0xff]
      %v4950 = vld [vmem:[%s4912 + $0x128] sm:$0xff]
      %v4951 = vld [vmem:[%s4912 + $0x130] sm:$0xff]
      %v4952 = vld [vmem:[%s4912 + $0x138] sm:$0xff]
      %v4953 = vld [vmem:[%s4912 + $0x140] sm:$0xff]
      %v4954 = vld [vmem:[%s4912 + $0x148] sm:$0xff]
      %v4955 = vld [vmem:[%s4912 + $0x150] sm:$0xff]
      %v4956 = vld [vmem:[%s4912 + $0x158] sm:$0xff]
      %v4957 = vld [vmem:[%s4912 + $0x160] sm:$0xff]
      %v4958 = vld [vmem:[%s4912 + $0x168] sm:$0xff]
      %v4959 = vld [vmem:[%s4912 + $0x170] sm:$0xff]
      %v4960 = vld [vmem:[%s4912 + $0x178] sm:$0xff]
      %v4961 = vld [vmem:[%s4912 + $0x180] sm:$0xff]
      %v4962 = vld [vmem:[%s4912 + $0x188] sm:$0xff]
      %v4963 = vld [vmem:[%s4912 + $0x190] sm:$0xff]
      %v4964 = vld [vmem:[%s4912 + $0x198] sm:$0xff]
      %v4965 = vld [vmem:[%s4912 + $0x1a0] sm:$0xff]
      %v4966 = vld [vmem:[%s4912 + $0x1a8] sm:$0xff]
      %v4967 = vld [vmem:[%s4912 + $0x1b0] sm:$0xff]
      %v4968 = vld [vmem:[%s4912 + $0x1b8] sm:$0xff]
      %v4969 = vld [vmem:[%s4912 + $0x1c0] sm:$0xff]
      %v4970 = vld [vmem:[%s4912 + $0x1c8] sm:$0xff]
      %v4971 = vld [vmem:[%s4912 + $0x1d0] sm:$0xff]
      %v4972 = vld [vmem:[%s4912 + $0x1d8] sm:$0xff]
      %v4973 = vld [vmem:[%s4912 + $0x1e0] sm:$0xff]
      %v4974 = vld [vmem:[%s4912 + $0x1e8] sm:$0xff]
      %v4975 = vld [vmem:[%s4912 + $0x1f0] sm:$0xff]
      %v4976 = vld [vmem:[%s4912 + $0x1f8] sm:$0xff]
      %v4978 = vshrl.u32 %v4844, 16
      %v4980 = vrot.slane %v4978, 4
      %v4981 = vshll.u32 %v4844, 16
      %v4983 = vrot.slane %v4981, 5
      %v4984 = vor.u32 %v4980, %v4983
      %v4986 = vshrl.u32 %v4845, 16
      %v4988 = vrot.slane %v4986, 4
      %v4989 = vshll.u32 %v4845, 16
      %v4991 = vrot.slane %v4989, 5
      %v4992 = vor.u32 %v4988, %v4991
      %v5059 = vunpack.c.l.b16 %v4913
      %v5060 = vunpack.c.h.b16 %v4913
      %v5061 = vunpack.c.l.b16 %v4914
      %v5062 = vunpack.c.h.b16 %v4914
      %v5063 = vunpack.c.l.b16 %v4915
      %v5064 = vunpack.c.h.b16 %v4915
      %v5065 = vunpack.c.l.b16 %v4916
      %v5066 = vunpack.c.h.b16 %v4916
      %v5067 = vunpack.c.l.b16 %v4917
      %v5068 = vunpack.c.h.b16 %v4917
      %v5069 = vunpack.c.l.b16 %v4918
      %v5070 = vunpack.c.h.b16 %v4918
      %v5071 = vunpack.c.l.b16 %v4919
      %v5072 = vunpack.c.h.b16 %v4919
      %v5073 = vunpack.c.l.b16 %v4920
      %v5074 = vunpack.c.h.b16 %v4920
      %v5075 = vunpack.c.l.b16 %v4921
      %v5076 = vunpack.c.h.b16 %v4921
      %v5077 = vunpack.c.l.b16 %v4922
      %v5078 = vunpack.c.h.b16 %v4922
      %v5079 = vunpack.c.l.b16 %v4923
      %v5080 = vunpack.c.h.b16 %v4923
      %v5081 = vunpack.c.l.b16 %v4924
      %v5082 = vunpack.c.h.b16 %v4924
      %v5083 = vunpack.c.l.b16 %v4925
      %v5084 = vunpack.c.h.b16 %v4925
      %v5085 = vunpack.c.l.b16 %v4926
      %v5086 = vunpack.c.h.b16 %v4926
      %v5087 = vunpack.c.l.b16 %v4927
      %v5088 = vunpack.c.h.b16 %v4927
      %v5089 = vunpack.c.l.b16 %v4928
      %v5090 = vunpack.c.h.b16 %v4928
      %v5091 = vunpack.c.l.b16 %v4929
      %v5092 = vunpack.c.h.b16 %v4929
      %v5093 = vunpack.c.l.b16 %v4930
      %v5094 = vunpack.c.h.b16 %v4930
      %v5095 = vunpack.c.l.b16 %v4931
      %v5096 = vunpack.c.h.b16 %v4931
      %v5097 = vunpack.c.l.b16 %v4932
      %v5098 = vunpack.c.h.b16 %v4932
      %v5099 = vunpack.c.l.b16 %v4933
      %v5100 = vunpack.c.h.b16 %v4933
      %v5101 = vunpack.c.l.b16 %v4934
      %v5102 = vunpack.c.h.b16 %v4934
      %v5103 = vunpack.c.l.b16 %v4935
      %v5104 = vunpack.c.h.b16 %v4935
      %v5105 = vunpack.c.l.b16 %v4936
      %v5106 = vunpack.c.h.b16 %v4936
      %v5107 = vunpack.c.l.b16 %v4937
      %v5108 = vunpack.c.h.b16 %v4937
      %v5109 = vunpack.c.l.b16 %v4938
      %v5110 = vunpack.c.h.b16 %v4938
      %v5111 = vunpack.c.l.b16 %v4939
      %v5112 = vunpack.c.h.b16 %v4939
      %v5113 = vunpack.c.l.b16 %v4940
      %v5114 = vunpack.c.h.b16 %v4940
      %v5115 = vunpack.c.l.b16 %v4941
      %v5116 = vunpack.c.h.b16 %v4941
      %v5117 = vunpack.c.l.b16 %v4942
      %v5118 = vunpack.c.h.b16 %v4942
      %v5119 = vunpack.c.l.b16 %v4943
      %v5120 = vunpack.c.h.b16 %v4943
      %v5121 = vunpack.c.l.b16 %v4944
      %v5122 = vunpack.c.h.b16 %v4944
      %v5123 = vunpack.c.l.b16 %v4945
      %v5124 = vunpack.c.h.b16 %v4945
      %v5125 = vunpack.c.l.b16 %v4946
      %v5126 = vunpack.c.h.b16 %v4946
      %v5127 = vunpack.c.l.b16 %v4947
      %v5128 = vunpack.c.h.b16 %v4947
      %v5129 = vunpack.c.l.b16 %v4948
      %v5130 = vunpack.c.h.b16 %v4948
      %v5131 = vunpack.c.l.b16 %v4949
      %v5132 = vunpack.c.h.b16 %v4949
      %v5133 = vunpack.c.l.b16 %v4950
      %v5134 = vunpack.c.h.b16 %v4950
      %v5135 = vunpack.c.l.b16 %v4951
      %v5136 = vunpack.c.h.b16 %v4951
      %v5137 = vunpack.c.l.b16 %v4952
      %v5138 = vunpack.c.h.b16 %v4952
      %v5139 = vunpack.c.l.b16 %v4953
      %v5140 = vunpack.c.h.b16 %v4953
      %v5141 = vunpack.c.l.b16 %v4954
      %v5142 = vunpack.c.h.b16 %v4954
      %v5143 = vunpack.c.l.b16 %v4955
      %v5144 = vunpack.c.h.b16 %v4955
      %v5145 = vunpack.c.l.b16 %v4956
      %v5146 = vunpack.c.h.b16 %v4956
      %v5147 = vunpack.c.l.b16 %v4957
      %v5148 = vunpack.c.h.b16 %v4957
      %v5149 = vunpack.c.l.b16 %v4958
      %v5150 = vunpack.c.h.b16 %v4958
      %v5151 = vunpack.c.l.b16 %v4959
      %v5152 = vunpack.c.h.b16 %v4959
      %v5153 = vunpack.c.l.b16 %v4960
      %v5154 = vunpack.c.h.b16 %v4960
      %v5155 = vunpack.c.l.b16 %v4961
      %v5156 = vunpack.c.h.b16 %v4961
      %v5157 = vunpack.c.l.b16 %v4962
      %v5158 = vunpack.c.h.b16 %v4962
      %v5159 = vunpack.c.l.b16 %v4963
      %v5160 = vunpack.c.h.b16 %v4963
      %v5161 = vunpack.c.l.b16 %v4964
      %v5162 = vunpack.c.h.b16 %v4964
      %v5163 = vunpack.c.l.b16 %v4965
      %v5164 = vunpack.c.h.b16 %v4965
      %v5165 = vunpack.c.l.b16 %v4966
      %v5166 = vunpack.c.h.b16 %v4966
      %v5167 = vunpack.c.l.b16 %v4967
      %v5168 = vunpack.c.h.b16 %v4967
      %v5169 = vunpack.c.l.b16 %v4968
      %v5170 = vunpack.c.h.b16 %v4968
      %v5171 = vunpack.c.l.b16 %v4969
      %v5172 = vunpack.c.h.b16 %v4969
      %v5173 = vunpack.c.l.b16 %v4970
      %v5174 = vunpack.c.h.b16 %v4970
      %v5175 = vunpack.c.l.b16 %v4971
      %v5176 = vunpack.c.h.b16 %v4971
      %v5177 = vunpack.c.l.b16 %v4972
      %v5178 = vunpack.c.h.b16 %v4972
      %v5179 = vunpack.c.l.b16 %v4973
      %v5180 = vunpack.c.h.b16 %v4973
      %v5181 = vunpack.c.l.b16 %v4974
      %v5182 = vunpack.c.h.b16 %v4974
      %v5183 = vunpack.c.l.b16 %v4975
      %v5184 = vunpack.c.h.b16 %v4975
      %v5185 = vunpack.c.l.b16 %v4976
      %v5186 = vunpack.c.h.b16 %v4976
      %v5187 = vpack.c.b16 %v5063, %v5059
      %v5188 = vpack.c.b16 %v5064, %v5060
      %v5189 = vpack.c.b16 %v5065, %v5061
      %v5190 = vpack.c.b16 %v5066, %v5062
      %v5191 = vpack.c.b16 %v5071, %v5067
      %v5192 = vpack.c.b16 %v5072, %v5068
      %v5193 = vpack.c.b16 %v5073, %v5069
      %v5194 = vpack.c.b16 %v5074, %v5070
      %v5195 = vpack.c.b16 %v5079, %v5075
      %v5196 = vpack.c.b16 %v5080, %v5076
      %v5197 = vpack.c.b16 %v5081, %v5077
      %v5198 = vpack.c.b16 %v5082, %v5078
      %v5199 = vpack.c.b16 %v5087, %v5083
      %v5200 = vpack.c.b16 %v5088, %v5084
      %v5201 = vpack.c.b16 %v5089, %v5085
      %v5202 = vpack.c.b16 %v5090, %v5086
      %v5203 = vpack.c.b16 %v5095, %v5091
      %v5204 = vpack.c.b16 %v5096, %v5092
      %v5205 = vpack.c.b16 %v5097, %v5093
      %v5206 = vpack.c.b16 %v5098, %v5094
      %v5207 = vpack.c.b16 %v5103, %v5099
      %v5208 = vpack.c.b16 %v5104, %v5100
      %v5209 = vpack.c.b16 %v5105, %v5101
      %v5210 = vpack.c.b16 %v5106, %v5102
      %v5211 = vpack.c.b16 %v5111, %v5107
      %v5212 = vpack.c.b16 %v5112, %v5108
      %v5213 = vpack.c.b16 %v5113, %v5109
      %v5214 = vpack.c.b16 %v5114, %v5110
      %v5215 = vpack.c.b16 %v5119, %v5115
      %v5216 = vpack.c.b16 %v5120, %v5116
      %v5217 = vpack.c.b16 %v5121, %v5117
      %v5218 = vpack.c.b16 %v5122, %v5118
      %v5219 = vpack.c.b16 %v5127, %v5123
      %v5220 = vpack.c.b16 %v5128, %v5124
      %v5221 = vpack.c.b16 %v5129, %v5125
      %v5222 = vpack.c.b16 %v5130, %v5126
      %v5223 = vpack.c.b16 %v5135, %v5131
      %v5224 = vpack.c.b16 %v5136, %v5132
      %v5225 = vpack.c.b16 %v5137, %v5133
      %v5226 = vpack.c.b16 %v5138, %v5134
      %v5227 = vpack.c.b16 %v5143, %v5139
      %v5228 = vpack.c.b16 %v5144, %v5140
      %v5229 = vpack.c.b16 %v5145, %v5141
      %v5230 = vpack.c.b16 %v5146, %v5142
      %v5231 = vpack.c.b16 %v5151, %v5147
      %v5232 = vpack.c.b16 %v5152, %v5148
      %v5233 = vpack.c.b16 %v5153, %v5149
      %v5234 = vpack.c.b16 %v5154, %v5150
      %v5235 = vpack.c.b16 %v5159, %v5155
      %v5236 = vpack.c.b16 %v5160, %v5156
      %v5237 = vpack.c.b16 %v5161, %v5157
      %v5238 = vpack.c.b16 %v5162, %v5158
      %v5239 = vpack.c.b16 %v5167, %v5163
      %v5240 = vpack.c.b16 %v5168, %v5164
      %v5241 = vpack.c.b16 %v5169, %v5165
      %v5242 = vpack.c.b16 %v5170, %v5166
      %v5243 = vpack.c.b16 %v5175, %v5171
      %v5244 = vpack.c.b16 %v5176, %v5172
      %v5245 = vpack.c.b16 %v5177, %v5173
      %v5246 = vpack.c.b16 %v5178, %v5174
      %v5247 = vpack.c.b16 %v5183, %v5179
      %v5248 = vpack.c.b16 %v5184, %v5180
      %v5249 = vpack.c.b16 %v5185, %v5181
      %v5250 = vpack.c.b16 %v5186, %v5182
      %5315 = vmatprep.subr.bf16.mxu0 %v5188
      %5316 = vmatpush1.bf16.msra.mxu0 %v5187
      %5317 = vmatprep.subr.bf16.mxu0 %v5192
      %5318 = vmatpush1.bf16.msra.mxu0 %v5191
      %5319 = vmatprep.subr.bf16.mxu0 %v5196
      %5320 = vmatpush1.bf16.msra.mxu0 %v5195
      %5321 = vmatprep.subr.bf16.mxu0 %v5200
      %5322 = vmatpush1.bf16.msra.mxu0 %v5199
      %5323 = vmatprep.subr.bf16.mxu0 %v5204
      %5324 = vmatpush1.bf16.msra.mxu0 %v5203
      %5325 = vmatprep.subr.bf16.mxu0 %v5208
      %5326 = vmatpush1.bf16.msra.mxu0 %v5207
      %5327 = vmatprep.subr.bf16.mxu0 %v5212
      %5328 = vmatpush1.bf16.msra.mxu0 %v5211
      %5329 = vmatprep.subr.bf16.mxu0 %v5216
      %5330 = vmatpush1.bf16.msra.mxu0 %v5215
      %5331 = vmatprep.subr.bf16.mxu0 %v5220
      %5332 = vmatpush1.bf16.msra.mxu0 %v5219
      %5333 = vmatprep.subr.bf16.mxu0 %v5224
      %5334 = vmatpush1.bf16.msra.mxu0 %v5223
      %5335 = vmatprep.subr.bf16.mxu0 %v5228
      %5336 = vmatpush1.bf16.msra.mxu0 %v5227
      %5337 = vmatprep.subr.bf16.mxu0 %v5232
      %5338 = vmatpush1.bf16.msra.mxu0 %v5231
      %5339 = vmatprep.subr.bf16.mxu0 %v5236
      %5340 = vmatpush1.bf16.msra.mxu0 %v5235
      %5341 = vmatprep.subr.bf16.mxu0 %v5240
      %5342 = vmatpush1.bf16.msra.mxu0 %v5239
      %5343 = vmatprep.subr.bf16.mxu0 %v5244
      %5344 = vmatpush1.bf16.msra.mxu0 %v5243
      %5345 = vmatprep.subr.bf16.mxu0 %v5248
      %5346 = vmatpush1.bf16.msra.mxu0 %v5247
      %5347 = vmatprep.mubr.bf16.mxu0 %v4992
      %5348 = vmatmul.mubr.bf16.gmra.mrb[0].mxu0 %v4984
      %v5349 = vpop.f32.mrb[0].mxu0
      %v5350 = vadd.f32 0.0, %v5349
      %v5351 = vpop.f32.mrb[0].mxu0
      %v5352 = vadd.f32 0.0, %v5351
      %v5353 = vpop.f32.mrb[0].mxu0
      %v5354 = vpop.f32.mrb[0].mxu0
      %5355 = vdwg.mxu0
      %5356 = vmatprep.subr.bf16.mxu0 %v5190
      %5357 = vmatpush1.bf16.msra.mxu0 %v5189
      %5358 = vmatprep.subr.bf16.mxu0 %v5194
      %5359 = vmatpush1.bf16.msra.mxu0 %v5193
      %5360 = vmatprep.subr.bf16.mxu0 %v5198
      %5361 = vmatpush1.bf16.msra.mxu0 %v5197
      %5362 = vmatprep.subr.bf16.mxu0 %v5202
      %5363 = vmatpush1.bf16.msra.mxu0 %v5201
      %5364 = vmatprep.subr.bf16.mxu0 %v5206
      %5365 = vmatpush1.bf16.msra.mxu0 %v5205
      %5366 = vmatprep.subr.bf16.mxu0 %v5210
      %5367 = vmatpush1.bf16.msra.mxu0 %v5209
      %5368 = vmatprep.subr.bf16.mxu0 %v5214
      %5369 = vmatpush1.bf16.msra.mxu0 %v5213
      %5370 = vmatprep.subr.bf16.mxu0 %v5218
      %5371 = vmatpush1.bf16.msra.mxu0 %v5217
      %5372 = vmatprep.subr.bf16.mxu0 %v5222
      %5373 = vmatpush1.bf16.msra.mxu0 %v5221
      %5374 = vmatprep.subr.bf16.mxu0 %v5226
      %5375 = vmatpush1.bf16.msra.mxu0 %v5225
      %5376 = vmatprep.subr.bf16.mxu0 %v5230
      %5377 = vmatpush1.bf16.msra.mxu0 %v5229
      %5378 = vmatprep.subr.bf16.mxu0 %v5234
      %5379 = vmatpush1.bf16.msra.mxu0 %v5233
      %5380 = vmatprep.subr.bf16.mxu0 %v5238
      %5381 = vmatpush1.bf16.msra.mxu0 %v5237
      %5382 = vmatprep.subr.bf16.mxu0 %v5242
      %5383 = vmatpush1.bf16.msra.mxu0 %v5241
      %5384 = vmatprep.subr.bf16.mxu0 %v5246
      %5385 = vmatpush1.bf16.msra.mxu0 %v5245
      %5386 = vmatprep.subr.bf16.mxu0 %v5250
      %5387 = vmatpush1.bf16.msra.mxu0 %v5249
      %5388 = vmatprep.mubr.bf16.mxu0 %v4992
      %5389 = vmatmul.mubr.bf16.gmra.mrb[0].mxu0 %v4984
      %v5390 = vpop.f32.mrb[0].mxu0
      %v5391 = vadd.f32 0.0, %v5390
      %v5392 = vpop.f32.mrb[0].mxu0
      %v5393 = vadd.f32 0.0, %v5392
      %v5394 = vpop.f32.mrb[0].mxu0
      %v5395 = vpop.f32.mrb[0].mxu0
      %5396 = vdwg.mxu0
      %v5461 = vunpack.c.l.b16 %v4848
      %v5462 = vunpack.c.h.b16 %v4848
      %v5463 = vunpack.c.l.b16 %v4849
      %v5464 = vunpack.c.h.b16 %v4849
      %v5465 = vunpack.c.l.b16 %v4850
      %v5466 = vunpack.c.h.b16 %v4850
      %v5467 = vunpack.c.l.b16 %v4851
      %v5468 = vunpack.c.h.b16 %v4851
      %v5469 = vunpack.c.l.b16 %v4852
      %v5470 = vunpack.c.h.b16 %v4852
      %v5471 = vunpack.c.l.b16 %v4853
      %v5472 = vunpack.c.h.b16 %v4853
      %v5473 = vunpack.c.l.b16 %v4854
      %v5474 = vunpack.c.h.b16 %v4854
      %v5475 = vunpack.c.l.b16 %v4855
      %v5476 = vunpack.c.h.b16 %v4855
      %v5477 = vunpack.c.l.b16 %v4856
      %v5478 = vunpack.c.h.b16 %v4856
      %v5479 = vunpack.c.l.b16 %v4857
      %v5480 = vunpack.c.h.b16 %v4857
      %v5481 = vunpack.c.l.b16 %v4858
      %v5482 = vunpack.c.h.b16 %v4858
      %v5483 = vunpack.c.l.b16 %v4859
      %v5484 = vunpack.c.h.b16 %v4859
      %v5485 = vunpack.c.l.b16 %v4860
      %v5486 = vunpack.c.h.b16 %v4860
      %v5487 = vunpack.c.l.b16 %v4861
      %v5488 = vunpack.c.h.b16 %v4861
      %v5489 = vunpack.c.l.b16 %v4862
      %v5490 = vunpack.c.h.b16 %v4862
      %v5491 = vunpack.c.l.b16 %v4863
      %v5492 = vunpack.c.h.b16 %v4863
      %v5493 = vunpack.c.l.b16 %v4864
      %v5494 = vunpack.c.h.b16 %v4864
      %v5495 = vunpack.c.l.b16 %v4865
      %v5496 = vunpack.c.h.b16 %v4865
      %v5497 = vunpack.c.l.b16 %v4866
      %v5498 = vunpack.c.h.b16 %v4866
      %v5499 = vunpack.c.l.b16 %v4867
      %v5500 = vunpack.c.h.b16 %v4867
      %v5501 = vunpack.c.l.b16 %v4868
      %v5502 = vunpack.c.h.b16 %v4868
      %v5503 = vunpack.c.l.b16 %v4869
      %v5504 = vunpack.c.h.b16 %v4869
      %v5505 = vunpack.c.l.b16 %v4870
      %v5506 = vunpack.c.h.b16 %v4870
      %v5507 = vunpack.c.l.b16 %v4871
      %v5508 = vunpack.c.h.b16 %v4871
      %v5509 = vunpack.c.l.b16 %v4872
      %v5510 = vunpack.c.h.b16 %v4872
      %v5511 = vunpack.c.l.b16 %v4873
      %v5512 = vunpack.c.h.b16 %v4873
      %v5513 = vunpack.c.l.b16 %v4874
      %v5514 = vunpack.c.h.b16 %v4874
      %v5515 = vunpack.c.l.b16 %v4875
      %v5516 = vunpack.c.h.b16 %v4875
      %v5517 = vunpack.c.l.b16 %v4876
      %v5518 = vunpack.c.h.b16 %v4876
      %v5519 = vunpack.c.l.b16 %v4877
      %v5520 = vunpack.c.h.b16 %v4877
      %v5521 = vunpack.c.l.b16 %v4878
      %v5522 = vunpack.c.h.b16 %v4878
      %v5523 = vunpack.c.l.b16 %v4879
      %v5524 = vunpack.c.h.b16 %v4879
      %v5525 = vunpack.c.l.b16 %v4880
      %v5526 = vunpack.c.h.b16 %v4880
      %v5527 = vunpack.c.l.b16 %v4881
      %v5528 = vunpack.c.h.b16 %v4881
      %v5529 = vunpack.c.l.b16 %v4882
      %v5530 = vunpack.c.h.b16 %v4882
      %v5531 = vunpack.c.l.b16 %v4883
      %v5532 = vunpack.c.h.b16 %v4883
      %v5533 = vunpack.c.l.b16 %v4884
      %v5534 = vunpack.c.h.b16 %v4884
      %v5535 = vunpack.c.l.b16 %v4885
      %v5536 = vunpack.c.h.b16 %v4885
      %v5537 = vunpack.c.l.b16 %v4886
      %v5538 = vunpack.c.h.b16 %v4886
      %v5539 = vunpack.c.l.b16 %v4887
      %v5540 = vunpack.c.h.b16 %v4887
      %v5541 = vunpack.c.l.b16 %v4888
      %v5542 = vunpack.c.h.b16 %v4888
      %v5543 = vunpack.c.l.b16 %v4889
      %v5544 = vunpack.c.h.b16 %v4889
      %v5545 = vunpack.c.l.b16 %v4890
      %v5546 = vunpack.c.h.b16 %v4890
      %v5547 = vunpack.c.l.b16 %v4891
      %v5548 = vunpack.c.h.b16 %v4891
      %v5549 = vunpack.c.l.b16 %v4892
      %v5550 = vunpack.c.h.b16 %v4892
      %v5551 = vunpack.c.l.b16 %v4893
      %v5552 = vunpack.c.h.b16 %v4893
      %v5553 = vunpack.c.l.b16 %v4894
      %v5554 = vunpack.c.h.b16 %v4894
      %v5555 = vunpack.c.l.b16 %v4895
      %v5556 = vunpack.c.h.b16 %v4895
      %v5557 = vunpack.c.l.b16 %v4896
      %v5558 = vunpack.c.h.b16 %v4896
      %v5559 = vunpack.c.l.b16 %v4897
      %v5560 = vunpack.c.h.b16 %v4897
      %v5561 = vunpack.c.l.b16 %v4898
      %v5562 = vunpack.c.h.b16 %v4898
      %v5563 = vunpack.c.l.b16 %v4899
      %v5564 = vunpack.c.h.b16 %v4899
      %v5565 = vunpack.c.l.b16 %v4900
      %v5566 = vunpack.c.h.b16 %v4900
      %v5567 = vunpack.c.l.b16 %v4901
      %v5568 = vunpack.c.h.b16 %v4901
      %v5569 = vunpack.c.l.b16 %v4902
      %v5570 = vunpack.c.h.b16 %v4902
      %v5571 = vunpack.c.l.b16 %v4903
      %v5572 = vunpack.c.h.b16 %v4903
      %v5573 = vunpack.c.l.b16 %v4904
      %v5574 = vunpack.c.h.b16 %v4904
      %v5575 = vunpack.c.l.b16 %v4905
      %v5576 = vunpack.c.h.b16 %v4905
      %v5577 = vunpack.c.l.b16 %v4906
      %v5578 = vunpack.c.h.b16 %v4906
      %v5579 = vunpack.c.l.b16 %v4907
      %v5580 = vunpack.c.h.b16 %v4907
      %v5581 = vunpack.c.l.b16 %v4908
      %v5582 = vunpack.c.h.b16 %v4908
      %v5583 = vunpack.c.l.b16 %v4909
      %v5584 = vunpack.c.h.b16 %v4909
      %v5585 = vunpack.c.l.b16 %v4910
      %v5586 = vunpack.c.h.b16 %v4910
      %v5587 = vunpack.c.l.b16 %v4911
      %v5588 = vunpack.c.h.b16 %v4911
      %v5589 = vpack.c.b16 %v5465, %v5461
      %v5590 = vpack.c.b16 %v5466, %v5462
      %v5591 = vpack.c.b16 %v5467, %v5463
      %v5592 = vpack.c.b16 %v5468, %v5464
      %v5593 = vpack.c.b16 %v5473, %v5469
      %v5594 = vpack.c.b16 %v5474, %v5470
      %v5595 = vpack.c.b16 %v5475, %v5471
      %v5596 = vpack.c.b16 %v5476, %v5472
      %v5597 = vpack.c.b16 %v5481, %v5477
      %v5598 = vpack.c.b16 %v5482, %v5478
      %v5599 = vpack.c.b16 %v5483, %v5479
      %v5600 = vpack.c.b16 %v5484, %v5480
      %v5601 = vpack.c.b16 %v5489, %v5485
      %v5602 = vpack.c.b16 %v5490, %v5486
      %v5603 = vpack.c.b16 %v5491, %v5487
      %v5604 = vpack.c.b16 %v5492, %v5488
      %v5605 = vpack.c.b16 %v5497, %v5493
      %v5606 = vpack.c.b16 %v5498, %v5494
      %v5607 = vpack.c.b16 %v5499, %v5495
      %v5608 = vpack.c.b16 %v5500, %v5496
      %v5609 = vpack.c.b16 %v5505, %v5501
      %v5610 = vpack.c.b16 %v5506, %v5502
      %v5611 = vpack.c.b16 %v5507, %v5503
      %v5612 = vpack.c.b16 %v5508, %v5504
      %v5613 = vpack.c.b16 %v5513, %v5509
      %v5614 = vpack.c.b16 %v5514, %v5510
      %v5615 = vpack.c.b16 %v5515, %v5511
      %v5616 = vpack.c.b16 %v5516, %v5512
      %v5617 = vpack.c.b16 %v5521, %v5517
      %v5618 = vpack.c.b16 %v5522, %v5518
      %v5619 = vpack.c.b16 %v5523, %v5519
      %v5620 = vpack.c.b16 %v5524, %v5520
      %v5621 = vpack.c.b16 %v5529, %v5525
      %v5622 = vpack.c.b16 %v5530, %v5526
      %v5623 = vpack.c.b16 %v5531, %v5527
      %v5624 = vpack.c.b16 %v5532, %v5528
      %v5625 = vpack.c.b16 %v5537, %v5533
      %v5626 = vpack.c.b16 %v5538, %v5534
      %v5627 = vpack.c.b16 %v5539, %v5535
      %v5628 = vpack.c.b16 %v5540, %v5536
      %v5629 = vpack.c.b16 %v5545, %v5541
      %v5630 = vpack.c.b16 %v5546, %v5542
      %v5631 = vpack.c.b16 %v5547, %v5543
      %v5632 = vpack.c.b16 %v5548, %v5544
      %v5633 = vpack.c.b16 %v5553, %v5549
      %v5634 = vpack.c.b16 %v5554, %v5550
      %v5635 = vpack.c.b16 %v5555, %v5551
      %v5636 = vpack.c.b16 %v5556, %v5552
      %v5637 = vpack.c.b16 %v5561, %v5557
      %v5638 = vpack.c.b16 %v5562, %v5558
      %v5639 = vpack.c.b16 %v5563, %v5559
      %v5640 = vpack.c.b16 %v5564, %v5560
      %v5641 = vpack.c.b16 %v5569, %v5565
      %v5642 = vpack.c.b16 %v5570, %v5566
      %v5643 = vpack.c.b16 %v5571, %v5567
      %v5644 = vpack.c.b16 %v5572, %v5568
      %v5645 = vpack.c.b16 %v5577, %v5573
      %v5646 = vpack.c.b16 %v5578, %v5574
      %v5647 = vpack.c.b16 %v5579, %v5575
      %v5648 = vpack.c.b16 %v5580, %v5576
      %v5649 = vpack.c.b16 %v5585, %v5581
      %v5650 = vpack.c.b16 %v5586, %v5582
      %v5651 = vpack.c.b16 %v5587, %v5583
      %v5652 = vpack.c.b16 %v5588, %v5584
      %5717 = vmatprep.subr.bf16.mxu0 %v5590
      %5718 = vmatpush1.bf16.msra.mxu0 %v5589
      %5719 = vmatprep.subr.bf16.mxu0 %v5594
      %5720 = vmatpush1.bf16.msra.mxu0 %v5593
      %5721 = vmatprep.subr.bf16.mxu0 %v5598
      %5722 = vmatpush1.bf16.msra.mxu0 %v5597
      %5723 = vmatprep.subr.bf16.mxu0 %v5602
      %5724 = vmatpush1.bf16.msra.mxu0 %v5601
      %5725 = vmatprep.subr.bf16.mxu0 %v5606
      %5726 = vmatpush1.bf16.msra.mxu0 %v5605
      %5727 = vmatprep.subr.bf16.mxu0 %v5610
      %5728 = vmatpush1.bf16.msra.mxu0 %v5609
      %5729 = vmatprep.subr.bf16.mxu0 %v5614
      %5730 = vmatpush1.bf16.msra.mxu0 %v5613
      %5731 = vmatprep.subr.bf16.mxu0 %v5618
      %5732 = vmatpush1.bf16.msra.mxu0 %v5617
      %5733 = vmatprep.subr.bf16.mxu0 %v5622
      %5734 = vmatpush1.bf16.msra.mxu0 %v5621
      %5735 = vmatprep.subr.bf16.mxu0 %v5626
      %5736 = vmatpush1.bf16.msra.mxu0 %v5625
      %5737 = vmatprep.subr.bf16.mxu0 %v5630
      %5738 = vmatpush1.bf16.msra.mxu0 %v5629
      %5739 = vmatprep.subr.bf16.mxu0 %v5634
      %5740 = vmatpush1.bf16.msra.mxu0 %v5633
      %5741 = vmatprep.subr.bf16.mxu0 %v5638
      %5742 = vmatpush1.bf16.msra.mxu0 %v5637
      %5743 = vmatprep.subr.bf16.mxu0 %v5642
      %5744 = vmatpush1.bf16.msra.mxu0 %v5641
      %5745 = vmatprep.subr.bf16.mxu0 %v5646
      %5746 = vmatpush1.bf16.msra.mxu0 %v5645
      %5747 = vmatprep.subr.bf16.mxu0 %v5650
      %5748 = vmatpush1.bf16.msra.mxu0 %v5649
      %5749 = vmatprep.mubr.bf16.mxu0 %v4845
      %5750 = vmatmul.mubr.bf16.gmra.mrb[0].mxu0 %v4844
      %v5751 = vpop.f32.mrb[0].mxu0
      %v5752 = vadd.f32 %v5350, %v5751
      %v5753 = vpop.f32.mrb[0].mxu0
      %v5754 = vadd.f32 %v5352, %v5753
      %v5755 = vpop.f32.mrb[0].mxu0
      %v5756 = vpop.f32.mrb[0].mxu0
      %5757 = vdwg.mxu0
      %5758 = vmatprep.subr.bf16.mxu0 %v5592
      %5759 = vmatpush1.bf16.msra.mxu0 %v5591
      %5760 = vmatprep.subr.bf16.mxu0 %v5596
      %5761 = vmatpush1.bf16.msra.mxu0 %v5595
      %5762 = vmatprep.subr.bf16.mxu0 %v5600
      %5763 = vmatpush1.bf16.msra.mxu0 %v5599
      %5764 = vmatprep.subr.bf16.mxu0 %v5604
      %5765 = vmatpush1.bf16.msra.mxu0 %v5603
      %5766 = vmatprep.subr.bf16.mxu0 %v5608
      %5767 = vmatpush1.bf16.msra.mxu0 %v5607
      %5768 = vmatprep.subr.bf16.mxu0 %v5612
      %5769 = vmatpush1.bf16.msra.mxu0 %v5611
      %5770 = vmatprep.subr.bf16.mxu0 %v5616
      %5771 = vmatpush1.bf16.msra.mxu0 %v5615
      %5772 = vmatprep.subr.bf16.mxu0 %v5620
      %5773 = vmatpush1.bf16.msra.mxu0 %v5619
      %5774 = vmatprep.subr.bf16.mxu0 %v5624
      %5775 = vmatpush1.bf16.msra.mxu0 %v5623
      %5776 = vmatprep.subr.bf16.mxu0 %v5628
      %5777 = vmatpush1.bf16.msra.mxu0 %v5627
      %5778 = vmatprep.subr.bf16.mxu0 %v5632
      %5779 = vmatpush1.bf16.msra.mxu0 %v5631
      %5780 = vmatprep.subr.bf16.mxu0 %v5636
      %5781 = vmatpush1.bf16.msra.mxu0 %v5635
      %5782 = vmatprep.subr.bf16.mxu0 %v5640
      %5783 = vmatpush1.bf16.msra.mxu0 %v5639
      %5784 = vmatprep.subr.bf16.mxu0 %v5644
      %5785 = vmatpush1.bf16.msra.mxu0 %v5643
      %5786 = vmatprep.subr.bf16.mxu0 %v5648
      %5787 = vmatpush1.bf16.msra.mxu0 %v5647
      %5788 = vmatprep.subr.bf16.mxu0 %v5652
      %5789 = vmatpush1.bf16.msra.mxu0 %v5651
      %5790 = vmatprep.mubr.bf16.mxu0 %v4845
      %5791 = vmatmul.mubr.bf16.gmra.mrb[0].mxu0 %v4844
      %v5792 = vpop.f32.mrb[0].mxu0
      %v5793 = vadd.f32 %v5391, %v5792
      %v5794 = vpop.f32.mrb[0].mxu0
      %v5795 = vadd.f32 %v5393, %v5794
      %v5796 = vpop.f32.mrb[0].mxu0
      %v5797 = vpop.f32.mrb[0].mxu0
      %5798 = vdwg.mxu0
      %s5799 = scalar_lea.vmem %s8, 1024
      %v5800 = vld [vmem:[%s5799] sm:$0xff]
      %v5801 = vld [vmem:[%s5799 + $0x8] sm:$0xff]
      %v5802 = vld [vmem:[%s5799 + $0x10] sm:$0xff]
      %v5803 = vld [vmem:[%s5799 + $0x18] sm:$0xff]
      %v5804 = vld [vmem:[%s5799 + $0x20] sm:$0xff]
      %v5805 = vld [vmem:[%s5799 + $0x28] sm:$0xff]
      %v5806 = vld [vmem:[%s5799 + $0x30] sm:$0xff]
      %v5807 = vld [vmem:[%s5799 + $0x38] sm:$0xff]
      %v5808 = vld [vmem:[%s5799 + $0x40] sm:$0xff]
      %v5809 = vld [vmem:[%s5799 + $0x48] sm:$0xff]
      %v5810 = vld [vmem:[%s5799 + $0x50] sm:$0xff]
      %v5811 = vld [vmem:[%s5799 + $0x58] sm:$0xff]
      %v5812 = vld [vmem:[%s5799 + $0x60] sm:$0xff]
      %v5813 = vld [vmem:[%s5799 + $0x68] sm:$0xff]
      %v5814 = vld [vmem:[%s5799 + $0x70] sm:$0xff]
      %v5815 = vld [vmem:[%s5799 + $0x78] sm:$0xff]
      %v5816 = vld [vmem:[%s5799 + $0x80] sm:$0xff]
      %v5817 = vld [vmem:[%s5799 + $0x88] sm:$0xff]
      %v5818 = vld [vmem:[%s5799 + $0x90] sm:$0xff]
      %v5819 = vld [vmem:[%s5799 + $0x98] sm:$0xff]
      %v5820 = vld [vmem:[%s5799 + $0xa0] sm:$0xff]
      %v5821 = vld [vmem:[%s5799 + $0xa8] sm:$0xff]
      %v5822 = vld [vmem:[%s5799 + $0xb0] sm:$0xff]
      %v5823 = vld [vmem:[%s5799 + $0xb8] sm:$0xff]
      %v5824 = vld [vmem:[%s5799 + $0xc0] sm:$0xff]
      %v5825 = vld [vmem:[%s5799 + $0xc8] sm:$0xff]
      %v5826 = vld [vmem:[%s5799 + $0xd0] sm:$0xff]
      %v5827 = vld [vmem:[%s5799 + $0xd8] sm:$0xff]
      %v5828 = vld [vmem:[%s5799 + $0xe0] sm:$0xff]
      %v5829 = vld [vmem:[%s5799 + $0xe8] sm:$0xff]
      %v5830 = vld [vmem:[%s5799 + $0xf0] sm:$0xff]
      %v5831 = vld [vmem:[%s5799 + $0xf8] sm:$0xff]
      %v5832 = vld [vmem:[%s5799 + $0x100] sm:$0xff]
      %v5833 = vld [vmem:[%s5799 + $0x108] sm:$0xff]
      %v5834 = vld [vmem:[%s5799 + $0x110] sm:$0xff]
      %v5835 = vld [vmem:[%s5799 + $0x118] sm:$0xff]
      %v5836 = vld [vmem:[%s5799 + $0x120] sm:$0xff]
      %v5837 = vld [vmem:[%s5799 + $0x128] sm:$0xff]
      %v5838 = vld [vmem:[%s5799 + $0x130] sm:$0xff]
      %v5839 = vld [vmem:[%s5799 + $0x138] sm:$0xff]
      %v5840 = vld [vmem:[%s5799 + $0x140] sm:$0xff]
      %v5841 = vld [vmem:[%s5799 + $0x148] sm:$0xff]
      %v5842 = vld [vmem:[%s5799 + $0x150] sm:$0xff]
      %v5843 = vld [vmem:[%s5799 + $0x158] sm:$0xff]
      %v5844 = vld [vmem:[%s5799 + $0x160] sm:$0xff]
      %v5845 = vld [vmem:[%s5799 + $0x168] sm:$0xff]
      %v5846 = vld [vmem:[%s5799 + $0x170] sm:$0xff]
      %v5847 = vld [vmem:[%s5799 + $0x178] sm:$0xff]
      %v5848 = vld [vmem:[%s5799 + $0x180] sm:$0xff]
      %v5849 = vld [vmem:[%s5799 + $0x188] sm:$0xff]
      %v5850 = vld [vmem:[%s5799 + $0x190] sm:$0xff]
      %v5851 = vld [vmem:[%s5799 + $0x198] sm:$0xff]
      %v5852 = vld [vmem:[%s5799 + $0x1a0] sm:$0xff]
      %v5853 = vld [vmem:[%s5799 + $0x1a8] sm:$0xff]
      %v5854 = vld [vmem:[%s5799 + $0x1b0] sm:$0xff]
      %v5855 = vld [vmem:[%s5799 + $0x1b8] sm:$0xff]
      %v5856 = vld [vmem:[%s5799 + $0x1c0] sm:$0xff]
      %v5857 = vld [vmem:[%s5799 + $0x1c8] sm:$0xff]
      %v5858 = vld [vmem:[%s5799 + $0x1d0] sm:$0xff]
      %v5859 = vld [vmem:[%s5799 + $0x1d8] sm:$0xff]
      %v5860 = vld [vmem:[%s5799 + $0x1e0] sm:$0xff]
      %v5861 = vld [vmem:[%s5799 + $0x1e8] sm:$0xff]
      %v5862 = vld [vmem:[%s5799 + $0x1f0] sm:$0xff]
      %v5863 = vld [vmem:[%s5799 + $0x1f8] sm:$0xff]
      %v5864 = vrot.slane %v4981, 1
      %v5865 = vor.u32 %v4978, %v5864
      %v5866 = vrot.slane %v4989, 1
      %v5867 = vor.u32 %v4986, %v5866
      %v5934 = vunpack.c.l.b16 %v5800
      %v5935 = vunpack.c.h.b16 %v5800
      %v5936 = vunpack.c.l.b16 %v5801
      %v5937 = vunpack.c.h.b16 %v5801
      %v5938 = vunpack.c.l.b16 %v5802
      %v5939 = vunpack.c.h.b16 %v5802
      %v5940 = vunpack.c.l.b16 %v5803
      %v5941 = vunpack.c.h.b16 %v5803
      %v5942 = vunpack.c.l.b16 %v5804
      %v5943 = vunpack.c.h.b16 %v5804
      %v5944 = vunpack.c.l.b16 %v5805
      %v5945 = vunpack.c.h.b16 %v5805
      %v5946 = vunpack.c.l.b16 %v5806
      %v5947 = vunpack.c.h.b16 %v5806
      %v5948 = vunpack.c.l.b16 %v5807
      %v5949 = vunpack.c.h.b16 %v5807
      %v5950 = vunpack.c.l.b16 %v5808
      %v5951 = vunpack.c.h.b16 %v5808
      %v5952 = vunpack.c.l.b16 %v5809
      %v5953 = vunpack.c.h.b16 %v5809
      %v5954 = vunpack.c.l.b16 %v5810
      %v5955 = vunpack.c.h.b16 %v5810
      %v5956 = vunpack.c.l.b16 %v5811
      %v5957 = vunpack.c.h.b16 %v5811
      %v5958 = vunpack.c.l.b16 %v5812
      %v5959 = vunpack.c.h.b16 %v5812
      %v5960 = vunpack.c.l.b16 %v5813
      %v5961 = vunpack.c.h.b16 %v5813
      %v5962 = vunpack.c.l.b16 %v5814
      %v5963 = vunpack.c.h.b16 %v5814
      %v5964 = vunpack.c.l.b16 %v5815
      %v5965 = vunpack.c.h.b16 %v5815
      %v5966 = vunpack.c.l.b16 %v5816
      %v5967 = vunpack.c.h.b16 %v5816
      %v5968 = vunpack.c.l.b16 %v5817
      %v5969 = vunpack.c.h.b16 %v5817
      %v5970 = vunpack.c.l.b16 %v5818
      %v5971 = vunpack.c.h.b16 %v5818
      %v5972 = vunpack.c.l.b16 %v5819
      %v5973 = vunpack.c.h.b16 %v5819
      %v5974 = vunpack.c.l.b16 %v5820
      %v5975 = vunpack.c.h.b16 %v5820
      %v5976 = vunpack.c.l.b16 %v5821
      %v5977 = vunpack.c.h.b16 %v5821
      %v5978 = vunpack.c.l.b16 %v5822
      %v5979 = vunpack.c.h.b16 %v5822
      %v5980 = vunpack.c.l.b16 %v5823
      %v5981 = vunpack.c.h.b16 %v5823
      %v5982 = vunpack.c.l.b16 %v5824
      %v5983 = vunpack.c.h.b16 %v5824
      %v5984 = vunpack.c.l.b16 %v5825
      %v5985 = vunpack.c.h.b16 %v5825
      %v5986 = vunpack.c.l.b16 %v5826
      %v5987 = vunpack.c.h.b16 %v5826
      %v5988 = vunpack.c.l.b16 %v5827
      %v5989 = vunpack.c.h.b16 %v5827
      %v5990 = vunpack.c.l.b16 %v5828
      %v5991 = vunpack.c.h.b16 %v5828
      %v5992 = vunpack.c.l.b16 %v5829
      %v5993 = vunpack.c.h.b16 %v5829
      %v5994 = vunpack.c.l.b16 %v5830
      %v5995 = vunpack.c.h.b16 %v5830
      %v5996 = vunpack.c.l.b16 %v5831
      %v5997 = vunpack.c.h.b16 %v5831
      %v5998 = vunpack.c.l.b16 %v5832
      %v5999 = vunpack.c.h.b16 %v5832
      %v6000 = vunpack.c.l.b16 %v5833
      %v6001 = vunpack.c.h.b16 %v5833
      %v6002 = vunpack.c.l.b16 %v5834
      %v6003 = vunpack.c.h.b16 %v5834
      %v6004 = vunpack.c.l.b16 %v5835
      %v6005 = vunpack.c.h.b16 %v5835
      %v6006 = vunpack.c.l.b16 %v5836
      %v6007 = vunpack.c.h.b16 %v5836
      %v6008 = vunpack.c.l.b16 %v5837
      %v6009 = vunpack.c.h.b16 %v5837
      %v6010 = vunpack.c.l.b16 %v5838
      %v6011 = vunpack.c.h.b16 %v5838
      %v6012 = vunpack.c.l.b16 %v5839
      %v6013 = vunpack.c.h.b16 %v5839
      %v6014 = vunpack.c.l.b16 %v5840
      %v6015 = vunpack.c.h.b16 %v5840
      %v6016 = vunpack.c.l.b16 %v5841
      %v6017 = vunpack.c.h.b16 %v5841
      %v6018 = vunpack.c.l.b16 %v5842
      %v6019 = vunpack.c.h.b16 %v5842
      %v6020 = vunpack.c.l.b16 %v5843
      %v6021 = vunpack.c.h.b16 %v5843
      %v6022 = vunpack.c.l.b16 %v5844
      %v6023 = vunpack.c.h.b16 %v5844
      %v6024 = vunpack.c.l.b16 %v5845
      %v6025 = vunpack.c.h.b16 %v5845
      %v6026 = vunpack.c.l.b16 %v5846
      %v6027 = vunpack.c.h.b16 %v5846
      %v6028 = vunpack.c.l.b16 %v5847
      %v6029 = vunpack.c.h.b16 %v5847
      %v6030 = vunpack.c.l.b16 %v5848
      %v6031 = vunpack.c.h.b16 %v5848
      %v6032 = vunpack.c.l.b16 %v5849
      %v6033 = vunpack.c.h.b16 %v5849
      %v6034 = vunpack.c.l.b16 %v5850
      %v6035 = vunpack.c.h.b16 %v5850
      %v6036 = vunpack.c.l.b16 %v5851
      %v6037 = vunpack.c.h.b16 %v5851
      %v6038 = vunpack.c.l.b16 %v5852
      %v6039 = vunpack.c.h.b16 %v5852
      %v6040 = vunpack.c.l.b16 %v5853
      %v6041 = vunpack.c.h.b16 %v5853
      %v6042 = vunpack.c.l.b16 %v5854
      %v6043 = vunpack.c.h.b16 %v5854
      %v6044 = vunpack.c.l.b16 %v5855
      %v6045 = vunpack.c.h.b16 %v5855
      %v6046 = vunpack.c.l.b16 %v5856
      %v6047 = vunpack.c.h.b16 %v5856
      %v6048 = vunpack.c.l.b16 %v5857
      %v6049 = vunpack.c.h.b16 %v5857
      %v6050 = vunpack.c.l.b16 %v5858
      %v6051 = vunpack.c.h.b16 %v5858
      %v6052 = vunpack.c.l.b16 %v5859
      %v6053 = vunpack.c.h.b16 %v5859
      %v6054 = vunpack.c.l.b16 %v5860
      %v6055 = vunpack.c.h.b16 %v5860
      %v6056 = vunpack.c.l.b16 %v5861
      %v6057 = vunpack.c.h.b16 %v5861
      %v6058 = vunpack.c.l.b16 %v5862
      %v6059 = vunpack.c.h.b16 %v5862
      %v6060 = vunpack.c.l.b16 %v5863
      %v6061 = vunpack.c.h.b16 %v5863
      %v6062 = vpack.c.b16 %v5938, %v5934
      %v6063 = vpack.c.b16 %v5939, %v5935
      %v6064 = vpack.c.b16 %v5940, %v5936
      %v6065 = vpack.c.b16 %v5941, %v5937
      %v6066 = vpack.c.b16 %v5946, %v5942
      %v6067 = vpack.c.b16 %v5947, %v5943
      %v6068 = vpack.c.b16 %v5948, %v5944
      %v6069 = vpack.c.b16 %v5949, %v5945
      %v6070 = vpack.c.b16 %v5954, %v5950
      %v6071 = vpack.c.b16 %v5955, %v5951
      %v6072 = vpack.c.b16 %v5956, %v5952
      %v6073 = vpack.c.b16 %v5957, %v5953
      %v6074 = vpack.c.b16 %v5962, %v5958
      %v6075 = vpack.c.b16 %v5963, %v5959
      %v6076 = vpack.c.b16 %v5964, %v5960
      %v6077 = vpack.c.b16 %v5965, %v5961
      %v6078 = vpack.c.b16 %v5970, %v5966
      %v6079 = vpack.c.b16 %v5971, %v5967
      %v6080 = vpack.c.b16 %v5972, %v5968
      %v6081 = vpack.c.b16 %v5973, %v5969
      %v6082 = vpack.c.b16 %v5978, %v5974
      %v6083 = vpack.c.b16 %v5979, %v5975
      %v6084 = vpack.c.b16 %v5980, %v5976
      %v6085 = vpack.c.b16 %v5981, %v5977
      %v6086 = vpack.c.b16 %v5986, %v5982
      %v6087 = vpack.c.b16 %v5987, %v5983
      %v6088 = vpack.c.b16 %v5988, %v5984
      %v6089 = vpack.c.b16 %v5989, %v5985
      %v6090 = vpack.c.b16 %v5994, %v5990
      %v6091 = vpack.c.b16 %v5995, %v5991
      %v6092 = vpack.c.b16 %v5996, %v5992
      %v6093 = vpack.c.b16 %v5997, %v5993
      %v6094 = vpack.c.b16 %v6002, %v5998
      %v6095 = vpack.c.b16 %v6003, %v5999
      %v6096 = vpack.c.b16 %v6004, %v6000
      %v6097 = vpack.c.b16 %v6005, %v6001
      %v6098 = vpack.c.b16 %v6010, %v6006
      %v6099 = vpack.c.b16 %v6011, %v6007
      %v6100 = vpack.c.b16 %v6012, %v6008
      %v6101 = vpack.c.b16 %v6013, %v6009
      %v6102 = vpack.c.b16 %v6018, %v6014
      %v6103 = vpack.c.b16 %v6019, %v6015
      %v6104 = vpack.c.b16 %v6020, %v6016
      %v6105 = vpack.c.b16 %v6021, %v6017
      %v6106 = vpack.c.b16 %v6026, %v6022
      %v6107 = vpack.c.b16 %v6027, %v6023
      %v6108 = vpack.c.b16 %v6028, %v6024
      %v6109 = vpack.c.b16 %v6029, %v6025
      %v6110 = vpack.c.b16 %v6034, %v6030
      %v6111 = vpack.c.b16 %v6035, %v6031
      %v6112 = vpack.c.b16 %v6036, %v6032
      %v6113 = vpack.c.b16 %v6037, %v6033
      %v6114 = vpack.c.b16 %v6042, %v6038
      %v6115 = vpack.c.b16 %v6043, %v6039
      %v6116 = vpack.c.b16 %v6044, %v6040
      %v6117 = vpack.c.b16 %v6045, %v6041
      %v6118 = vpack.c.b16 %v6050, %v6046
      %v6119 = vpack.c.b16 %v6051, %v6047
      %v6120 = vpack.c.b16 %v6052, %v6048
      %v6121 = vpack.c.b16 %v6053, %v6049
      %v6122 = vpack.c.b16 %v6058, %v6054
      %v6123 = vpack.c.b16 %v6059, %v6055
      %v6124 = vpack.c.b16 %v6060, %v6056
      %v6125 = vpack.c.b16 %v6061, %v6057
      %6190 = vmatprep.subr.bf16.mxu0 %v6063
      %6191 = vmatpush1.bf16.msra.mxu0 %v6062
      %6192 = vmatprep.subr.bf16.mxu0 %v6067
      %6193 = vmatpush1.bf16.msra.mxu0 %v6066
      %6194 = vmatprep.subr.bf16.mxu0 %v6071
      %6195 = vmatpush1.bf16.msra.mxu0 %v6070
      %6196 = vmatprep.subr.bf16.mxu0 %v6075
      %6197 = vmatpush1.bf16.msra.mxu0 %v6074
      %6198 = vmatprep.subr.bf16.mxu0 %v6079
      %6199 = vmatpush1.bf16.msra.mxu0 %v6078
      %6200 = vmatprep.subr.bf16.mxu0 %v6083
      %6201 = vmatpush1.bf16.msra.mxu0 %v6082
      %6202 = vmatprep.subr.bf16.mxu0 %v6087
      %6203 = vmatpush1.bf16.msra.mxu0 %v6086
      %6204 = vmatprep.subr.bf16.mxu0 %v6091
      %6205 = vmatpush1.bf16.msra.mxu0 %v6090
      %6206 = vmatprep.subr.bf16.mxu0 %v6095
      %6207 = vmatpush1.bf16.msra.mxu0 %v6094
      %6208 = vmatprep.subr.bf16.mxu0 %v6099
      %6209 = vmatpush1.bf16.msra.mxu0 %v6098
      %6210 = vmatprep.subr.bf16.mxu0 %v6103
      %6211 = vmatpush1.bf16.msra.mxu0 %v6102
      %6212 = vmatprep.subr.bf16.mxu0 %v6107
      %6213 = vmatpush1.bf16.msra.mxu0 %v6106
      %6214 = vmatprep.subr.bf16.mxu0 %v6111
      %6215 = vmatpush1.bf16.msra.mxu0 %v6110
      %6216 = vmatprep.subr.bf16.mxu0 %v6115
      %6217 = vmatpush1.bf16.msra.mxu0 %v6114
      %6218 = vmatprep.subr.bf16.mxu0 %v6119
      %6219 = vmatpush1.bf16.msra.mxu0 %v6118
      %6220 = vmatprep.subr.bf16.mxu0 %v6123
      %6221 = vmatpush1.bf16.msra.mxu0 %v6122
      %6222 = vmatprep.mubr.bf16.mxu0 %v5867
      %6223 = vmatmul.mubr.bf16.gmra.mrb[0].mxu0 %v5865
      %v6224 = vpop.f32.mrb[0].mxu0
      %v6225 = vadd.f32 0.0, %v6224
      %v6226 = vpop.f32.mrb[0].mxu0
      %v6227 = vadd.f32 0.0, %v6226
      %v6228 = vpop.f32.mrb[0].mxu0
      %v6229 = vpop.f32.mrb[0].mxu0
      %6230 = vdwg.mxu0
      %6231 = vmatprep.subr.bf16.mxu0 %v6065
      %6232 = vmatpush1.bf16.msra.mxu0 %v6064
      %6233 = vmatprep.subr.bf16.mxu0 %v6069
      %6234 = vmatpush1.bf16.msra.mxu0 %v6068
      %6235 = vmatprep.subr.bf16.mxu0 %v6073
      %6236 = vmatpush1.bf16.msra.mxu0 %v6072
      %6237 = vmatprep.subr.bf16.mxu0 %v6077
      %6238 = vmatpush1.bf16.msra.mxu0 %v6076
      %6239 = vmatprep.subr.bf16.mxu0 %v6081
      %6240 = vmatpush1.bf16.msra.mxu0 %v6080
      %6241 = vmatprep.subr.bf16.mxu0 %v6085
      %6242 = vmatpush1.bf16.msra.mxu0 %v6084
      %6243 = vmatprep.subr.bf16.mxu0 %v6089
      %6244 = vmatpush1.bf16.msra.mxu0 %v6088
      %6245 = vmatprep.subr.bf16.mxu0 %v6093
      %6246 = vmatpush1.bf16.msra.mxu0 %v6092
      %6247 = vmatprep.subr.bf16.mxu0 %v6097
      %6248 = vmatpush1.bf16.msra.mxu0 %v6096
      %6249 = vmatprep.subr.bf16.mxu0 %v6101
      %6250 = vmatpush1.bf16.msra.mxu0 %v6100
      %6251 = vmatprep.subr.bf16.mxu0 %v6105
      %6252 = vmatpush1.bf16.msra.mxu0 %v6104
      %6253 = vmatprep.subr.bf16.mxu0 %v6109
      %6254 = vmatpush1.bf16.msra.mxu0 %v6108
      %6255 = vmatprep.subr.bf16.mxu0 %v6113
      %6256 = vmatpush1.bf16.msra.mxu0 %v6112
      %6257 = vmatprep.subr.bf16.mxu0 %v6117
      %6258 = vmatpush1.bf16.msra.mxu0 %v6116
      %6259 = vmatprep.subr.bf16.mxu0 %v6121
      %6260 = vmatpush1.bf16.msra.mxu0 %v6120
      %6261 = vmatprep.subr.bf16.mxu0 %v6125
      %6262 = vmatpush1.bf16.msra.mxu0 %v6124
      %6263 = vmatprep.mubr.bf16.mxu0 %v5867
      %6264 = vmatmul.mubr.bf16.gmra.mrb[0].mxu0 %v5865
      %v6265 = vpop.f32.mrb[0].mxu0
      %v6266 = vadd.f32 0.0, %v6265
      %v6267 = vpop.f32.mrb[0].mxu0
      %v6268 = vadd.f32 0.0, %v6267
      %v6269 = vpop.f32.mrb[0].mxu0
      %v6270 = vpop.f32.mrb[0].mxu0
      %6271 = vdwg.mxu0
      %v6272 = vadd.f32 %v5752, %v6225
      %v6273 = vadd.f32 %v5754, %v6227
      %v6274 = vadd.f32 %v5793, %v6266
      %v6275 = vadd.f32 %v5795, %v6268
      %s6276 = scalar_lea.vmem %s8, 1536
      %v6277 = vld [vmem:[%s6276] sm:$0xff]
      %v6278 = vld [vmem:[%s6276 + $0x8] sm:$0xff]
      %v6279 = vld [vmem:[%s6276 + $0x10] sm:$0xff]
      %v6280 = vld [vmem:[%s6276 + $0x18] sm:$0xff]
      %v6281 = vld [vmem:[%s6276 + $0x20] sm:$0xff]
      %v6282 = vld [vmem:[%s6276 + $0x28] sm:$0xff]
      %v6283 = vld [vmem:[%s6276 + $0x30] sm:$0xff]
      %v6284 = vld [vmem:[%s6276 + $0x38] sm:$0xff]
      %v6285 = vld [vmem:[%s6276 + $0x40] sm:$0xff]
      %v6286 = vld [vmem:[%s6276 + $0x48] sm:$0xff]
      %v6287 = vld [vmem:[%s6276 + $0x50] sm:$0xff]
      %v6288 = vld [vmem:[%s6276 + $0x58] sm:$0xff]
      %v6289 = vld [vmem:[%s6276 + $0x60] sm:$0xff]
      %v6290 = vld [vmem:[%s6276 + $0x68] sm:$0xff]
      %v6291 = vld [vmem:[%s6276 + $0x70] sm:$0xff]
      %v6292 = vld [vmem:[%s6276 + $0x78] sm:$0xff]
      %v6293 = vld [vmem:[%s6276 + $0x80] sm:$0xff]
      %v6294 = vld [vmem:[%s6276 + $0x88] sm:$0xff]
      %v6295 = vld [vmem:[%s6276 + $0x90] sm:$0xff]
      %v6296 = vld [vmem:[%s6276 + $0x98] sm:$0xff]
      %v6297 = vld [vmem:[%s6276 + $0xa0] sm:$0xff]
      %v6298 = vld [vmem:[%s6276 + $0xa8] sm:$0xff]
      %v6299 = vld [vmem:[%s6276 + $0xb0] sm:$0xff]
      %v6300 = vld [vmem:[%s6276 + $0xb8] sm:$0xff]
      %v6301 = vld [vmem:[%s6276 + $0xc0] sm:$0xff]
      %v6302 = vld [vmem:[%s6276 + $0xc8] sm:$0xff]
      %v6303 = vld [vmem:[%s6276 + $0xd0] sm:$0xff]
      %v6304 = vld [vmem:[%s6276 + $0xd8] sm:$0xff]
      %v6305 = vld [vmem:[%s6276 + $0xe0] sm:$0xff]
      %v6306 = vld [vmem:[%s6276 + $0xe8] sm:$0xff]
      %v6307 = vld [vmem:[%s6276 + $0xf0] sm:$0xff]
      %v6308 = vld [vmem:[%s6276 + $0xf8] sm:$0xff]
      %v6309 = vld [vmem:[%s6276 + $0x100] sm:$0xff]
      %v6310 = vld [vmem:[%s6276 + $0x108] sm:$0xff]
      %v6311 = vld [vmem:[%s6276 + $0x110] sm:$0xff]
      %v6312 = vld [vmem:[%s6276 + $0x118] sm:$0xff]
      %v6313 = vld [vmem:[%s6276 + $0x120] sm:$0xff]
      %v6314 = vld [vmem:[%s6276 + $0x128] sm:$0xff]
      %v6315 = vld [vmem:[%s6276 + $0x130] sm:$0xff]
      %v6316 = vld [vmem:[%s6276 + $0x138] sm:$0xff]
      %v6317 = vld [vmem:[%s6276 + $0x140] sm:$0xff]
      %v6318 = vld [vmem:[%s6276 + $0x148] sm:$0xff]
      %v6319 = vld [vmem:[%s6276 + $0x150] sm:$0xff]
      %v6320 = vld [vmem:[%s6276 + $0x158] sm:$0xff]
      %v6321 = vld [vmem:[%s6276 + $0x160] sm:$0xff]
      %v6322 = vld [vmem:[%s6276 + $0x168] sm:$0xff]
      %v6323 = vld [vmem:[%s6276 + $0x170] sm:$0xff]
      %v6324 = vld [vmem:[%s6276 + $0x178] sm:$0xff]
      %v6325 = vld [vmem:[%s6276 + $0x180] sm:$0xff]
      %v6326 = vld [vmem:[%s6276 + $0x188] sm:$0xff]
      %v6327 = vld [vmem:[%s6276 + $0x190] sm:$0xff]
      %v6328 = vld [vmem:[%s6276 + $0x198] sm:$0xff]
      %v6329 = vld [vmem:[%s6276 + $0x1a0] sm:$0xff]
      %v6330 = vld [vmem:[%s6276 + $0x1a8] sm:$0xff]
      %v6331 = vld [vmem:[%s6276 + $0x1b0] sm:$0xff]
      %v6332 = vld [vmem:[%s6276 + $0x1b8] sm:$0xff]
      %v6333 = vld [vmem:[%s6276 + $0x1c0] sm:$0xff]
      %v6334 = vld [vmem:[%s6276 + $0x1c8] sm:$0xff]
      %v6335 = vld [vmem:[%s6276 + $0x1d0] sm:$0xff]
      %v6336 = vld [vmem:[%s6276 + $0x1d8] sm:$0xff]
      %v6337 = vld [vmem:[%s6276 + $0x1e0] sm:$0xff]
      %v6338 = vld [vmem:[%s6276 + $0x1e8] sm:$0xff]
      %v6339 = vld [vmem:[%s6276 + $0x1f0] sm:$0xff]
      %v6340 = vld [vmem:[%s6276 + $0x1f8] sm:$0xff]
      %v6343 = vrot.slane %v4846, 1
      %v6344 = vrot.slane %v4847, 1
      %v6411 = vunpack.c.l.b16 %v6277
      %v6412 = vunpack.c.h.b16 %v6277
      %v6413 = vunpack.c.l.b16 %v6278
      %v6414 = vunpack.c.h.b16 %v6278
      %v6415 = vunpack.c.l.b16 %v6279
      %v6416 = vunpack.c.h.b16 %v6279
      %v6417 = vunpack.c.l.b16 %v6280
      %v6418 = vunpack.c.h.b16 %v6280
      %v6419 = vunpack.c.l.b16 %v6281
      %v6420 = vunpack.c.h.b16 %v6281
      %v6421 = vunpack.c.l.b16 %v6282
      %v6422 = vunpack.c.h.b16 %v6282
      %v6423 = vunpack.c.l.b16 %v6283
      %v6424 = vunpack.c.h.b16 %v6283
      %v6425 = vunpack.c.l.b16 %v6284
      %v6426 = vunpack.c.h.b16 %v6284
      %v6427 = vunpack.c.l.b16 %v6285
      %v6428 = vunpack.c.h.b16 %v6285
      %v6429 = vunpack.c.l.b16 %v6286
      %v6430 = vunpack.c.h.b16 %v6286
      %v6431 = vunpack.c.l.b16 %v6287
      %v6432 = vunpack.c.h.b16 %v6287
      %v6433 = vunpack.c.l.b16 %v6288
      %v6434 = vunpack.c.h.b16 %v6288
      %v6435 = vunpack.c.l.b16 %v6289
      %v6436 = vunpack.c.h.b16 %v6289
      %v6437 = vunpack.c.l.b16 %v6290
      %v6438 = vunpack.c.h.b16 %v6290
      %v6439 = vunpack.c.l.b16 %v6291
      %v6440 = vunpack.c.h.b16 %v6291
      %v6441 = vunpack.c.l.b16 %v6292
      %v6442 = vunpack.c.h.b16 %v6292
      %v6443 = vunpack.c.l.b16 %v6293
      %v6444 = vunpack.c.h.b16 %v6293
      %v6445 = vunpack.c.l.b16 %v6294
      %v6446 = vunpack.c.h.b16 %v6294
      %v6447 = vunpack.c.l.b16 %v6295
      %v6448 = vunpack.c.h.b16 %v6295
      %v6449 = vunpack.c.l.b16 %v6296
      %v6450 = vunpack.c.h.b16 %v6296
      %v6451 = vunpack.c.l.b16 %v6297
      %v6452 = vunpack.c.h.b16 %v6297
      %v6453 = vunpack.c.l.b16 %v6298
      %v6454 = vunpack.c.h.b16 %v6298
      %v6455 = vunpack.c.l.b16 %v6299
      %v6456 = vunpack.c.h.b16 %v6299
      %v6457 = vunpack.c.l.b16 %v6300
      %v6458 = vunpack.c.h.b16 %v6300
      %v6459 = vunpack.c.l.b16 %v6301
      %v6460 = vunpack.c.h.b16 %v6301
      %v6461 = vunpack.c.l.b16 %v6302
      %v6462 = vunpack.c.h.b16 %v6302
      %v6463 = vunpack.c.l.b16 %v6303
      %v6464 = vunpack.c.h.b16 %v6303
      %v6465 = vunpack.c.l.b16 %v6304
      %v6466 = vunpack.c.h.b16 %v6304
      %v6467 = vunpack.c.l.b16 %v6305
      %v6468 = vunpack.c.h.b16 %v6305
      %v6469 = vunpack.c.l.b16 %v6306
      %v6470 = vunpack.c.h.b16 %v6306
      %v6471 = vunpack.c.l.b16 %v6307
      %v6472 = vunpack.c.h.b16 %v6307
      %v6473 = vunpack.c.l.b16 %v6308
      %v6474 = vunpack.c.h.b16 %v6308
      %v6475 = vunpack.c.l.b16 %v6309
      %v6476 = vunpack.c.h.b16 %v6309
      %v6477 = vunpack.c.l.b16 %v6310
      %v6478 = vunpack.c.h.b16 %v6310
      %v6479 = vunpack.c.l.b16 %v6311
      %v6480 = vunpack.c.h.b16 %v6311
      %v6481 = vunpack.c.l.b16 %v6312
      %v6482 = vunpack.c.h.b16 %v6312
      %v6483 = vunpack.c.l.b16 %v6313
      %v6484 = vunpack.c.h.b16 %v6313
      %v6485 = vunpack.c.l.b16 %v6314
      %v6486 = vunpack.c.h.b16 %v6314
      %v6487 = vunpack.c.l.b16 %v6315
      %v6488 = vunpack.c.h.b16 %v6315
      %v6489 = vunpack.c.l.b16 %v6316
      %v6490 = vunpack.c.h.b16 %v6316
      %v6491 = vunpack.c.l.b16 %v6317
      %v6492 = vunpack.c.h.b16 %v6317
      %v6493 = vunpack.c.l.b16 %v6318
      %v6494 = vunpack.c.h.b16 %v6318
      %v6495 = vunpack.c.l.b16 %v6319
      %v6496 = vunpack.c.h.b16 %v6319
      %v6497 = vunpack.c.l.b16 %v6320
      %v6498 = vunpack.c.h.b16 %v6320
      %v6499 = vunpack.c.l.b16 %v6321
      %v6500 = vunpack.c.h.b16 %v6321
      %v6501 = vunpack.c.l.b16 %v6322
      %v6502 = vunpack.c.h.b16 %v6322
      %v6503 = vunpack.c.l.b16 %v6323
      %v6504 = vunpack.c.h.b16 %v6323
      %v6505 = vunpack.c.l.b16 %v6324
      %v6506 = vunpack.c.h.b16 %v6324
      %v6507 = vunpack.c.l.b16 %v6325
      %v6508 = vunpack.c.h.b16 %v6325
      %v6509 = vunpack.c.l.b16 %v6326
      %v6510 = vunpack.c.h.b16 %v6326
      %v6511 = vunpack.c.l.b16 %v6327
      %v6512 = vunpack.c.h.b16 %v6327
      %v6513 = vunpack.c.l.b16 %v6328
      %v6514 = vunpack.c.h.b16 %v6328
      %v6515 = vunpack.c.l.b16 %v6329
      %v6516 = vunpack.c.h.b16 %v6329
      %v6517 = vunpack.c.l.b16 %v6330
      %v6518 = vunpack.c.h.b16 %v6330
      %v6519 = vunpack.c.l.b16 %v6331
      %v6520 = vunpack.c.h.b16 %v6331
      %v6521 = vunpack.c.l.b16 %v6332
      %v6522 = vunpack.c.h.b16 %v6332
      %v6523 = vunpack.c.l.b16 %v6333
      %v6524 = vunpack.c.h.b16 %v6333
      %v6525 = vunpack.c.l.b16 %v6334
      %v6526 = vunpack.c.h.b16 %v6334
      %v6527 = vunpack.c.l.b16 %v6335
      %v6528 = vunpack.c.h.b16 %v6335
      %v6529 = vunpack.c.l.b16 %v6336
      %v6530 = vunpack.c.h.b16 %v6336
      %v6531 = vunpack.c.l.b16 %v6337
      %v6532 = vunpack.c.h.b16 %v6337
      %v6533 = vunpack.c.l.b16 %v6338
      %v6534 = vunpack.c.h.b16 %v6338
      %v6535 = vunpack.c.l.b16 %v6339
      %v6536 = vunpack.c.h.b16 %v6339
      %v6537 = vunpack.c.l.b16 %v6340
      %v6538 = vunpack.c.h.b16 %v6340
      %v6539 = vpack.c.b16 %v6415, %v6411
      %v6540 = vpack.c.b16 %v6416, %v6412
      %v6541 = vpack.c.b16 %v6417, %v6413
      %v6542 = vpack.c.b16 %v6418, %v6414
      %v6543 = vpack.c.b16 %v6423, %v6419
      %v6544 = vpack.c.b16 %v6424, %v6420
      %v6545 = vpack.c.b16 %v6425, %v6421
      %v6546 = vpack.c.b16 %v6426, %v6422
      %v6547 = vpack.c.b16 %v6431, %v6427
      %v6548 = vpack.c.b16 %v6432, %v6428
      %v6549 = vpack.c.b16 %v6433, %v6429
      %v6550 = vpack.c.b16 %v6434, %v6430
      %v6551 = vpack.c.b16 %v6439, %v6435
      %v6552 = vpack.c.b16 %v6440, %v6436
      %v6553 = vpack.c.b16 %v6441, %v6437
      %v6554 = vpack.c.b16 %v6442, %v6438
      %v6555 = vpack.c.b16 %v6447, %v6443
      %v6556 = vpack.c.b16 %v6448, %v6444
      %v6557 = vpack.c.b16 %v6449, %v6445
      %v6558 = vpack.c.b16 %v6450, %v6446
      %v6559 = vpack.c.b16 %v6455, %v6451
      %v6560 = vpack.c.b16 %v6456, %v6452
      %v6561 = vpack.c.b16 %v6457, %v6453
      %v6562 = vpack.c.b16 %v6458, %v6454
      %v6563 = vpack.c.b16 %v6463, %v6459
      %v6564 = vpack.c.b16 %v6464, %v6460
      %v6565 = vpack.c.b16 %v6465, %v6461
      %v6566 = vpack.c.b16 %v6466, %v6462
      %v6567 = vpack.c.b16 %v6471, %v6467
      %v6568 = vpack.c.b16 %v6472, %v6468
      %v6569 = vpack.c.b16 %v6473, %v6469
      %v6570 = vpack.c.b16 %v6474, %v6470
      %v6571 = vpack.c.b16 %v6479, %v6475
      %v6572 = vpack.c.b16 %v6480, %v6476
      %v6573 = vpack.c.b16 %v6481, %v6477
      %v6574 = vpack.c.b16 %v6482, %v6478
      %v6575 = vpack.c.b16 %v6487, %v6483
      %v6576 = vpack.c.b16 %v6488, %v6484
      %v6577 = vpack.c.b16 %v6489, %v6485
      %v6578 = vpack.c.b16 %v6490, %v6486
      %v6579 = vpack.c.b16 %v6495, %v6491
      %v6580 = vpack.c.b16 %v6496, %v6492
      %v6581 = vpack.c.b16 %v6497, %v6493
      %v6582 = vpack.c.b16 %v6498, %v6494
      %v6583 = vpack.c.b16 %v6503, %v6499
      %v6584 = vpack.c.b16 %v6504, %v6500
      %v6585 = vpack.c.b16 %v6505, %v6501
      %v6586 = vpack.c.b16 %v6506, %v6502
      %v6587 = vpack.c.b16 %v6511, %v6507
      %v6588 = vpack.c.b16 %v6512, %v6508
      %v6589 = vpack.c.b16 %v6513, %v6509
      %v6590 = vpack.c.b16 %v6514, %v6510
      %v6591 = vpack.c.b16 %v6519, %v6515
      %v6592 = vpack.c.b16 %v6520, %v6516
      %v6593 = vpack.c.b16 %v6521, %v6517
      %v6594 = vpack.c.b16 %v6522, %v6518
      %v6595 = vpack.c.b16 %v6527, %v6523
      %v6596 = vpack.c.b16 %v6528, %v6524
      %v6597 = vpack.c.b16 %v6529, %v6525
      %v6598 = vpack.c.b16 %v6530, %v6526
      %v6599 = vpack.c.b16 %v6535, %v6531
      %v6600 = vpack.c.b16 %v6536, %v6532
      %v6601 = vpack.c.b16 %v6537, %v6533
      %v6602 = vpack.c.b16 %v6538, %v6534
      %6667 = vmatprep.subr.bf16.mxu0 %v6540
      %6668 = vmatpush1.bf16.msra.mxu0 %v6539
      %6669 = vmatprep.subr.bf16.mxu0 %v6544
      %6670 = vmatpush1.bf16.msra.mxu0 %v6543
      %6671 = vmatprep.subr.bf16.mxu0 %v6548
      %6672 = vmatpush1.bf16.msra.mxu0 %v6547
      %6673 = vmatprep.subr.bf16.mxu0 %v6552
      %6674 = vmatpush1.bf16.msra.mxu0 %v6551
      %6675 = vmatprep.subr.bf16.mxu0 %v6556
      %6676 = vmatpush1.bf16.msra.mxu0 %v6555
      %6677 = vmatprep.subr.bf16.mxu0 %v6560
      %6678 = vmatpush1.bf16.msra.mxu0 %v6559
      %6679 = vmatprep.subr.bf16.mxu0 %v6564
      %6680 = vmatpush1.bf16.msra.mxu0 %v6563
      %6681 = vmatprep.subr.bf16.mxu0 %v6568
      %6682 = vmatpush1.bf16.msra.mxu0 %v6567
      %6683 = vmatprep.subr.bf16.mxu0 %v6572
      %6684 = vmatpush1.bf16.msra.mxu0 %v6571
      %6685 = vmatprep.subr.bf16.mxu0 %v6576
      %6686 = vmatpush1.bf16.msra.mxu0 %v6575
      %6687 = vmatprep.subr.bf16.mxu0 %v6580
      %6688 = vmatpush1.bf16.msra.mxu0 %v6579
      %6689 = vmatprep.subr.bf16.mxu0 %v6584
      %6690 = vmatpush1.bf16.msra.mxu0 %v6583
      %6691 = vmatprep.subr.bf16.mxu0 %v6588
      %6692 = vmatpush1.bf16.msra.mxu0 %v6587
      %6693 = vmatprep.subr.bf16.mxu0 %v6592
      %6694 = vmatpush1.bf16.msra.mxu0 %v6591
      %6695 = vmatprep.subr.bf16.mxu0 %v6596
      %6696 = vmatpush1.bf16.msra.mxu0 %v6595
      %6697 = vmatprep.subr.bf16.mxu0 %v6600
      %6698 = vmatpush1.bf16.msra.mxu0 %v6599
      %6699 = vmatprep.mubr.bf16.mxu0 %v6344
      %6700 = vmatmul.mubr.bf16.gmra.mrb[0].mxu0 %v6343
      %v6701 = vpop.f32.mrb[0].mxu0
      %v6702 = vadd.f32 0.0, %v6701
      %v6703 = vpop.f32.mrb[0].mxu0
      %v6704 = vadd.f32 0.0, %v6703
      %v6705 = vpop.f32.mrb[0].mxu0
      %v6706 = vpop.f32.mrb[0].mxu0
      %6707 = vdwg.mxu0
      %6708 = vmatprep.subr.bf16.mxu0 %v6542
      %6709 = vmatpush1.bf16.msra.mxu0 %v6541
      %6710 = vmatprep.subr.bf16.mxu0 %v6546
      %6711 = vmatpush1.bf16.msra.mxu0 %v6545
      %6712 = vmatprep.subr.bf16.mxu0 %v6550
      %6713 = vmatpush1.bf16.msra.mxu0 %v6549
      %6714 = vmatprep.subr.bf16.mxu0 %v6554
      %6715 = vmatpush1.bf16.msra.mxu0 %v6553
      %6716 = vmatprep.subr.bf16.mxu0 %v6558
      %6717 = vmatpush1.bf16.msra.mxu0 %v6557
      %6718 = vmatprep.subr.bf16.mxu0 %v6562
      %6719 = vmatpush1.bf16.msra.mxu0 %v6561
      %6720 = vmatprep.subr.bf16.mxu0 %v6566
      %6721 = vmatpush1.bf16.msra.mxu0 %v6565
      %6722 = vmatprep.subr.bf16.mxu0 %v6570
      %6723 = vmatpush1.bf16.msra.mxu0 %v6569
      %6724 = vmatprep.subr.bf16.mxu0 %v6574
      %6725 = vmatpush1.bf16.msra.mxu0 %v6573
      %6726 = vmatprep.subr.bf16.mxu0 %v6578
      %6727 = vmatpush1.bf16.msra.mxu0 %v6577
      %6728 = vmatprep.subr.bf16.mxu0 %v6582
      %6729 = vmatpush1.bf16.msra.mxu0 %v6581
      %6730 = vmatprep.subr.bf16.mxu0 %v6586
      %6731 = vmatpush1.bf16.msra.mxu0 %v6585
      %6732 = vmatprep.subr.bf16.mxu0 %v6590
      %6733 = vmatpush1.bf16.msra.mxu0 %v6589
      %6734 = vmatprep.subr.bf16.mxu0 %v6594
      %6735 = vmatpush1.bf16.msra.mxu0 %v6593
      %6736 = vmatprep.subr.bf16.mxu0 %v6598
      %6737 = vmatpush1.bf16.msra.mxu0 %v6597
      %6738 = vmatprep.subr.bf16.mxu0 %v6602
      %6739 = vmatpush1.bf16.msra.mxu0 %v6601
      %6740 = vmatprep.mubr.bf16.mxu0 %v6344
      %6741 = vmatmul.mubr.bf16.gmra.mrb[0].mxu0 %v6343
      %v6742 = vpop.f32.mrb[0].mxu0
      %v6743 = vadd.f32 0.0, %v6742
      %v6744 = vpop.f32.mrb[0].mxu0
      %v6745 = vadd.f32 0.0, %v6744
      %v6746 = vpop.f32.mrb[0].mxu0
      %v6747 = vpop.f32.mrb[0].mxu0
      %6748 = vdwg.mxu0
      %v6749 = vadd.f32 %v6272, %v6702
      %v6750 = vadd.f32 %v6273, %v6704
      %v6751 = vadd.f32 %v6274, %v6743
      %v6752 = vadd.f32 %v6275, %v6745
      %s6753 = scalar_lea.vmem %s8, 2048
      %v6754 = vld [vmem:[%s6753] sm:$0xff]
      %v6755 = vld [vmem:[%s6753 + $0x8] sm:$0xff]
      %v6756 = vld [vmem:[%s6753 + $0x10] sm:$0xff]
      %v6757 = vld [vmem:[%s6753 + $0x18] sm:$0xff]
      %v6758 = vld [vmem:[%s6753 + $0x20] sm:$0xff]
      %v6759 = vld [vmem:[%s6753 + $0x28] sm:$0xff]
      %v6760 = vld [vmem:[%s6753 + $0x30] sm:$0xff]
      %v6761 = vld [vmem:[%s6753 + $0x38] sm:$0xff]
      %v6762 = vld [vmem:[%s6753 + $0x40] sm:$0xff]
      %v6763 = vld [vmem:[%s6753 + $0x48] sm:$0xff]
      %v6764 = vld [vmem:[%s6753 + $0x50] sm:$0xff]
      %v6765 = vld [vmem:[%s6753 + $0x58] sm:$0xff]
      %v6766 = vld [vmem:[%s6753 + $0x60] sm:$0xff]
      %v6767 = vld [vmem:[%s6753 + $0x68] sm:$0xff]
      %v6768 = vld [vmem:[%s6753 + $0x70] sm:$0xff]
      %v6769 = vld [vmem:[%s6753 + $0x78] sm:$0xff]
      %v6770 = vld [vmem:[%s6753 + $0x80] sm:$0xff]
      %v6771 = vld [vmem:[%s6753 + $0x88] sm:$0xff]
      %v6772 = vld [vmem:[%s6753 + $0x90] sm:$0xff]
      %v6773 = vld [vmem:[%s6753 + $0x98] sm:$0xff]
      %v6774 = vld [vmem:[%s6753 + $0xa0] sm:$0xff]
      %v6775 = vld [vmem:[%s6753 + $0xa8] sm:$0xff]
      %v6776 = vld [vmem:[%s6753 + $0xb0] sm:$0xff]
      %v6777 = vld [vmem:[%s6753 + $0xb8] sm:$0xff]
      %v6778 = vld [vmem:[%s6753 + $0xc0] sm:$0xff]
      %v6779 = vld [vmem:[%s6753 + $0xc8] sm:$0xff]
      %v6780 = vld [vmem:[%s6753 + $0xd0] sm:$0xff]
      %v6781 = vld [vmem:[%s6753 + $0xd8] sm:$0xff]
      %v6782 = vld [vmem:[%s6753 + $0xe0] sm:$0xff]
      %v6783 = vld [vmem:[%s6753 + $0xe8] sm:$0xff]
      %v6784 = vld [vmem:[%s6753 + $0xf0] sm:$0xff]
      %v6785 = vld [vmem:[%s6753 + $0xf8] sm:$0xff]
      %v6786 = vld [vmem:[%s6753 + $0x100] sm:$0xff]
      %v6787 = vld [vmem:[%s6753 + $0x108] sm:$0xff]
      %v6788 = vld [vmem:[%s6753 + $0x110] sm:$0xff]
      %v6789 = vld [vmem:[%s6753 + $0x118] sm:$0xff]
      %v6790 = vld [vmem:[%s6753 + $0x120] sm:$0xff]
      %v6791 = vld [vmem:[%s6753 + $0x128] sm:$0xff]
      %v6792 = vld [vmem:[%s6753 + $0x130] sm:$0xff]
      %v6793 = vld [vmem:[%s6753 + $0x138] sm:$0xff]
      %v6794 = vld [vmem:[%s6753 + $0x140] sm:$0xff]
      %v6795 = vld [vmem:[%s6753 + $0x148] sm:$0xff]
      %v6796 = vld [vmem:[%s6753 + $0x150] sm:$0xff]
      %v6797 = vld [vmem:[%s6753 + $0x158] sm:$0xff]
      %v6798 = vld [vmem:[%s6753 + $0x160] sm:$0xff]
      %v6799 = vld [vmem:[%s6753 + $0x168] sm:$0xff]
      %v6800 = vld [vmem:[%s6753 + $0x170] sm:$0xff]
      %v6801 = vld [vmem:[%s6753 + $0x178] sm:$0xff]
      %v6802 = vld [vmem:[%s6753 + $0x180] sm:$0xff]
      %v6803 = vld [vmem:[%s6753 + $0x188] sm:$0xff]
      %v6804 = vld [vmem:[%s6753 + $0x190] sm:$0xff]
      %v6805 = vld [vmem:[%s6753 + $0x198] sm:$0xff]
      %v6806 = vld [vmem:[%s6753 + $0x1a0] sm:$0xff]
      %v6807 = vld [vmem:[%s6753 + $0x1a8] sm:$0xff]
      %v6808 = vld [vmem:[%s6753 + $0x1b0] sm:$0xff]
      %v6809 = vld [vmem:[%s6753 + $0x1b8] sm:$0xff]
      %v6810 = vld [vmem:[%s6753 + $0x1c0] sm:$0xff]
      %v6811 = vld [vmem:[%s6753 + $0x1c8] sm:$0xff]
      %v6812 = vld [vmem:[%s6753 + $0x1d0] sm:$0xff]
      %v6813 = vld [vmem:[%s6753 + $0x1d8] sm:$0xff]
      %v6814 = vld [vmem:[%s6753 + $0x1e0] sm:$0xff]
      %v6815 = vld [vmem:[%s6753 + $0x1e8] sm:$0xff]
      %v6816 = vld [vmem:[%s6753 + $0x1f0] sm:$0xff]
      %v6817 = vld [vmem:[%s6753 + $0x1f8] sm:$0xff]
      %v6819 = vshrl.u32 %v4846, 16
      %v6821 = vrot.slane %v6819, 5
      %v6822 = vshll.u32 %v4846, 16
      %v6824 = vrot.slane %v6822, 6
      %v6825 = vor.u32 %v6821, %v6824
      %v6827 = vshrl.u32 %v4847, 16
      %v6829 = vrot.slane %v6827, 5
      %v6830 = vshll.u32 %v4847, 16
      %v6832 = vrot.slane %v6830, 6
      %v6833 = vor.u32 %v6829, %v6832
      %v6900 = vunpack.c.l.b16 %v6754
      %v6901 = vunpack.c.h.b16 %v6754
      %v6902 = vunpack.c.l.b16 %v6755
      %v6903 = vunpack.c.h.b16 %v6755
      %v6904 = vunpack.c.l.b16 %v6756
      %v6905 = vunpack.c.h.b16 %v6756
      %v6906 = vunpack.c.l.b16 %v6757
      %v6907 = vunpack.c.h.b16 %v6757
      %v6908 = vunpack.c.l.b16 %v6758
      %v6909 = vunpack.c.h.b16 %v6758
      %v6910 = vunpack.c.l.b16 %v6759
      %v6911 = vunpack.c.h.b16 %v6759
      %v6912 = vunpack.c.l.b16 %v6760
      %v6913 = vunpack.c.h.b16 %v6760
      %v6914 = vunpack.c.l.b16 %v6761
      %v6915 = vunpack.c.h.b16 %v6761
      %v6916 = vunpack.c.l.b16 %v6762
      %v6917 = vunpack.c.h.b16 %v6762
      %v6918 = vunpack.c.l.b16 %v6763
      %v6919 = vunpack.c.h.b16 %v6763
      %v6920 = vunpack.c.l.b16 %v6764
      %v6921 = vunpack.c.h.b16 %v6764
      %v6922 = vunpack.c.l.b16 %v6765
      %v6923 = vunpack.c.h.b16 %v6765
      %v6924 = vunpack.c.l.b16 %v6766
      %v6925 = vunpack.c.h.b16 %v6766
      %v6926 = vunpack.c.l.b16 %v6767
      %v6927 = vunpack.c.h.b16 %v6767
      %v6928 = vunpack.c.l.b16 %v6768
      %v6929 = vunpack.c.h.b16 %v6768
      %v6930 = vunpack.c.l.b16 %v6769
      %v6931 = vunpack.c.h.b16 %v6769
      %v6932 = vunpack.c.l.b16 %v6770
      %v6933 = vunpack.c.h.b16 %v6770
      %v6934 = vunpack.c.l.b16 %v6771
      %v6935 = vunpack.c.h.b16 %v6771
      %v6936 = vunpack.c.l.b16 %v6772
      %v6937 = vunpack.c.h.b16 %v6772
      %v6938 = vunpack.c.l.b16 %v6773
      %v6939 = vunpack.c.h.b16 %v6773
      %v6940 = vunpack.c.l.b16 %v6774
      %v6941 = vunpack.c.h.b16 %v6774
      %v6942 = vunpack.c.l.b16 %v6775
      %v6943 = vunpack.c.h.b16 %v6775
      %v6944 = vunpack.c.l.b16 %v6776
      %v6945 = vunpack.c.h.b16 %v6776
      %v6946 = vunpack.c.l.b16 %v6777
      %v6947 = vunpack.c.h.b16 %v6777
      %v6948 = vunpack.c.l.b16 %v6778
      %v6949 = vunpack.c.h.b16 %v6778
      %v6950 = vunpack.c.l.b16 %v6779
      %v6951 = vunpack.c.h.b16 %v6779
      %v6952 = vunpack.c.l.b16 %v6780
      %v6953 = vunpack.c.h.b16 %v6780
      %v6954 = vunpack.c.l.b16 %v6781
      %v6955 = vunpack.c.h.b16 %v6781
      %v6956 = vunpack.c.l.b16 %v6782
      %v6957 = vunpack.c.h.b16 %v6782
      %v6958 = vunpack.c.l.b16 %v6783
      %v6959 = vunpack.c.h.b16 %v6783
      %v6960 = vunpack.c.l.b16 %v6784
      %v6961 = vunpack.c.h.b16 %v6784
      %v6962 = vunpack.c.l.b16 %v6785
      %v6963 = vunpack.c.h.b16 %v6785
      %v6964 = vunpack.c.l.b16 %v6786
      %v6965 = vunpack.c.h.b16 %v6786
      %v6966 = vunpack.c.l.b16 %v6787
      %v6967 = vunpack.c.h.b16 %v6787
      %v6968 = vunpack.c.l.b16 %v6788
      %v6969 = vunpack.c.h.b16 %v6788
      %v6970 = vunpack.c.l.b16 %v6789
      %v6971 = vunpack.c.h.b16 %v6789
      %v6972 = vunpack.c.l.b16 %v6790
      %v6973 = vunpack.c.h.b16 %v6790
      %v6974 = vunpack.c.l.b16 %v6791
      %v6975 = vunpack.c.h.b16 %v6791
      %v6976 = vunpack.c.l.b16 %v6792
      %v6977 = vunpack.c.h.b16 %v6792
      %v6978 = vunpack.c.l.b16 %v6793
      %v6979 = vunpack.c.h.b16 %v6793
      %v6980 = vunpack.c.l.b16 %v6794
      %v6981 = vunpack.c.h.b16 %v6794
      %v6982 = vunpack.c.l.b16 %v6795
      %v6983 = vunpack.c.h.b16 %v6795
      %v6984 = vunpack.c.l.b16 %v6796
      %v6985 = vunpack.c.h.b16 %v6796
      %v6986 = vunpack.c.l.b16 %v6797
      %v6987 = vunpack.c.h.b16 %v6797
      %v6988 = vunpack.c.l.b16 %v6798
      %v6989 = vunpack.c.h.b16 %v6798
      %v6990 = vunpack.c.l.b16 %v6799
      %v6991 = vunpack.c.h.b16 %v6799
      %v6992 = vunpack.c.l.b16 %v6800
      %v6993 = vunpack.c.h.b16 %v6800
      %v6994 = vunpack.c.l.b16 %v6801
      %v6995 = vunpack.c.h.b16 %v6801
      %v6996 = vunpack.c.l.b16 %v6802
      %v6997 = vunpack.c.h.b16 %v6802
      %v6998 = vunpack.c.l.b16 %v6803
      %v6999 = vunpack.c.h.b16 %v6803
      %v7000 = vunpack.c.l.b16 %v6804
      %v7001 = vunpack.c.h.b16 %v6804
      %v7002 = vunpack.c.l.b16 %v6805
      %v7003 = vunpack.c.h.b16 %v6805
      %v7004 = vunpack.c.l.b16 %v6806
      %v7005 = vunpack.c.h.b16 %v6806
      %v7006 = vunpack.c.l.b16 %v6807
      %v7007 = vunpack.c.h.b16 %v6807
      %v7008 = vunpack.c.l.b16 %v6808
      %v7009 = vunpack.c.h.b16 %v6808
      %v7010 = vunpack.c.l.b16 %v6809
      %v7011 = vunpack.c.h.b16 %v6809
      %v7012 = vunpack.c.l.b16 %v6810
      %v7013 = vunpack.c.h.b16 %v6810
      %v7014 = vunpack.c.l.b16 %v6811
      %v7015 = vunpack.c.h.b16 %v6811
      %v7016 = vunpack.c.l.b16 %v6812
      %v7017 = vunpack.c.h.b16 %v6812
      %v7018 = vunpack.c.l.b16 %v6813
      %v7019 = vunpack.c.h.b16 %v6813
      %v7020 = vunpack.c.l.b16 %v6814
      %v7021 = vunpack.c.h.b16 %v6814
      %v7022 = vunpack.c.l.b16 %v6815
      %v7023 = vunpack.c.h.b16 %v6815
      %v7024 = vunpack.c.l.b16 %v6816
      %v7025 = vunpack.c.h.b16 %v6816
      %v7026 = vunpack.c.l.b16 %v6817
      %v7027 = vunpack.c.h.b16 %v6817
      %v7028 = vpack.c.b16 %v6904, %v6900
      %v7029 = vpack.c.b16 %v6905, %v6901
      %v7030 = vpack.c.b16 %v6906, %v6902
      %v7031 = vpack.c.b16 %v6907, %v6903
      %v7032 = vpack.c.b16 %v6912, %v6908
      %v7033 = vpack.c.b16 %v6913, %v6909
      %v7034 = vpack.c.b16 %v6914, %v6910
      %v7035 = vpack.c.b16 %v6915, %v6911
      %v7036 = vpack.c.b16 %v6920, %v6916
      %v7037 = vpack.c.b16 %v6921, %v6917
      %v7038 = vpack.c.b16 %v6922, %v6918
      %v7039 = vpack.c.b16 %v6923, %v6919
      %v7040 = vpack.c.b16 %v6928, %v6924
      %v7041 = vpack.c.b16 %v6929, %v6925
      %v7042 = vpack.c.b16 %v6930, %v6926
      %v7043 = vpack.c.b16 %v6931, %v6927
      %v7044 = vpack.c.b16 %v6936, %v6932
      %v7045 = vpack.c.b16 %v6937, %v6933
      %v7046 = vpack.c.b16 %v6938, %v6934
      %v7047 = vpack.c.b16 %v6939, %v6935
      %v7048 = vpack.c.b16 %v6944, %v6940
      %v7049 = vpack.c.b16 %v6945, %v6941
      %v7050 = vpack.c.b16 %v6946, %v6942
      %v7051 = vpack.c.b16 %v6947, %v6943
      %v7052 = vpack.c.b16 %v6952, %v6948
      %v7053 = vpack.c.b16 %v6953, %v6949
      %v7054 = vpack.c.b16 %v6954, %v6950
      %v7055 = vpack.c.b16 %v6955, %v6951
      %v7056 = vpack.c.b16 %v6960, %v6956
      %v7057 = vpack.c.b16 %v6961, %v6957
      %v7058 = vpack.c.b16 %v6962, %v6958
      %v7059 = vpack.c.b16 %v6963, %v6959
      %v7060 = vpack.c.b16 %v6968, %v6964
      %v7061 = vpack.c.b16 %v6969, %v6965
      %v7062 = vpack.c.b16 %v6970, %v6966
      %v7063 = vpack.c.b16 %v6971, %v6967
      %v7064 = vpack.c.b16 %v6976, %v6972
      %v7065 = vpack.c.b16 %v6977, %v6973
      %v7066 = vpack.c.b16 %v6978, %v6974
      %v7067 = vpack.c.b16 %v6979, %v6975
      %v7068 = vpack.c.b16 %v6984, %v6980
      %v7069 = vpack.c.b16 %v6985, %v6981
      %v7070 = vpack.c.b16 %v6986, %v6982
      %v7071 = vpack.c.b16 %v6987, %v6983
      %v7072 = vpack.c.b16 %v6992, %v6988
      %v7073 = vpack.c.b16 %v6993, %v6989
      %v7074 = vpack.c.b16 %v6994, %v6990
      %v7075 = vpack.c.b16 %v6995, %v6991
      %v7076 = vpack.c.b16 %v7000, %v6996
      %v7077 = vpack.c.b16 %v7001, %v6997
      %v7078 = vpack.c.b16 %v7002, %v6998
      %v7079 = vpack.c.b16 %v7003, %v6999
      %v7080 = vpack.c.b16 %v7008, %v7004
      %v7081 = vpack.c.b16 %v7009, %v7005
      %v7082 = vpack.c.b16 %v7010, %v7006
      %v7083 = vpack.c.b16 %v7011, %v7007
      %v7084 = vpack.c.b16 %v7016, %v7012
      %v7085 = vpack.c.b16 %v7017, %v7013
      %v7086 = vpack.c.b16 %v7018, %v7014
      %v7087 = vpack.c.b16 %v7019, %v7015
      %v7088 = vpack.c.b16 %v7024, %v7020
      %v7089 = vpack.c.b16 %v7025, %v7021
      %v7090 = vpack.c.b16 %v7026, %v7022
      %v7091 = vpack.c.b16 %v7027, %v7023
      %7156 = vmatprep.subr.bf16.mxu0 %v7029
      %7157 = vmatpush1.bf16.msra.mxu0 %v7028
      %7158 = vmatprep.subr.bf16.mxu0 %v7033
      %7159 = vmatpush1.bf16.msra.mxu0 %v7032
      %7160 = vmatprep.subr.bf16.mxu0 %v7037
      %7161 = vmatpush1.bf16.msra.mxu0 %v7036
      %7162 = vmatprep.subr.bf16.mxu0 %v7041
      %7163 = vmatpush1.bf16.msra.mxu0 %v7040
      %7164 = vmatprep.subr.bf16.mxu0 %v7045
      %7165 = vmatpush1.bf16.msra.mxu0 %v7044
      %7166 = vmatprep.subr.bf16.mxu0 %v7049
      %7167 = vmatpush1.bf16.msra.mxu0 %v7048
      %7168 = vmatprep.subr.bf16.mxu0 %v7053
      %7169 = vmatpush1.bf16.msra.mxu0 %v7052
      %7170 = vmatprep.subr.bf16.mxu0 %v7057
      %7171 = vmatpush1.bf16.msra.mxu0 %v7056
      %7172 = vmatprep.subr.bf16.mxu0 %v7061
      %7173 = vmatpush1.bf16.msra.mxu0 %v7060
      %7174 = vmatprep.subr.bf16.mxu0 %v7065
      %7175 = vmatpush1.bf16.msra.mxu0 %v7064
      %7176 = vmatprep.subr.bf16.mxu0 %v7069
      %7177 = vmatpush1.bf16.msra.mxu0 %v7068
      %7178 = vmatprep.subr.bf16.mxu0 %v7073
      %7179 = vmatpush1.bf16.msra.mxu0 %v7072
      %7180 = vmatprep.subr.bf16.mxu0 %v7077
      %7181 = vmatpush1.bf16.msra.mxu0 %v7076
      %7182 = vmatprep.subr.bf16.mxu0 %v7081
      %7183 = vmatpush1.bf16.msra.mxu0 %v7080
      %7184 = vmatprep.subr.bf16.mxu0 %v7085
      %7185 = vmatpush1.bf16.msra.mxu0 %v7084
      %7186 = vmatprep.subr.bf16.mxu0 %v7089
      %7187 = vmatpush1.bf16.msra.mxu0 %v7088
      %7188 = vmatprep.mubr.bf16.mxu0 %v6833
      %7189 = vmatmul.mubr.bf16.gmra.mrb[0].mxu0 %v6825
      %v7190 = vpop.f32.mrb[0].mxu0
      %v7191 = vadd.f32 0.0, %v7190
      %v7192 = vpop.f32.mrb[0].mxu0
      %v7193 = vadd.f32 0.0, %v7192
      %v7194 = vpop.f32.mrb[0].mxu0
      %v7195 = vpop.f32.mrb[0].mxu0
      %7196 = vdwg.mxu0
      %7197 = vmatprep.subr.bf16.mxu0 %v7031
      %7198 = vmatpush1.bf16.msra.mxu0 %v7030
      %7199 = vmatprep.subr.bf16.mxu0 %v7035
      %7200 = vmatpush1.bf16.msra.mxu0 %v7034
      %7201 = vmatprep.subr.bf16.mxu0 %v7039
      %7202 = vmatpush1.bf16.msra.mxu0 %v7038
      %7203 = vmatprep.subr.bf16.mxu0 %v7043
      %7204 = vmatpush1.bf16.msra.mxu0 %v7042
      %7205 = vmatprep.subr.bf16.mxu0 %v7047
      %7206 = vmatpush1.bf16.msra.mxu0 %v7046
      %7207 = vmatprep.subr.bf16.mxu0 %v7051
      %7208 = vmatpush1.bf16.msra.mxu0 %v7050
      %7209 = vmatprep.subr.bf16.mxu0 %v7055
      %7210 = vmatpush1.bf16.msra.mxu0 %v7054
      %7211 = vmatprep.subr.bf16.mxu0 %v7059
      %7212 = vmatpush1.bf16.msra.mxu0 %v7058
      %7213 = vmatprep.subr.bf16.mxu0 %v7063
      %7214 = vmatpush1.bf16.msra.mxu0 %v7062
      %7215 = vmatprep.subr.bf16.mxu0 %v7067
      %7216 = vmatpush1.bf16.msra.mxu0 %v7066
      %7217 = vmatprep.subr.bf16.mxu0 %v7071
      %7218 = vmatpush1.bf16.msra.mxu0 %v7070
      %7219 = vmatprep.subr.bf16.mxu0 %v7075
      %7220 = vmatpush1.bf16.msra.mxu0 %v7074
      %7221 = vmatprep.subr.bf16.mxu0 %v7079
      %7222 = vmatpush1.bf16.msra.mxu0 %v7078
      %7223 = vmatprep.subr.bf16.mxu0 %v7083
      %7224 = vmatpush1.bf16.msra.mxu0 %v7082
      %7225 = vmatprep.subr.bf16.mxu0 %v7087
      %7226 = vmatpush1.bf16.msra.mxu0 %v7086
      %7227 = vmatprep.subr.bf16.mxu0 %v7091
      %7228 = vmatpush1.bf16.msra.mxu0 %v7090
      %7229 = vmatprep.mubr.bf16.mxu0 %v6833
      %7230 = vmatmul.mubr.bf16.gmra.mrb[0].mxu0 %v6825
      %v7231 = vpop.f32.mrb[0].mxu0
      %v7232 = vadd.f32 0.0, %v7231
      %v7233 = vpop.f32.mrb[0].mxu0
      %v7234 = vadd.f32 0.0, %v7233
      %v7235 = vpop.f32.mrb[0].mxu0
      %v7236 = vpop.f32.mrb[0].mxu0
      %7237 = vdwg.mxu0
      %v7238 = vadd.f32 %v6749, %v7191
      %v7239 = vadd.f32 %v6750, %v7193
      %v7240 = vadd.f32 %v6751, %v7232
      %v7241 = vadd.f32 %v6752, %v7234
      %s7242 = scalar_lea.vmem %s8, 2560
      %v7243 = vld [vmem:[%s7242] sm:$0xff]
      %v7244 = vld [vmem:[%s7242 + $0x8] sm:$0xff]
      %v7245 = vld [vmem:[%s7242 + $0x10] sm:$0xff]
      %v7246 = vld [vmem:[%s7242 + $0x18] sm:$0xff]
      %v7247 = vld [vmem:[%s7242 + $0x20] sm:$0xff]
      %v7248 = vld [vmem:[%s7242 + $0x28] sm:$0xff]
      %v7249 = vld [vmem:[%s7242 + $0x30] sm:$0xff]
      %v7250 = vld [vmem:[%s7242 + $0x38] sm:$0xff]
      %v7251 = vld [vmem:[%s7242 + $0x40] sm:$0xff]
      %v7252 = vld [vmem:[%s7242 + $0x48] sm:$0xff]
      %v7253 = vld [vmem:[%s7242 + $0x50] sm:$0xff]
      %v7254 = vld [vmem:[%s7242 + $0x58] sm:$0xff]
      %v7255 = vld [vmem:[%s7242 + $0x60] sm:$0xff]
      %v7256 = vld [vmem:[%s7242 + $0x68] sm:$0xff]
      %v7257 = vld [vmem:[%s7242 + $0x70] sm:$0xff]
      %v7258 = vld [vmem:[%s7242 + $0x78] sm:$0xff]
      %v7259 = vld [vmem:[%s7242 + $0x80] sm:$0xff]
      %v7260 = vld [vmem:[%s7242 + $0x88] sm:$0xff]
      %v7261 = vld [vmem:[%s7242 + $0x90] sm:$0xff]
      %v7262 = vld [vmem:[%s7242 + $0x98] sm:$0xff]
      %v7263 = vld [vmem:[%s7242 + $0xa0] sm:$0xff]
      %v7264 = vld [vmem:[%s7242 + $0xa8] sm:$0xff]
      %v7265 = vld [vmem:[%s7242 + $0xb0] sm:$0xff]
      %v7266 = vld [vmem:[%s7242 + $0xb8] sm:$0xff]
      %v7267 = vld [vmem:[%s7242 + $0xc0] sm:$0xff]
      %v7268 = vld [vmem:[%s7242 + $0xc8] sm:$0xff]
      %v7269 = vld [vmem:[%s7242 + $0xd0] sm:$0xff]
      %v7270 = vld [vmem:[%s7242 + $0xd8] sm:$0xff]
      %v7271 = vld [vmem:[%s7242 + $0xe0] sm:$0xff]
      %v7272 = vld [vmem:[%s7242 + $0xe8] sm:$0xff]
      %v7273 = vld [vmem:[%s7242 + $0xf0] sm:$0xff]
      %v7274 = vld [vmem:[%s7242 + $0xf8] sm:$0xff]
      %v7275 = vld [vmem:[%s7242 + $0x100] sm:$0xff]
      %v7276 = vld [vmem:[%s7242 + $0x108] sm:$0xff]
      %v7277 = vld [vmem:[%s7242 + $0x110] sm:$0xff]
      %v7278 = vld [vmem:[%s7242 + $0x118] sm:$0xff]
      %v7279 = vld [vmem:[%s7242 + $0x120] sm:$0xff]
      %v7280 = vld [vmem:[%s7242 + $0x128] sm:$0xff]
      %v7281 = vld [vmem:[%s7242 + $0x130] sm:$0xff]
      %v7282 = vld [vmem:[%s7242 + $0x138] sm:$0xff]
      %v7283 = vld [vmem:[%s7242 + $0x140] sm:$0xff]
      %v7284 = vld [vmem:[%s7242 + $0x148] sm:$0xff]
      %v7285 = vld [vmem:[%s7242 + $0x150] sm:$0xff]
      %v7286 = vld [vmem:[%s7242 + $0x158] sm:$0xff]
      %v7287 = vld [vmem:[%s7242 + $0x160] sm:$0xff]
      %v7288 = vld [vmem:[%s7242 + $0x168] sm:$0xff]
      %v7289 = vld [vmem:[%s7242 + $0x170] sm:$0xff]
      %v7290 = vld [vmem:[%s7242 + $0x178] sm:$0xff]
      %v7291 = vld [vmem:[%s7242 + $0x180] sm:$0xff]
      %v7292 = vld [vmem:[%s7242 + $0x188] sm:$0xff]
      %v7293 = vld [vmem:[%s7242 + $0x190] sm:$0xff]
      %v7294 = vld [vmem:[%s7242 + $0x198] sm:$0xff]
      %v7295 = vld [vmem:[%s7242 + $0x1a0] sm:$0xff]
      %v7296 = vld [vmem:[%s7242 + $0x1a8] sm:$0xff]
      %v7297 = vld [vmem:[%s7242 + $0x1b0] sm:$0xff]
      %v7298 = vld [vmem:[%s7242 + $0x1b8] sm:$0xff]
      %v7299 = vld [vmem:[%s7242 + $0x1c0] sm:$0xff]
      %v7300 = vld [vmem:[%s7242 + $0x1c8] sm:$0xff]
      %v7301 = vld [vmem:[%s7242 + $0x1d0] sm:$0xff]
      %v7302 = vld [vmem:[%s7242 + $0x1d8] sm:$0xff]
      %v7303 = vld [vmem:[%s7242 + $0x1e0] sm:$0xff]
      %v7304 = vld [vmem:[%s7242 + $0x1e8] sm:$0xff]
      %v7305 = vld [vmem:[%s7242 + $0x1f0] sm:$0xff]
      %v7306 = vld [vmem:[%s7242 + $0x1f8] sm:$0xff]
      %v7307 = vrot.slane %v6819, 1
      %v7308 = vrot.slane %v6822, 2
      %v7309 = vor.u32 %v7307, %v7308
      %v7310 = vrot.slane %v6827, 1
      %v7311 = vrot.slane %v6830, 2
      %v7312 = vor.u32 %v7310, %v7311
      %v7379 = vunpack.c.l.b16 %v7243
      %v7380 = vunpack.c.h.b16 %v7243
      %v7381 = vunpack.c.l.b16 %v7244
      %v7382 = vunpack.c.h.b16 %v7244
      %v7383 = vunpack.c.l.b16 %v7245
      %v7384 = vunpack.c.h.b16 %v7245
      %v7385 = vunpack.c.l.b16 %v7246
      %v7386 = vunpack.c.h.b16 %v7246
      %v7387 = vunpack.c.l.b16 %v7247
      %v7388 = vunpack.c.h.b16 %v7247
      %v7389 = vunpack.c.l.b16 %v7248
      %v7390 = vunpack.c.h.b16 %v7248
      %v7391 = vunpack.c.l.b16 %v7249
      %v7392 = vunpack.c.h.b16 %v7249
      %v7393 = vunpack.c.l.b16 %v7250
      %v7394 = vunpack.c.h.b16 %v7250
      %v7395 = vunpack.c.l.b16 %v7251
      %v7396 = vunpack.c.h.b16 %v7251
      %v7397 = vunpack.c.l.b16 %v7252
      %v7398 = vunpack.c.h.b16 %v7252
      %v7399 = vunpack.c.l.b16 %v7253
      %v7400 = vunpack.c.h.b16 %v7253
      %v7401 = vunpack.c.l.b16 %v7254
      %v7402 = vunpack.c.h.b16 %v7254
      %v7403 = vunpack.c.l.b16 %v7255
      %v7404 = vunpack.c.h.b16 %v7255
      %v7405 = vunpack.c.l.b16 %v7256
      %v7406 = vunpack.c.h.b16 %v7256
      %v7407 = vunpack.c.l.b16 %v7257
      %v7408 = vunpack.c.h.b16 %v7257
      %v7409 = vunpack.c.l.b16 %v7258
      %v7410 = vunpack.c.h.b16 %v7258
      %v7411 = vunpack.c.l.b16 %v7259
      %v7412 = vunpack.c.h.b16 %v7259
      %v7413 = vunpack.c.l.b16 %v7260
      %v7414 = vunpack.c.h.b16 %v7260
      %v7415 = vunpack.c.l.b16 %v7261
      %v7416 = vunpack.c.h.b16 %v7261
      %v7417 = vunpack.c.l.b16 %v7262
      %v7418 = vunpack.c.h.b16 %v7262
      %v7419 = vunpack.c.l.b16 %v7263
      %v7420 = vunpack.c.h.b16 %v7263
      %v7421 = vunpack.c.l.b16 %v7264
      %v7422 = vunpack.c.h.b16 %v7264
      %v7423 = vunpack.c.l.b16 %v7265
      %v7424 = vunpack.c.h.b16 %v7265
      %v7425 = vunpack.c.l.b16 %v7266
      %v7426 = vunpack.c.h.b16 %v7266
      %v7427 = vunpack.c.l.b16 %v7267
      %v7428 = vunpack.c.h.b16 %v7267
      %v7429 = vunpack.c.l.b16 %v7268
      %v7430 = vunpack.c.h.b16 %v7268
      %v7431 = vunpack.c.l.b16 %v7269
      %v7432 = vunpack.c.h.b16 %v7269
      %v7433 = vunpack.c.l.b16 %v7270
      %v7434 = vunpack.c.h.b16 %v7270
      %v7435 = vunpack.c.l.b16 %v7271
      %v7436 = vunpack.c.h.b16 %v7271
      %v7437 = vunpack.c.l.b16 %v7272
      %v7438 = vunpack.c.h.b16 %v7272
      %v7439 = vunpack.c.l.b16 %v7273
      %v7440 = vunpack.c.h.b16 %v7273
      %v7441 = vunpack.c.l.b16 %v7274
      %v7442 = vunpack.c.h.b16 %v7274
      %v7443 = vunpack.c.l.b16 %v7275
      %v7444 = vunpack.c.h.b16 %v7275
      %v7445 = vunpack.c.l.b16 %v7276
      %v7446 = vunpack.c.h.b16 %v7276
      %v7447 = vunpack.c.l.b16 %v7277
      %v7448 = vunpack.c.h.b16 %v7277
      %v7449 = vunpack.c.l.b16 %v7278
      %v7450 = vunpack.c.h.b16 %v7278
      %v7451 = vunpack.c.l.b16 %v7279
      %v7452 = vunpack.c.h.b16 %v7279
      %v7453 = vunpack.c.l.b16 %v7280
      %v7454 = vunpack.c.h.b16 %v7280
      %v7455 = vunpack.c.l.b16 %v7281
      %v7456 = vunpack.c.h.b16 %v7281
      %v7457 = vunpack.c.l.b16 %v7282
      %v7458 = vunpack.c.h.b16 %v7282
      %v7459 = vunpack.c.l.b16 %v7283
      %v7460 = vunpack.c.h.b16 %v7283
      %v7461 = vunpack.c.l.b16 %v7284
      %v7462 = vunpack.c.h.b16 %v7284
      %v7463 = vunpack.c.l.b16 %v7285
      %v7464 = vunpack.c.h.b16 %v7285
      %v7465 = vunpack.c.l.b16 %v7286
      %v7466 = vunpack.c.h.b16 %v7286
      %v7467 = vunpack.c.l.b16 %v7287
      %v7468 = vunpack.c.h.b16 %v7287
      %v7469 = vunpack.c.l.b16 %v7288
      %v7470 = vunpack.c.h.b16 %v7288
      %v7471 = vunpack.c.l.b16 %v7289
      %v7472 = vunpack.c.h.b16 %v7289
      %v7473 = vunpack.c.l.b16 %v7290
      %v7474 = vunpack.c.h.b16 %v7290
      %v7475 = vunpack.c.l.b16 %v7291
      %v7476 = vunpack.c.h.b16 %v7291
      %v7477 = vunpack.c.l.b16 %v7292
      %v7478 = vunpack.c.h.b16 %v7292
      %v7479 = vunpack.c.l.b16 %v7293
      %v7480 = vunpack.c.h.b16 %v7293
      %v7481 = vunpack.c.l.b16 %v7294
      %v7482 = vunpack.c.h.b16 %v7294
      %v7483 = vunpack.c.l.b16 %v7295
      %v7484 = vunpack.c.h.b16 %v7295
      %v7485 = vunpack.c.l.b16 %v7296
      %v7486 = vunpack.c.h.b16 %v7296
      %v7487 = vunpack.c.l.b16 %v7297
      %v7488 = vunpack.c.h.b16 %v7297
      %v7489 = vunpack.c.l.b16 %v7298
      %v7490 = vunpack.c.h.b16 %v7298
      %v7491 = vunpack.c.l.b16 %v7299
      %v7492 = vunpack.c.h.b16 %v7299
      %v7493 = vunpack.c.l.b16 %v7300
      %v7494 = vunpack.c.h.b16 %v7300
      %v7495 = vunpack.c.l.b16 %v7301
      %v7496 = vunpack.c.h.b16 %v7301
      %v7497 = vunpack.c.l.b16 %v7302
      %v7498 = vunpack.c.h.b16 %v7302
      %v7499 = vunpack.c.l.b16 %v7303
      %v7500 = vunpack.c.h.b16 %v7303
      %v7501 = vunpack.c.l.b16 %v7304
      %v7502 = vunpack.c.h.b16 %v7304
      %v7503 = vunpack.c.l.b16 %v7305
      %v7504 = vunpack.c.h.b16 %v7305
      %v7505 = vunpack.c.l.b16 %v7306
      %v7506 = vunpack.c.h.b16 %v7306
      %v7507 = vpack.c.b16 %v7383, %v7379
      %v7508 = vpack.c.b16 %v7384, %v7380
      %v7509 = vpack.c.b16 %v7385, %v7381
      %v7510 = vpack.c.b16 %v7386, %v7382
      %v7511 = vpack.c.b16 %v7391, %v7387
      %v7512 = vpack.c.b16 %v7392, %v7388
      %v7513 = vpack.c.b16 %v7393, %v7389
      %v7514 = vpack.c.b16 %v7394, %v7390
      %v7515 = vpack.c.b16 %v7399, %v7395
      %v7516 = vpack.c.b16 %v7400, %v7396
      %v7517 = vpack.c.b16 %v7401, %v7397
      %v7518 = vpack.c.b16 %v7402, %v7398
      %v7519 = vpack.c.b16 %v7407, %v7403
      %v7520 = vpack.c.b16 %v7408, %v7404
      %v7521 = vpack.c.b16 %v7409, %v7405
      %v7522 = vpack.c.b16 %v7410, %v7406
      %v7523 = vpack.c.b16 %v7415, %v7411
      %v7524 = vpack.c.b16 %v7416, %v7412
      %v7525 = vpack.c.b16 %v7417, %v7413
      %v7526 = vpack.c.b16 %v7418, %v7414
      %v7527 = vpack.c.b16 %v7423, %v7419
      %v7528 = vpack.c.b16 %v7424, %v7420
      %v7529 = vpack.c.b16 %v7425, %v7421
      %v7530 = vpack.c.b16 %v7426, %v7422
      %v7531 = vpack.c.b16 %v7431, %v7427
      %v7532 = vpack.c.b16 %v7432, %v7428
      %v7533 = vpack.c.b16 %v7433, %v7429
      %v7534 = vpack.c.b16 %v7434, %v7430
      %v7535 = vpack.c.b16 %v7439, %v7435
      %v7536 = vpack.c.b16 %v7440, %v7436
      %v7537 = vpack.c.b16 %v7441, %v7437
      %v7538 = vpack.c.b16 %v7442, %v7438
      %v7539 = vpack.c.b16 %v7447, %v7443
      %v7540 = vpack.c.b16 %v7448, %v7444
      %v7541 = vpack.c.b16 %v7449, %v7445
      %v7542 = vpack.c.b16 %v7450, %v7446
      %v7543 = vpack.c.b16 %v7455, %v7451
      %v7544 = vpack.c.b16 %v7456, %v7452
      %v7545 = vpack.c.b16 %v7457, %v7453
      %v7546 = vpack.c.b16 %v7458, %v7454
      %v7547 = vpack.c.b16 %v7463, %v7459
      %v7548 = vpack.c.b16 %v7464, %v7460
      %v7549 = vpack.c.b16 %v7465, %v7461
      %v7550 = vpack.c.b16 %v7466, %v7462
      %v7551 = vpack.c.b16 %v7471, %v7467
      %v7552 = vpack.c.b16 %v7472, %v7468
      %v7553 = vpack.c.b16 %v7473, %v7469
      %v7554 = vpack.c.b16 %v7474, %v7470
      %v7555 = vpack.c.b16 %v7479, %v7475
      %v7556 = vpack.c.b16 %v7480, %v7476
      %v7557 = vpack.c.b16 %v7481, %v7477
      %v7558 = vpack.c.b16 %v7482, %v7478
      %v7559 = vpack.c.b16 %v7487, %v7483
      %v7560 = vpack.c.b16 %v7488, %v7484
      %v7561 = vpack.c.b16 %v7489, %v7485
      %v7562 = vpack.c.b16 %v7490, %v7486
      %v7563 = vpack.c.b16 %v7495, %v7491
      %v7564 = vpack.c.b16 %v7496, %v7492
      %v7565 = vpack.c.b16 %v7497, %v7493
      %v7566 = vpack.c.b16 %v7498, %v7494
      %v7567 = vpack.c.b16 %v7503, %v7499
      %v7568 = vpack.c.b16 %v7504, %v7500
      %v7569 = vpack.c.b16 %v7505, %v7501
      %v7570 = vpack.c.b16 %v7506, %v7502
      %7635 = vmatprep.subr.bf16.mxu0 %v7508
      %7636 = vmatpush1.bf16.msra.mxu0 %v7507
      %7637 = vmatprep.subr.bf16.mxu0 %v7512
      %7638 = vmatpush1.bf16.msra.mxu0 %v7511
      %7639 = vmatprep.subr.bf16.mxu0 %v7516
      %7640 = vmatpush1.bf16.msra.mxu0 %v7515
      %7641 = vmatprep.subr.bf16.mxu0 %v7520
      %7642 = vmatpush1.bf16.msra.mxu0 %v7519
      %7643 = vmatprep.subr.bf16.mxu0 %v7524
      %7644 = vmatpush1.bf16.msra.mxu0 %v7523
      %7645 = vmatprep.subr.bf16.mxu0 %v7528
      %7646 = vmatpush1.bf16.msra.mxu0 %v7527
      %7647 = vmatprep.subr.bf16.mxu0 %v7532
      %7648 = vmatpush1.bf16.msra.mxu0 %v7531
      %7649 = vmatprep.subr.bf16.mxu0 %v7536
      %7650 = vmatpush1.bf16.msra.mxu0 %v7535
      %7651 = vmatprep.subr.bf16.mxu0 %v7540
      %7652 = vmatpush1.bf16.msra.mxu0 %v7539
      %7653 = vmatprep.subr.bf16.mxu0 %v7544
      %7654 = vmatpush1.bf16.msra.mxu0 %v7543
      %7655 = vmatprep.subr.bf16.mxu0 %v7548
      %7656 = vmatpush1.bf16.msra.mxu0 %v7547
      %7657 = vmatprep.subr.bf16.mxu0 %v7552
      %7658 = vmatpush1.bf16.msra.mxu0 %v7551
      %7659 = vmatprep.subr.bf16.mxu0 %v7556
      %7660 = vmatpush1.bf16.msra.mxu0 %v7555
      %7661 = vmatprep.subr.bf16.mxu0 %v7560
      %7662 = vmatpush1.bf16.msra.mxu0 %v7559
      %7663 = vmatprep.subr.bf16.mxu0 %v7564
      %7664 = vmatpush1.bf16.msra.mxu0 %v7563
      %7665 = vmatprep.subr.bf16.mxu0 %v7568
      %7666 = vmatpush1.bf16.msra.mxu0 %v7567
      %7667 = vmatprep.mubr.bf16.mxu0 %v7312
      %7668 = vmatmul.mubr.bf16.gmra.mrb[0].mxu0 %v7309
      %v7669 = vpop.f32.mrb[0].mxu0
      %v7670 = vadd.f32 0.0, %v7669
      %v7671 = vpop.f32.mrb[0].mxu0
      %v7672 = vadd.f32 0.0, %v7671
      %v7673 = vpop.f32.mrb[0].mxu0
      %v7674 = vpop.f32.mrb[0].mxu0
      %7675 = vdwg.mxu0
      %7676 = vmatprep.subr.bf16.mxu0 %v7510
      %7677 = vmatpush1.bf16.msra.mxu0 %v7509
      %7678 = vmatprep.subr.bf16.mxu0 %v7514
      %7679 = vmatpush1.bf16.msra.mxu0 %v7513
      %7680 = vmatprep.subr.bf16.mxu0 %v7518
      %7681 = vmatpush1.bf16.msra.mxu0 %v7517
      %7682 = vmatprep.subr.bf16.mxu0 %v7522
      %7683 = vmatpush1.bf16.msra.mxu0 %v7521
      %7684 = vmatprep.subr.bf16.mxu0 %v7526
      %7685 = vmatpush1.bf16.msra.mxu0 %v7525
      %7686 = vmatprep.subr.bf16.mxu0 %v7530
      %7687 = vmatpush1.bf16.msra.mxu0 %v7529
      %7688 = vmatprep.subr.bf16.mxu0 %v7534
      %7689 = vmatpush1.bf16.msra.mxu0 %v7533
      %7690 = vmatprep.subr.bf16.mxu0 %v7538
      %7691 = vmatpush1.bf16.msra.mxu0 %v7537
      %7692 = vmatprep.subr.bf16.mxu0 %v7542
      %7693 = vmatpush1.bf16.msra.mxu0 %v7541
      %7694 = vmatprep.subr.bf16.mxu0 %v7546
      %7695 = vmatpush1.bf16.msra.mxu0 %v7545
      %7696 = vmatprep.subr.bf16.mxu0 %v7550
      %7697 = vmatpush1.bf16.msra.mxu0 %v7549
      %7698 = vmatprep.subr.bf16.mxu0 %v7554
      %7699 = vmatpush1.bf16.msra.mxu0 %v7553
      %7700 = vmatprep.subr.bf16.mxu0 %v7558
      %7701 = vmatpush1.bf16.msra.mxu0 %v7557
      %7702 = vmatprep.subr.bf16.mxu0 %v7562
      %7703 = vmatpush1.bf16.msra.mxu0 %v7561
      %7704 = vmatprep.subr.bf16.mxu0 %v7566
      %7705 = vmatpush1.bf16.msra.mxu0 %v7565
      %7706 = vmatprep.subr.bf16.mxu0 %v7570
      %7707 = vmatpush1.bf16.msra.mxu0 %v7569
      %7708 = vmatprep.mubr.bf16.mxu0 %v7312
      %7709 = vmatmul.mubr.bf16.gmra.mrb[0].mxu0 %v7309
      %v7710 = vpop.f32.mrb[0].mxu0
      %v7711 = vadd.f32 0.0, %v7710
      %v7712 = vpop.f32.mrb[0].mxu0
      %v7713 = vadd.f32 0.0, %v7712
      %v7714 = vpop.f32.mrb[0].mxu0
      %v7715 = vpop.f32.mrb[0].mxu0
      %7716 = vdwg.mxu0
      %v7717 = vadd.f32 %v7238, %v7670
      %v7718 = vadd.f32 %v7239, %v7672
      %v7719 = vadd.f32 %v7240, %v7711
      %v7720 = vadd.f32 %v7241, %v7713
      %s7721 = scalar_lea.vmem %s8, 3072
      %v7722 = vld [vmem:[%s7721] sm:$0xff]
      %v7723 = vld [vmem:[%s7721 + $0x8] sm:$0xff]
      %v7724 = vld [vmem:[%s7721 + $0x10] sm:$0xff]
      %v7725 = vld [vmem:[%s7721 + $0x18] sm:$0xff]
      %v7726 = vld [vmem:[%s7721 + $0x20] sm:$0xff]
      %v7727 = vld [vmem:[%s7721 + $0x28] sm:$0xff]
      %v7728 = vld [vmem:[%s7721 + $0x30] sm:$0xff]
      %v7729 = vld [vmem:[%s7721 + $0x38] sm:$0xff]
      %v7730 = vld [vmem:[%s7721 + $0x40] sm:$0xff]
      %v7731 = vld [vmem:[%s7721 + $0x48] sm:$0xff]
      %v7732 = vld [vmem:[%s7721 + $0x50] sm:$0xff]
      %v7733 = vld [vmem:[%s7721 + $0x58] sm:$0xff]
      %v7734 = vld [vmem:[%s7721 + $0x60] sm:$0xff]
      %v7735 = vld [vmem:[%s7721 + $0x68] sm:$0xff]
      %v7736 = vld [vmem:[%s7721 + $0x70] sm:$0xff]
      %v7737 = vld [vmem:[%s7721 + $0x78] sm:$0xff]
      %v7738 = vld [vmem:[%s7721 + $0x80] sm:$0xff]
      %v7739 = vld [vmem:[%s7721 + $0x88] sm:$0xff]
      %v7740 = vld [vmem:[%s7721 + $0x90] sm:$0xff]
      %v7741 = vld [vmem:[%s7721 + $0x98] sm:$0xff]
      %v7742 = vld [vmem:[%s7721 + $0xa0] sm:$0xff]
      %v7743 = vld [vmem:[%s7721 + $0xa8] sm:$0xff]
      %v7744 = vld [vmem:[%s7721 + $0xb0] sm:$0xff]
      %v7745 = vld [vmem:[%s7721 + $0xb8] sm:$0xff]
      %v7746 = vld [vmem:[%s7721 + $0xc0] sm:$0xff]
      %v7747 = vld [vmem:[%s7721 + $0xc8] sm:$0xff]
      %v7748 = vld [vmem:[%s7721 + $0xd0] sm:$0xff]
      %v7749 = vld [vmem:[%s7721 + $0xd8] sm:$0xff]
      %v7750 = vld [vmem:[%s7721 + $0xe0] sm:$0xff]
      %v7751 = vld [vmem:[%s7721 + $0xe8] sm:$0xff]
      %v7752 = vld [vmem:[%s7721 + $0xf0] sm:$0xff]
      %v7753 = vld [vmem:[%s7721 + $0xf8] sm:$0xff]
      %v7754 = vld [vmem:[%s7721 + $0x100] sm:$0xff]
      %v7755 = vld [vmem:[%s7721 + $0x108] sm:$0xff]
      %v7756 = vld [vmem:[%s7721 + $0x110] sm:$0xff]
      %v7757 = vld [vmem:[%s7721 + $0x118] sm:$0xff]
      %v7758 = vld [vmem:[%s7721 + $0x120] sm:$0xff]
      %v7759 = vld [vmem:[%s7721 + $0x128] sm:$0xff]
      %v7760 = vld [vmem:[%s7721 + $0x130] sm:$0xff]
      %v7761 = vld [vmem:[%s7721 + $0x138] sm:$0xff]
      %v7762 = vld [vmem:[%s7721 + $0x140] sm:$0xff]
      %v7763 = vld [vmem:[%s7721 + $0x148] sm:$0xff]
      %v7764 = vld [vmem:[%s7721 + $0x150] sm:$0xff]
      %v7765 = vld [vmem:[%s7721 + $0x158] sm:$0xff]
      %v7766 = vld [vmem:[%s7721 + $0x160] sm:$0xff]
      %v7767 = vld [vmem:[%s7721 + $0x168] sm:$0xff]
      %v7768 = vld [vmem:[%s7721 + $0x170] sm:$0xff]
      %v7769 = vld [vmem:[%s7721 + $0x178] sm:$0xff]
      %v7770 = vld [vmem:[%s7721 + $0x180] sm:$0xff]
      %v7771 = vld [vmem:[%s7721 + $0x188] sm:$0xff]
      %v7772 = vld [vmem:[%s7721 + $0x190] sm:$0xff]
      %v7773 = vld [vmem:[%s7721 + $0x198] sm:$0xff]
      %v7774 = vld [vmem:[%s7721 + $0x1a0] sm:$0xff]
      %v7775 = vld [vmem:[%s7721 + $0x1a8] sm:$0xff]
      %v7776 = vld [vmem:[%s7721 + $0x1b0] sm:$0xff]
      %v7777 = vld [vmem:[%s7721 + $0x1b8] sm:$0xff]
      %v7778 = vld [vmem:[%s7721 + $0x1c0] sm:$0xff]
      %v7779 = vld [vmem:[%s7721 + $0x1c8] sm:$0xff]
      %v7780 = vld [vmem:[%s7721 + $0x1d0] sm:$0xff]
      %v7781 = vld [vmem:[%s7721 + $0x1d8] sm:$0xff]
      %v7782 = vld [vmem:[%s7721 + $0x1e0] sm:$0xff]
      %v7783 = vld [vmem:[%s7721 + $0x1e8] sm:$0xff]
      %v7784 = vld [vmem:[%s7721 + $0x1f0] sm:$0xff]
      %v7785 = vld [vmem:[%s7721 + $0x1f8] sm:$0xff]
      %v7786 = vrot.slane %v4978, 1
      %v7787 = vrot.slane %v4981, 2
      %v7788 = vor.u32 %v7786, %v7787
      %v7789 = vrot.slane %v4986, 1
      %v7790 = vrot.slane %v4989, 2
      %v7791 = vor.u32 %v7789, %v7790
      %v7858 = vunpack.c.l.b16 %v7722
      %v7859 = vunpack.c.h.b16 %v7722
      %v7860 = vunpack.c.l.b16 %v7723
      %v7861 = vunpack.c.h.b16 %v7723
      %v7862 = vunpack.c.l.b16 %v7724
      %v7863 = vunpack.c.h.b16 %v7724
      %v7864 = vunpack.c.l.b16 %v7725
      %v7865 = vunpack.c.h.b16 %v7725
      %v7866 = vunpack.c.l.b16 %v7726
      %v7867 = vunpack.c.h.b16 %v7726
      %v7868 = vunpack.c.l.b16 %v7727
      %v7869 = vunpack.c.h.b16 %v7727
      %v7870 = vunpack.c.l.b16 %v7728
      %v7871 = vunpack.c.h.b16 %v7728
      %v7872 = vunpack.c.l.b16 %v7729
      %v7873 = vunpack.c.h.b16 %v7729
      %v7874 = vunpack.c.l.b16 %v7730
      %v7875 = vunpack.c.h.b16 %v7730
      %v7876 = vunpack.c.l.b16 %v7731
      %v7877 = vunpack.c.h.b16 %v7731
      %v7878 = vunpack.c.l.b16 %v7732
      %v7879 = vunpack.c.h.b16 %v7732
      %v7880 = vunpack.c.l.b16 %v7733
      %v7881 = vunpack.c.h.b16 %v7733
      %v7882 = vunpack.c.l.b16 %v7734
      %v7883 = vunpack.c.h.b16 %v7734
      %v7884 = vunpack.c.l.b16 %v7735
      %v7885 = vunpack.c.h.b16 %v7735
      %v7886 = vunpack.c.l.b16 %v7736
      %v7887 = vunpack.c.h.b16 %v7736
      %v7888 = vunpack.c.l.b16 %v7737
      %v7889 = vunpack.c.h.b16 %v7737
      %v7890 = vunpack.c.l.b16 %v7738
      %v7891 = vunpack.c.h.b16 %v7738
      %v7892 = vunpack.c.l.b16 %v7739
      %v7893 = vunpack.c.h.b16 %v7739
      %v7894 = vunpack.c.l.b16 %v7740
      %v7895 = vunpack.c.h.b16 %v7740
      %v7896 = vunpack.c.l.b16 %v7741
      %v7897 = vunpack.c.h.b16 %v7741
      %v7898 = vunpack.c.l.b16 %v7742
      %v7899 = vunpack.c.h.b16 %v7742
      %v7900 = vunpack.c.l.b16 %v7743
      %v7901 = vunpack.c.h.b16 %v7743
      %v7902 = vunpack.c.l.b16 %v7744
      %v7903 = vunpack.c.h.b16 %v7744
      %v7904 = vunpack.c.l.b16 %v7745
      %v7905 = vunpack.c.h.b16 %v7745
      %v7906 = vunpack.c.l.b16 %v7746
      %v7907 = vunpack.c.h.b16 %v7746
      %v7908 = vunpack.c.l.b16 %v7747
      %v7909 = vunpack.c.h.b16 %v7747
      %v7910 = vunpack.c.l.b16 %v7748
      %v7911 = vunpack.c.h.b16 %v7748
      %v7912 = vunpack.c.l.b16 %v7749
      %v7913 = vunpack.c.h.b16 %v7749
      %v7914 = vunpack.c.l.b16 %v7750
      %v7915 = vunpack.c.h.b16 %v7750
      %v7916 = vunpack.c.l.b16 %v7751
      %v7917 = vunpack.c.h.b16 %v7751
      %v7918 = vunpack.c.l.b16 %v7752
      %v7919 = vunpack.c.h.b16 %v7752
      %v7920 = vunpack.c.l.b16 %v7753
      %v7921 = vunpack.c.h.b16 %v7753
      %v7922 = vunpack.c.l.b16 %v7754
      %v7923 = vunpack.c.h.b16 %v7754
      %v7924 = vunpack.c.l.b16 %v7755
      %v7925 = vunpack.c.h.b16 %v7755
      %v7926 = vunpack.c.l.b16 %v7756
      %v7927 = vunpack.c.h.b16 %v7756
      %v7928 = vunpack.c.l.b16 %v7757
      %v7929 = vunpack.c.h.b16 %v7757
      %v7930 = vunpack.c.l.b16 %v7758
      %v7931 = vunpack.c.h.b16 %v7758
      %v7932 = vunpack.c.l.b16 %v7759
      %v7933 = vunpack.c.h.b16 %v7759
      %v7934 = vunpack.c.l.b16 %v7760
      %v7935 = vunpack.c.h.b16 %v7760
      %v7936 = vunpack.c.l.b16 %v7761
      %v7937 = vunpack.c.h.b16 %v7761
      %v7938 = vunpack.c.l.b16 %v7762
      %v7939 = vunpack.c.h.b16 %v7762
      %v7940 = vunpack.c.l.b16 %v7763
      %v7941 = vunpack.c.h.b16 %v7763
      %v7942 = vunpack.c.l.b16 %v7764
      %v7943 = vunpack.c.h.b16 %v7764
      %v7944 = vunpack.c.l.b16 %v7765
      %v7945 = vunpack.c.h.b16 %v7765
      %v7946 = vunpack.c.l.b16 %v7766
      %v7947 = vunpack.c.h.b16 %v7766
      %v7948 = vunpack.c.l.b16 %v7767
      %v7949 = vunpack.c.h.b16 %v7767
      %v7950 = vunpack.c.l.b16 %v7768
      %v7951 = vunpack.c.h.b16 %v7768
      %v7952 = vunpack.c.l.b16 %v7769
      %v7953 = vunpack.c.h.b16 %v7769
      %v7954 = vunpack.c.l.b16 %v7770
      %v7955 = vunpack.c.h.b16 %v7770
      %v7956 = vunpack.c.l.b16 %v7771
      %v7957 = vunpack.c.h.b16 %v7771
      %v7958 = vunpack.c.l.b16 %v7772
      %v7959 = vunpack.c.h.b16 %v7772
      %v7960 = vunpack.c.l.b16 %v7773
      %v7961 = vunpack.c.h.b16 %v7773
      %v7962 = vunpack.c.l.b16 %v7774
      %v7963 = vunpack.c.h.b16 %v7774
      %v7964 = vunpack.c.l.b16 %v7775
      %v7965 = vunpack.c.h.b16 %v7775
      %v7966 = vunpack.c.l.b16 %v7776
      %v7967 = vunpack.c.h.b16 %v7776
      %v7968 = vunpack.c.l.b16 %v7777
      %v7969 = vunpack.c.h.b16 %v7777
      %v7970 = vunpack.c.l.b16 %v7778
      %v7971 = vunpack.c.h.b16 %v7778
      %v7972 = vunpack.c.l.b16 %v7779
      %v7973 = vunpack.c.h.b16 %v7779
      %v7974 = vunpack.c.l.b16 %v7780
      %v7975 = vunpack.c.h.b16 %v7780
      %v7976 = vunpack.c.l.b16 %v7781
      %v7977 = vunpack.c.h.b16 %v7781
      %v7978 = vunpack.c.l.b16 %v7782
      %v7979 = vunpack.c.h.b16 %v7782
      %v7980 = vunpack.c.l.b16 %v7783
      %v7981 = vunpack.c.h.b16 %v7783
      %v7982 = vunpack.c.l.b16 %v7784
      %v7983 = vunpack.c.h.b16 %v7784
      %v7984 = vunpack.c.l.b16 %v7785
      %v7985 = vunpack.c.h.b16 %v7785
      %v7986 = vpack.c.b16 %v7862, %v7858
      %v7987 = vpack.c.b16 %v7863, %v7859
      %v7988 = vpack.c.b16 %v7864, %v7860
      %v7989 = vpack.c.b16 %v7865, %v7861
      %v7990 = vpack.c.b16 %v7870, %v7866
      %v7991 = vpack.c.b16 %v7871, %v7867
      %v7992 = vpack.c.b16 %v7872, %v7868
      %v7993 = vpack.c.b16 %v7873, %v7869
      %v7994 = vpack.c.b16 %v7878, %v7874
      %v7995 = vpack.c.b16 %v7879, %v7875
      %v7996 = vpack.c.b16 %v7880, %v7876
      %v7997 = vpack.c.b16 %v7881, %v7877
      %v7998 = vpack.c.b16 %v7886, %v7882
      %v7999 = vpack.c.b16 %v7887, %v7883
      %v8000 = vpack.c.b16 %v7888, %v7884
      %v8001 = vpack.c.b16 %v7889, %v7885
      %v8002 = vpack.c.b16 %v7894, %v7890
      %v8003 = vpack.c.b16 %v7895, %v7891
      %v8004 = vpack.c.b16 %v7896, %v7892
      %v8005 = vpack.c.b16 %v7897, %v7893
      %v8006 = vpack.c.b16 %v7902, %v7898
      %v8007 = vpack.c.b16 %v7903, %v7899
      %v8008 = vpack.c.b16 %v7904, %v7900
      %v8009 = vpack.c.b16 %v7905, %v7901
      %v8010 = vpack.c.b16 %v7910, %v7906
      %v8011 = vpack.c.b16 %v7911, %v7907
      %v8012 = vpack.c.b16 %v7912, %v7908
      %v8013 = vpack.c.b16 %v7913, %v7909
      %v8014 = vpack.c.b16 %v7918, %v7914
      %v8015 = vpack.c.b16 %v7919, %v7915
      %v8016 = vpack.c.b16 %v7920, %v7916
      %v8017 = vpack.c.b16 %v7921, %v7917
      %v8018 = vpack.c.b16 %v7926, %v7922
      %v8019 = vpack.c.b16 %v7927, %v7923
      %v8020 = vpack.c.b16 %v7928, %v7924
      %v8021 = vpack.c.b16 %v7929, %v7925
      %v8022 = vpack.c.b16 %v7934, %v7930
      %v8023 = vpack.c.b16 %v7935, %v7931
      %v8024 = vpack.c.b16 %v7936, %v7932
      %v8025 = vpack.c.b16 %v7937, %v7933
      %v8026 = vpack.c.b16 %v7942, %v7938
      %v8027 = vpack.c.b16 %v7943, %v7939
      %v8028 = vpack.c.b16 %v7944, %v7940
      %v8029 = vpack.c.b16 %v7945, %v7941
      %v8030 = vpack.c.b16 %v7950, %v7946
      %v8031 = vpack.c.b16 %v7951, %v7947
      %v8032 = vpack.c.b16 %v7952, %v7948
      %v8033 = vpack.c.b16 %v7953, %v7949
      %v8034 = vpack.c.b16 %v7958, %v7954
      %v8035 = vpack.c.b16 %v7959, %v7955
      %v8036 = vpack.c.b16 %v7960, %v7956
      %v8037 = vpack.c.b16 %v7961, %v7957
      %v8038 = vpack.c.b16 %v7966, %v7962
      %v8039 = vpack.c.b16 %v7967, %v7963
      %v8040 = vpack.c.b16 %v7968, %v7964
      %v8041 = vpack.c.b16 %v7969, %v7965
      %v8042 = vpack.c.b16 %v7974, %v7970
      %v8043 = vpack.c.b16 %v7975, %v7971
      %v8044 = vpack.c.b16 %v7976, %v7972
      %v8045 = vpack.c.b16 %v7977, %v7973
      %v8046 = vpack.c.b16 %v7982, %v7978
      %v8047 = vpack.c.b16 %v7983, %v7979
      %v8048 = vpack.c.b16 %v7984, %v7980
      %v8049 = vpack.c.b16 %v7985, %v7981
      %8114 = vmatprep.subr.bf16.mxu0 %v7987
      %8115 = vmatpush1.bf16.msra.mxu0 %v7986
      %8116 = vmatprep.subr.bf16.mxu0 %v7991
      %8117 = vmatpush1.bf16.msra.mxu0 %v7990
      %8118 = vmatprep.subr.bf16.mxu0 %v7995
      %8119 = vmatpush1.bf16.msra.mxu0 %v7994
      %8120 = vmatprep.subr.bf16.mxu0 %v7999
      %8121 = vmatpush1.bf16.msra.mxu0 %v7998
      %8122 = vmatprep.subr.bf16.mxu0 %v8003
      %8123 = vmatpush1.bf16.msra.mxu0 %v8002
      %8124 = vmatprep.subr.bf16.mxu0 %v8007
      %8125 = vmatpush1.bf16.msra.mxu0 %v8006
      %8126 = vmatprep.subr.bf16.mxu0 %v8011
      %8127 = vmatpush1.bf16.msra.mxu0 %v8010
      %8128 = vmatprep.subr.bf16.mxu0 %v8015
      %8129 = vmatpush1.bf16.msra.mxu0 %v8014
      %8130 = vmatprep.subr.bf16.mxu0 %v8019
      %8131 = vmatpush1.bf16.msra.mxu0 %v8018
      %8132 = vmatprep.subr.bf16.mxu0 %v8023
      %8133 = vmatpush1.bf16.msra.mxu0 %v8022
      %8134 = vmatprep.subr.bf16.mxu0 %v8027
      %8135 = vmatpush1.bf16.msra.mxu0 %v8026
      %8136 = vmatprep.subr.bf16.mxu0 %v8031
      %8137 = vmatpush1.bf16.msra.mxu0 %v8030
      %8138 = vmatprep.subr.bf16.mxu0 %v8035
      %8139 = vmatpush1.bf16.msra.mxu0 %v8034
      %8140 = vmatprep.subr.bf16.mxu0 %v8039
      %8141 = vmatpush1.bf16.msra.mxu0 %v8038
      %8142 = vmatprep.subr.bf16.mxu0 %v8043
      %8143 = vmatpush1.bf16.msra.mxu0 %v8042
      %8144 = vmatprep.subr.bf16.mxu0 %v8047
      %8145 = vmatpush1.bf16.msra.mxu0 %v8046
      %8146 = vmatprep.mubr.bf16.mxu0 %v7791
      %8147 = vmatmul.mubr.bf16.gmra.mrb[0].mxu0 %v7788
      %v8148 = vpop.f32.mrb[0].mxu0
      %v8149 = vadd.f32 0.0, %v8148
      %v8150 = vpop.f32.mrb[0].mxu0
      %v8151 = vadd.f32 0.0, %v8150
      %v8152 = vpop.f32.mrb[0].mxu0
      %v8153 = vpop.f32.mrb[0].mxu0
      %8154 = vdwg.mxu0
      %8155 = vmatprep.subr.bf16.mxu0 %v7989
      %8156 = vmatpush1.bf16.msra.mxu0 %v7988
      %8157 = vmatprep.subr.bf16.mxu0 %v7993
      %8158 = vmatpush1.bf16.msra.mxu0 %v7992
      %8159 = vmatprep.subr.bf16.mxu0 %v7997
      %8160 = vmatpush1.bf16.msra.mxu0 %v7996
      %8161 = vmatprep.subr.bf16.mxu0 %v8001
      %8162 = vmatpush1.bf16.msra.mxu0 %v8000
      %8163 = vmatprep.subr.bf16.mxu0 %v8005
      %8164 = vmatpush1.bf16.msra.mxu0 %v8004
      %8165 = vmatprep.subr.bf16.mxu0 %v8009
      %8166 = vmatpush1.bf16.msra.mxu0 %v8008
      %8167 = vmatprep.subr.bf16.mxu0 %v8013
      %8168 = vmatpush1.bf16.msra.mxu0 %v8012
      %8169 = vmatprep.subr.bf16.mxu0 %v8017
      %8170 = vmatpush1.bf16.msra.mxu0 %v8016
      %8171 = vmatprep.subr.bf16.mxu0 %v8021
      %8172 = vmatpush1.bf16.msra.mxu0 %v8020
      %8173 = vmatprep.subr.bf16.mxu0 %v8025
      %8174 = vmatpush1.bf16.msra.mxu0 %v8024
      %8175 = vmatprep.subr.bf16.mxu0 %v8029
      %8176 = vmatpush1.bf16.msra.mxu0 %v8028
      %8177 = vmatprep.subr.bf16.mxu0 %v8033
      %8178 = vmatpush1.bf16.msra.mxu0 %v8032
      %8179 = vmatprep.subr.bf16.mxu0 %v8037
      %8180 = vmatpush1.bf16.msra.mxu0 %v8036
      %8181 = vmatprep.subr.bf16.mxu0 %v8041
      %8182 = vmatpush1.bf16.msra.mxu0 %v8040
      %8183 = vmatprep.subr.bf16.mxu0 %v8045
      %8184 = vmatpush1.bf16.msra.mxu0 %v8044
      %8185 = vmatprep.subr.bf16.mxu0 %v8049
      %8186 = vmatpush1.bf16.msra.mxu0 %v8048
      %8187 = vmatprep.mubr.bf16.mxu0 %v7791
      %8188 = vmatmul.mubr.bf16.gmra.mrb[0].mxu0 %v7788
      %v8189 = vpop.f32.mrb[0].mxu0
      %v8190 = vadd.f32 0.0, %v8189
      %v8191 = vpop.f32.mrb[0].mxu0
      %v8192 = vadd.f32 0.0, %v8191
      %v8193 = vpop.f32.mrb[0].mxu0
      %v8194 = vpop.f32.mrb[0].mxu0
      %8195 = vdwg.mxu0
      %v8196 = vadd.f32 %v7717, %v8149
      %v8197 = vadd.f32 %v7718, %v8151
      %v8198 = vadd.f32 %v7719, %v8190
      %v8199 = vadd.f32 %v7720, %v8192
      %s8200 = scalar_lea.vmem %s8, 3584
      %v8201 = vld [vmem:[%s8200] sm:$0xff]
      %v8202 = vld [vmem:[%s8200 + $0x8] sm:$0xff]
      %v8203 = vld [vmem:[%s8200 + $0x10] sm:$0xff]
      %v8204 = vld [vmem:[%s8200 + $0x18] sm:$0xff]
      %v8205 = vld [vmem:[%s8200 + $0x20] sm:$0xff]
      %v8206 = vld [vmem:[%s8200 + $0x28] sm:$0xff]
      %v8207 = vld [vmem:[%s8200 + $0x30] sm:$0xff]
      %v8208 = vld [vmem:[%s8200 + $0x38] sm:$0xff]
      %v8209 = vld [vmem:[%s8200 + $0x40] sm:$0xff]
      %v8210 = vld [vmem:[%s8200 + $0x48] sm:$0xff]
      %v8211 = vld [vmem:[%s8200 + $0x50] sm:$0xff]
      %v8212 = vld [vmem:[%s8200 + $0x58] sm:$0xff]
      %v8213 = vld [vmem:[%s8200 + $0x60] sm:$0xff]
      %v8214 = vld [vmem:[%s8200 + $0x68] sm:$0xff]
      %v8215 = vld [vmem:[%s8200 + $0x70] sm:$0xff]
      %v8216 = vld [vmem:[%s8200 + $0x78] sm:$0xff]
      %v8217 = vld [vmem:[%s8200 + $0x80] sm:$0xff]
      %v8218 = vld [vmem:[%s8200 + $0x88] sm:$0xff]
      %v8219 = vld [vmem:[%s8200 + $0x90] sm:$0xff]
      %v8220 = vld [vmem:[%s8200 + $0x98] sm:$0xff]
      %v8221 = vld [vmem:[%s8200 + $0xa0] sm:$0xff]
      %v8222 = vld [vmem:[%s8200 + $0xa8] sm:$0xff]
      %v8223 = vld [vmem:[%s8200 + $0xb0] sm:$0xff]
      %v8224 = vld [vmem:[%s8200 + $0xb8] sm:$0xff]
      %v8225 = vld [vmem:[%s8200 + $0xc0] sm:$0xff]
      %v8226 = vld [vmem:[%s8200 + $0xc8] sm:$0xff]
      %v8227 = vld [vmem:[%s8200 + $0xd0] sm:$0xff]
      %v8228 = vld [vmem:[%s8200 + $0xd8] sm:$0xff]
      %v8229 = vld [vmem:[%s8200 + $0xe0] sm:$0xff]
      %v8230 = vld [vmem:[%s8200 + $0xe8] sm:$0xff]
      %v8231 = vld [vmem:[%s8200 + $0xf0] sm:$0xff]
      %v8232 = vld [vmem:[%s8200 + $0xf8] sm:$0xff]
      %v8233 = vld [vmem:[%s8200 + $0x100] sm:$0xff]
      %v8234 = vld [vmem:[%s8200 + $0x108] sm:$0xff]
      %v8235 = vld [vmem:[%s8200 + $0x110] sm:$0xff]
      %v8236 = vld [vmem:[%s8200 + $0x118] sm:$0xff]
      %v8237 = vld [vmem:[%s8200 + $0x120] sm:$0xff]
      %v8238 = vld [vmem:[%s8200 + $0x128] sm:$0xff]
      %v8239 = vld [vmem:[%s8200 + $0x130] sm:$0xff]
      %v8240 = vld [vmem:[%s8200 + $0x138] sm:$0xff]
      %v8241 = vld [vmem:[%s8200 + $0x140] sm:$0xff]
      %v8242 = vld [vmem:[%s8200 + $0x148] sm:$0xff]
      %v8243 = vld [vmem:[%s8200 + $0x150] sm:$0xff]
      %v8244 = vld [vmem:[%s8200 + $0x158] sm:$0xff]
      %v8245 = vld [vmem:[%s8200 + $0x160] sm:$0xff]
      %v8246 = vld [vmem:[%s8200 + $0x168] sm:$0xff]
      %v8247 = vld [vmem:[%s8200 + $0x170] sm:$0xff]
      %v8248 = vld [vmem:[%s8200 + $0x178] sm:$0xff]
      %v8249 = vld [vmem:[%s8200 + $0x180] sm:$0xff]
      %v8250 = vld [vmem:[%s8200 + $0x188] sm:$0xff]
      %v8251 = vld [vmem:[%s8200 + $0x190] sm:$0xff]
      %v8252 = vld [vmem:[%s8200 + $0x198] sm:$0xff]
      %v8253 = vld [vmem:[%s8200 + $0x1a0] sm:$0xff]
      %v8254 = vld [vmem:[%s8200 + $0x1a8] sm:$0xff]
      %v8255 = vld [vmem:[%s8200 + $0x1b0] sm:$0xff]
      %v8256 = vld [vmem:[%s8200 + $0x1b8] sm:$0xff]
      %v8257 = vld [vmem:[%s8200 + $0x1c0] sm:$0xff]
      %v8258 = vld [vmem:[%s8200 + $0x1c8] sm:$0xff]
      %v8259 = vld [vmem:[%s8200 + $0x1d0] sm:$0xff]
      %v8260 = vld [vmem:[%s8200 + $0x1d8] sm:$0xff]
      %v8261 = vld [vmem:[%s8200 + $0x1e0] sm:$0xff]
      %v8262 = vld [vmem:[%s8200 + $0x1e8] sm:$0xff]
      %v8263 = vld [vmem:[%s8200 + $0x1f0] sm:$0xff]
      %v8264 = vld [vmem:[%s8200 + $0x1f8] sm:$0xff]
      %vm8267 = vcmask 1041408
      %v8268 = vrot.slane %v4844, 6
      %v8269 = vrot.slane %v4846, 6
      %v8270 = vsel %vm8267, %v8268, %v8269
      %v8271 = vrot.slane %v4845, 6
      %v8272 = vrot.slane %v4847, 6
      %v8273 = vsel %vm8267, %v8271, %v8272
      %v8340 = vunpack.c.l.b16 %v8201
      %v8341 = vunpack.c.h.b16 %v8201
      %v8342 = vunpack.c.l.b16 %v8202
      %v8343 = vunpack.c.h.b16 %v8202
      %v8344 = vunpack.c.l.b16 %v8203
      %v8345 = vunpack.c.h.b16 %v8203
      %v8346 = vunpack.c.l.b16 %v8204
      %v8347 = vunpack.c.h.b16 %v8204
      %v8348 = vunpack.c.l.b16 %v8205
      %v8349 = vunpack.c.h.b16 %v8205
      %v8350 = vunpack.c.l.b16 %v8206
      %v8351 = vunpack.c.h.b16 %v8206
      %v8352 = vunpack.c.l.b16 %v8207
      %v8353 = vunpack.c.h.b16 %v8207
      %v8354 = vunpack.c.l.b16 %v8208
      %v8355 = vunpack.c.h.b16 %v8208
      %v8356 = vunpack.c.l.b16 %v8209
      %v8357 = vunpack.c.h.b16 %v8209
      %v8358 = vunpack.c.l.b16 %v8210
      %v8359 = vunpack.c.h.b16 %v8210
      %v8360 = vunpack.c.l.b16 %v8211
      %v8361 = vunpack.c.h.b16 %v8211
      %v8362 = vunpack.c.l.b16 %v8212
      %v8363 = vunpack.c.h.b16 %v8212
      %v8364 = vunpack.c.l.b16 %v8213
      %v8365 = vunpack.c.h.b16 %v8213
      %v8366 = vunpack.c.l.b16 %v8214
      %v8367 = vunpack.c.h.b16 %v8214
      %v8368 = vunpack.c.l.b16 %v8215
      %v8369 = vunpack.c.h.b16 %v8215
      %v8370 = vunpack.c.l.b16 %v8216
      %v8371 = vunpack.c.h.b16 %v8216
      %v8372 = vunpack.c.l.b16 %v8217
      %v8373 = vunpack.c.h.b16 %v8217
      %v8374 = vunpack.c.l.b16 %v8218
      %v8375 = vunpack.c.h.b16 %v8218
      %v8376 = vunpack.c.l.b16 %v8219
      %v8377 = vunpack.c.h.b16 %v8219
      %v8378 = vunpack.c.l.b16 %v8220
      %v8379 = vunpack.c.h.b16 %v8220
      %v8380 = vunpack.c.l.b16 %v8221
      %v8381 = vunpack.c.h.b16 %v8221
      %v8382 = vunpack.c.l.b16 %v8222
      %v8383 = vunpack.c.h.b16 %v8222
      %v8384 = vunpack.c.l.b16 %v8223
      %v8385 = vunpack.c.h.b16 %v8223
      %v8386 = vunpack.c.l.b16 %v8224
      %v8387 = vunpack.c.h.b16 %v8224
      %v8388 = vunpack.c.l.b16 %v8225
      %v8389 = vunpack.c.h.b16 %v8225
      %v8390 = vunpack.c.l.b16 %v8226
      %v8391 = vunpack.c.h.b16 %v8226
      %v8392 = vunpack.c.l.b16 %v8227
      %v8393 = vunpack.c.h.b16 %v8227
      %v8394 = vunpack.c.l.b16 %v8228
      %v8395 = vunpack.c.h.b16 %v8228
      %v8396 = vunpack.c.l.b16 %v8229
      %v8397 = vunpack.c.h.b16 %v8229
      %v8398 = vunpack.c.l.b16 %v8230
      %v8399 = vunpack.c.h.b16 %v8230
      %v8400 = vunpack.c.l.b16 %v8231
      %v8401 = vunpack.c.h.b16 %v8231
      %v8402 = vunpack.c.l.b16 %v8232
      %v8403 = vunpack.c.h.b16 %v8232
      %v8404 = vunpack.c.l.b16 %v8233
      %v8405 = vunpack.c.h.b16 %v8233
      %v8406 = vunpack.c.l.b16 %v8234
      %v8407 = vunpack.c.h.b16 %v8234
      %v8408 = vunpack.c.l.b16 %v8235
      %v8409 = vunpack.c.h.b16 %v8235
      %v8410 = vunpack.c.l.b16 %v8236
      %v8411 = vunpack.c.h.b16 %v8236
      %v8412 = vunpack.c.l.b16 %v8237
      %v8413 = vunpack.c.h.b16 %v8237
      %v8414 = vunpack.c.l.b16 %v8238
      %v8415 = vunpack.c.h.b16 %v8238
      %v8416 = vunpack.c.l.b16 %v8239
      %v8417 = vunpack.c.h.b16 %v8239
      %v8418 = vunpack.c.l.b16 %v8240
      %v8419 = vunpack.c.h.b16 %v8240
      %v8420 = vunpack.c.l.b16 %v8241
      %v8421 = vunpack.c.h.b16 %v8241
      %v8422 = vunpack.c.l.b16 %v8242
      %v8423 = vunpack.c.h.b16 %v8242
      %v8424 = vunpack.c.l.b16 %v8243
      %v8425 = vunpack.c.h.b16 %v8243
      %v8426 = vunpack.c.l.b16 %v8244
      %v8427 = vunpack.c.h.b16 %v8244
      %v8428 = vunpack.c.l.b16 %v8245
      %v8429 = vunpack.c.h.b16 %v8245
      %v8430 = vunpack.c.l.b16 %v8246
      %v8431 = vunpack.c.h.b16 %v8246
      %v8432 = vunpack.c.l.b16 %v8247
      %v8433 = vunpack.c.h.b16 %v8247
      %v8434 = vunpack.c.l.b16 %v8248
      %v8435 = vunpack.c.h.b16 %v8248
      %v8436 = vunpack.c.l.b16 %v8249
      %v8437 = vunpack.c.h.b16 %v8249
      %v8438 = vunpack.c.l.b16 %v8250
      %v8439 = vunpack.c.h.b16 %v8250
      %v8440 = vunpack.c.l.b16 %v8251
      %v8441 = vunpack.c.h.b16 %v8251
      %v8442 = vunpack.c.l.b16 %v8252
      %v8443 = vunpack.c.h.b16 %v8252
      %v8444 = vunpack.c.l.b16 %v8253
      %v8445 = vunpack.c.h.b16 %v8253
      %v8446 = vunpack.c.l.b16 %v8254
      %v8447 = vunpack.c.h.b16 %v8254
      %v8448 = vunpack.c.l.b16 %v8255
      %v8449 = vunpack.c.h.b16 %v8255
      %v8450 = vunpack.c.l.b16 %v8256
      %v8451 = vunpack.c.h.b16 %v8256
      %v8452 = vunpack.c.l.b16 %v8257
      %v8453 = vunpack.c.h.b16 %v8257
      %v8454 = vunpack.c.l.b16 %v8258
      %v8455 = vunpack.c.h.b16 %v8258
      %v8456 = vunpack.c.l.b16 %v8259
      %v8457 = vunpack.c.h.b16 %v8259
      %v8458 = vunpack.c.l.b16 %v8260
      %v8459 = vunpack.c.h.b16 %v8260
      %v8460 = vunpack.c.l.b16 %v8261
      %v8461 = vunpack.c.h.b16 %v8261
      %v8462 = vunpack.c.l.b16 %v8262
      %v8463 = vunpack.c.h.b16 %v8262
      %v8464 = vunpack.c.l.b16 %v8263
      %v8465 = vunpack.c.h.b16 %v8263
      %v8466 = vunpack.c.l.b16 %v8264
      %v8467 = vunpack.c.h.b16 %v8264
      %v8468 = vpack.c.b16 %v8344, %v8340
      %v8469 = vpack.c.b16 %v8345, %v8341
      %v8470 = vpack.c.b16 %v8346, %v8342
      %v8471 = vpack.c.b16 %v8347, %v8343
      %v8472 = vpack.c.b16 %v8352, %v8348
      %v8473 = vpack.c.b16 %v8353, %v8349
      %v8474 = vpack.c.b16 %v8354, %v8350
      %v8475 = vpack.c.b16 %v8355, %v8351
      %v8476 = vpack.c.b16 %v8360, %v8356
      %v8477 = vpack.c.b16 %v8361, %v8357
      %v8478 = vpack.c.b16 %v8362, %v8358
      %v8479 = vpack.c.b16 %v8363, %v8359
      %v8480 = vpack.c.b16 %v8368, %v8364
      %v8481 = vpack.c.b16 %v8369, %v8365
      %v8482 = vpack.c.b16 %v8370, %v8366
      %v8483 = vpack.c.b16 %v8371, %v8367
      %v8484 = vpack.c.b16 %v8376, %v8372
      %v8485 = vpack.c.b16 %v8377, %v8373
      %v8486 = vpack.c.b16 %v8378, %v8374
      %v8487 = vpack.c.b16 %v8379, %v8375
      %v8488 = vpack.c.b16 %v8384, %v8380
      %v8489 = vpack.c.b16 %v8385, %v8381
      %v8490 = vpack.c.b16 %v8386, %v8382
      %v8491 = vpack.c.b16 %v8387, %v8383
      %v8492 = vpack.c.b16 %v8392, %v8388
      %v8493 = vpack.c.b16 %v8393, %v8389
      %v8494 = vpack.c.b16 %v8394, %v8390
      %v8495 = vpack.c.b16 %v8395, %v8391
      %v8496 = vpack.c.b16 %v8400, %v8396
      %v8497 = vpack.c.b16 %v8401, %v8397
      %v8498 = vpack.c.b16 %v8402, %v8398
      %v8499 = vpack.c.b16 %v8403, %v8399
      %v8500 = vpack.c.b16 %v8408, %v8404
      %v8501 = vpack.c.b16 %v8409, %v8405
      %v8502 = vpack.c.b16 %v8410, %v8406
      %v8503 = vpack.c.b16 %v8411, %v8407
      %v8504 = vpack.c.b16 %v8416, %v8412
      %v8505 = vpack.c.b16 %v8417, %v8413
      %v8506 = vpack.c.b16 %v8418, %v8414
      %v8507 = vpack.c.b16 %v8419, %v8415
      %v8508 = vpack.c.b16 %v8424, %v8420
      %v8509 = vpack.c.b16 %v8425, %v8421
      %v8510 = vpack.c.b16 %v8426, %v8422
      %v8511 = vpack.c.b16 %v8427, %v8423
      %v8512 = vpack.c.b16 %v8432, %v8428
      %v8513 = vpack.c.b16 %v8433, %v8429
      %v8514 = vpack.c.b16 %v8434, %v8430
      %v8515 = vpack.c.b16 %v8435, %v8431
      %v8516 = vpack.c.b16 %v8440, %v8436
      %v8517 = vpack.c.b16 %v8441, %v8437
      %v8518 = vpack.c.b16 %v8442, %v8438
      %v8519 = vpack.c.b16 %v8443, %v8439
      %v8520 = vpack.c.b16 %v8448, %v8444
      %v8521 = vpack.c.b16 %v8449, %v8445
      %v8522 = vpack.c.b16 %v8450, %v8446
      %v8523 = vpack.c.b16 %v8451, %v8447
      %v8524 = vpack.c.b16 %v8456, %v8452
      %v8525 = vpack.c.b16 %v8457, %v8453
      %v8526 = vpack.c.b16 %v8458, %v8454
      %v8527 = vpack.c.b16 %v8459, %v8455
      %v8528 = vpack.c.b16 %v8464, %v8460
      %v8529 = vpack.c.b16 %v8465, %v8461
      %v8530 = vpack.c.b16 %v8466, %v8462
      %v8531 = vpack.c.b16 %v8467, %v8463
      %8596 = vmatprep.subr.bf16.mxu0 %v8469
      %8597 = vmatpush1.bf16.msra.mxu0 %v8468
      %8598 = vmatprep.subr.bf16.mxu0 %v8473
      %8599 = vmatpush1.bf16.msra.mxu0 %v8472
      %8600 = vmatprep.subr.bf16.mxu0 %v8477
      %8601 = vmatpush1.bf16.msra.mxu0 %v8476
      %8602 = vmatprep.subr.bf16.mxu0 %v8481
      %8603 = vmatpush1.bf16.msra.mxu0 %v8480
      %8604 = vmatprep.subr.bf16.mxu0 %v8485
      %8605 = vmatpush1.bf16.msra.mxu0 %v8484
      %8606 = vmatprep.subr.bf16.mxu0 %v8489
      %8607 = vmatpush1.bf16.msra.mxu0 %v8488
      %8608 = vmatprep.subr.bf16.mxu0 %v8493
      %8609 = vmatpush1.bf16.msra.mxu0 %v8492
      %8610 = vmatprep.subr.bf16.mxu0 %v8497
      %8611 = vmatpush1.bf16.msra.mxu0 %v8496
      %8612 = vmatprep.subr.bf16.mxu0 %v8501
      %8613 = vmatpush1.bf16.msra.mxu0 %v8500
      %8614 = vmatprep.subr.bf16.mxu0 %v8505
      %8615 = vmatpush1.bf16.msra.mxu0 %v8504
      %8616 = vmatprep.subr.bf16.mxu0 %v8509
      %8617 = vmatpush1.bf16.msra.mxu0 %v8508
      %8618 = vmatprep.subr.bf16.mxu0 %v8513
      %8619 = vmatpush1.bf16.msra.mxu0 %v8512
      %8620 = vmatprep.subr.bf16.mxu0 %v8517
      %8621 = vmatpush1.bf16.msra.mxu0 %v8516
      %8622 = vmatprep.subr.bf16.mxu0 %v8521
      %8623 = vmatpush1.bf16.msra.mxu0 %v8520
      %8624 = vmatprep.subr.bf16.mxu0 %v8525
      %8625 = vmatpush1.bf16.msra.mxu0 %v8524
      %8626 = vmatprep.subr.bf16.mxu0 %v8529
      %8627 = vmatpush1.bf16.msra.mxu0 %v8528
      %8628 = vmatprep.mubr.bf16.mxu0 %v8273
      %8629 = vmatmul.mubr.bf16.gmra.mrb[0].mxu0 %v8270
      %v8630 = vpop.f32.mrb[0].mxu0
      %v8631 = vadd.f32 0.0, %v8630
      %v8632 = vpop.f32.mrb[0].mxu0
      %v8633 = vadd.f32 0.0, %v8632
      %v8634 = vpop.f32.mrb[0].mxu0
      %v8635 = vpop.f32.mrb[0].mxu0
      %8636 = vdwg.mxu0
      %8637 = vmatprep.subr.bf16.mxu0 %v8471
      %8638 = vmatpush1.bf16.msra.mxu0 %v8470
      %8639 = vmatprep.subr.bf16.mxu0 %v8475
      %8640 = vmatpush1.bf16.msra.mxu0 %v8474
      %8641 = vmatprep.subr.bf16.mxu0 %v8479
      %8642 = vmatpush1.bf16.msra.mxu0 %v8478
      %8643 = vmatprep.subr.bf16.mxu0 %v8483
      %8644 = vmatpush1.bf16.msra.mxu0 %v8482
      %8645 = vmatprep.subr.bf16.mxu0 %v8487
      %8646 = vmatpush1.bf16.msra.mxu0 %v8486
      %8647 = vmatprep.subr.bf16.mxu0 %v8491
      %8648 = vmatpush1.bf16.msra.mxu0 %v8490
      %8649 = vmatprep.subr.bf16.mxu0 %v8495
      %8650 = vmatpush1.bf16.msra.mxu0 %v8494
      %8651 = vmatprep.subr.bf16.mxu0 %v8499
      %8652 = vmatpush1.bf16.msra.mxu0 %v8498
      %8653 = vmatprep.subr.bf16.mxu0 %v8503
      %8654 = vmatpush1.bf16.msra.mxu0 %v8502
      %8655 = vmatprep.subr.bf16.mxu0 %v8507
      %8656 = vmatpush1.bf16.msra.mxu0 %v8506
      %8657 = vmatprep.subr.bf16.mxu0 %v8511
      %8658 = vmatpush1.bf16.msra.mxu0 %v8510
      %8659 = vmatprep.subr.bf16.mxu0 %v8515
      %8660 = vmatpush1.bf16.msra.mxu0 %v8514
      %8661 = vmatprep.subr.bf16.mxu0 %v8519
      %8662 = vmatpush1.bf16.msra.mxu0 %v8518
      %8663 = vmatprep.subr.bf16.mxu0 %v8523
      %8664 = vmatpush1.bf16.msra.mxu0 %v8522
      %8665 = vmatprep.subr.bf16.mxu0 %v8527
      %8666 = vmatpush1.bf16.msra.mxu0 %v8526
      %8667 = vmatprep.subr.bf16.mxu0 %v8531
      %8668 = vmatpush1.bf16.msra.mxu0 %v8530
      %8669 = vmatprep.mubr.bf16.mxu0 %v8273
      %8670 = vmatmul.mubr.bf16.gmra.mrb[0].mxu0 %v8270
      %v8671 = vpop.f32.mrb[0].mxu0
      %v8672 = vadd.f32 0.0, %v8671
      %v8673 = vpop.f32.mrb[0].mxu0
      %v8674 = vadd.f32 0.0, %v8673
      %v8675 = vpop.f32.mrb[0].mxu0
      %v8676 = vpop.f32.mrb[0].mxu0
      %8677 = vdwg.mxu0
      %v8678 = vadd.f32 %v8196, %v8631
      %v8679 = vadd.f32 %v8197, %v8633
      %v8680 = vadd.f32 %v8198, %v8672
      %v8681 = vadd.f32 %v8199, %v8674
      %s8682 = scalar_lea.vmem %s8, 4096
      %v8683 = vld [vmem:[%s8682] sm:$0xff]
      %v8684 = vld [vmem:[%s8682 + $0x8] sm:$0xff]
      %v8685 = vld [vmem:[%s8682 + $0x10] sm:$0xff]
      %v8686 = vld [vmem:[%s8682 + $0x18] sm:$0xff]
      %v8687 = vld [vmem:[%s8682 + $0x20] sm:$0xff]
      %v8688 = vld [vmem:[%s8682 + $0x28] sm:$0xff]
      %v8689 = vld [vmem:[%s8682 + $0x30] sm:$0xff]
      %v8690 = vld [vmem:[%s8682 + $0x38] sm:$0xff]
      %v8691 = vld [vmem:[%s8682 + $0x40] sm:$0xff]
      %v8692 = vld [vmem:[%s8682 + $0x48] sm:$0xff]
      %v8693 = vld [vmem:[%s8682 + $0x50] sm:$0xff]
      %v8694 = vld [vmem:[%s8682 + $0x58] sm:$0xff]
      %v8695 = vld [vmem:[%s8682 + $0x60] sm:$0xff]
      %v8696 = vld [vmem:[%s8682 + $0x68] sm:$0xff]
      %v8697 = vld [vmem:[%s8682 + $0x70] sm:$0xff]
      %v8698 = vld [vmem:[%s8682 + $0x78] sm:$0xff]
      %v8699 = vld [vmem:[%s8682 + $0x80] sm:$0xff]
      %v8700 = vld [vmem:[%s8682 + $0x88] sm:$0xff]
      %v8701 = vld [vmem:[%s8682 + $0x90] sm:$0xff]
      %v8702 = vld [vmem:[%s8682 + $0x98] sm:$0xff]
      %v8703 = vld [vmem:[%s8682 + $0xa0] sm:$0xff]
      %v8704 = vld [vmem:[%s8682 + $0xa8] sm:$0xff]
      %v8705 = vld [vmem:[%s8682 + $0xb0] sm:$0xff]
      %v8706 = vld [vmem:[%s8682 + $0xb8] sm:$0xff]
      %v8707 = vld [vmem:[%s8682 + $0xc0] sm:$0xff]
      %v8708 = vld [vmem:[%s8682 + $0xc8] sm:$0xff]
      %v8709 = vld [vmem:[%s8682 + $0xd0] sm:$0xff]
      %v8710 = vld [vmem:[%s8682 + $0xd8] sm:$0xff]
      %v8711 = vld [vmem:[%s8682 + $0xe0] sm:$0xff]
      %v8712 = vld [vmem:[%s8682 + $0xe8] sm:$0xff]
      %v8713 = vld [vmem:[%s8682 + $0xf0] sm:$0xff]
      %v8714 = vld [vmem:[%s8682 + $0xf8] sm:$0xff]
      %v8715 = vld [vmem:[%s8682 + $0x100] sm:$0xff]
      %v8716 = vld [vmem:[%s8682 + $0x108] sm:$0xff]
      %v8717 = vld [vmem:[%s8682 + $0x110] sm:$0xff]
      %v8718 = vld [vmem:[%s8682 + $0x118] sm:$0xff]
      %v8719 = vld [vmem:[%s8682 + $0x120] sm:$0xff]
      %v8720 = vld [vmem:[%s8682 + $0x128] sm:$0xff]
      %v8721 = vld [vmem:[%s8682 + $0x130] sm:$0xff]
      %v8722 = vld [vmem:[%s8682 + $0x138] sm:$0xff]
      %v8723 = vld [vmem:[%s8682 + $0x140] sm:$0xff]
      %v8724 = vld [vmem:[%s8682 + $0x148] sm:$0xff]
      %v8725 = vld [vmem:[%s8682 + $0x150] sm:$0xff]
      %v8726 = vld [vmem:[%s8682 + $0x158] sm:$0xff]
      %v8727 = vld [vmem:[%s8682 + $0x160] sm:$0xff]
      %v8728 = vld [vmem:[%s8682 + $0x168] sm:$0xff]
      %v8729 = vld [vmem:[%s8682 + $0x170] sm:$0xff]
      %v8730 = vld [vmem:[%s8682 + $0x178] sm:$0xff]
      %v8731 = vld [vmem:[%s8682 + $0x180] sm:$0xff]
      %v8732 = vld [vmem:[%s8682 + $0x188] sm:$0xff]
      %v8733 = vld [vmem:[%s8682 + $0x190] sm:$0xff]
      %v8734 = vld [vmem:[%s8682 + $0x198] sm:$0xff]
      %v8735 = vld [vmem:[%s8682 + $0x1a0] sm:$0xff]
      %v8736 = vld [vmem:[%s8682 + $0x1a8] sm:$0xff]
      %v8737 = vld [vmem:[%s8682 + $0x1b0] sm:$0xff]
      %v8738 = vld [vmem:[%s8682 + $0x1b8] sm:$0xff]
      %v8739 = vld [vmem:[%s8682 + $0x1c0] sm:$0xff]
      %v8740 = vld [vmem:[%s8682 + $0x1c8] sm:$0xff]
      %v8741 = vld [vmem:[%s8682 + $0x1d0] sm:$0xff]
      %v8742 = vld [vmem:[%s8682 + $0x1d8] sm:$0xff]
      %v8743 = vld [vmem:[%s8682 + $0x1e0] sm:$0xff]
      %v8744 = vld [vmem:[%s8682 + $0x1e8] sm:$0xff]
      %v8745 = vld [vmem:[%s8682 + $0x1f0] sm:$0xff]
      %v8746 = vld [vmem:[%s8682 + $0x1f8] sm:$0xff]
      %v8747 = vrot.slane %v4844, 2
      %v8748 = vrot.slane %v4845, 2
      %v8815 = vunpack.c.l.b16 %v8683
      %v8816 = vunpack.c.h.b16 %v8683
      %v8817 = vunpack.c.l.b16 %v8684
      %v8818 = vunpack.c.h.b16 %v8684
      %v8819 = vunpack.c.l.b16 %v8685
      %v8820 = vunpack.c.h.b16 %v8685
      %v8821 = vunpack.c.l.b16 %v8686
      %v8822 = vunpack.c.h.b16 %v8686
      %v8823 = vunpack.c.l.b16 %v8687
      %v8824 = vunpack.c.h.b16 %v8687
      %v8825 = vunpack.c.l.b16 %v8688
      %v8826 = vunpack.c.h.b16 %v8688
      %v8827 = vunpack.c.l.b16 %v8689
      %v8828 = vunpack.c.h.b16 %v8689
      %v8829 = vunpack.c.l.b16 %v8690
      %v8830 = vunpack.c.h.b16 %v8690
      %v8831 = vunpack.c.l.b16 %v8691
      %v8832 = vunpack.c.h.b16 %v8691
      %v8833 = vunpack.c.l.b16 %v8692
      %v8834 = vunpack.c.h.b16 %v8692
      %v8835 = vunpack.c.l.b16 %v8693
      %v8836 = vunpack.c.h.b16 %v8693
      %v8837 = vunpack.c.l.b16 %v8694
      %v8838 = vunpack.c.h.b16 %v8694
      %v8839 = vunpack.c.l.b16 %v8695
      %v8840 = vunpack.c.h.b16 %v8695
      %v8841 = vunpack.c.l.b16 %v8696
      %v8842 = vunpack.c.h.b16 %v8696
      %v8843 = vunpack.c.l.b16 %v8697
      %v8844 = vunpack.c.h.b16 %v8697
      %v8845 = vunpack.c.l.b16 %v8698
      %v8846 = vunpack.c.h.b16 %v8698
      %v8847 = vunpack.c.l.b16 %v8699
      %v8848 = vunpack.c.h.b16 %v8699
      %v8849 = vunpack.c.l.b16 %v8700
      %v8850 = vunpack.c.h.b16 %v8700
      %v8851 = vunpack.c.l.b16 %v8701
      %v8852 = vunpack.c.h.b16 %v8701
      %v8853 = vunpack.c.l.b16 %v8702
      %v8854 = vunpack.c.h.b16 %v8702
      %v8855 = vunpack.c.l.b16 %v8703
      %v8856 = vunpack.c.h.b16 %v8703
      %v8857 = vunpack.c.l.b16 %v8704
      %v8858 = vunpack.c.h.b16 %v8704
      %v8859 = vunpack.c.l.b16 %v8705
      %v8860 = vunpack.c.h.b16 %v8705
      %v8861 = vunpack.c.l.b16 %v8706
      %v8862 = vunpack.c.h.b16 %v8706
      %v8863 = vunpack.c.l.b16 %v8707
      %v8864 = vunpack.c.h.b16 %v8707
      %v8865 = vunpack.c.l.b16 %v8708
      %v8866 = vunpack.c.h.b16 %v8708
      %v8867 = vunpack.c.l.b16 %v8709
      %v8868 = vunpack.c.h.b16 %v8709
      %v8869 = vunpack.c.l.b16 %v8710
      %v8870 = vunpack.c.h.b16 %v8710
      %v8871 = vunpack.c.l.b16 %v8711
      %v8872 = vunpack.c.h.b16 %v8711
      %v8873 = vunpack.c.l.b16 %v8712
      %v8874 = vunpack.c.h.b16 %v8712
      %v8875 = vunpack.c.l.b16 %v8713
      %v8876 = vunpack.c.h.b16 %v8713
      %v8877 = vunpack.c.l.b16 %v8714
      %v8878 = vunpack.c.h.b16 %v8714
      %v8879 = vunpack.c.l.b16 %v8715
      %v8880 = vunpack.c.h.b16 %v8715
      %v8881 = vunpack.c.l.b16 %v8716
      %v8882 = vunpack.c.h.b16 %v8716
      %v8883 = vunpack.c.l.b16 %v8717
      %v8884 = vunpack.c.h.b16 %v8717
      %v8885 = vunpack.c.l.b16 %v8718
      %v8886 = vunpack.c.h.b16 %v8718
      %v8887 = vunpack.c.l.b16 %v8719
      %v8888 = vunpack.c.h.b16 %v8719
      %v8889 = vunpack.c.l.b16 %v8720
      %v8890 = vunpack.c.h.b16 %v8720
      %v8891 = vunpack.c.l.b16 %v8721
      %v8892 = vunpack.c.h.b16 %v8721
      %v8893 = vunpack.c.l.b16 %v8722
      %v8894 = vunpack.c.h.b16 %v8722
      %v8895 = vunpack.c.l.b16 %v8723
      %v8896 = vunpack.c.h.b16 %v8723
      %v8897 = vunpack.c.l.b16 %v8724
      %v8898 = vunpack.c.h.b16 %v8724
      %v8899 = vunpack.c.l.b16 %v8725
      %v8900 = vunpack.c.h.b16 %v8725
      %v8901 = vunpack.c.l.b16 %v8726
      %v8902 = vunpack.c.h.b16 %v8726
      %v8903 = vunpack.c.l.b16 %v8727
      %v8904 = vunpack.c.h.b16 %v8727
      %v8905 = vunpack.c.l.b16 %v8728
      %v8906 = vunpack.c.h.b16 %v8728
      %v8907 = vunpack.c.l.b16 %v8729
      %v8908 = vunpack.c.h.b16 %v8729
      %v8909 = vunpack.c.l.b16 %v8730
      %v8910 = vunpack.c.h.b16 %v8730
      %v8911 = vunpack.c.l.b16 %v8731
      %v8912 = vunpack.c.h.b16 %v8731
      %v8913 = vunpack.c.l.b16 %v8732
      %v8914 = vunpack.c.h.b16 %v8732
      %v8915 = vunpack.c.l.b16 %v8733
      %v8916 = vunpack.c.h.b16 %v8733
      %v8917 = vunpack.c.l.b16 %v8734
      %v8918 = vunpack.c.h.b16 %v8734
      %v8919 = vunpack.c.l.b16 %v8735
      %v8920 = vunpack.c.h.b16 %v8735
      %v8921 = vunpack.c.l.b16 %v8736
      %v8922 = vunpack.c.h.b16 %v8736
      %v8923 = vunpack.c.l.b16 %v8737
      %v8924 = vunpack.c.h.b16 %v8737
      %v8925 = vunpack.c.l.b16 %v8738
      %v8926 = vunpack.c.h.b16 %v8738
      %v8927 = vunpack.c.l.b16 %v8739
      %v8928 = vunpack.c.h.b16 %v8739
      %v8929 = vunpack.c.l.b16 %v8740
      %v8930 = vunpack.c.h.b16 %v8740
      %v8931 = vunpack.c.l.b16 %v8741
      %v8932 = vunpack.c.h.b16 %v8741
      %v8933 = vunpack.c.l.b16 %v8742
      %v8934 = vunpack.c.h.b16 %v8742
      %v8935 = vunpack.c.l.b16 %v8743
      %v8936 = vunpack.c.h.b16 %v8743
      %v8937 = vunpack.c.l.b16 %v8744
      %v8938 = vunpack.c.h.b16 %v8744
      %v8939 = vunpack.c.l.b16 %v8745
      %v8940 = vunpack.c.h.b16 %v8745
      %v8941 = vunpack.c.l.b16 %v8746
      %v8942 = vunpack.c.h.b16 %v8746
      %v8943 = vpack.c.b16 %v8819, %v8815
      %v8944 = vpack.c.b16 %v8820, %v8816
      %v8945 = vpack.c.b16 %v8821, %v8817
      %v8946 = vpack.c.b16 %v8822, %v8818
      %v8947 = vpack.c.b16 %v8827, %v8823
      %v8948 = vpack.c.b16 %v8828, %v8824
      %v8949 = vpack.c.b16 %v8829, %v8825
      %v8950 = vpack.c.b16 %v8830, %v8826
      %v8951 = vpack.c.b16 %v8835, %v8831
      %v8952 = vpack.c.b16 %v8836, %v8832
      %v8953 = vpack.c.b16 %v8837, %v8833
      %v8954 = vpack.c.b16 %v8838, %v8834
      %v8955 = vpack.c.b16 %v8843, %v8839
      %v8956 = vpack.c.b16 %v8844, %v8840
      %v8957 = vpack.c.b16 %v8845, %v8841
      %v8958 = vpack.c.b16 %v8846, %v8842
      %v8959 = vpack.c.b16 %v8851, %v8847
      %v8960 = vpack.c.b16 %v8852, %v8848
      %v8961 = vpack.c.b16 %v8853, %v8849
      %v8962 = vpack.c.b16 %v8854, %v8850
      %v8963 = vpack.c.b16 %v8859, %v8855
      %v8964 = vpack.c.b16 %v8860, %v8856
      %v8965 = vpack.c.b16 %v8861, %v8857
      %v8966 = vpack.c.b16 %v8862, %v8858
      %v8967 = vpack.c.b16 %v8867, %v8863
      %v8968 = vpack.c.b16 %v8868, %v8864
      %v8969 = vpack.c.b16 %v8869, %v8865
      %v8970 = vpack.c.b16 %v8870, %v8866
      %v8971 = vpack.c.b16 %v8875, %v8871
      %v8972 = vpack.c.b16 %v8876, %v8872
      %v8973 = vpack.c.b16 %v8877, %v8873
      %v8974 = vpack.c.b16 %v8878, %v8874
      %v8975 = vpack.c.b16 %v8883, %v8879
      %v8976 = vpack.c.b16 %v8884, %v8880
      %v8977 = vpack.c.b16 %v8885, %v8881
      %v8978 = vpack.c.b16 %v8886, %v8882
      %v8979 = vpack.c.b16 %v8891, %v8887
      %v8980 = vpack.c.b16 %v8892, %v8888
      %v8981 = vpack.c.b16 %v8893, %v8889
      %v8982 = vpack.c.b16 %v8894, %v8890
      %v8983 = vpack.c.b16 %v8899, %v8895
      %v8984 = vpack.c.b16 %v8900, %v8896
      %v8985 = vpack.c.b16 %v8901, %v8897
      %v8986 = vpack.c.b16 %v8902, %v8898
      %v8987 = vpack.c.b16 %v8907, %v8903
      %v8988 = vpack.c.b16 %v8908, %v8904
      %v8989 = vpack.c.b16 %v8909, %v8905
      %v8990 = vpack.c.b16 %v8910, %v8906
      %v8991 = vpack.c.b16 %v8915, %v8911
      %v8992 = vpack.c.b16 %v8916, %v8912
      %v8993 = vpack.c.b16 %v8917, %v8913
      %v8994 = vpack.c.b16 %v8918, %v8914
      %v8995 = vpack.c.b16 %v8923, %v8919
      %v8996 = vpack.c.b16 %v8924, %v8920
      %v8997 = vpack.c.b16 %v8925, %v8921
      %v8998 = vpack.c.b16 %v8926, %v8922
      %v8999 = vpack.c.b16 %v8931, %v8927
      %v9000 = vpack.c.b16 %v8932, %v8928
      %v9001 = vpack.c.b16 %v8933, %v8929
      %v9002 = vpack.c.b16 %v8934, %v8930
      %v9003 = vpack.c.b16 %v8939, %v8935
      %v9004 = vpack.c.b16 %v8940, %v8936
      %v9005 = vpack.c.b16 %v8941, %v8937
      %v9006 = vpack.c.b16 %v8942, %v8938
      %9071 = vmatprep.subr.bf16.mxu0 %v8944
      %9072 = vmatpush1.bf16.msra.mxu0 %v8943
      %9073 = vmatprep.subr.bf16.mxu0 %v8948
      %9074 = vmatpush1.bf16.msra.mxu0 %v8947
      %9075 = vmatprep.subr.bf16.mxu0 %v8952
      %9076 = vmatpush1.bf16.msra.mxu0 %v8951
      %9077 = vmatprep.subr.bf16.mxu0 %v8956
      %9078 = vmatpush1.bf16.msra.mxu0 %v8955
      %9079 = vmatprep.subr.bf16.mxu0 %v8960
      %9080 = vmatpush1.bf16.msra.mxu0 %v8959
      %9081 = vmatprep.subr.bf16.mxu0 %v8964
      %9082 = vmatpush1.bf16.msra.mxu0 %v8963
      %9083 = vmatprep.subr.bf16.mxu0 %v8968
      %9084 = vmatpush1.bf16.msra.mxu0 %v8967
      %9085 = vmatprep.subr.bf16.mxu0 %v8972
      %9086 = vmatpush1.bf16.msra.mxu0 %v8971
      %9087 = vmatprep.subr.bf16.mxu0 %v8976
      %9088 = vmatpush1.bf16.msra.mxu0 %v8975
      %9089 = vmatprep.subr.bf16.mxu0 %v8980
      %9090 = vmatpush1.bf16.msra.mxu0 %v8979
      %9091 = vmatprep.subr.bf16.mxu0 %v8984
      %9092 = vmatpush1.bf16.msra.mxu0 %v8983
      %9093 = vmatprep.subr.bf16.mxu0 %v8988
      %9094 = vmatpush1.bf16.msra.mxu0 %v8987
      %9095 = vmatprep.subr.bf16.mxu0 %v8992
      %9096 = vmatpush1.bf16.msra.mxu0 %v8991
      %9097 = vmatprep.subr.bf16.mxu0 %v8996
      %9098 = vmatpush1.bf16.msra.mxu0 %v8995
      %9099 = vmatprep.subr.bf16.mxu0 %v9000
      %9100 = vmatpush1.bf16.msra.mxu0 %v8999
      %9101 = vmatprep.subr.bf16.mxu0 %v9004
      %9102 = vmatpush1.bf16.msra.mxu0 %v9003
      %9103 = vmatprep.mubr.bf16.mxu0 %v8748
      %9104 = vmatmul.mubr.bf16.gmra.mrb[0].mxu0 %v8747
      %v9105 = vpop.f32.mrb[0].mxu0
      %v9106 = vadd.f32 0.0, %v9105
      %v9107 = vpop.f32.mrb[0].mxu0
      %v9108 = vadd.f32 0.0, %v9107
      %v9109 = vpop.f32.mrb[0].mxu0
      %v9110 = vpop.f32.mrb[0].mxu0
      %9111 = vdwg.mxu0
      %9112 = vmatprep.subr.bf16.mxu0 %v8946
      %9113 = vmatpush1.bf16.msra.mxu0 %v8945
      %9114 = vmatprep.subr.bf16.mxu0 %v8950
      %9115 = vmatpush1.bf16.msra.mxu0 %v8949
      %9116 = vmatprep.subr.bf16.mxu0 %v8954
      %9117 = vmatpush1.bf16.msra.mxu0 %v8953
      %9118 = vmatprep.subr.bf16.mxu0 %v8958
      %9119 = vmatpush1.bf16.msra.mxu0 %v8957
      %9120 = vmatprep.subr.bf16.mxu0 %v8962
      %9121 = vmatpush1.bf16.msra.mxu0 %v8961
      %9122 = vmatprep.subr.bf16.mxu0 %v8966
      %9123 = vmatpush1.bf16.msra.mxu0 %v8965
      %9124 = vmatprep.subr.bf16.mxu0 %v8970
      %9125 = vmatpush1.bf16.msra.mxu0 %v8969
      %9126 = vmatprep.subr.bf16.mxu0 %v8974
      %9127 = vmatpush1.bf16.msra.mxu0 %v8973
      %9128 = vmatprep.subr.bf16.mxu0 %v8978
      %9129 = vmatpush1.bf16.msra.mxu0 %v8977
      %9130 = vmatprep.subr.bf16.mxu0 %v8982
      %9131 = vmatpush1.bf16.msra.mxu0 %v8981
      %9132 = vmatprep.subr.bf16.mxu0 %v8986
      %9133 = vmatpush1.bf16.msra.mxu0 %v8985
      %9134 = vmatprep.subr.bf16.mxu0 %v8990
      %9135 = vmatpush1.bf16.msra.mxu0 %v8989
      %9136 = vmatprep.subr.bf16.mxu0 %v8994
      %9137 = vmatpush1.bf16.msra.mxu0 %v8993
      %9138 = vmatprep.subr.bf16.mxu0 %v8998
      %9139 = vmatpush1.bf16.msra.mxu0 %v8997
      %9140 = vmatprep.subr.bf16.mxu0 %v9002
      %9141 = vmatpush1.bf16.msra.mxu0 %v9001
      %9142 = vmatprep.subr.bf16.mxu0 %v9006
      %9143 = vmatpush1.bf16.msra.mxu0 %v9005
      %9144 = vmatprep.mubr.bf16.mxu0 %v8748
      %9145 = vmatmul.mubr.bf16.gmra.mrb[0].mxu0 %v8747
      %v9146 = vpop.f32.mrb[0].mxu0
      %v9147 = vadd.f32 0.0, %v9146
      %v9148 = vpop.f32.mrb[0].mxu0
      %v9149 = vadd.f32 0.0, %v9148
      %v9150 = vpop.f32.mrb[0].mxu0
      %v9151 = vpop.f32.mrb[0].mxu0
      %9152 = vdwg.mxu0
      %v9153 = vadd.f32 %v8678, %v9106
      %v9154 = vadd.f32 %v8679, %v9108
      %v9155 = vadd.f32 %v8680, %v9147
      %v9156 = vadd.f32 %v8681, %v9149
      %vm9157 = vcmp.ne.s32.totalorder %v2735, 2
      %v9158 = vsel %vm9157, 1, 0
      %v9159 = vcvt.s32.f32 %v9158
      %v9160 = vmul.f32 %v9153, %v9159
      %v9161 = vmul.f32 %v9154, %v9159
      %v9162 = vmul.f32 %v9155, %v9159
      %v9163 = vmul.f32 %v9156, %v9159
      %vm9164 = vcmask 1044480
      %v9165 = vsel %vm9164, %v9160, 0.0
      %v9166 = vrot.slane %v9165, 4
      %v9167 = vadd.f32 %v9165, %v9166
      %v9168 = vrot.slane %v9167, 2
      %v9169 = vadd.f32 %v9167, %v9168
      %v9170 = vrot.slane %v9169, 1
      %v9171 = vadd.f32 %v9169, %v9170
      %v9172 = vsel %vm9164, %v9161, 0.0
      %v9173 = vrot.slane %v9172, 4
      %v9174 = vadd.f32 %v9172, %v9173
      %v9175 = vrot.slane %v9174, 2
      %v9176 = vadd.f32 %v9174, %v9175
      %v9177 = vrot.slane %v9176, 1
      %v9178 = vadd.f32 %v9176, %v9177
      %v9179 = vsel %vm9164, %v9162, 0.0
      %v9180 = vrot.slane %v9179, 4
      %v9181 = vadd.f32 %v9179, %v9180
      %v9182 = vrot.slane %v9181, 2
      %v9183 = vadd.f32 %v9181, %v9182
      %v9184 = vrot.slane %v9183, 1
      %v9185 = vadd.f32 %v9183, %v9184
      %v9186 = vsel %vm9164, %v9163, 0.0
      %v9187 = vrot.slane %v9186, 4
      %v9188 = vadd.f32 %v9186, %v9187
      %v9189 = vrot.slane %v9188, 2
      %v9190 = vadd.f32 %v9188, %v9189
      %v9191 = vrot.slane %v9190, 1
      %v9192 = vadd.f32 %v9190, %v9191
      %v9193 = vmul.f32 %v9171, 0.25
      %v9194 = vmul.f32 %v9178, 0.25
      %v9195 = vmul.f32 %v9185, 0.25
      %v9196 = vmul.f32 %v9192, 0.25
      %v9197 = vsub.f32 %v9153, %v9193
      %v9198 = vsub.f32 %v9154, %v9194
      %v9199 = vsub.f32 %v9155, %v9195
      %v9200 = vsub.f32 %v9156, %v9196
      %v9201 = vmul.f32 %v9197, %v9159
      %v9202 = vmul.f32 %v9198, %v9159
      %v9203 = vmul.f32 %v9199, %v9159
      %v9204 = vmul.f32 %v9200, %v9159
      %v9205 = vmul.f32 %v9201, %v9201
      %v9206 = vmul.f32 %v9202, %v9202
      %v9207 = vmul.f32 %v9203, %v9203
      %v9208 = vmul.f32 %v9204, %v9204
      %v9209 = vsel %vm9164, %v9205, 0.0
      %v9210 = vrot.slane %v9209, 4
      %v9211 = vadd.f32 %v9209, %v9210
      %v9212 = vrot.slane %v9211, 2
      %v9213 = vadd.f32 %v9211, %v9212
      %v9214 = vrot.slane %v9213, 1
      %v9215 = vadd.f32 %v9213, %v9214
      %v9216 = vsel %vm9164, %v9206, 0.0
      %v9217 = vrot.slane %v9216, 4
      %v9218 = vadd.f32 %v9216, %v9217
      %v9219 = vrot.slane %v9218, 2
      %v9220 = vadd.f32 %v9218, %v9219
      %v9221 = vrot.slane %v9220, 1
      %v9222 = vadd.f32 %v9220, %v9221
      %v9223 = vsel %vm9164, %v9207, 0.0
      %v9224 = vrot.slane %v9223, 4
      %v9225 = vadd.f32 %v9223, %v9224
      %v9226 = vrot.slane %v9225, 2
      %v9227 = vadd.f32 %v9225, %v9226
      %v9228 = vrot.slane %v9227, 1
      %v9229 = vadd.f32 %v9227, %v9228
      %v9230 = vsel %vm9164, %v9208, 0.0
      %v9231 = vrot.slane %v9230, 4
      %v9232 = vadd.f32 %v9230, %v9231
      %v9233 = vrot.slane %v9232, 2
      %v9234 = vadd.f32 %v9232, %v9233
      %v9235 = vrot.slane %v9234, 1
      %v9236 = vadd.f32 %v9234, %v9235
      %v9237 = vmul.f32 %v9215, 0.25
      %v9238 = vmul.f32 %v9222, 0.25
      %v9239 = vmul.f32 %v9229, 0.25
      %v9240 = vmul.f32 %v9236, 0.25
      %v9241 = vadd.f32 %v9237, 1e-05
      %v9242 = vadd.f32 %v9238, 1e-05
      %v9243 = vadd.f32 %v9239, 1e-05
      %v9244 = vadd.f32 %v9240, 1e-05
      %v9245 = vrsqrt.pop %v9241
      %v9246 = vrsqrt.pop %v9242
      %v9247 = vrsqrt.pop %v9243
      %v9248 = vrsqrt.pop %v9244
      %v9249 = vmul.f32 %v9197, %v9245
      %v9250 = vmul.f32 %v9198, %v9246
      %v9251 = vmul.f32 %v9199, %v9247
      %v9252 = vmul.f32 %v9200, %v9248
      %vm9253 = vcmp.gt.f32.partialorder %v9249, 0.0
      %vm9254 = vcmp.gt.f32.partialorder %v9250, 0.0
      %vm9255 = vcmp.gt.f32.partialorder %v9251, 0.0
      %vm9256 = vcmp.gt.f32.partialorder %v9252, 0.0
      %v9257 = vmul.f32 %v9249, 0.2
      %v9258 = vmul.f32 %v9250, 0.2
      %v9259 = vmul.f32 %v9251, 0.2
      %v9260 = vmul.f32 %v9252, 0.2
      %v9261 = vsel %vm9253, %v9249, %v9257
      %v9262 = vsel %vm9254, %v9250, %v9258
      %v9263 = vsel %vm9255, %v9251, %v9259
      %v9264 = vsel %vm9256, %v9252, %v9260
      %v9265 = vpack.c.bf16 %v9261, %v9261
      %v9266 = vpack.c.bf16 %v9262, %v9262
      %v9267 = vpack.c.bf16 %v9263, %v9263
      %v9268 = vpack.c.bf16 %v9264, %v9264
      %v9269 = vld [vmem:[%s9] sm:$0xf]
      %v9270 = vld [vmem:[%s9 + $0x4] sm:$0xf]
      %v9273 = vunpack.c.l.b16 %v9269
      %v9274 = vunpack.c.l.b16 %v9270
      %v9275 = vpack.c.b16 %v9274, %v9273
      %vm9276 = vcmask 39936
      %v9278 = vsel %vm9276, %v9275, 0
      %v9280 = vsel %vm4776, 4294967295, 65535
      %v9281 = vsel %vm3059, %v9280, 0
      %v9283 = vand.u32 %v9265, %v9281
      %v9286 = vand.u32 %v9266, %v9281
      %v9289 = vand.u32 %v9267, %v9281
      %v9292 = vand.u32 %v9268, %v9281
      %9294 = vmatprep.subr.bf16.mxu0 %v9286
      %9295 = vmatpush1.bf16.msra.mxu0 %v9283
      %9296 = vmatprep.subr.bf16.mxu0 0
      %9297 = vmatpush1.bf16.msra.mxu0 0
      %9298 = vmatprep.subr.bf16.mxu0 0
      %9299 = vmatpush1.bf16.msra.mxu0 0
      %9300 = vmatprep.subr.bf16.mxu0 0
      %9301 = vmatpush1.bf16.msra.mxu0 0
      %9302 = vmatprep.subr.bf16.mxu0 0
      %9303 = vmatpush1.bf16.msra.mxu0 0
      %9304 = vmatprep.subr.bf16.mxu0 0
      %9305 = vmatpush1.bf16.msra.mxu0 0
      %9306 = vmatprep.subr.bf16.mxu0 0
      %9307 = vmatpush1.bf16.msra.mxu0 0
      %9308 = vmatprep.subr.bf16.mxu0 0
      %9309 = vmatpush1.bf16.msra.mxu0 0
      %9310 = vmatprep.subr.bf16.mxu0 0
      %9311 = vmatpush1.bf16.msra.mxu0 0
      %9312 = vmatprep.subr.bf16.mxu0 0
      %9313 = vmatpush1.bf16.msra.mxu0 0
      %9314 = vmatprep.subr.bf16.mxu0 0
      %9315 = vmatpush1.bf16.msra.mxu0 0
      %9316 = vmatprep.subr.bf16.mxu0 0
      %9317 = vmatpush1.bf16.msra.mxu0 0
      %9318 = vmatprep.subr.bf16.mxu0 0
      %9319 = vmatpush1.bf16.msra.mxu0 0
      %9320 = vmatprep.subr.bf16.mxu0 0
      %9321 = vmatpush1.bf16.msra.mxu0 0
      %9322 = vmatprep.subr.bf16.mxu0 0
      %9323 = vmatpush1.bf16.msra.mxu0 0
      %9324 = vmatprep.subr.bf16.mxu0 0
      %9325 = vmatpush1.bf16.msra.mxu0 0
      %9326 = vmatprep.mubr.bf16.mxu0 0
      %9327 = vmatmul.mubr.bf16.gmra.mrb[0].mxu0 %v9278
      %v9328 = vpop.f32.mrb[0].mxu0
      %v9329 = vadd.f32 0.0, %v9328
      %v9330 = vpop.f32.mrb[0].mxu0
      %v9331 = vadd.f32 0.0, %v9330
      %v9332 = vpop.f32.mrb[0].mxu0
      %v9333 = vadd.f32 0.0, %v9332
      %v9334 = vpop.f32.mrb[0].mxu0
      %v9335 = vadd.f32 0.0, %v9334
      %9336 = vdwg.mxu0
      %9337 = vmatprep.subr.bf16.mxu0 %v9292
      %9338 = vmatpush1.bf16.msra.mxu0 %v9289
      %9339 = vmatprep.subr.bf16.mxu0 0
      %9340 = vmatpush1.bf16.msra.mxu0 0
      %9341 = vmatprep.subr.bf16.mxu0 0
      %9342 = vmatpush1.bf16.msra.mxu0 0
      %9343 = vmatprep.subr.bf16.mxu0 0
      %9344 = vmatpush1.bf16.msra.mxu0 0
      %9345 = vmatprep.subr.bf16.mxu0 0
      %9346 = vmatpush1.bf16.msra.mxu0 0
      %9347 = vmatprep.subr.bf16.mxu0 0
      %9348 = vmatpush1.bf16.msra.mxu0 0
      %9349 = vmatprep.subr.bf16.mxu0 0
      %9350 = vmatpush1.bf16.msra.mxu0 0
      %9351 = vmatprep.subr.bf16.mxu0 0
      %9352 = vmatpush1.bf16.msra.mxu0 0
      %9353 = vmatprep.subr.bf16.mxu0 0
      %9354 = vmatpush1.bf16.msra.mxu0 0
      %9355 = vmatprep.subr.bf16.mxu0 0
      %9356 = vmatpush1.bf16.msra.mxu0 0
      %9357 = vmatprep.subr.bf16.mxu0 0
      %9358 = vmatpush1.bf16.msra.mxu0 0
      %9359 = vmatprep.subr.bf16.mxu0 0
      %9360 = vmatpush1.bf16.msra.mxu0 0
      %9361 = vmatprep.subr.bf16.mxu0 0
      %9362 = vmatpush1.bf16.msra.mxu0 0
      %9363 = vmatprep.subr.bf16.mxu0 0
      %9364 = vmatpush1.bf16.msra.mxu0 0
      %9365 = vmatprep.subr.bf16.mxu0 0
      %9366 = vmatpush1.bf16.msra.mxu0 0
      %9367 = vmatprep.subr.bf16.mxu0 0
      %9368 = vmatpush1.bf16.msra.mxu0 0
      %9369 = vmatprep.mubr.bf16.mxu0 0
      %9370 = vmatmul.mubr.bf16.gmra.mrb[0].mxu0 %v9278
      %v9371 = vpop.f32.mrb[0].mxu0
      %v9372 = vadd.f32 0.0, %v9371
      %v9373 = vpop.f32.mrb[0].mxu0
      %v9374 = vadd.f32 0.0, %v9373
      %v9375 = vpop.f32.mrb[0].mxu0
      %v9376 = vadd.f32 0.0, %v9375
      %v9377 = vpop.f32.mrb[0].mxu0
      %v9378 = vadd.f32 0.0, %v9377
      %9379 = vdwg.mxu0
      %v9380 = vpack.c.bf16 %v9333, %v9329
      %v9381 = vpack.c.bf16 %v9335, %v9331
      %v9382 = vpack.c.bf16 %v9376, %v9372
      %v9383 = vpack.c.bf16 %v9378, %v9374
      %v9384 = vld [vmem:[%s10] sm:$0xf]
      %v9385 = vld [vmem:[%s10 + $0x4] sm:$0xf]
      %v9386 = vld [vmem:[%s10 + $0x8] sm:$0xf]
      %v9387 = vld [vmem:[%s10 + $0xc] sm:$0xf]
      %v9388 = vld [vmem:[%s10 + $0x10] sm:$0xf]
      %v9389 = vld [vmem:[%s10 + $0x14] sm:$0xf]
      %v9390 = vld [vmem:[%s10 + $0x18] sm:$0xf]
      %v9391 = vld [vmem:[%s10 + $0x1c] sm:$0xf]
      %v9392 = vld [vmem:[%s10 + $0x20] sm:$0xf]
      %v9393 = vld [vmem:[%s10 + $0x24] sm:$0xf]
      %v9394 = vld [vmem:[%s10 + $0x28] sm:$0xf]
      %v9395 = vld [vmem:[%s10 + $0x2c] sm:$0xf]
      %v9396 = vld [vmem:[%s10 + $0x30] sm:$0xf]
      %v9397 = vld [vmem:[%s10 + $0x34] sm:$0xf]
      %v9398 = vld [vmem:[%s10 + $0x38] sm:$0xf]
      %v9399 = vld [vmem:[%s10 + $0x3c] sm:$0xf]
      %v9400 = vld [vmem:[%s10 + $0x40] sm:$0xf]
      %v9401 = vld [vmem:[%s10 + $0x44] sm:$0xf]
      %v9402 = vld [vmem:[%s10 + $0x48] sm:$0xf]
      %v9403 = vld [vmem:[%s10 + $0x4c] sm:$0xf]
      %v9404 = vld [vmem:[%s10 + $0x50] sm:$0xf]
      %v9405 = vld [vmem:[%s10 + $0x54] sm:$0xf]
      %v9406 = vld [vmem:[%s10 + $0x58] sm:$0xf]
      %v9407 = vld [vmem:[%s10 + $0x5c] sm:$0xf]
      %v9408 = vld [vmem:[%s10 + $0x60] sm:$0xf]
      %v9409 = vld [vmem:[%s10 + $0x64] sm:$0xf]
      %v9410 = vld [vmem:[%s10 + $0x68] sm:$0xf]
      %v9411 = vld [vmem:[%s10 + $0x6c] sm:$0xf]
      %v9412 = vld [vmem:[%s10 + $0x70] sm:$0xf]
      %v9413 = vld [vmem:[%s10 + $0x74] sm:$0xf]
      %v9414 = vld [vmem:[%s10 + $0x78] sm:$0xf]
      %v9415 = vld [vmem:[%s10 + $0x7c] sm:$0xf]
      %v9416 = vld [vmem:[%s10 + $0x80] sm:$0xf]
      %v9417 = vld [vmem:[%s10 + $0x84] sm:$0xf]
      %v9418 = vld [vmem:[%s10 + $0x88] sm:$0xf]
      %v9419 = vld [vmem:[%s10 + $0x8c] sm:$0xf]
      %v9420 = vld [vmem:[%s10 + $0x90] sm:$0xf]
      %v9421 = vld [vmem:[%s10 + $0x94] sm:$0xf]
      %v9422 = vld [vmem:[%s10 + $0x98] sm:$0xf]
      %v9423 = vld [vmem:[%s10 + $0x9c] sm:$0xf]
      %v9424 = vld [vmem:[%s10 + $0xa0] sm:$0xf]
      %v9425 = vld [vmem:[%s10 + $0xa4] sm:$0xf]
      %v9426 = vld [vmem:[%s10 + $0xa8] sm:$0xf]
      %v9427 = vld [vmem:[%s10 + $0xac] sm:$0xf]
      %v9428 = vld [vmem:[%s10 + $0xb0] sm:$0xf]
      %v9429 = vld [vmem:[%s10 + $0xb4] sm:$0xf]
      %v9430 = vld [vmem:[%s10 + $0xb8] sm:$0xf]
      %v9431 = vld [vmem:[%s10 + $0xbc] sm:$0xf]
      %v9432 = vld [vmem:[%s10 + $0xc0] sm:$0xf]
      %v9433 = vld [vmem:[%s10 + $0xc4] sm:$0xf]
      %v9434 = vld [vmem:[%s10 + $0xc8] sm:$0xf]
      %v9435 = vld [vmem:[%s10 + $0xcc] sm:$0xf]
      %v9436 = vld [vmem:[%s10 + $0xd0] sm:$0xf]
      %v9437 = vld [vmem:[%s10 + $0xd4] sm:$0xf]
      %v9438 = vld [vmem:[%s10 + $0xd8] sm:$0xf]
      %v9439 = vld [vmem:[%s10 + $0xdc] sm:$0xf]
      %v9440 = vld [vmem:[%s10 + $0xe0] sm:$0xf]
      %v9441 = vld [vmem:[%s10 + $0xe4] sm:$0xf]
      %v9442 = vld [vmem:[%s10 + $0xe8] sm:$0xf]
      %v9443 = vld [vmem:[%s10 + $0xec] sm:$0xf]
      %v9444 = vld [vmem:[%s10 + $0xf0] sm:$0xf]
      %v9445 = vld [vmem:[%s10 + $0xf4] sm:$0xf]
      %v9446 = vld [vmem:[%s10 + $0xf8] sm:$0xf]
      %v9447 = vld [vmem:[%s10 + $0xfc] sm:$0xf]
      %s9448 = scalar_lea.vmem %s10, 256
      %v9449 = vld [vmem:[%s9448] sm:$0xf]
      %v9450 = vld [vmem:[%s9448 + $0x4] sm:$0xf]
      %v9451 = vld [vmem:[%s9448 + $0x8] sm:$0xf]
      %v9452 = vld [vmem:[%s9448 + $0xc] sm:$0xf]
      %v9453 = vld [vmem:[%s9448 + $0x10] sm:$0xf]
      %v9454 = vld [vmem:[%s9448 + $0x14] sm:$0xf]
      %v9455 = vld [vmem:[%s9448 + $0x18] sm:$0xf]
      %v9456 = vld [vmem:[%s9448 + $0x1c] sm:$0xf]
      %v9457 = vld [vmem:[%s9448 + $0x20] sm:$0xf]
      %v9458 = vld [vmem:[%s9448 + $0x24] sm:$0xf]
      %v9459 = vld [vmem:[%s9448 + $0x28] sm:$0xf]
      %v9460 = vld [vmem:[%s9448 + $0x2c] sm:$0xf]
      %v9461 = vld [vmem:[%s9448 + $0x30] sm:$0xf]
      %v9462 = vld [vmem:[%s9448 + $0x34] sm:$0xf]
      %v9463 = vld [vmem:[%s9448 + $0x38] sm:$0xf]
      %v9464 = vld [vmem:[%s9448 + $0x3c] sm:$0xf]
      %v9465 = vld [vmem:[%s9448 + $0x40] sm:$0xf]
      %v9466 = vld [vmem:[%s9448 + $0x44] sm:$0xf]
      %v9467 = vld [vmem:[%s9448 + $0x48] sm:$0xf]
      %v9468 = vld [vmem:[%s9448 + $0x4c] sm:$0xf]
      %v9469 = vld [vmem:[%s9448 + $0x50] sm:$0xf]
      %v9470 = vld [vmem:[%s9448 + $0x54] sm:$0xf]
      %v9471 = vld [vmem:[%s9448 + $0x58] sm:$0xf]
      %v9472 = vld [vmem:[%s9448 + $0x5c] sm:$0xf]
      %v9473 = vld [vmem:[%s9448 + $0x60] sm:$0xf]
      %v9474 = vld [vmem:[%s9448 + $0x64] sm:$0xf]
      %v9475 = vld [vmem:[%s9448 + $0x68] sm:$0xf]
      %v9476 = vld [vmem:[%s9448 + $0x6c] sm:$0xf]
      %v9477 = vld [vmem:[%s9448 + $0x70] sm:$0xf]
      %v9478 = vld [vmem:[%s9448 + $0x74] sm:$0xf]
      %v9479 = vld [vmem:[%s9448 + $0x78] sm:$0xf]
      %v9480 = vld [vmem:[%s9448 + $0x7c] sm:$0xf]
      %v9481 = vld [vmem:[%s9448 + $0x80] sm:$0xf]
      %v9482 = vld [vmem:[%s9448 + $0x84] sm:$0xf]
      %v9483 = vld [vmem:[%s9448 + $0x88] sm:$0xf]
      %v9484 = vld [vmem:[%s9448 + $0x8c] sm:$0xf]
      %v9485 = vld [vmem:[%s9448 + $0x90] sm:$0xf]
      %v9486 = vld [vmem:[%s9448 + $0x94] sm:$0xf]
      %v9487 = vld [vmem:[%s9448 + $0x98] sm:$0xf]
      %v9488 = vld [vmem:[%s9448 + $0x9c] sm:$0xf]
      %v9489 = vld [vmem:[%s9448 + $0xa0] sm:$0xf]
      %v9490 = vld [vmem:[%s9448 + $0xa4] sm:$0xf]
      %v9491 = vld [vmem:[%s9448 + $0xa8] sm:$0xf]
      %v9492 = vld [vmem:[%s9448 + $0xac] sm:$0xf]
      %v9493 = vld [vmem:[%s9448 + $0xb0] sm:$0xf]
      %v9494 = vld [vmem:[%s9448 + $0xb4] sm:$0xf]
      %v9495 = vld [vmem:[%s9448 + $0xb8] sm:$0xf]
      %v9496 = vld [vmem:[%s9448 + $0xbc] sm:$0xf]
      %v9497 = vld [vmem:[%s9448 + $0xc0] sm:$0xf]
      %v9498 = vld [vmem:[%s9448 + $0xc4] sm:$0xf]
      %v9499 = vld [vmem:[%s9448 + $0xc8] sm:$0xf]
      %v9500 = vld [vmem:[%s9448 + $0xcc] sm:$0xf]
      %v9501 = vld [vmem:[%s9448 + $0xd0] sm:$0xf]
      %v9502 = vld [vmem:[%s9448 + $0xd4] sm:$0xf]
      %v9503 = vld [vmem:[%s9448 + $0xd8] sm:$0xf]
      %v9504 = vld [vmem:[%s9448 + $0xdc] sm:$0xf]
      %v9505 = vld [vmem:[%s9448 + $0xe0] sm:$0xf]
      %v9506 = vld [vmem:[%s9448 + $0xe4] sm:$0xf]
      %v9507 = vld [vmem:[%s9448 + $0xe8] sm:$0xf]
      %v9508 = vld [vmem:[%s9448 + $0xec] sm:$0xf]
      %v9509 = vld [vmem:[%s9448 + $0xf0] sm:$0xf]
      %v9510 = vld [vmem:[%s9448 + $0xf4] sm:$0xf]
      %v9511 = vld [vmem:[%s9448 + $0xf8] sm:$0xf]
      %v9512 = vld [vmem:[%s9448 + $0xfc] sm:$0xf]
      %v9514 = vshrl.u32 %v9380, 16
      %v9516 = vshll.u32 %v9380, 16
      %v9518 = vrot.slane %v9516, 1
      %v9519 = vor.u32 %v9514, %v9518
      %v9521 = vshrl.u32 %v9381, 16
      %v9523 = vshll.u32 %v9381, 16
      %v9525 = vrot.slane %v9523, 1
      %v9526 = vor.u32 %v9521, %v9525
      %v9528 = vshrl.u32 %v9382, 16
      %v9530 = vshll.u32 %v9382, 16
      %v9532 = vrot.slane %v9530, 1
      %v9533 = vor.u32 %v9528, %v9532
      %v9535 = vshrl.u32 %v9383, 16
      %v9537 = vshll.u32 %v9383, 16
      %v9539 = vrot.slane %v9537, 1
      %v9540 = vor.u32 %v9535, %v9539
      %v9609 = vunpack.c.l.b16 %v9449
      %v9610 = vunpack.c.l.b16 %v9450
      %v9611 = vunpack.c.l.b16 %v9451
      %v9612 = vunpack.c.l.b16 %v9452
      %v9613 = vunpack.c.l.b16 %v9453
      %v9614 = vunpack.c.l.b16 %v9454
      %v9615 = vunpack.c.l.b16 %v9455
      %v9616 = vunpack.c.l.b16 %v9456
      %v9617 = vunpack.c.l.b16 %v9457
      %v9618 = vunpack.c.l.b16 %v9458
      %v9619 = vunpack.c.l.b16 %v9459
      %v9620 = vunpack.c.l.b16 %v9460
      %v9621 = vunpack.c.l.b16 %v9461
      %v9622 = vunpack.c.l.b16 %v9462
      %v9623 = vunpack.c.l.b16 %v9463
      %v9624 = vunpack.c.l.b16 %v9464
      %v9625 = vunpack.c.l.b16 %v9465
      %v9626 = vunpack.c.l.b16 %v9466
      %v9627 = vunpack.c.l.b16 %v9467
      %v9628 = vunpack.c.l.b16 %v9468
      %v9629 = vunpack.c.l.b16 %v9469
      %v9630 = vunpack.c.l.b16 %v9470
      %v9631 = vunpack.c.l.b16 %v9471
      %v9632 = vunpack.c.l.b16 %v9472
      %v9633 = vunpack.c.l.b16 %v9473
      %v9634 = vunpack.c.l.b16 %v9474
      %v9635 = vunpack.c.l.b16 %v9475
      %v9636 = vunpack.c.l.b16 %v9476
      %v9637 = vunpack.c.l.b16 %v9477
      %v9638 = vunpack.c.l.b16 %v9478
      %v9639 = vunpack.c.l.b16 %v9479
      %v9640 = vunpack.c.l.b16 %v9480
      %v9641 = vunpack.c.l.b16 %v9481
      %v9642 = vunpack.c.l.b16 %v9482
      %v9643 = vunpack.c.l.b16 %v9483
      %v9644 = vunpack.c.l.b16 %v9484
      %v9645 = vunpack.c.l.b16 %v9485
      %v9646 = vunpack.c.l.b16 %v9486
      %v9647 = vunpack.c.l.b16 %v9487
      %v9648 = vunpack.c.l.b16 %v9488
      %v9649 = vunpack.c.l.b16 %v9489
      %v9650 = vunpack.c.l.b16 %v9490
      %v9651 = vunpack.c.l.b16 %v9491
      %v9652 = vunpack.c.l.b16 %v9492
      %v9653 = vunpack.c.l.b16 %v9493
      %v9654 = vunpack.c.l.b16 %v9494
      %v9655 = vunpack.c.l.b16 %v9495
      %v9656 = vunpack.c.l.b16 %v9496
      %v9657 = vunpack.c.l.b16 %v9497
      %v9658 = vunpack.c.l.b16 %v9498
      %v9659 = vunpack.c.l.b16 %v9499
      %v9660 = vunpack.c.l.b16 %v9500
      %v9661 = vunpack.c.l.b16 %v9501
      %v9662 = vunpack.c.l.b16 %v9502
      %v9663 = vunpack.c.l.b16 %v9503
      %v9664 = vunpack.c.l.b16 %v9504
      %v9665 = vunpack.c.l.b16 %v9505
      %v9666 = vunpack.c.l.b16 %v9506
      %v9667 = vunpack.c.l.b16 %v9507
      %v9668 = vunpack.c.l.b16 %v9508
      %v9669 = vunpack.c.l.b16 %v9509
      %v9670 = vunpack.c.l.b16 %v9510
      %v9671 = vunpack.c.l.b16 %v9511
      %v9672 = vunpack.c.l.b16 %v9512
      %v9673 = vpack.c.b16 %v9610, %v9609
      %v9674 = vpack.c.b16 %v9612, %v9611
      %v9675 = vpack.c.b16 %v9614, %v9613
      %v9676 = vpack.c.b16 %v9616, %v9615
      %v9677 = vpack.c.b16 %v9618, %v9617
      %v9678 = vpack.c.b16 %v9620, %v9619
      %v9679 = vpack.c.b16 %v9622, %v9621
      %v9680 = vpack.c.b16 %v9624, %v9623
      %v9681 = vpack.c.b16 %v9626, %v9625
      %v9682 = vpack.c.b16 %v9628, %v9627
      %v9683 = vpack.c.b16 %v9630, %v9629
      %v9684 = vpack.c.b16 %v9632, %v9631
      %v9685 = vpack.c.b16 %v9634, %v9633
      %v9686 = vpack.c.b16 %v9636, %v9635
      %v9687 = vpack.c.b16 %v9638, %v9637
      %v9688 = vpack.c.b16 %v9640, %v9639
      %v9689 = vpack.c.b16 %v9642, %v9641
      %v9690 = vpack.c.b16 %v9644, %v9643
      %v9691 = vpack.c.b16 %v9646, %v9645
      %v9692 = vpack.c.b16 %v9648, %v9647
      %v9693 = vpack.c.b16 %v9650, %v9649
      %v9694 = vpack.c.b16 %v9652, %v9651
      %v9695 = vpack.c.b16 %v9654, %v9653
      %v9696 = vpack.c.b16 %v9656, %v9655
      %v9697 = vpack.c.b16 %v9658, %v9657
      %v9698 = vpack.c.b16 %v9660, %v9659
      %v9699 = vpack.c.b16 %v9662, %v9661
      %v9700 = vpack.c.b16 %v9664, %v9663
      %v9701 = vpack.c.b16 %v9666, %v9665
      %v9702 = vpack.c.b16 %v9668, %v9667
      %v9703 = vpack.c.b16 %v9670, %v9669
      %v9704 = vpack.c.b16 %v9672, %v9671
      %9737 = vmatprep.subr.bf16.mxu0 0
      %9738 = vmatpush1.bf16.msra.mxu0 %v9673
      %9739 = vmatprep.subr.bf16.mxu0 0
      %9740 = vmatpush1.bf16.msra.mxu0 %v9674
      %9741 = vmatprep.subr.bf16.mxu0 0
      %9742 = vmatpush1.bf16.msra.mxu0 %v9675
      %9743 = vmatprep.subr.bf16.mxu0 0
      %9744 = vmatpush1.bf16.msra.mxu0 %v9676
      %9745 = vmatprep.subr.bf16.mxu0 0
      %9746 = vmatpush1.bf16.msra.mxu0 %v9677
      %9747 = vmatprep.subr.bf16.mxu0 0
      %9748 = vmatpush1.bf16.msra.mxu0 %v9678
      %9749 = vmatprep.subr.bf16.mxu0 0
      %9750 = vmatpush1.bf16.msra.mxu0 %v9679
      %9751 = vmatprep.subr.bf16.mxu0 0
      %9752 = vmatpush1.bf16.msra.mxu0 %v9680
      %9753 = vmatprep.subr.bf16.mxu0 0
      %9754 = vmatpush1.bf16.msra.mxu0 %v9681
      %9755 = vmatprep.subr.bf16.mxu0 0
      %9756 = vmatpush1.bf16.msra.mxu0 %v9682
      %9757 = vmatprep.subr.bf16.mxu0 0
      %9758 = vmatpush1.bf16.msra.mxu0 %v9683
      %9759 = vmatprep.subr.bf16.mxu0 0
      %9760 = vmatpush1.bf16.msra.mxu0 %v9684
      %9761 = vmatprep.subr.bf16.mxu0 0
      %9762 = vmatpush1.bf16.msra.mxu0 %v9685
      %9763 = vmatprep.subr.bf16.mxu0 0
      %9764 = vmatpush1.bf16.msra.mxu0 %v9686
      %9765 = vmatprep.subr.bf16.mxu0 0
      %9766 = vmatpush1.bf16.msra.mxu0 %v9687
      %9767 = vmatprep.subr.bf16.mxu0 0
      %9768 = vmatpush1.bf16.msra.mxu0 %v9688
      %9769 = vmatprep.mubr.bf16.mxu0 %v9526
      %9770 = vmatmul.mubr.bf16.gmra.mrb[0].mxu0 %v9519
      %v9771 = vpop.f32.mrb[0].mxu0
      %v9772 = vadd.f32 0.0, %v9771
      %v9773 = vpop.f32.mrb[0].mxu0
      %v9774 = vpop.f32.mrb[0].mxu0
      %v9775 = vpop.f32.mrb[0].mxu0
      %9776 = vdwg.mxu0
      %9777 = vmatprep.subr.bf16.mxu0 0
      %9778 = vmatpush1.bf16.msra.mxu0 %v9689
      %9779 = vmatprep.subr.bf16.mxu0 0
      %9780 = vmatpush1.bf16.msra.mxu0 %v9690
      %9781 = vmatprep.subr.bf16.mxu0 0
      %9782 = vmatpush1.bf16.msra.mxu0 %v9691
      %9783 = vmatprep.subr.bf16.mxu0 0
      %9784 = vmatpush1.bf16.msra.mxu0 %v9692
      %9785 = vmatprep.subr.bf16.mxu0 0
      %9786 = vmatpush1.bf16.msra.mxu0 %v9693
      %9787 = vmatprep.subr.bf16.mxu0 0
      %9788 = vmatpush1.bf16.msra.mxu0 %v9694
      %9789 = vmatprep.subr.bf16.mxu0 0
      %9790 = vmatpush1.bf16.msra.mxu0 %v9695
      %9791 = vmatprep.subr.bf16.mxu0 0
      %9792 = vmatpush1.bf16.msra.mxu0 %v9696
      %9793 = vmatprep.subr.bf16.mxu0 0
      %9794 = vmatpush1.bf16.msra.mxu0 %v9697
      %9795 = vmatprep.subr.bf16.mxu0 0
      %9796 = vmatpush1.bf16.msra.mxu0 %v9698
      %9797 = vmatprep.subr.bf16.mxu0 0
      %9798 = vmatpush1.bf16.msra.mxu0 %v9699
      %9799 = vmatprep.subr.bf16.mxu0 0
      %9800 = vmatpush1.bf16.msra.mxu0 %v9700
      %9801 = vmatprep.subr.bf16.mxu0 0
      %9802 = vmatpush1.bf16.msra.mxu0 %v9701
      %9803 = vmatprep.subr.bf16.mxu0 0
      %9804 = vmatpush1.bf16.msra.mxu0 %v9702
      %9805 = vmatprep.subr.bf16.mxu0 0
      %9806 = vmatpush1.bf16.msra.mxu0 %v9703
      %9807 = vmatprep.subr.bf16.mxu0 0
      %9808 = vmatpush1.bf16.msra.mxu0 %v9704
      %9809 = vmatprep.mubr.bf16.mxu0 %v9540
      %9810 = vmatmul.mubr.bf16.gmra.mrb[0].mxu0 %v9533
      %v9811 = vpop.f32.mrb[0].mxu0
      %v9812 = vadd.f32 %v9772, %v9811
      %v9813 = vpop.f32.mrb[0].mxu0
      %v9814 = vpop.f32.mrb[0].mxu0
      %v9815 = vpop.f32.mrb[0].mxu0
      %9816 = vdwg.mxu0
      %v9881 = vunpack.c.l.b16 %v9384
      %v9882 = vunpack.c.l.b16 %v9385
      %v9883 = vunpack.c.l.b16 %v9386
      %v9884 = vunpack.c.l.b16 %v9387
      %v9885 = vunpack.c.l.b16 %v9388
      %v9886 = vunpack.c.l.b16 %v9389
      %v9887 = vunpack.c.l.b16 %v9390
      %v9888 = vunpack.c.l.b16 %v9391
      %v9889 = vunpack.c.l.b16 %v9392
      %v9890 = vunpack.c.l.b16 %v9393
      %v9891 = vunpack.c.l.b16 %v9394
      %v9892 = vunpack.c.l.b16 %v9395
      %v9893 = vunpack.c.l.b16 %v9396
      %v9894 = vunpack.c.l.b16 %v9397
      %v9895 = vunpack.c.l.b16 %v9398
      %v9896 = vunpack.c.l.b16 %v9399
      %v9897 = vunpack.c.l.b16 %v9400
      %v9898 = vunpack.c.l.b16 %v9401
      %v9899 = vunpack.c.l.b16 %v9402
      %v9900 = vunpack.c.l.b16 %v9403
      %v9901 = vunpack.c.l.b16 %v9404
      %v9902 = vunpack.c.l.b16 %v9405
      %v9903 = vunpack.c.l.b16 %v9406
      %v9904 = vunpack.c.l.b16 %v9407
      %v9905 = vunpack.c.l.b16 %v9408
      %v9906 = vunpack.c.l.b16 %v9409
      %v9907 = vunpack.c.l.b16 %v9410
      %v9908 = vunpack.c.l.b16 %v9411
      %v9909 = vunpack.c.l.b16 %v9412
      %v9910 = vunpack.c.l.b16 %v9413
      %v9911 = vunpack.c.l.b16 %v9414
      %v9912 = vunpack.c.l.b16 %v9415
      %v9913 = vunpack.c.l.b16 %v9416
      %v9914 = vunpack.c.l.b16 %v9417
      %v9915 = vunpack.c.l.b16 %v9418
      %v9916 = vunpack.c.l.b16 %v9419
      %v9917 = vunpack.c.l.b16 %v9420
      %v9918 = vunpack.c.l.b16 %v9421
      %v9919 = vunpack.c.l.b16 %v9422
      %v9920 = vunpack.c.l.b16 %v9423
      %v9921 = vunpack.c.l.b16 %v9424
      %v9922 = vunpack.c.l.b16 %v9425
      %v9923 = vunpack.c.l.b16 %v9426
      %v9924 = vunpack.c.l.b16 %v9427
      %v9925 = vunpack.c.l.b16 %v9428
      %v9926 = vunpack.c.l.b16 %v9429
      %v9927 = vunpack.c.l.b16 %v9430
      %v9928 = vunpack.c.l.b16 %v9431
      %v9929 = vunpack.c.l.b16 %v9432
      %v9930 = vunpack.c.l.b16 %v9433
      %v9931 = vunpack.c.l.b16 %v9434
      %v9932 = vunpack.c.l.b16 %v9435
      %v9933 = vunpack.c.l.b16 %v9436
      %v9934 = vunpack.c.l.b16 %v9437
      %v9935 = vunpack.c.l.b16 %v9438
      %v9936 = vunpack.c.l.b16 %v9439
      %v9937 = vunpack.c.l.b16 %v9440
      %v9938 = vunpack.c.l.b16 %v9441
      %v9939 = vunpack.c.l.b16 %v9442
      %v9940 = vunpack.c.l.b16 %v9443
      %v9941 = vunpack.c.l.b16 %v9444
      %v9942 = vunpack.c.l.b16 %v9445
      %v9943 = vunpack.c.l.b16 %v9446
      %v9944 = vunpack.c.l.b16 %v9447
      %v9945 = vpack.c.b16 %v9882, %v9881
      %v9946 = vpack.c.b16 %v9884, %v9883
      %v9947 = vpack.c.b16 %v9886, %v9885
      %v9948 = vpack.c.b16 %v9888, %v9887
      %v9949 = vpack.c.b16 %v9890, %v9889
      %v9950 = vpack.c.b16 %v9892, %v9891
      %v9951 = vpack.c.b16 %v9894, %v9893
      %v9952 = vpack.c.b16 %v9896, %v9895
      %v9953 = vpack.c.b16 %v9898, %v9897
      %v9954 = vpack.c.b16 %v9900, %v9899
      %v9955 = vpack.c.b16 %v9902, %v9901
      %v9956 = vpack.c.b16 %v9904, %v9903
      %v9957 = vpack.c.b16 %v9906, %v9905
      %v9958 = vpack.c.b16 %v9908, %v9907
      %v9959 = vpack.c.b16 %v9910, %v9909
      %v9960 = vpack.c.b16 %v9912, %v9911
      %v9961 = vpack.c.b16 %v9914, %v9913
      %v9962 = vpack.c.b16 %v9916, %v9915
      %v9963 = vpack.c.b16 %v9918, %v9917
      %v9964 = vpack.c.b16 %v9920, %v9919
      %v9965 = vpack.c.b16 %v9922, %v9921
      %v9966 = vpack.c.b16 %v9924, %v9923
      %v9967 = vpack.c.b16 %v9926, %v9925
      %v9968 = vpack.c.b16 %v9928, %v9927
      %v9969 = vpack.c.b16 %v9930, %v9929
      %v9970 = vpack.c.b16 %v9932, %v9931
      %v9971 = vpack.c.b16 %v9934, %v9933
      %v9972 = vpack.c.b16 %v9936, %v9935
      %v9973 = vpack.c.b16 %v9938, %v9937
      %v9974 = vpack.c.b16 %v9940, %v9939
      %v9975 = vpack.c.b16 %v9942, %v9941
      %v9976 = vpack.c.b16 %v9944, %v9943
      %10009 = vmatprep.subr.bf16.mxu0 0
      %10010 = vmatpush1.bf16.msra.mxu0 %v9945
      %10011 = vmatprep.subr.bf16.mxu0 0
      %10012 = vmatpush1.bf16.msra.mxu0 %v9946
      %10013 = vmatprep.subr.bf16.mxu0 0
      %10014 = vmatpush1.bf16.msra.mxu0 %v9947
      %10015 = vmatprep.subr.bf16.mxu0 0
      %10016 = vmatpush1.bf16.msra.mxu0 %v9948
      %10017 = vmatprep.subr.bf16.mxu0 0
      %10018 = vmatpush1.bf16.msra.mxu0 %v9949
      %10019 = vmatprep.subr.bf16.mxu0 0
      %10020 = vmatpush1.bf16.msra.mxu0 %v9950
      %10021 = vmatprep.subr.bf16.mxu0 0
      %10022 = vmatpush1.bf16.msra.mxu0 %v9951
      %10023 = vmatprep.subr.bf16.mxu0 0
      %10024 = vmatpush1.bf16.msra.mxu0 %v9952
      %10025 = vmatprep.subr.bf16.mxu0 0
      %10026 = vmatpush1.bf16.msra.mxu0 %v9953
      %10027 = vmatprep.subr.bf16.mxu0 0
      %10028 = vmatpush1.bf16.msra.mxu0 %v9954
      %10029 = vmatprep.subr.bf16.mxu0 0
      %10030 = vmatpush1.bf16.msra.mxu0 %v9955
      %10031 = vmatprep.subr.bf16.mxu0 0
      %10032 = vmatpush1.bf16.msra.mxu0 %v9956
      %10033 = vmatprep.subr.bf16.mxu0 0
      %10034 = vmatpush1.bf16.msra.mxu0 %v9957
      %10035 = vmatprep.subr.bf16.mxu0 0
      %10036 = vmatpush1.bf16.msra.mxu0 %v9958
      %10037 = vmatprep.subr.bf16.mxu0 0
      %10038 = vmatpush1.bf16.msra.mxu0 %v9959
      %10039 = vmatprep.subr.bf16.mxu0 0
      %10040 = vmatpush1.bf16.msra.mxu0 %v9960
      %10041 = vmatprep.mubr.bf16.mxu0 %v9381
      %10042 = vmatmul.mubr.bf16.gmra.mrb[0].mxu0 %v9380
      %v10043 = vpop.f32.mrb[0].mxu0
      %v10044 = vadd.f32 %v9812, %v10043
      %v10045 = vpop.f32.mrb[0].mxu0
      %v10046 = vpop.f32.mrb[0].mxu0
      %v10047 = vpop.f32.mrb[0].mxu0
      %10048 = vdwg.mxu0
      %10049 = vmatprep.subr.bf16.mxu0 0
      %10050 = vmatpush1.bf16.msra.mxu0 %v9961
      %10051 = vmatprep.subr.bf16.mxu0 0
      %10052 = vmatpush1.bf16.msra.mxu0 %v9962
      %10053 = vmatprep.subr.bf16.mxu0 0
      %10054 = vmatpush1.bf16.msra.mxu0 %v9963
      %10055 = vmatprep.subr.bf16.mxu0 0
      %10056 = vmatpush1.bf16.msra.mxu0 %v9964
      %10057 = vmatprep.subr.bf16.mxu0 0
      %10058 = vmatpush1.bf16.msra.mxu0 %v9965
      %10059 = vmatprep.subr.bf16.mxu0 0
      %10060 = vmatpush1.bf16.msra.mxu0 %v9966
      %10061 = vmatprep.subr.bf16.mxu0 0
      %10062 = vmatpush1.bf16.msra.mxu0 %v9967
      %10063 = vmatprep.subr.bf16.mxu0 0
      %10064 = vmatpush1.bf16.msra.mxu0 %v9968
      %10065 = vmatprep.subr.bf16.mxu0 0
      %10066 = vmatpush1.bf16.msra.mxu0 %v9969
      %10067 = vmatprep.subr.bf16.mxu0 0
      %10068 = vmatpush1.bf16.msra.mxu0 %v9970
      %10069 = vmatprep.subr.bf16.mxu0 0
      %10070 = vmatpush1.bf16.msra.mxu0 %v9971
      %10071 = vmatprep.subr.bf16.mxu0 0
      %10072 = vmatpush1.bf16.msra.mxu0 %v9972
      %10073 = vmatprep.subr.bf16.mxu0 0
      %10074 = vmatpush1.bf16.msra.mxu0 %v9973
      %10075 = vmatprep.subr.bf16.mxu0 0
      %10076 = vmatpush1.bf16.msra.mxu0 %v9974
      %10077 = vmatprep.subr.bf16.mxu0 0
      %10078 = vmatpush1.bf16.msra.mxu0 %v9975
      %10079 = vmatprep.subr.bf16.mxu0 0
      %10080 = vmatpush1.bf16.msra.mxu0 %v9976
      %10081 = vmatprep.mubr.bf16.mxu0 %v9383
      %10082 = vmatmul.mubr.bf16.gmra.mrb[0].mxu0 %v9382
      %v10083 = vpop.f32.mrb[0].mxu0
      %v10084 = vadd.f32 %v10044, %v10083
      %v10085 = vpop.f32.mrb[0].mxu0
      %v10086 = vpop.f32.mrb[0].mxu0
      %v10087 = vpop.f32.mrb[0].mxu0
      %10088 = vdwg.mxu0
      %s10089 = scalar_lea.vmem %s10, 512
      %v10090 = vld [vmem:[%s10089] sm:$0xf]
      %v10091 = vld [vmem:[%s10089 + $0x4] sm:$0xf]
      %v10092 = vld [vmem:[%s10089 + $0x8] sm:$0xf]
      %v10093 = vld [vmem:[%s10089 + $0xc] sm:$0xf]
      %v10094 = vld [vmem:[%s10089 + $0x10] sm:$0xf]
      %v10095 = vld [vmem:[%s10089 + $0x14] sm:$0xf]
      %v10096 = vld [vmem:[%s10089 + $0x18] sm:$0xf]
      %v10097 = vld [vmem:[%s10089 + $0x1c] sm:$0xf]
      %v10098 = vld [vmem:[%s10089 + $0x20] sm:$0xf]
      %v10099 = vld [vmem:[%s10089 + $0x24] sm:$0xf]
      %v10100 = vld [vmem:[%s10089 + $0x28] sm:$0xf]
      %v10101 = vld [vmem:[%s10089 + $0x2c] sm:$0xf]
      %v10102 = vld [vmem:[%s10089 + $0x30] sm:$0xf]
      %v10103 = vld [vmem:[%s10089 + $0x34] sm:$0xf]
      %v10104 = vld [vmem:[%s10089 + $0x38] sm:$0xf]
      %v10105 = vld [vmem:[%s10089 + $0x3c] sm:$0xf]
      %v10106 = vld [vmem:[%s10089 + $0x40] sm:$0xf]
      %v10107 = vld [vmem:[%s10089 + $0x44] sm:$0xf]
      %v10108 = vld [vmem:[%s10089 + $0x48] sm:$0xf]
      %v10109 = vld [vmem:[%s10089 + $0x4c] sm:$0xf]
      %v10110 = vld [vmem:[%s10089 + $0x50] sm:$0xf]
      %v10111 = vld [vmem:[%s10089 + $0x54] sm:$0xf]
      %v10112 = vld [vmem:[%s10089 + $0x58] sm:$0xf]
      %v10113 = vld [vmem:[%s10089 + $0x5c] sm:$0xf]
      %v10114 = vld [vmem:[%s10089 + $0x60] sm:$0xf]
      %v10115 = vld [vmem:[%s10089 + $0x64] sm:$0xf]
      %v10116 = vld [vmem:[%s10089 + $0x68] sm:$0xf]
      %v10117 = vld [vmem:[%s10089 + $0x6c] sm:$0xf]
      %v10118 = vld [vmem:[%s10089 + $0x70] sm:$0xf]
      %v10119 = vld [vmem:[%s10089 + $0x74] sm:$0xf]
      %v10120 = vld [vmem:[%s10089 + $0x78] sm:$0xf]
      %v10121 = vld [vmem:[%s10089 + $0x7c] sm:$0xf]
      %v10122 = vld [vmem:[%s10089 + $0x80] sm:$0xf]
      %v10123 = vld [vmem:[%s10089 + $0x84] sm:$0xf]
      %v10124 = vld [vmem:[%s10089 + $0x88] sm:$0xf]
      %v10125 = vld [vmem:[%s10089 + $0x8c] sm:$0xf]
      %v10126 = vld [vmem:[%s10089 + $0x90] sm:$0xf]
      %v10127 = vld [vmem:[%s10089 + $0x94] sm:$0xf]
      %v10128 = vld [vmem:[%s10089 + $0x98] sm:$0xf]
      %v10129 = vld [vmem:[%s10089 + $0x9c] sm:$0xf]
      %v10130 = vld [vmem:[%s10089 + $0xa0] sm:$0xf]
      %v10131 = vld [vmem:[%s10089 + $0xa4] sm:$0xf]
      %v10132 = vld [vmem:[%s10089 + $0xa8] sm:$0xf]
      %v10133 = vld [vmem:[%s10089 + $0xac] sm:$0xf]
      %v10134 = vld [vmem:[%s10089 + $0xb0] sm:$0xf]
      %v10135 = vld [vmem:[%s10089 + $0xb4] sm:$0xf]
      %v10136 = vld [vmem:[%s10089 + $0xb8] sm:$0xf]
      %v10137 = vld [vmem:[%s10089 + $0xbc] sm:$0xf]
      %v10138 = vld [vmem:[%s10089 + $0xc0] sm:$0xf]
      %v10139 = vld [vmem:[%s10089 + $0xc4] sm:$0xf]
      %v10140 = vld [vmem:[%s10089 + $0xc8] sm:$0xf]
      %v10141 = vld [vmem:[%s10089 + $0xcc] sm:$0xf]
      %v10142 = vld [vmem:[%s10089 + $0xd0] sm:$0xf]
      %v10143 = vld [vmem:[%s10089 + $0xd4] sm:$0xf]
      %v10144 = vld [vmem:[%s10089 + $0xd8] sm:$0xf]
      %v10145 = vld [vmem:[%s10089 + $0xdc] sm:$0xf]
      %v10146 = vld [vmem:[%s10089 + $0xe0] sm:$0xf]
      %v10147 = vld [vmem:[%s10089 + $0xe4] sm:$0xf]
      %v10148 = vld [vmem:[%s10089 + $0xe8] sm:$0xf]
      %v10149 = vld [vmem:[%s10089 + $0xec] sm:$0xf]
      %v10150 = vld [vmem:[%s10089 + $0xf0] sm:$0xf]
      %v10151 = vld [vmem:[%s10089 + $0xf4] sm:$0xf]
      %v10152 = vld [vmem:[%s10089 + $0xf8] sm:$0xf]
      %v10153 = vld [vmem:[%s10089 + $0xfc] sm:$0xf]
      %v10158 = vrot.slane %v9380, 1
      %v10159 = vrot.slane %v9381, 1
      %v10160 = vrot.slane %v9382, 1
      %v10161 = vrot.slane %v9383, 1
      %v10230 = vunpack.c.l.b16 %v10090
      %v10231 = vunpack.c.l.b16 %v10091
      %v10232 = vunpack.c.l.b16 %v10092
      %v10233 = vunpack.c.l.b16 %v10093
      %v10234 = vunpack.c.l.b16 %v10094
      %v10235 = vunpack.c.l.b16 %v10095
      %v10236 = vunpack.c.l.b16 %v10096
      %v10237 = vunpack.c.l.b16 %v10097
      %v10238 = vunpack.c.l.b16 %v10098
      %v10239 = vunpack.c.l.b16 %v10099
      %v10240 = vunpack.c.l.b16 %v10100
      %v10241 = vunpack.c.l.b16 %v10101
      %v10242 = vunpack.c.l.b16 %v10102
      %v10243 = vunpack.c.l.b16 %v10103
      %v10244 = vunpack.c.l.b16 %v10104
      %v10245 = vunpack.c.l.b16 %v10105
      %v10246 = vunpack.c.l.b16 %v10106
      %v10247 = vunpack.c.l.b16 %v10107
      %v10248 = vunpack.c.l.b16 %v10108
      %v10249 = vunpack.c.l.b16 %v10109
      %v10250 = vunpack.c.l.b16 %v10110
      %v10251 = vunpack.c.l.b16 %v10111
      %v10252 = vunpack.c.l.b16 %v10112
      %v10253 = vunpack.c.l.b16 %v10113
      %v10254 = vunpack.c.l.b16 %v10114
      %v10255 = vunpack.c.l.b16 %v10115
      %v10256 = vunpack.c.l.b16 %v10116
      %v10257 = vunpack.c.l.b16 %v10117
      %v10258 = vunpack.c.l.b16 %v10118
      %v10259 = vunpack.c.l.b16 %v10119
      %v10260 = vunpack.c.l.b16 %v10120
      %v10261 = vunpack.c.l.b16 %v10121
      %v10262 = vunpack.c.l.b16 %v10122
      %v10263 = vunpack.c.l.b16 %v10123
      %v10264 = vunpack.c.l.b16 %v10124
      %v10265 = vunpack.c.l.b16 %v10125
      %v10266 = vunpack.c.l.b16 %v10126
      %v10267 = vunpack.c.l.b16 %v10127
      %v10268 = vunpack.c.l.b16 %v10128
      %v10269 = vunpack.c.l.b16 %v10129
      %v10270 = vunpack.c.l.b16 %v10130
      %v10271 = vunpack.c.l.b16 %v10131
      %v10272 = vunpack.c.l.b16 %v10132
      %v10273 = vunpack.c.l.b16 %v10133
      %v10274 = vunpack.c.l.b16 %v10134
      %v10275 = vunpack.c.l.b16 %v10135
      %v10276 = vunpack.c.l.b16 %v10136
      %v10277 = vunpack.c.l.b16 %v10137
      %v10278 = vunpack.c.l.b16 %v10138
      %v10279 = vunpack.c.l.b16 %v10139
      %v10280 = vunpack.c.l.b16 %v10140
      %v10281 = vunpack.c.l.b16 %v10141
      %v10282 = vunpack.c.l.b16 %v10142
      %v10283 = vunpack.c.l.b16 %v10143
      %v10284 = vunpack.c.l.b16 %v10144
      %v10285 = vunpack.c.l.b16 %v10145
      %v10286 = vunpack.c.l.b16 %v10146
      %v10287 = vunpack.c.l.b16 %v10147
      %v10288 = vunpack.c.l.b16 %v10148
      %v10289 = vunpack.c.l.b16 %v10149
      %v10290 = vunpack.c.l.b16 %v10150
      %v10291 = vunpack.c.l.b16 %v10151
      %v10292 = vunpack.c.l.b16 %v10152
      %v10293 = vunpack.c.l.b16 %v10153
      %v10294 = vpack.c.b16 %v10231, %v10230
      %v10295 = vpack.c.b16 %v10233, %v10232
      %v10296 = vpack.c.b16 %v10235, %v10234
      %v10297 = vpack.c.b16 %v10237, %v10236
      %v10298 = vpack.c.b16 %v10239, %v10238
      %v10299 = vpack.c.b16 %v10241, %v10240
      %v10300 = vpack.c.b16 %v10243, %v10242
      %v10301 = vpack.c.b16 %v10245, %v10244
      %v10302 = vpack.c.b16 %v10247, %v10246
      %v10303 = vpack.c.b16 %v10249, %v10248
      %v10304 = vpack.c.b16 %v10251, %v10250
      %v10305 = vpack.c.b16 %v10253, %v10252
      %v10306 = vpack.c.b16 %v10255, %v10254
      %v10307 = vpack.c.b16 %v10257, %v10256
      %v10308 = vpack.c.b16 %v10259, %v10258
      %v10309 = vpack.c.b16 %v10261, %v10260
      %v10310 = vpack.c.b16 %v10263, %v10262
      %v10311 = vpack.c.b16 %v10265, %v10264
      %v10312 = vpack.c.b16 %v10267, %v10266
      %v10313 = vpack.c.b16 %v10269, %v10268
      %v10314 = vpack.c.b16 %v10271, %v10270
      %v10315 = vpack.c.b16 %v10273, %v10272
      %v10316 = vpack.c.b16 %v10275, %v10274
      %v10317 = vpack.c.b16 %v10277, %v10276
      %v10318 = vpack.c.b16 %v10279, %v10278
      %v10319 = vpack.c.b16 %v10281, %v10280
      %v10320 = vpack.c.b16 %v10283, %v10282
      %v10321 = vpack.c.b16 %v10285, %v10284
      %v10322 = vpack.c.b16 %v10287, %v10286
      %v10323 = vpack.c.b16 %v10289, %v10288
      %v10324 = vpack.c.b16 %v10291, %v10290
      %v10325 = vpack.c.b16 %v10293, %v10292
      %10358 = vmatprep.subr.bf16.mxu0 0
      %10359 = vmatpush1.bf16.msra.mxu0 %v10294
      %10360 = vmatprep.subr.bf16.mxu0 0
      %10361 = vmatpush1.bf16.msra.mxu0 %v10295
      %10362 = vmatprep.subr.bf16.mxu0 0
      %10363 = vmatpush1.bf16.msra.mxu0 %v10296
      %10364 = vmatprep.subr.bf16.mxu0 0
      %10365 = vmatpush1.bf16.msra.mxu0 %v10297
      %10366 = vmatprep.subr.bf16.mxu0 0
      %10367 = vmatpush1.bf16.msra.mxu0 %v10298
      %10368 = vmatprep.subr.bf16.mxu0 0
      %10369 = vmatpush1.bf16.msra.mxu0 %v10299
      %10370 = vmatprep.subr.bf16.mxu0 0
      %10371 = vmatpush1.bf16.msra.mxu0 %v10300
      %10372 = vmatprep.subr.bf16.mxu0 0
      %10373 = vmatpush1.bf16.msra.mxu0 %v10301
      %10374 = vmatprep.subr.bf16.mxu0 0
      %10375 = vmatpush1.bf16.msra.mxu0 %v10302
      %10376 = vmatprep.subr.bf16.mxu0 0
      %10377 = vmatpush1.bf16.msra.mxu0 %v10303
      %10378 = vmatprep.subr.bf16.mxu0 0
      %10379 = vmatpush1.bf16.msra.mxu0 %v10304
      %10380 = vmatprep.subr.bf16.mxu0 0
      %10381 = vmatpush1.bf16.msra.mxu0 %v10305
      %10382 = vmatprep.subr.bf16.mxu0 0
      %10383 = vmatpush1.bf16.msra.mxu0 %v10306
      %10384 = vmatprep.subr.bf16.mxu0 0
      %10385 = vmatpush1.bf16.msra.mxu0 %v10307
      %10386 = vmatprep.subr.bf16.mxu0 0
      %10387 = vmatpush1.bf16.msra.mxu0 %v10308
      %10388 = vmatprep.subr.bf16.mxu0 0
      %10389 = vmatpush1.bf16.msra.mxu0 %v10309
      %10390 = vmatprep.mubr.bf16.mxu0 %v10159
      %10391 = vmatmul.mubr.bf16.gmra.mrb[0].mxu0 %v10158
      %v10392 = vpop.f32.mrb[0].mxu0
      %v10393 = vadd.f32 0.0, %v10392
      %v10394 = vpop.f32.mrb[0].mxu0
      %v10395 = vpop.f32.mrb[0].mxu0
      %v10396 = vpop.f32.mrb[0].mxu0
      %10397 = vdwg.mxu0
      %10398 = vmatprep.subr.bf16.mxu0 0
      %10399 = vmatpush1.bf16.msra.mxu0 %v10310
      %10400 = vmatprep.subr.bf16.mxu0 0
      %10401 = vmatpush1.bf16.msra.mxu0 %v10311
      %10402 = vmatprep.subr.bf16.mxu0 0
      %10403 = vmatpush1.bf16.msra.mxu0 %v10312
      %10404 = vmatprep.subr.bf16.mxu0 0
      %10405 = vmatpush1.bf16.msra.mxu0 %v10313
      %10406 = vmatprep.subr.bf16.mxu0 0
      %10407 = vmatpush1.bf16.msra.mxu0 %v10314
      %10408 = vmatprep.subr.bf16.mxu0 0
      %10409 = vmatpush1.bf16.msra.mxu0 %v10315
      %10410 = vmatprep.subr.bf16.mxu0 0
      %10411 = vmatpush1.bf16.msra.mxu0 %v10316
      %10412 = vmatprep.subr.bf16.mxu0 0
      %10413 = vmatpush1.bf16.msra.mxu0 %v10317
      %10414 = vmatprep.subr.bf16.mxu0 0
      %10415 = vmatpush1.bf16.msra.mxu0 %v10318
      %10416 = vmatprep.subr.bf16.mxu0 0
      %10417 = vmatpush1.bf16.msra.mxu0 %v10319
      %10418 = vmatprep.subr.bf16.mxu0 0
      %10419 = vmatpush1.bf16.msra.mxu0 %v10320
      %10420 = vmatprep.subr.bf16.mxu0 0
      %10421 = vmatpush1.bf16.msra.mxu0 %v10321
      %10422 = vmatprep.subr.bf16.mxu0 0
      %10423 = vmatpush1.bf16.msra.mxu0 %v10322
      %10424 = vmatprep.subr.bf16.mxu0 0
      %10425 = vmatpush1.bf16.msra.mxu0 %v10323
      %10426 = vmatprep.subr.bf16.mxu0 0
      %10427 = vmatpush1.bf16.msra.mxu0 %v10324
      %10428 = vmatprep.subr.bf16.mxu0 0
      %10429 = vmatpush1.bf16.msra.mxu0 %v10325
      %10430 = vmatprep.mubr.bf16.mxu0 %v10161
      %10431 = vmatmul.mubr.bf16.gmra.mrb[0].mxu0 %v10160
      %v10432 = vpop.f32.mrb[0].mxu0
      %v10433 = vadd.f32 %v10393, %v10432
      %v10434 = vpop.f32.mrb[0].mxu0
      %v10435 = vpop.f32.mrb[0].mxu0
      %v10436 = vpop.f32.mrb[0].mxu0
      %10437 = vdwg.mxu0
      %v10438 = vadd.f32 %v10084, %v10433
      %s10439 = scalar_lea.vmem %s10, 768
      %v10440 = vld [vmem:[%s10439] sm:$0xf]
      %v10441 = vld [vmem:[%s10439 + $0x4] sm:$0xf]
      %v10442 = vld [vmem:[%s10439 + $0x8] sm:$0xf]
      %v10443 = vld [vmem:[%s10439 + $0xc] sm:$0xf]
      %v10444 = vld [vmem:[%s10439 + $0x10] sm:$0xf]
      %v10445 = vld [vmem:[%s10439 + $0x14] sm:$0xf]
      %v10446 = vld [vmem:[%s10439 + $0x18] sm:$0xf]
      %v10447 = vld [vmem:[%s10439 + $0x1c] sm:$0xf]
      %v10448 = vld [vmem:[%s10439 + $0x20] sm:$0xf]
      %v10449 = vld [vmem:[%s10439 + $0x24] sm:$0xf]
      %v10450 = vld [vmem:[%s10439 + $0x28] sm:$0xf]
      %v10451 = vld [vmem:[%s10439 + $0x2c] sm:$0xf]
      %v10452 = vld [vmem:[%s10439 + $0x30] sm:$0xf]
      %v10453 = vld [vmem:[%s10439 + $0x34] sm:$0xf]
      %v10454 = vld [vmem:[%s10439 + $0x38] sm:$0xf]
      %v10455 = vld [vmem:[%s10439 + $0x3c] sm:$0xf]
      %v10456 = vld [vmem:[%s10439 + $0x40] sm:$0xf]
      %v10457 = vld [vmem:[%s10439 + $0x44] sm:$0xf]
      %v10458 = vld [vmem:[%s10439 + $0x48] sm:$0xf]
      %v10459 = vld [vmem:[%s10439 + $0x4c] sm:$0xf]
      %v10460 = vld [vmem:[%s10439 + $0x50] sm:$0xf]
      %v10461 = vld [vmem:[%s10439 + $0x54] sm:$0xf]
      %v10462 = vld [vmem:[%s10439 + $0x58] sm:$0xf]
      %v10463 = vld [vmem:[%s10439 + $0x5c] sm:$0xf]
      %v10464 = vld [vmem:[%s10439 + $0x60] sm:$0xf]
      %v10465 = vld [vmem:[%s10439 + $0x64] sm:$0xf]
      %v10466 = vld [vmem:[%s10439 + $0x68] sm:$0xf]
      %v10467 = vld [vmem:[%s10439 + $0x6c] sm:$0xf]
      %v10468 = vld [vmem:[%s10439 + $0x70] sm:$0xf]
      %v10469 = vld [vmem:[%s10439 + $0x74] sm:$0xf]
      %v10470 = vld [vmem:[%s10439 + $0x78] sm:$0xf]
      %v10471 = vld [vmem:[%s10439 + $0x7c] sm:$0xf]
      %v10472 = vld [vmem:[%s10439 + $0x80] sm:$0xf]
      %v10473 = vld [vmem:[%s10439 + $0x84] sm:$0xf]
      %v10474 = vld [vmem:[%s10439 + $0x88] sm:$0xf]
      %v10475 = vld [vmem:[%s10439 + $0x8c] sm:$0xf]
      %v10476 = vld [vmem:[%s10439 + $0x90] sm:$0xf]
      %v10477 = vld [vmem:[%s10439 + $0x94] sm:$0xf]
      %v10478 = vld [vmem:[%s10439 + $0x98] sm:$0xf]
      %v10479 = vld [vmem:[%s10439 + $0x9c] sm:$0xf]
      %v10480 = vld [vmem:[%s10439 + $0xa0] sm:$0xf]
      %v10481 = vld [vmem:[%s10439 + $0xa4] sm:$0xf]
      %v10482 = vld [vmem:[%s10439 + $0xa8] sm:$0xf]
      %v10483 = vld [vmem:[%s10439 + $0xac] sm:$0xf]
      %v10484 = vld [vmem:[%s10439 + $0xb0] sm:$0xf]
      %v10485 = vld [vmem:[%s10439 + $0xb4] sm:$0xf]
      %v10486 = vld [vmem:[%s10439 + $0xb8] sm:$0xf]
      %v10487 = vld [vmem:[%s10439 + $0xbc] sm:$0xf]
      %v10488 = vld [vmem:[%s10439 + $0xc0] sm:$0xf]
      %v10489 = vld [vmem:[%s10439 + $0xc4] sm:$0xf]
      %v10490 = vld [vmem:[%s10439 + $0xc8] sm:$0xf]
      %v10491 = vld [vmem:[%s10439 + $0xcc] sm:$0xf]
      %v10492 = vld [vmem:[%s10439 + $0xd0] sm:$0xf]
      %v10493 = vld [vmem:[%s10439 + $0xd4] sm:$0xf]
      %v10494 = vld [vmem:[%s10439 + $0xd8] sm:$0xf]
      %v10495 = vld [vmem:[%s10439 + $0xdc] sm:$0xf]
      %v10496 = vld [vmem:[%s10439 + $0xe0] sm:$0xf]
      %v10497 = vld [vmem:[%s10439 + $0xe4] sm:$0xf]
      %v10498 = vld [vmem:[%s10439 + $0xe8] sm:$0xf]
      %v10499 = vld [vmem:[%s10439 + $0xec] sm:$0xf]
      %v10500 = vld [vmem:[%s10439 + $0xf0] sm:$0xf]
      %v10501 = vld [vmem:[%s10439 + $0xf4] sm:$0xf]
      %v10502 = vld [vmem:[%s10439 + $0xf8] sm:$0xf]
      %v10503 = vld [vmem:[%s10439 + $0xfc] sm:$0xf]
      %v10504 = vrot.slane %v9380, 2
      %v10505 = vrot.slane %v9381, 2
      %v10506 = vrot.slane %v9382, 2
      %v10507 = vrot.slane %v9383, 2
      %v10576 = vunpack.c.l.b16 %v10440
      %v10577 = vunpack.c.l.b16 %v10441
      %v10578 = vunpack.c.l.b16 %v10442
      %v10579 = vunpack.c.l.b16 %v10443
      %v10580 = vunpack.c.l.b16 %v10444
      %v10581 = vunpack.c.l.b16 %v10445
      %v10582 = vunpack.c.l.b16 %v10446
      %v10583 = vunpack.c.l.b16 %v10447
      %v10584 = vunpack.c.l.b16 %v10448
      %v10585 = vunpack.c.l.b16 %v10449
      %v10586 = vunpack.c.l.b16 %v10450
      %v10587 = vunpack.c.l.b16 %v10451
      %v10588 = vunpack.c.l.b16 %v10452
      %v10589 = vunpack.c.l.b16 %v10453
      %v10590 = vunpack.c.l.b16 %v10454
      %v10591 = vunpack.c.l.b16 %v10455
      %v10592 = vunpack.c.l.b16 %v10456
      %v10593 = vunpack.c.l.b16 %v10457
      %v10594 = vunpack.c.l.b16 %v10458
      %v10595 = vunpack.c.l.b16 %v10459
      %v10596 = vunpack.c.l.b16 %v10460
      %v10597 = vunpack.c.l.b16 %v10461
      %v10598 = vunpack.c.l.b16 %v10462
      %v10599 = vunpack.c.l.b16 %v10463
      %v10600 = vunpack.c.l.b16 %v10464
      %v10601 = vunpack.c.l.b16 %v10465
      %v10602 = vunpack.c.l.b16 %v10466
      %v10603 = vunpack.c.l.b16 %v10467
      %v10604 = vunpack.c.l.b16 %v10468
      %v10605 = vunpack.c.l.b16 %v10469
      %v10606 = vunpack.c.l.b16 %v10470
      %v10607 = vunpack.c.l.b16 %v10471
      %v10608 = vunpack.c.l.b16 %v10472
      %v10609 = vunpack.c.l.b16 %v10473
      %v10610 = vunpack.c.l.b16 %v10474
      %v10611 = vunpack.c.l.b16 %v10475
      %v10612 = vunpack.c.l.b16 %v10476
      %v10613 = vunpack.c.l.b16 %v10477
      %v10614 = vunpack.c.l.b16 %v10478
      %v10615 = vunpack.c.l.b16 %v10479
      %v10616 = vunpack.c.l.b16 %v10480
      %v10617 = vunpack.c.l.b16 %v10481
      %v10618 = vunpack.c.l.b16 %v10482
      %v10619 = vunpack.c.l.b16 %v10483
      %v10620 = vunpack.c.l.b16 %v10484
      %v10621 = vunpack.c.l.b16 %v10485
      %v10622 = vunpack.c.l.b16 %v10486
      %v10623 = vunpack.c.l.b16 %v10487
      %v10624 = vunpack.c.l.b16 %v10488
      %v10625 = vunpack.c.l.b16 %v10489
      %v10626 = vunpack.c.l.b16 %v10490
      %v10627 = vunpack.c.l.b16 %v10491
      %v10628 = vunpack.c.l.b16 %v10492
      %v10629 = vunpack.c.l.b16 %v10493
      %v10630 = vunpack.c.l.b16 %v10494
      %v10631 = vunpack.c.l.b16 %v10495
      %v10632 = vunpack.c.l.b16 %v10496
      %v10633 = vunpack.c.l.b16 %v10497
      %v10634 = vunpack.c.l.b16 %v10498
      %v10635 = vunpack.c.l.b16 %v10499
      %v10636 = vunpack.c.l.b16 %v10500
      %v10637 = vunpack.c.l.b16 %v10501
      %v10638 = vunpack.c.l.b16 %v10502
      %v10639 = vunpack.c.l.b16 %v10503
      %v10640 = vpack.c.b16 %v10577, %v10576
      %v10641 = vpack.c.b16 %v10579, %v10578
      %v10642 = vpack.c.b16 %v10581, %v10580
      %v10643 = vpack.c.b16 %v10583, %v10582
      %v10644 = vpack.c.b16 %v10585, %v10584
      %v10645 = vpack.c.b16 %v10587, %v10586
      %v10646 = vpack.c.b16 %v10589, %v10588
      %v10647 = vpack.c.b16 %v10591, %v10590
      %v10648 = vpack.c.b16 %v10593, %v10592
      %v10649 = vpack.c.b16 %v10595, %v10594
      %v10650 = vpack.c.b16 %v10597, %v10596
      %v10651 = vpack.c.b16 %v10599, %v10598
      %v10652 = vpack.c.b16 %v10601, %v10600
      %v10653 = vpack.c.b16 %v10603, %v10602
      %v10654 = vpack.c.b16 %v10605, %v10604
      %v10655 = vpack.c.b16 %v10607, %v10606
      %v10656 = vpack.c.b16 %v10609, %v10608
      %v10657 = vpack.c.b16 %v10611, %v10610
      %v10658 = vpack.c.b16 %v10613, %v10612
      %v10659 = vpack.c.b16 %v10615, %v10614
      %v10660 = vpack.c.b16 %v10617, %v10616
      %v10661 = vpack.c.b16 %v10619, %v10618
      %v10662 = vpack.c.b16 %v10621, %v10620
      %v10663 = vpack.c.b16 %v10623, %v10622
      %v10664 = vpack.c.b16 %v10625, %v10624
      %v10665 = vpack.c.b16 %v10627, %v10626
      %v10666 = vpack.c.b16 %v10629, %v10628
      %v10667 = vpack.c.b16 %v10631, %v10630
      %v10668 = vpack.c.b16 %v10633, %v10632
      %v10669 = vpack.c.b16 %v10635, %v10634
      %v10670 = vpack.c.b16 %v10637, %v10636
      %v10671 = vpack.c.b16 %v10639, %v10638
      %10704 = vmatprep.subr.bf16.mxu0 0
      %10705 = vmatpush1.bf16.msra.mxu0 %v10640
      %10706 = vmatprep.subr.bf16.mxu0 0
      %10707 = vmatpush1.bf16.msra.mxu0 %v10641
      %10708 = vmatprep.subr.bf16.mxu0 0
      %10709 = vmatpush1.bf16.msra.mxu0 %v10642
      %10710 = vmatprep.subr.bf16.mxu0 0
      %10711 = vmatpush1.bf16.msra.mxu0 %v10643
      %10712 = vmatprep.subr.bf16.mxu0 0
      %10713 = vmatpush1.bf16.msra.mxu0 %v10644
      %10714 = vmatprep.subr.bf16.mxu0 0
      %10715 = vmatpush1.bf16.msra.mxu0 %v10645
      %10716 = vmatprep.subr.bf16.mxu0 0
      %10717 = vmatpush1.bf16.msra.mxu0 %v10646
      %10718 = vmatprep.subr.bf16.mxu0 0
      %10719 = vmatpush1.bf16.msra.mxu0 %v10647
      %10720 = vmatprep.subr.bf16.mxu0 0
      %10721 = vmatpush1.bf16.msra.mxu0 %v10648
      %10722 = vmatprep.subr.bf16.mxu0 0
      %10723 = vmatpush1.bf16.msra.mxu0 %v10649
      %10724 = vmatprep.subr.bf16.mxu0 0
      %10725 = vmatpush1.bf16.msra.mxu0 %v10650
      %10726 = vmatprep.subr.bf16.mxu0 0
      %10727 = vmatpush1.bf16.msra.mxu0 %v10651
      %10728 = vmatprep.subr.bf16.mxu0 0
      %10729 = vmatpush1.bf16.msra.mxu0 %v10652
      %10730 = vmatprep.subr.bf16.mxu0 0
      %10731 = vmatpush1.bf16.msra.mxu0 %v10653
      %10732 = vmatprep.subr.bf16.mxu0 0
      %10733 = vmatpush1.bf16.msra.mxu0 %v10654
      %10734 = vmatprep.subr.bf16.mxu0 0
      %10735 = vmatpush1.bf16.msra.mxu0 %v10655
      %10736 = vmatprep.mubr.bf16.mxu0 %v10505
      %10737 = vmatmul.mubr.bf16.gmra.mrb[0].mxu0 %v10504
      %v10738 = vpop.f32.mrb[0].mxu0
      %v10739 = vadd.f32 0.0, %v10738
      %v10740 = vpop.f32.mrb[0].mxu0
      %v10741 = vpop.f32.mrb[0].mxu0
      %v10742 = vpop.f32.mrb[0].mxu0
      %10743 = vdwg.mxu0
      %10744 = vmatprep.subr.bf16.mxu0 0
      %10745 = vmatpush1.bf16.msra.mxu0 %v10656
      %10746 = vmatprep.subr.bf16.mxu0 0
      %10747 = vmatpush1.bf16.msra.mxu0 %v10657
      %10748 = vmatprep.subr.bf16.mxu0 0
      %10749 = vmatpush1.bf16.msra.mxu0 %v10658
      %10750 = vmatprep.subr.bf16.mxu0 0
      %10751 = vmatpush1.bf16.msra.mxu0 %v10659
      %10752 = vmatprep.subr.bf16.mxu0 0
      %10753 = vmatpush1.bf16.msra.mxu0 %v10660
      %10754 = vmatprep.subr.bf16.mxu0 0
      %10755 = vmatpush1.bf16.msra.mxu0 %v10661
      %10756 = vmatprep.subr.bf16.mxu0 0
      %10757 = vmatpush1.bf16.msra.mxu0 %v10662
      %10758 = vmatprep.subr.bf16.mxu0 0
      %10759 = vmatpush1.bf16.msra.mxu0 %v10663
      %10760 = vmatprep.subr.bf16.mxu0 0
      %10761 = vmatpush1.bf16.msra.mxu0 %v10664
      %10762 = vmatprep.subr.bf16.mxu0 0
      %10763 = vmatpush1.bf16.msra.mxu0 %v10665
      %10764 = vmatprep.subr.bf16.mxu0 0
      %10765 = vmatpush1.bf16.msra.mxu0 %v10666
      %10766 = vmatprep.subr.bf16.mxu0 0
      %10767 = vmatpush1.bf16.msra.mxu0 %v10667
      %10768 = vmatprep.subr.bf16.mxu0 0
      %10769 = vmatpush1.bf16.msra.mxu0 %v10668
      %10770 = vmatprep.subr.bf16.mxu0 0
      %10771 = vmatpush1.bf16.msra.mxu0 %v10669
      %10772 = vmatprep.subr.bf16.mxu0 0
      %10773 = vmatpush1.bf16.msra.mxu0 %v10670
      %10774 = vmatprep.subr.bf16.mxu0 0
      %10775 = vmatpush1.bf16.msra.mxu0 %v10671
      %10776 = vmatprep.mubr.bf16.mxu0 %v10507
      %10777 = vmatmul.mubr.bf16.gmra.mrb[0].mxu0 %v10506
      %v10778 = vpop.f32.mrb[0].mxu0
      %v10779 = vadd.f32 %v10739, %v10778
      %v10780 = vpop.f32.mrb[0].mxu0
      %v10781 = vpop.f32.mrb[0].mxu0
      %v10782 = vpop.f32.mrb[0].mxu0
      %10783 = vdwg.mxu0
      %v10784 = vadd.f32 %v10438, %v10779
      %s10785 = scalar_lea.vmem %s10, 1024
      %v10786 = vld [vmem:[%s10785] sm:$0xf]
      %v10787 = vld [vmem:[%s10785 + $0x4] sm:$0xf]
      %v10788 = vld [vmem:[%s10785 + $0x8] sm:$0xf]
      %v10789 = vld [vmem:[%s10785 + $0xc] sm:$0xf]
      %v10790 = vld [vmem:[%s10785 + $0x10] sm:$0xf]
      %v10791 = vld [vmem:[%s10785 + $0x14] sm:$0xf]
      %v10792 = vld [vmem:[%s10785 + $0x18] sm:$0xf]
      %v10793 = vld [vmem:[%s10785 + $0x1c] sm:$0xf]
      %v10794 = vld [vmem:[%s10785 + $0x20] sm:$0xf]
      %v10795 = vld [vmem:[%s10785 + $0x24] sm:$0xf]
      %v10796 = vld [vmem:[%s10785 + $0x28] sm:$0xf]
      %v10797 = vld [vmem:[%s10785 + $0x2c] sm:$0xf]
      %v10798 = vld [vmem:[%s10785 + $0x30] sm:$0xf]
      %v10799 = vld [vmem:[%s10785 + $0x34] sm:$0xf]
      %v10800 = vld [vmem:[%s10785 + $0x38] sm:$0xf]
      %v10801 = vld [vmem:[%s10785 + $0x3c] sm:$0xf]
      %v10802 = vld [vmem:[%s10785 + $0x40] sm:$0xf]
      %v10803 = vld [vmem:[%s10785 + $0x44] sm:$0xf]
      %v10804 = vld [vmem:[%s10785 + $0x48] sm:$0xf]
      %v10805 = vld [vmem:[%s10785 + $0x4c] sm:$0xf]
      %v10806 = vld [vmem:[%s10785 + $0x50] sm:$0xf]
      %v10807 = vld [vmem:[%s10785 + $0x54] sm:$0xf]
      %v10808 = vld [vmem:[%s10785 + $0x58] sm:$0xf]
      %v10809 = vld [vmem:[%s10785 + $0x5c] sm:$0xf]
      %v10810 = vld [vmem:[%s10785 + $0x60] sm:$0xf]
      %v10811 = vld [vmem:[%s10785 + $0x64] sm:$0xf]
      %v10812 = vld [vmem:[%s10785 + $0x68] sm:$0xf]
      %v10813 = vld [vmem:[%s10785 + $0x6c] sm:$0xf]
      %v10814 = vld [vmem:[%s10785 + $0x70] sm:$0xf]
      %v10815 = vld [vmem:[%s10785 + $0x74] sm:$0xf]
      %v10816 = vld [vmem:[%s10785 + $0x78] sm:$0xf]
      %v10817 = vld [vmem:[%s10785 + $0x7c] sm:$0xf]
      %v10818 = vld [vmem:[%s10785 + $0x80] sm:$0xf]
      %v10819 = vld [vmem:[%s10785 + $0x84] sm:$0xf]
      %v10820 = vld [vmem:[%s10785 + $0x88] sm:$0xf]
      %v10821 = vld [vmem:[%s10785 + $0x8c] sm:$0xf]
      %v10822 = vld [vmem:[%s10785 + $0x90] sm:$0xf]
      %v10823 = vld [vmem:[%s10785 + $0x94] sm:$0xf]
      %v10824 = vld [vmem:[%s10785 + $0x98] sm:$0xf]
      %v10825 = vld [vmem:[%s10785 + $0x9c] sm:$0xf]
      %v10826 = vld [vmem:[%s10785 + $0xa0] sm:$0xf]
      %v10827 = vld [vmem:[%s10785 + $0xa4] sm:$0xf]
      %v10828 = vld [vmem:[%s10785 + $0xa8] sm:$0xf]
      %v10829 = vld [vmem:[%s10785 + $0xac] sm:$0xf]
      %v10830 = vld [vmem:[%s10785 + $0xb0] sm:$0xf]
      %v10831 = vld [vmem:[%s10785 + $0xb4] sm:$0xf]
      %v10832 = vld [vmem:[%s10785 + $0xb8] sm:$0xf]
      %v10833 = vld [vmem:[%s10785 + $0xbc] sm:$0xf]
      %v10834 = vld [vmem:[%s10785 + $0xc0] sm:$0xf]
      %v10835 = vld [vmem:[%s10785 + $0xc4] sm:$0xf]
      %v10836 = vld [vmem:[%s10785 + $0xc8] sm:$0xf]
      %v10837 = vld [vmem:[%s10785 + $0xcc] sm:$0xf]
      %v10838 = vld [vmem:[%s10785 + $0xd0] sm:$0xf]
      %v10839 = vld [vmem:[%s10785 + $0xd4] sm:$0xf]
      %v10840 = vld [vmem:[%s10785 + $0xd8] sm:$0xf]
      %v10841 = vld [vmem:[%s10785 + $0xdc] sm:$0xf]
      %v10842 = vld [vmem:[%s10785 + $0xe0] sm:$0xf]
      %v10843 = vld [vmem:[%s10785 + $0xe4] sm:$0xf]
      %v10844 = vld [vmem:[%s10785 + $0xe8] sm:$0xf]
      %v10845 = vld [vmem:[%s10785 + $0xec] sm:$0xf]
      %v10846 = vld [vmem:[%s10785 + $0xf0] sm:$0xf]
      %v10847 = vld [vmem:[%s10785 + $0xf4] sm:$0xf]
      %v10848 = vld [vmem:[%s10785 + $0xf8] sm:$0xf]
      %v10849 = vld [vmem:[%s10785 + $0xfc] sm:$0xf]
      %v10850 = vrot.slane %v9514, 2
      %v10851 = vrot.slane %v9516, 3
      %v10852 = vor.u32 %v10850, %v10851
      %v10853 = vrot.slane %v9521, 2
      %v10854 = vrot.slane %v9523, 3
      %v10855 = vor.u32 %v10853, %v10854
      %v10856 = vrot.slane %v9528, 2
      %v10857 = vrot.slane %v9530, 3
      %v10858 = vor.u32 %v10856, %v10857
      %v10859 = vrot.slane %v9535, 2
      %v10860 = vrot.slane %v9537, 3
      %v10861 = vor.u32 %v10859, %v10860
      %v10930 = vunpack.c.l.b16 %v10786
      %v10931 = vunpack.c.l.b16 %v10787
      %v10932 = vunpack.c.l.b16 %v10788
      %v10933 = vunpack.c.l.b16 %v10789
      %v10934 = vunpack.c.l.b16 %v10790
      %v10935 = vunpack.c.l.b16 %v10791
      %v10936 = vunpack.c.l.b16 %v10792
      %v10937 = vunpack.c.l.b16 %v10793
      %v10938 = vunpack.c.l.b16 %v10794
      %v10939 = vunpack.c.l.b16 %v10795
      %v10940 = vunpack.c.l.b16 %v10796
      %v10941 = vunpack.c.l.b16 %v10797
      %v10942 = vunpack.c.l.b16 %v10798
      %v10943 = vunpack.c.l.b16 %v10799
      %v10944 = vunpack.c.l.b16 %v10800
      %v10945 = vunpack.c.l.b16 %v10801
      %v10946 = vunpack.c.l.b16 %v10802
      %v10947 = vunpack.c.l.b16 %v10803
      %v10948 = vunpack.c.l.b16 %v10804
      %v10949 = vunpack.c.l.b16 %v10805
      %v10950 = vunpack.c.l.b16 %v10806
      %v10951 = vunpack.c.l.b16 %v10807
      %v10952 = vunpack.c.l.b16 %v10808
      %v10953 = vunpack.c.l.b16 %v10809
      %v10954 = vunpack.c.l.b16 %v10810
      %v10955 = vunpack.c.l.b16 %v10811
      %v10956 = vunpack.c.l.b16 %v10812
      %v10957 = vunpack.c.l.b16 %v10813
      %v10958 = vunpack.c.l.b16 %v10814
      %v10959 = vunpack.c.l.b16 %v10815
      %v10960 = vunpack.c.l.b16 %v10816
      %v10961 = vunpack.c.l.b16 %v10817
      %v10962 = vunpack.c.l.b16 %v10818
      %v10963 = vunpack.c.l.b16 %v10819
      %v10964 = vunpack.c.l.b16 %v10820
      %v10965 = vunpack.c.l.b16 %v10821
      %v10966 = vunpack.c.l.b16 %v10822
      %v10967 = vunpack.c.l.b16 %v10823
      %v10968 = vunpack.c.l.b16 %v10824
      %v10969 = vunpack.c.l.b16 %v10825
      %v10970 = vunpack.c.l.b16 %v10826
      %v10971 = vunpack.c.l.b16 %v10827
      %v10972 = vunpack.c.l.b16 %v10828
      %v10973 = vunpack.c.l.b16 %v10829
      %v10974 = vunpack.c.l.b16 %v10830
      %v10975 = vunpack.c.l.b16 %v10831
      %v10976 = vunpack.c.l.b16 %v10832
      %v10977 = vunpack.c.l.b16 %v10833
      %v10978 = vunpack.c.l.b16 %v10834
      %v10979 = vunpack.c.l.b16 %v10835
      %v10980 = vunpack.c.l.b16 %v10836
      %v10981 = vunpack.c.l.b16 %v10837
      %v10982 = vunpack.c.l.b16 %v10838
      %v10983 = vunpack.c.l.b16 %v10839
      %v10984 = vunpack.c.l.b16 %v10840
      %v10985 = vunpack.c.l.b16 %v10841
      %v10986 = vunpack.c.l.b16 %v10842
      %v10987 = vunpack.c.l.b16 %v10843
      %v10988 = vunpack.c.l.b16 %v10844
      %v10989 = vunpack.c.l.b16 %v10845
      %v10990 = vunpack.c.l.b16 %v10846
      %v10991 = vunpack.c.l.b16 %v10847
      %v10992 = vunpack.c.l.b16 %v10848
      %v10993 = vunpack.c.l.b16 %v10849
      %v10994 = vpack.c.b16 %v10931, %v10930
      %v10995 = vpack.c.b16 %v10933, %v10932
      %v10996 = vpack.c.b16 %v10935, %v10934
      %v10997 = vpack.c.b16 %v10937, %v10936
      %v10998 = vpack.c.b16 %v10939, %v10938
      %v10999 = vpack.c.b16 %v10941, %v10940
      %v11000 = vpack.c.b16 %v10943, %v10942
      %v11001 = vpack.c.b16 %v10945, %v10944
      %v11002 = vpack.c.b16 %v10947, %v10946
      %v11003 = vpack.c.b16 %v10949, %v10948
      %v11004 = vpack.c.b16 %v10951, %v10950
      %v11005 = vpack.c.b16 %v10953, %v10952
      %v11006 = vpack.c.b16 %v10955, %v10954
      %v11007 = vpack.c.b16 %v10957, %v10956
      %v11008 = vpack.c.b16 %v10959, %v10958
      %v11009 = vpack.c.b16 %v10961, %v10960
      %v11010 = vpack.c.b16 %v10963, %v10962
      %v11011 = vpack.c.b16 %v10965, %v10964
      %v11012 = vpack.c.b16 %v10967, %v10966
      %v11013 = vpack.c.b16 %v10969, %v10968
      %v11014 = vpack.c.b16 %v10971, %v10970
      %v11015 = vpack.c.b16 %v10973, %v10972
      %v11016 = vpack.c.b16 %v10975, %v10974
      %v11017 = vpack.c.b16 %v10977, %v10976
      %v11018 = vpack.c.b16 %v10979, %v10978
      %v11019 = vpack.c.b16 %v10981, %v10980
      %v11020 = vpack.c.b16 %v10983, %v10982
      %v11021 = vpack.c.b16 %v10985, %v10984
      %v11022 = vpack.c.b16 %v10987, %v10986
      %v11023 = vpack.c.b16 %v10989, %v10988
      %v11024 = vpack.c.b16 %v10991, %v10990
      %v11025 = vpack.c.b16 %v10993, %v10992
      %11058 = vmatprep.subr.bf16.mxu0 0
      %11059 = vmatpush1.bf16.msra.mxu0 %v10994
      %11060 = vmatprep.subr.bf16.mxu0 0
      %11061 = vmatpush1.bf16.msra.mxu0 %v10995
      %11062 = vmatprep.subr.bf16.mxu0 0
      %11063 = vmatpush1.bf16.msra.mxu0 %v10996
      %11064 = vmatprep.subr.bf16.mxu0 0
      %11065 = vmatpush1.bf16.msra.mxu0 %v10997
      %11066 = vmatprep.subr.bf16.mxu0 0
      %11067 = vmatpush1.bf16.msra.mxu0 %v10998
      %11068 = vmatprep.subr.bf16.mxu0 0
      %11069 = vmatpush1.bf16.msra.mxu0 %v10999
      %11070 = vmatprep.subr.bf16.mxu0 0
      %11071 = vmatpush1.bf16.msra.mxu0 %v11000
      %11072 = vmatprep.subr.bf16.mxu0 0
      %11073 = vmatpush1.bf16.msra.mxu0 %v11001
      %11074 = vmatprep.subr.bf16.mxu0 0
      %11075 = vmatpush1.bf16.msra.mxu0 %v11002
      %11076 = vmatprep.subr.bf16.mxu0 0
      %11077 = vmatpush1.bf16.msra.mxu0 %v11003
      %11078 = vmatprep.subr.bf16.mxu0 0
      %11079 = vmatpush1.bf16.msra.mxu0 %v11004
      %11080 = vmatprep.subr.bf16.mxu0 0
      %11081 = vmatpush1.bf16.msra.mxu0 %v11005
      %11082 = vmatprep.subr.bf16.mxu0 0
      %11083 = vmatpush1.bf16.msra.mxu0 %v11006
      %11084 = vmatprep.subr.bf16.mxu0 0
      %11085 = vmatpush1.bf16.msra.mxu0 %v11007
      %11086 = vmatprep.subr.bf16.mxu0 0
      %11087 = vmatpush1.bf16.msra.mxu0 %v11008
      %11088 = vmatprep.subr.bf16.mxu0 0
      %11089 = vmatpush1.bf16.msra.mxu0 %v11009
      %11090 = vmatprep.mubr.bf16.mxu0 %v10855
      %11091 = vmatmul.mubr.bf16.gmra.mrb[0].mxu0 %v10852
      %v11092 = vpop.f32.mrb[0].mxu0
      %v11093 = vadd.f32 0.0, %v11092
      %v11094 = vpop.f32.mrb[0].mxu0
      %v11095 = vpop.f32.mrb[0].mxu0
      %v11096 = vpop.f32.mrb[0].mxu0
      %11097 = vdwg.mxu0
      %11098 = vmatprep.subr.bf16.mxu0 0
      %11099 = vmatpush1.bf16.msra.mxu0 %v11010
      %11100 = vmatprep.subr.bf16.mxu0 0
      %11101 = vmatpush1.bf16.msra.mxu0 %v11011
      %11102 = vmatprep.subr.bf16.mxu0 0
      %11103 = vmatpush1.bf16.msra.mxu0 %v11012
      %11104 = vmatprep.subr.bf16.mxu0 0
      %11105 = vmatpush1.bf16.msra.mxu0 %v11013
      %11106 = vmatprep.subr.bf16.mxu0 0
      %11107 = vmatpush1.bf16.msra.mxu0 %v11014
      %11108 = vmatprep.subr.bf16.mxu0 0
      %11109 = vmatpush1.bf16.msra.mxu0 %v11015
      %11110 = vmatprep.subr.bf16.mxu0 0
      %11111 = vmatpush1.bf16.msra.mxu0 %v11016
      %11112 = vmatprep.subr.bf16.mxu0 0
      %11113 = vmatpush1.bf16.msra.mxu0 %v11017
      %11114 = vmatprep.subr.bf16.mxu0 0
      %11115 = vmatpush1.bf16.msra.mxu0 %v11018
      %11116 = vmatprep.subr.bf16.mxu0 0
      %11117 = vmatpush1.bf16.msra.mxu0 %v11019
      %11118 = vmatprep.subr.bf16.mxu0 0
      %11119 = vmatpush1.bf16.msra.mxu0 %v11020
      %11120 = vmatprep.subr.bf16.mxu0 0
      %11121 = vmatpush1.bf16.msra.mxu0 %v11021
      %11122 = vmatprep.subr.bf16.mxu0 0
      %11123 = vmatpush1.bf16.msra.mxu0 %v11022
      %11124 = vmatprep.subr.bf16.mxu0 0
      %11125 = vmatpush1.bf16.msra.mxu0 %v11023
      %11126 = vmatprep.subr.bf16.mxu0 0
      %11127 = vmatpush1.bf16.msra.mxu0 %v11024
      %11128 = vmatprep.subr.bf16.mxu0 0
      %11129 = vmatpush1.bf16.msra.mxu0 %v11025
      %11130 = vmatprep.mubr.bf16.mxu0 %v10861
      %11131 = vmatmul.mubr.bf16.gmra.mrb[0].mxu0 %v10858
      %v11132 = vpop.f32.mrb[0].mxu0
      %v11133 = vadd.f32 %v11093, %v11132
      %v11134 = vpop.f32.mrb[0].mxu0
      %v11135 = vpop.f32.mrb[0].mxu0
      %v11136 = vpop.f32.mrb[0].mxu0
      %11137 = vdwg.mxu0
      %v11138 = vadd.f32 %v10784, %v11133
      %s11139 = scalar_lea.vmem %s10, 1280
      %v11140 = vld [vmem:[%s11139] sm:$0xf]
      %v11141 = vld [vmem:[%s11139 + $0x4] sm:$0xf]
      %v11142 = vld [vmem:[%s11139 + $0x8] sm:$0xf]
      %v11143 = vld [vmem:[%s11139 + $0xc] sm:$0xf]
      %v11144 = vld [vmem:[%s11139 + $0x10] sm:$0xf]
      %v11145 = vld [vmem:[%s11139 + $0x14] sm:$0xf]
      %v11146 = vld [vmem:[%s11139 + $0x18] sm:$0xf]
      %v11147 = vld [vmem:[%s11139 + $0x1c] sm:$0xf]
      %v11148 = vld [vmem:[%s11139 + $0x20] sm:$0xf]
      %v11149 = vld [vmem:[%s11139 + $0x24] sm:$0xf]
      %v11150 = vld [vmem:[%s11139 + $0x28] sm:$0xf]
      %v11151 = vld [vmem:[%s11139 + $0x2c] sm:$0xf]
      %v11152 = vld [vmem:[%s11139 + $0x30] sm:$0xf]
      %v11153 = vld [vmem:[%s11139 + $0x34] sm:$0xf]
      %v11154 = vld [vmem:[%s11139 + $0x38] sm:$0xf]
      %v11155 = vld [vmem:[%s11139 + $0x3c] sm:$0xf]
      %v11156 = vld [vmem:[%s11139 + $0x40] sm:$0xf]
      %v11157 = vld [vmem:[%s11139 + $0x44] sm:$0xf]
      %v11158 = vld [vmem:[%s11139 + $0x48] sm:$0xf]
      %v11159 = vld [vmem:[%s11139 + $0x4c] sm:$0xf]
      %v11160 = vld [vmem:[%s11139 + $0x50] sm:$0xf]
      %v11161 = vld [vmem:[%s11139 + $0x54] sm:$0xf]
      %v11162 = vld [vmem:[%s11139 + $0x58] sm:$0xf]
      %v11163 = vld [vmem:[%s11139 + $0x5c] sm:$0xf]
      %v11164 = vld [vmem:[%s11139 + $0x60] sm:$0xf]
      %v11165 = vld [vmem:[%s11139 + $0x64] sm:$0xf]
      %v11166 = vld [vmem:[%s11139 + $0x68] sm:$0xf]
      %v11167 = vld [vmem:[%s11139 + $0x6c] sm:$0xf]
      %v11168 = vld [vmem:[%s11139 + $0x70] sm:$0xf]
      %v11169 = vld [vmem:[%s11139 + $0x74] sm:$0xf]
      %v11170 = vld [vmem:[%s11139 + $0x78] sm:$0xf]
      %v11171 = vld [vmem:[%s11139 + $0x7c] sm:$0xf]
      %v11172 = vld [vmem:[%s11139 + $0x80] sm:$0xf]
      %v11173 = vld [vmem:[%s11139 + $0x84] sm:$0xf]
      %v11174 = vld [vmem:[%s11139 + $0x88] sm:$0xf]
      %v11175 = vld [vmem:[%s11139 + $0x8c] sm:$0xf]
      %v11176 = vld [vmem:[%s11139 + $0x90] sm:$0xf]
      %v11177 = vld [vmem:[%s11139 + $0x94] sm:$0xf]
      %v11178 = vld [vmem:[%s11139 + $0x98] sm:$0xf]
      %v11179 = vld [vmem:[%s11139 + $0x9c] sm:$0xf]
      %v11180 = vld [vmem:[%s11139 + $0xa0] sm:$0xf]
      %v11181 = vld [vmem:[%s11139 + $0xa4] sm:$0xf]
      %v11182 = vld [vmem:[%s11139 + $0xa8] sm:$0xf]
      %v11183 = vld [vmem:[%s11139 + $0xac] sm:$0xf]
      %v11184 = vld [vmem:[%s11139 + $0xb0] sm:$0xf]
      %v11185 = vld [vmem:[%s11139 + $0xb4] sm:$0xf]
      %v11186 = vld [vmem:[%s11139 + $0xb8] sm:$0xf]
      %v11187 = vld [vmem:[%s11139 + $0xbc] sm:$0xf]
      %v11188 = vld [vmem:[%s11139 + $0xc0] sm:$0xf]
      %v11189 = vld [vmem:[%s11139 + $0xc4] sm:$0xf]
      %v11190 = vld [vmem:[%s11139 + $0xc8] sm:$0xf]
      %v11191 = vld [vmem:[%s11139 + $0xcc] sm:$0xf]
      %v11192 = vld [vmem:[%s11139 + $0xd0] sm:$0xf]
      %v11193 = vld [vmem:[%s11139 + $0xd4] sm:$0xf]
      %v11194 = vld [vmem:[%s11139 + $0xd8] sm:$0xf]
      %v11195 = vld [vmem:[%s11139 + $0xdc] sm:$0xf]
      %v11196 = vld [vmem:[%s11139 + $0xe0] sm:$0xf]
      %v11197 = vld [vmem:[%s11139 + $0xe4] sm:$0xf]
      %v11198 = vld [vmem:[%s11139 + $0xe8] sm:$0xf]
      %v11199 = vld [vmem:[%s11139 + $0xec] sm:$0xf]
      %v11200 = vld [vmem:[%s11139 + $0xf0] sm:$0xf]
      %v11201 = vld [vmem:[%s11139 + $0xf4] sm:$0xf]
      %v11202 = vld [vmem:[%s11139 + $0xf8] sm:$0xf]
      %v11203 = vld [vmem:[%s11139 + $0xfc] sm:$0xf]
      %v11204 = vrot.slane %v9380, 3
      %v11205 = vrot.slane %v9381, 3
      %v11206 = vrot.slane %v9382, 3
      %v11207 = vrot.slane %v9383, 3
      %v11276 = vunpack.c.l.b16 %v11140
      %v11277 = vunpack.c.l.b16 %v11141
      %v11278 = vunpack.c.l.b16 %v11142
      %v11279 = vunpack.c.l.b16 %v11143
      %v11280 = vunpack.c.l.b16 %v11144
      %v11281 = vunpack.c.l.b16 %v11145
      %v11282 = vunpack.c.l.b16 %v11146
      %v11283 = vunpack.c.l.b16 %v11147
      %v11284 = vunpack.c.l.b16 %v11148
      %v11285 = vunpack.c.l.b16 %v11149
      %v11286 = vunpack.c.l.b16 %v11150
      %v11287 = vunpack.c.l.b16 %v11151
      %v11288 = vunpack.c.l.b16 %v11152
      %v11289 = vunpack.c.l.b16 %v11153
      %v11290 = vunpack.c.l.b16 %v11154
      %v11291 = vunpack.c.l.b16 %v11155
      %v11292 = vunpack.c.l.b16 %v11156
      %v11293 = vunpack.c.l.b16 %v11157
      %v11294 = vunpack.c.l.b16 %v11158
      %v11295 = vunpack.c.l.b16 %v11159
      %v11296 = vunpack.c.l.b16 %v11160
      %v11297 = vunpack.c.l.b16 %v11161
      %v11298 = vunpack.c.l.b16 %v11162
      %v11299 = vunpack.c.l.b16 %v11163
      %v11300 = vunpack.c.l.b16 %v11164
      %v11301 = vunpack.c.l.b16 %v11165
      %v11302 = vunpack.c.l.b16 %v11166
      %v11303 = vunpack.c.l.b16 %v11167
      %v11304 = vunpack.c.l.b16 %v11168
      %v11305 = vunpack.c.l.b16 %v11169
      %v11306 = vunpack.c.l.b16 %v11170
      %v11307 = vunpack.c.l.b16 %v11171
      %v11308 = vunpack.c.l.b16 %v11172
      %v11309 = vunpack.c.l.b16 %v11173
      %v11310 = vunpack.c.l.b16 %v11174
      %v11311 = vunpack.c.l.b16 %v11175
      %v11312 = vunpack.c.l.b16 %v11176
      %v11313 = vunpack.c.l.b16 %v11177
      %v11314 = vunpack.c.l.b16 %v11178
      %v11315 = vunpack.c.l.b16 %v11179
      %v11316 = vunpack.c.l.b16 %v11180
      %v11317 = vunpack.c.l.b16 %v11181
      %v11318 = vunpack.c.l.b16 %v11182
      %v11319 = vunpack.c.l.b16 %v11183
      %v11320 = vunpack.c.l.b16 %v11184
      %v11321 = vunpack.c.l.b16 %v11185
      %v11322 = vunpack.c.l.b16 %v11186
      %v11323 = vunpack.c.l.b16 %v11187
      %v11324 = vunpack.c.l.b16 %v11188
      %v11325 = vunpack.c.l.b16 %v11189
      %v11326 = vunpack.c.l.b16 %v11190
      %v11327 = vunpack.c.l.b16 %v11191
      %v11328 = vunpack.c.l.b16 %v11192
      %v11329 = vunpack.c.l.b16 %v11193
      %v11330 = vunpack.c.l.b16 %v11194
      %v11331 = vunpack.c.l.b16 %v11195
      %v11332 = vunpack.c.l.b16 %v11196
      %v11333 = vunpack.c.l.b16 %v11197
      %v11334 = vunpack.c.l.b16 %v11198
      %v11335 = vunpack.c.l.b16 %v11199
      %v11336 = vunpack.c.l.b16 %v11200
      %v11337 = vunpack.c.l.b16 %v11201
      %v11338 = vunpack.c.l.b16 %v11202
      %v11339 = vunpack.c.l.b16 %v11203
      %v11340 = vpack.c.b16 %v11277, %v11276
      %v11341 = vpack.c.b16 %v11279, %v11278
      %v11342 = vpack.c.b16 %v11281, %v11280
      %v11343 = vpack.c.b16 %v11283, %v11282
      %v11344 = vpack.c.b16 %v11285, %v11284
      %v11345 = vpack.c.b16 %v11287, %v11286
      %v11346 = vpack.c.b16 %v11289, %v11288
      %v11347 = vpack.c.b16 %v11291, %v11290
      %v11348 = vpack.c.b16 %v11293, %v11292
      %v11349 = vpack.c.b16 %v11295, %v11294
      %v11350 = vpack.c.b16 %v11297, %v11296
      %v11351 = vpack.c.b16 %v11299, %v11298
      %v11352 = vpack.c.b16 %v11301, %v11300
      %v11353 = vpack.c.b16 %v11303, %v11302
      %v11354 = vpack.c.b16 %v11305, %v11304
      %v11355 = vpack.c.b16 %v11307, %v11306
      %v11356 = vpack.c.b16 %v11309, %v11308
      %v11357 = vpack.c.b16 %v11311, %v11310
      %v11358 = vpack.c.b16 %v11313, %v11312
      %v11359 = vpack.c.b16 %v11315, %v11314
      %v11360 = vpack.c.b16 %v11317, %v11316
      %v11361 = vpack.c.b16 %v11319, %v11318
      %v11362 = vpack.c.b16 %v11321, %v11320
      %v11363 = vpack.c.b16 %v11323, %v11322
      %v11364 = vpack.c.b16 %v11325, %v11324
      %v11365 = vpack.c.b16 %v11327, %v11326
      %v11366 = vpack.c.b16 %v11329, %v11328
      %v11367 = vpack.c.b16 %v11331, %v11330
      %v11368 = vpack.c.b16 %v11333, %v11332
      %v11369 = vpack.c.b16 %v11335, %v11334
      %v11370 = vpack.c.b16 %v11337, %v11336
      %v11371 = vpack.c.b16 %v11339, %v11338
      %11404 = vmatprep.subr.bf16.mxu0 0
      %11405 = vmatpush1.bf16.msra.mxu0 %v11340
      %11406 = vmatprep.subr.bf16.mxu0 0
      %11407 = vmatpush1.bf16.msra.mxu0 %v11341
      %11408 = vmatprep.subr.bf16.mxu0 0
      %11409 = vmatpush1.bf16.msra.mxu0 %v11342
      %11410 = vmatprep.subr.bf16.mxu0 0
      %11411 = vmatpush1.bf16.msra.mxu0 %v11343
      %11412 = vmatprep.subr.bf16.mxu0 0
      %11413 = vmatpush1.bf16.msra.mxu0 %v11344
      %11414 = vmatprep.subr.bf16.mxu0 0
      %11415 = vmatpush1.bf16.msra.mxu0 %v11345
      %11416 = vmatprep.subr.bf16.mxu0 0
      %11417 = vmatpush1.bf16.msra.mxu0 %v11346
      %11418 = vmatprep.subr.bf16.mxu0 0
      %11419 = vmatpush1.bf16.msra.mxu0 %v11347
      %11420 = vmatprep.subr.bf16.mxu0 0
      %11421 = vmatpush1.bf16.msra.mxu0 %v11348
      %11422 = vmatprep.subr.bf16.mxu0 0
      %11423 = vmatpush1.bf16.msra.mxu0 %v11349
      %11424 = vmatprep.subr.bf16.mxu0 0
      %11425 = vmatpush1.bf16.msra.mxu0 %v11350
      %11426 = vmatprep.subr.bf16.mxu0 0
      %11427 = vmatpush1.bf16.msra.mxu0 %v11351
      %11428 = vmatprep.subr.bf16.mxu0 0
      %11429 = vmatpush1.bf16.msra.mxu0 %v11352
      %11430 = vmatprep.subr.bf16.mxu0 0
      %11431 = vmatpush1.bf16.msra.mxu0 %v11353
      %11432 = vmatprep.subr.bf16.mxu0 0
      %11433 = vmatpush1.bf16.msra.mxu0 %v11354
      %11434 = vmatprep.subr.bf16.mxu0 0
      %11435 = vmatpush1.bf16.msra.mxu0 %v11355
      %11436 = vmatprep.mubr.bf16.mxu0 %v11205
      %11437 = vmatmul.mubr.bf16.gmra.mrb[0].mxu0 %v11204
      %v11438 = vpop.f32.mrb[0].mxu0
      %v11439 = vadd.f32 0.0, %v11438
      %v11440 = vpop.f32.mrb[0].mxu0
      %v11441 = vpop.f32.mrb[0].mxu0
      %v11442 = vpop.f32.mrb[0].mxu0
      %11443 = vdwg.mxu0
      %11444 = vmatprep.subr.bf16.mxu0 0
      %11445 = vmatpush1.bf16.msra.mxu0 %v11356
      %11446 = vmatprep.subr.bf16.mxu0 0
      %11447 = vmatpush1.bf16.msra.mxu0 %v11357
      %11448 = vmatprep.subr.bf16.mxu0 0
      %11449 = vmatpush1.bf16.msra.mxu0 %v11358
      %11450 = vmatprep.subr.bf16.mxu0 0
      %11451 = vmatpush1.bf16.msra.mxu0 %v11359
      %11452 = vmatprep.subr.bf16.mxu0 0
      %11453 = vmatpush1.bf16.msra.mxu0 %v11360
      %11454 = vmatprep.subr.bf16.mxu0 0
      %11455 = vmatpush1.bf16.msra.mxu0 %v11361
      %11456 = vmatprep.subr.bf16.mxu0 0
      %11457 = vmatpush1.bf16.msra.mxu0 %v11362
      %11458 = vmatprep.subr.bf16.mxu0 0
      %11459 = vmatpush1.bf16.msra.mxu0 %v11363
      %11460 = vmatprep.subr.bf16.mxu0 0
      %11461 = vmatpush1.bf16.msra.mxu0 %v11364
      %11462 = vmatprep.subr.bf16.mxu0 0
      %11463 = vmatpush1.bf16.msra.mxu0 %v11365
      %11464 = vmatprep.subr.bf16.mxu0 0
      %11465 = vmatpush1.bf16.msra.mxu0 %v11366
      %11466 = vmatprep.subr.bf16.mxu0 0
      %11467 = vmatpush1.bf16.msra.mxu0 %v11367
      %11468 = vmatprep.subr.bf16.mxu0 0
      %11469 = vmatpush1.bf16.msra.mxu0 %v11368
      %11470 = vmatprep.subr.bf16.mxu0 0
      %11471 = vmatpush1.bf16.msra.mxu0 %v11369
      %11472 = vmatprep.subr.bf16.mxu0 0
      %11473 = vmatpush1.bf16.msra.mxu0 %v11370
      %11474 = vmatprep.subr.bf16.mxu0 0
      %11475 = vmatpush1.bf16.msra.mxu0 %v11371
      %11476 = vmatprep.mubr.bf16.mxu0 %v11207
      %11477 = vmatmul.mubr.bf16.gmra.mrb[0].mxu0 %v11206
      %v11478 = vpop.f32.mrb[0].mxu0
      %v11479 = vadd.f32 %v11439, %v11478
      %v11480 = vpop.f32.mrb[0].mxu0
      %v11481 = vpop.f32.mrb[0].mxu0
      %v11482 = vpop.f32.mrb[0].mxu0
      %11483 = vdwg.mxu0
      %v11484 = vadd.f32 %v11138, %v11479
      %s11485 = scalar_lea.vmem %s10, 1536
      %v11486 = vld [vmem:[%s11485] sm:$0xf]
      %v11487 = vld [vmem:[%s11485 + $0x4] sm:$0xf]
      %v11488 = vld [vmem:[%s11485 + $0x8] sm:$0xf]
      %v11489 = vld [vmem:[%s11485 + $0xc] sm:$0xf]
      %v11490 = vld [vmem:[%s11485 + $0x10] sm:$0xf]
      %v11491 = vld [vmem:[%s11485 + $0x14] sm:$0xf]
      %v11492 = vld [vmem:[%s11485 + $0x18] sm:$0xf]
      %v11493 = vld [vmem:[%s11485 + $0x1c] sm:$0xf]
      %v11494 = vld [vmem:[%s11485 + $0x20] sm:$0xf]
      %v11495 = vld [vmem:[%s11485 + $0x24] sm:$0xf]
      %v11496 = vld [vmem:[%s11485 + $0x28] sm:$0xf]
      %v11497 = vld [vmem:[%s11485 + $0x2c] sm:$0xf]
      %v11498 = vld [vmem:[%s11485 + $0x30] sm:$0xf]
      %v11499 = vld [vmem:[%s11485 + $0x34] sm:$0xf]
      %v11500 = vld [vmem:[%s11485 + $0x38] sm:$0xf]
      %v11501 = vld [vmem:[%s11485 + $0x3c] sm:$0xf]
      %v11502 = vld [vmem:[%s11485 + $0x40] sm:$0xf]
      %v11503 = vld [vmem:[%s11485 + $0x44] sm:$0xf]
      %v11504 = vld [vmem:[%s11485 + $0x48] sm:$0xf]
      %v11505 = vld [vmem:[%s11485 + $0x4c] sm:$0xf]
      %v11506 = vld [vmem:[%s11485 + $0x50] sm:$0xf]
      %v11507 = vld [vmem:[%s11485 + $0x54] sm:$0xf]
      %v11508 = vld [vmem:[%s11485 + $0x58] sm:$0xf]
      %v11509 = vld [vmem:[%s11485 + $0x5c] sm:$0xf]
      %v11510 = vld [vmem:[%s11485 + $0x60] sm:$0xf]
      %v11511 = vld [vmem:[%s11485 + $0x64] sm:$0xf]
      %v11512 = vld [vmem:[%s11485 + $0x68] sm:$0xf]
      %v11513 = vld [vmem:[%s11485 + $0x6c] sm:$0xf]
      %v11514 = vld [vmem:[%s11485 + $0x70] sm:$0xf]
      %v11515 = vld [vmem:[%s11485 + $0x74] sm:$0xf]
      %v11516 = vld [vmem:[%s11485 + $0x78] sm:$0xf]
      %v11517 = vld [vmem:[%s11485 + $0x7c] sm:$0xf]
      %v11518 = vld [vmem:[%s11485 + $0x80] sm:$0xf]
      %v11519 = vld [vmem:[%s11485 + $0x84] sm:$0xf]
      %v11520 = vld [vmem:[%s11485 + $0x88] sm:$0xf]
      %v11521 = vld [vmem:[%s11485 + $0x8c] sm:$0xf]
      %v11522 = vld [vmem:[%s11485 + $0x90] sm:$0xf]
      %v11523 = vld [vmem:[%s11485 + $0x94] sm:$0xf]
      %v11524 = vld [vmem:[%s11485 + $0x98] sm:$0xf]
      %v11525 = vld [vmem:[%s11485 + $0x9c] sm:$0xf]
      %v11526 = vld [vmem:[%s11485 + $0xa0] sm:$0xf]
      %v11527 = vld [vmem:[%s11485 + $0xa4] sm:$0xf]
      %v11528 = vld [vmem:[%s11485 + $0xa8] sm:$0xf]
      %v11529 = vld [vmem:[%s11485 + $0xac] sm:$0xf]
      %v11530 = vld [vmem:[%s11485 + $0xb0] sm:$0xf]
      %v11531 = vld [vmem:[%s11485 + $0xb4] sm:$0xf]
      %v11532 = vld [vmem:[%s11485 + $0xb8] sm:$0xf]
      %v11533 = vld [vmem:[%s11485 + $0xbc] sm:$0xf]
      %v11534 = vld [vmem:[%s11485 + $0xc0] sm:$0xf]
      %v11535 = vld [vmem:[%s11485 + $0xc4] sm:$0xf]
      %v11536 = vld [vmem:[%s11485 + $0xc8] sm:$0xf]
      %v11537 = vld [vmem:[%s11485 + $0xcc] sm:$0xf]
      %v11538 = vld [vmem:[%s11485 + $0xd0] sm:$0xf]
      %v11539 = vld [vmem:[%s11485 + $0xd4] sm:$0xf]
      %v11540 = vld [vmem:[%s11485 + $0xd8] sm:$0xf]
      %v11541 = vld [vmem:[%s11485 + $0xdc] sm:$0xf]
      %v11542 = vld [vmem:[%s11485 + $0xe0] sm:$0xf]
      %v11543 = vld [vmem:[%s11485 + $0xe4] sm:$0xf]
      %v11544 = vld [vmem:[%s11485 + $0xe8] sm:$0xf]
      %v11545 = vld [vmem:[%s11485 + $0xec] sm:$0xf]
      %v11546 = vld [vmem:[%s11485 + $0xf0] sm:$0xf]
      %v11547 = vld [vmem:[%s11485 + $0xf4] sm:$0xf]
      %v11548 = vld [vmem:[%s11485 + $0xf8] sm:$0xf]
      %v11549 = vld [vmem:[%s11485 + $0xfc] sm:$0xf]
      %v11550 = vrot.slane %v9380, 4
      %v11551 = vrot.slane %v9381, 4
      %v11552 = vrot.slane %v9382, 4
      %v11553 = vrot.slane %v9383, 4
      %v11622 = vunpack.c.l.b16 %v11486
      %v11623 = vunpack.c.l.b16 %v11487
      %v11624 = vunpack.c.l.b16 %v11488
      %v11625 = vunpack.c.l.b16 %v11489
      %v11626 = vunpack.c.l.b16 %v11490
      %v11627 = vunpack.c.l.b16 %v11491
      %v11628 = vunpack.c.l.b16 %v11492
      %v11629 = vunpack.c.l.b16 %v11493
      %v11630 = vunpack.c.l.b16 %v11494
      %v11631 = vunpack.c.l.b16 %v11495
      %v11632 = vunpack.c.l.b16 %v11496
      %v11633 = vunpack.c.l.b16 %v11497
      %v11634 = vunpack.c.l.b16 %v11498
      %v11635 = vunpack.c.l.b16 %v11499
      %v11636 = vunpack.c.l.b16 %v11500
      %v11637 = vunpack.c.l.b16 %v11501
      %v11638 = vunpack.c.l.b16 %v11502
      %v11639 = vunpack.c.l.b16 %v11503
      %v11640 = vunpack.c.l.b16 %v11504
      %v11641 = vunpack.c.l.b16 %v11505
      %v11642 = vunpack.c.l.b16 %v11506
      %v11643 = vunpack.c.l.b16 %v11507
      %v11644 = vunpack.c.l.b16 %v11508
      %v11645 = vunpack.c.l.b16 %v11509
      %v11646 = vunpack.c.l.b16 %v11510
      %v11647 = vunpack.c.l.b16 %v11511
      %v11648 = vunpack.c.l.b16 %v11512
      %v11649 = vunpack.c.l.b16 %v11513
      %v11650 = vunpack.c.l.b16 %v11514
      %v11651 = vunpack.c.l.b16 %v11515
      %v11652 = vunpack.c.l.b16 %v11516
      %v11653 = vunpack.c.l.b16 %v11517
      %v11654 = vunpack.c.l.b16 %v11518
      %v11655 = vunpack.c.l.b16 %v11519
      %v11656 = vunpack.c.l.b16 %v11520
      %v11657 = vunpack.c.l.b16 %v11521
      %v11658 = vunpack.c.l.b16 %v11522
      %v11659 = vunpack.c.l.b16 %v11523
      %v11660 = vunpack.c.l.b16 %v11524
      %v11661 = vunpack.c.l.b16 %v11525
      %v11662 = vunpack.c.l.b16 %v11526
      %v11663 = vunpack.c.l.b16 %v11527
      %v11664 = vunpack.c.l.b16 %v11528
      %v11665 = vunpack.c.l.b16 %v11529
      %v11666 = vunpack.c.l.b16 %v11530
      %v11667 = vunpack.c.l.b16 %v11531
      %v11668 = vunpack.c.l.b16 %v11532
      %v11669 = vunpack.c.l.b16 %v11533
      %v11670 = vunpack.c.l.b16 %v11534
      %v11671 = vunpack.c.l.b16 %v11535
      %v11672 = vunpack.c.l.b16 %v11536
      %v11673 = vunpack.c.l.b16 %v11537
      %v11674 = vunpack.c.l.b16 %v11538
      %v11675 = vunpack.c.l.b16 %v11539
      %v11676 = vunpack.c.l.b16 %v11540
      %v11677 = vunpack.c.l.b16 %v11541
      %v11678 = vunpack.c.l.b16 %v11542
      %v11679 = vunpack.c.l.b16 %v11543
      %v11680 = vunpack.c.l.b16 %v11544
      %v11681 = vunpack.c.l.b16 %v11545
      %v11682 = vunpack.c.l.b16 %v11546
      %v11683 = vunpack.c.l.b16 %v11547
      %v11684 = vunpack.c.l.b16 %v11548
      %v11685 = vunpack.c.l.b16 %v11549
      %v11686 = vpack.c.b16 %v11623, %v11622
      %v11687 = vpack.c.b16 %v11625, %v11624
      %v11688 = vpack.c.b16 %v11627, %v11626
      %v11689 = vpack.c.b16 %v11629, %v11628
      %v11690 = vpack.c.b16 %v11631, %v11630
      %v11691 = vpack.c.b16 %v11633, %v11632
      %v11692 = vpack.c.b16 %v11635, %v11634
      %v11693 = vpack.c.b16 %v11637, %v11636
      %v11694 = vpack.c.b16 %v11639, %v11638
      %v11695 = vpack.c.b16 %v11641, %v11640
      %v11696 = vpack.c.b16 %v11643, %v11642
      %v11697 = vpack.c.b16 %v11645, %v11644
      %v11698 = vpack.c.b16 %v11647, %v11646
      %v11699 = vpack.c.b16 %v11649, %v11648
      %v11700 = vpack.c.b16 %v11651, %v11650
      %v11701 = vpack.c.b16 %v11653, %v11652
      %v11702 = vpack.c.b16 %v11655, %v11654
      %v11703 = vpack.c.b16 %v11657, %v11656
      %v11704 = vpack.c.b16 %v11659, %v11658
      %v11705 = vpack.c.b16 %v11661, %v11660
      %v11706 = vpack.c.b16 %v11663, %v11662
      %v11707 = vpack.c.b16 %v11665, %v11664
      %v11708 = vpack.c.b16 %v11667, %v11666
      %v11709 = vpack.c.b16 %v11669, %v11668
      %v11710 = vpack.c.b16 %v11671, %v11670
      %v11711 = vpack.c.b16 %v11673, %v11672
      %v11712 = vpack.c.b16 %v11675, %v11674
      %v11713 = vpack.c.b16 %v11677, %v11676
      %v11714 = vpack.c.b16 %v11679, %v11678
      %v11715 = vpack.c.b16 %v11681, %v11680
      %v11716 = vpack.c.b16 %v11683, %v11682
      %v11717 = vpack.c.b16 %v11685, %v11684
      %11750 = vmatprep.subr.bf16.mxu0 0
      %11751 = vmatpush1.bf16.msra.mxu0 %v11686
      %11752 = vmatprep.subr.bf16.mxu0 0
      %11753 = vmatpush1.bf16.msra.mxu0 %v11687
      %11754 = vmatprep.subr.bf16.mxu0 0
      %11755 = vmatpush1.bf16.msra.mxu0 %v11688
      %11756 = vmatprep.subr.bf16.mxu0 0
      %11757 = vmatpush1.bf16.msra.mxu0 %v11689
      %11758 = vmatprep.subr.bf16.mxu0 0
      %11759 = vmatpush1.bf16.msra.mxu0 %v11690
      %11760 = vmatprep.subr.bf16.mxu0 0
      %11761 = vmatpush1.bf16.msra.mxu0 %v11691
      %11762 = vmatprep.subr.bf16.mxu0 0
      %11763 = vmatpush1.bf16.msra.mxu0 %v11692
      %11764 = vmatprep.subr.bf16.mxu0 0
      %11765 = vmatpush1.bf16.msra.mxu0 %v11693
      %11766 = vmatprep.subr.bf16.mxu0 0
      %11767 = vmatpush1.bf16.msra.mxu0 %v11694
      %11768 = vmatprep.subr.bf16.mxu0 0
      %11769 = vmatpush1.bf16.msra.mxu0 %v11695
      %11770 = vmatprep.subr.bf16.mxu0 0
      %11771 = vmatpush1.bf16.msra.mxu0 %v11696
      %11772 = vmatprep.subr.bf16.mxu0 0
      %11773 = vmatpush1.bf16.msra.mxu0 %v11697
      %11774 = vmatprep.subr.bf16.mxu0 0
      %11775 = vmatpush1.bf16.msra.mxu0 %v11698
      %11776 = vmatprep.subr.bf16.mxu0 0
      %11777 = vmatpush1.bf16.msra.mxu0 %v11699
      %11778 = vmatprep.subr.bf16.mxu0 0
      %11779 = vmatpush1.bf16.msra.mxu0 %v11700
      %11780 = vmatprep.subr.bf16.mxu0 0
      %11781 = vmatpush1.bf16.msra.mxu0 %v11701
      %11782 = vmatprep.mubr.bf16.mxu0 %v11551
      %11783 = vmatmul.mubr.bf16.gmra.mrb[0].mxu0 %v11550
      %v11784 = vpop.f32.mrb[0].mxu0
      %v11785 = vadd.f32 0.0, %v11784
      %v11786 = vpop.f32.mrb[0].mxu0
      %v11787 = vpop.f32.mrb[0].mxu0
      %v11788 = vpop.f32.mrb[0].mxu0
      %11789 = vdwg.mxu0
      %11790 = vmatprep.subr.bf16.mxu0 0
      %11791 = vmatpush1.bf16.msra.mxu0 %v11702
      %11792 = vmatprep.subr.bf16.mxu0 0
      %11793 = vmatpush1.bf16.msra.mxu0 %v11703
      %11794 = vmatprep.subr.bf16.mxu0 0
      %11795 = vmatpush1.bf16.msra.mxu0 %v11704
      %11796 = vmatprep.subr.bf16.mxu0 0
      %11797 = vmatpush1.bf16.msra.mxu0 %v11705
      %11798 = vmatprep.subr.bf16.mxu0 0
      %11799 = vmatpush1.bf16.msra.mxu0 %v11706
      %11800 = vmatprep.subr.bf16.mxu0 0
      %11801 = vmatpush1.bf16.msra.mxu0 %v11707
      %11802 = vmatprep.subr.bf16.mxu0 0
      %11803 = vmatpush1.bf16.msra.mxu0 %v11708
      %11804 = vmatprep.subr.bf16.mxu0 0
      %11805 = vmatpush1.bf16.msra.mxu0 %v11709
      %11806 = vmatprep.subr.bf16.mxu0 0
      %11807 = vmatpush1.bf16.msra.mxu0 %v11710
      %11808 = vmatprep.subr.bf16.mxu0 0
      %11809 = vmatpush1.bf16.msra.mxu0 %v11711
      %11810 = vmatprep.subr.bf16.mxu0 0
      %11811 = vmatpush1.bf16.msra.mxu0 %v11712
      %11812 = vmatprep.subr.bf16.mxu0 0
      %11813 = vmatpush1.bf16.msra.mxu0 %v11713
      %11814 = vmatprep.subr.bf16.mxu0 0
      %11815 = vmatpush1.bf16.msra.mxu0 %v11714
      %11816 = vmatprep.subr.bf16.mxu0 0
      %11817 = vmatpush1.bf16.msra.mxu0 %v11715
      %11818 = vmatprep.subr.bf16.mxu0 0
      %11819 = vmatpush1.bf16.msra.mxu0 %v11716
      %11820 = vmatprep.subr.bf16.mxu0 0
      %11821 = vmatpush1.bf16.msra.mxu0 %v11717
      %11822 = vmatprep.mubr.bf16.mxu0 %v11553
      %11823 = vmatmul.mubr.bf16.gmra.mrb[0].mxu0 %v11552
      %v11824 = vpop.f32.mrb[0].mxu0
      %v11825 = vadd.f32 %v11785, %v11824
      %v11826 = vpop.f32.mrb[0].mxu0
      %v11827 = vpop.f32.mrb[0].mxu0
      %v11828 = vpop.f32.mrb[0].mxu0
      %11829 = vdwg.mxu0
      %v11830 = vadd.f32 %v11484, %v11825
      %s11831 = scalar_lea.vmem %s10, 1792
      %v11832 = vld [vmem:[%s11831] sm:$0xf]
      %v11833 = vld [vmem:[%s11831 + $0x4] sm:$0xf]
      %v11834 = vld [vmem:[%s11831 + $0x8] sm:$0xf]
      %v11835 = vld [vmem:[%s11831 + $0xc] sm:$0xf]
      %v11836 = vld [vmem:[%s11831 + $0x10] sm:$0xf]
      %v11837 = vld [vmem:[%s11831 + $0x14] sm:$0xf]
      %v11838 = vld [vmem:[%s11831 + $0x18] sm:$0xf]
      %v11839 = vld [vmem:[%s11831 + $0x1c] sm:$0xf]
      %v11840 = vld [vmem:[%s11831 + $0x20] sm:$0xf]
      %v11841 = vld [vmem:[%s11831 + $0x24] sm:$0xf]
      %v11842 = vld [vmem:[%s11831 + $0x28] sm:$0xf]
      %v11843 = vld [vmem:[%s11831 + $0x2c] sm:$0xf]
      %v11844 = vld [vmem:[%s11831 + $0x30] sm:$0xf]
      %v11845 = vld [vmem:[%s11831 + $0x34] sm:$0xf]
      %v11846 = vld [vmem:[%s11831 + $0x38] sm:$0xf]
      %v11847 = vld [vmem:[%s11831 + $0x3c] sm:$0xf]
      %v11848 = vld [vmem:[%s11831 + $0x40] sm:$0xf]
      %v11849 = vld [vmem:[%s11831 + $0x44] sm:$0xf]
      %v11850 = vld [vmem:[%s11831 + $0x48] sm:$0xf]
      %v11851 = vld [vmem:[%s11831 + $0x4c] sm:$0xf]
      %v11852 = vld [vmem:[%s11831 + $0x50] sm:$0xf]
      %v11853 = vld [vmem:[%s11831 + $0x54] sm:$0xf]
      %v11854 = vld [vmem:[%s11831 + $0x58] sm:$0xf]
      %v11855 = vld [vmem:[%s11831 + $0x5c] sm:$0xf]
      %v11856 = vld [vmem:[%s11831 + $0x60] sm:$0xf]
      %v11857 = vld [vmem:[%s11831 + $0x64] sm:$0xf]
      %v11858 = vld [vmem:[%s11831 + $0x68] sm:$0xf]
      %v11859 = vld [vmem:[%s11831 + $0x6c] sm:$0xf]
      %v11860 = vld [vmem:[%s11831 + $0x70] sm:$0xf]
      %v11861 = vld [vmem:[%s11831 + $0x74] sm:$0xf]
      %v11862 = vld [vmem:[%s11831 + $0x78] sm:$0xf]
      %v11863 = vld [vmem:[%s11831 + $0x7c] sm:$0xf]
      %v11864 = vld [vmem:[%s11831 + $0x80] sm:$0xf]
      %v11865 = vld [vmem:[%s11831 + $0x84] sm:$0xf]
      %v11866 = vld [vmem:[%s11831 + $0x88] sm:$0xf]
      %v11867 = vld [vmem:[%s11831 + $0x8c] sm:$0xf]
      %v11868 = vld [vmem:[%s11831 + $0x90] sm:$0xf]
      %v11869 = vld [vmem:[%s11831 + $0x94] sm:$0xf]
      %v11870 = vld [vmem:[%s11831 + $0x98] sm:$0xf]
      %v11871 = vld [vmem:[%s11831 + $0x9c] sm:$0xf]
      %v11872 = vld [vmem:[%s11831 + $0xa0] sm:$0xf]
      %v11873 = vld [vmem:[%s11831 + $0xa4] sm:$0xf]
      %v11874 = vld [vmem:[%s11831 + $0xa8] sm:$0xf]
      %v11875 = vld [vmem:[%s11831 + $0xac] sm:$0xf]
      %v11876 = vld [vmem:[%s11831 + $0xb0] sm:$0xf]
      %v11877 = vld [vmem:[%s11831 + $0xb4] sm:$0xf]
      %v11878 = vld [vmem:[%s11831 + $0xb8] sm:$0xf]
      %v11879 = vld [vmem:[%s11831 + $0xbc] sm:$0xf]
      %v11880 = vld [vmem:[%s11831 + $0xc0] sm:$0xf]
      %v11881 = vld [vmem:[%s11831 + $0xc4] sm:$0xf]
      %v11882 = vld [vmem:[%s11831 + $0xc8] sm:$0xf]
      %v11883 = vld [vmem:[%s11831 + $0xcc] sm:$0xf]
      %v11884 = vld [vmem:[%s11831 + $0xd0] sm:$0xf]
      %v11885 = vld [vmem:[%s11831 + $0xd4] sm:$0xf]
      %v11886 = vld [vmem:[%s11831 + $0xd8] sm:$0xf]
      %v11887 = vld [vmem:[%s11831 + $0xdc] sm:$0xf]
      %v11888 = vld [vmem:[%s11831 + $0xe0] sm:$0xf]
      %v11889 = vld [vmem:[%s11831 + $0xe4] sm:$0xf]
      %v11890 = vld [vmem:[%s11831 + $0xe8] sm:$0xf]
      %v11891 = vld [vmem:[%s11831 + $0xec] sm:$0xf]
      %v11892 = vld [vmem:[%s11831 + $0xf0] sm:$0xf]
      %v11893 = vld [vmem:[%s11831 + $0xf4] sm:$0xf]
      %v11894 = vld [vmem:[%s11831 + $0xf8] sm:$0xf]
      %v11895 = vld [vmem:[%s11831 + $0xfc] sm:$0xf]
      %v11896 = vrot.slane %v9514, 4
      %v11897 = vrot.slane %v9516, 5
      %v11898 = vor.u32 %v11896, %v11897
      %v11899 = vrot.slane %v9521, 4
      %v11900 = vrot.slane %v9523, 5
      %v11901 = vor.u32 %v11899, %v11900
      %v11902 = vrot.slane %v9528, 4
      %v11903 = vrot.slane %v9530, 5
      %v11904 = vor.u32 %v11902, %v11903
      %v11905 = vrot.slane %v9535, 4
      %v11906 = vrot.slane %v9537, 5
      %v11907 = vor.u32 %v11905, %v11906
      %v11976 = vunpack.c.l.b16 %v11832
      %v11977 = vunpack.c.l.b16 %v11833
      %v11978 = vunpack.c.l.b16 %v11834
      %v11979 = vunpack.c.l.b16 %v11835
      %v11980 = vunpack.c.l.b16 %v11836
      %v11981 = vunpack.c.l.b16 %v11837
      %v11982 = vunpack.c.l.b16 %v11838
      %v11983 = vunpack.c.l.b16 %v11839
      %v11984 = vunpack.c.l.b16 %v11840
      %v11985 = vunpack.c.l.b16 %v11841
      %v11986 = vunpack.c.l.b16 %v11842
      %v11987 = vunpack.c.l.b16 %v11843
      %v11988 = vunpack.c.l.b16 %v11844
      %v11989 = vunpack.c.l.b16 %v11845
      %v11990 = vunpack.c.l.b16 %v11846
      %v11991 = vunpack.c.l.b16 %v11847
      %v11992 = vunpack.c.l.b16 %v11848
      %v11993 = vunpack.c.l.b16 %v11849
      %v11994 = vunpack.c.l.b16 %v11850
      %v11995 = vunpack.c.l.b16 %v11851
      %v11996 = vunpack.c.l.b16 %v11852
      %v11997 = vunpack.c.l.b16 %v11853
      %v11998 = vunpack.c.l.b16 %v11854
      %v11999 = vunpack.c.l.b16 %v11855
      %v12000 = vunpack.c.l.b16 %v11856
      %v12001 = vunpack.c.l.b16 %v11857
      %v12002 = vunpack.c.l.b16 %v11858
      %v12003 = vunpack.c.l.b16 %v11859
      %v12004 = vunpack.c.l.b16 %v11860
      %v12005 = vunpack.c.l.b16 %v11861
      %v12006 = vunpack.c.l.b16 %v11862
      %v12007 = vunpack.c.l.b16 %v11863
      %v12008 = vunpack.c.l.b16 %v11864
      %v12009 = vunpack.c.l.b16 %v11865
      %v12010 = vunpack.c.l.b16 %v11866
      %v12011 = vunpack.c.l.b16 %v11867
      %v12012 = vunpack.c.l.b16 %v11868
      %v12013 = vunpack.c.l.b16 %v11869
      %v12014 = vunpack.c.l.b16 %v11870
      %v12015 = vunpack.c.l.b16 %v11871
      %v12016 = vunpack.c.l.b16 %v11872
      %v12017 = vunpack.c.l.b16 %v11873
      %v12018 = vunpack.c.l.b16 %v11874
      %v12019 = vunpack.c.l.b16 %v11875
      %v12020 = vunpack.c.l.b16 %v11876
      %v12021 = vunpack.c.l.b16 %v11877
      %v12022 = vunpack.c.l.b16 %v11878
      %v12023 = vunpack.c.l.b16 %v11879
      %v12024 = vunpack.c.l.b16 %v11880
      %v12025 = vunpack.c.l.b16 %v11881
      %v12026 = vunpack.c.l.b16 %v11882
      %v12027 = vunpack.c.l.b16 %v11883
      %v12028 = vunpack.c.l.b16 %v11884
      %v12029 = vunpack.c.l.b16 %v11885
      %v12030 = vunpack.c.l.b16 %v11886
      %v12031 = vunpack.c.l.b16 %v11887
      %v12032 = vunpack.c.l.b16 %v11888
      %v12033 = vunpack.c.l.b16 %v11889
      %v12034 = vunpack.c.l.b16 %v11890
      %v12035 = vunpack.c.l.b16 %v11891
      %v12036 = vunpack.c.l.b16 %v11892
      %v12037 = vunpack.c.l.b16 %v11893
      %v12038 = vunpack.c.l.b16 %v11894
      %v12039 = vunpack.c.l.b16 %v11895
      %v12040 = vpack.c.b16 %v11977, %v11976
      %v12041 = vpack.c.b16 %v11979, %v11978
      %v12042 = vpack.c.b16 %v11981, %v11980
      %v12043 = vpack.c.b16 %v11983, %v11982
      %v12044 = vpack.c.b16 %v11985, %v11984
      %v12045 = vpack.c.b16 %v11987, %v11986
      %v12046 = vpack.c.b16 %v11989, %v11988
      %v12047 = vpack.c.b16 %v11991, %v11990
      %v12048 = vpack.c.b16 %v11993, %v11992
      %v12049 = vpack.c.b16 %v11995, %v11994
      %v12050 = vpack.c.b16 %v11997, %v11996
      %v12051 = vpack.c.b16 %v11999, %v11998
      %v12052 = vpack.c.b16 %v12001, %v12000
      %v12053 = vpack.c.b16 %v12003, %v12002
      %v12054 = vpack.c.b16 %v12005, %v12004
      %v12055 = vpack.c.b16 %v12007, %v12006
      %v12056 = vpack.c.b16 %v12009, %v12008
      %v12057 = vpack.c.b16 %v12011, %v12010
      %v12058 = vpack.c.b16 %v12013, %v12012
      %v12059 = vpack.c.b16 %v12015, %v12014
      %v12060 = vpack.c.b16 %v12017, %v12016
      %v12061 = vpack.c.b16 %v12019, %v12018
      %v12062 = vpack.c.b16 %v12021, %v12020
      %v12063 = vpack.c.b16 %v12023, %v12022
      %v12064 = vpack.c.b16 %v12025, %v12024
      %v12065 = vpack.c.b16 %v12027, %v12026
      %v12066 = vpack.c.b16 %v12029, %v12028
      %v12067 = vpack.c.b16 %v12031, %v12030
      %v12068 = vpack.c.b16 %v12033, %v12032
      %v12069 = vpack.c.b16 %v12035, %v12034
      %v12070 = vpack.c.b16 %v12037, %v12036
      %v12071 = vpack.c.b16 %v12039, %v12038
      %12104 = vmatprep.subr.bf16.mxu0 0
      %12105 = vmatpush1.bf16.msra.mxu0 %v12040
      %12106 = vmatprep.subr.bf16.mxu0 0
      %12107 = vmatpush1.bf16.msra.mxu0 %v12041
      %12108 = vmatprep.subr.bf16.mxu0 0
      %12109 = vmatpush1.bf16.msra.mxu0 %v12042
      %12110 = vmatprep.subr.bf16.mxu0 0
      %12111 = vmatpush1.bf16.msra.mxu0 %v12043
      %12112 = vmatprep.subr.bf16.mxu0 0
      %12113 = vmatpush1.bf16.msra.mxu0 %v12044
      %12114 = vmatprep.subr.bf16.mxu0 0
      %12115 = vmatpush1.bf16.msra.mxu0 %v12045
      %12116 = vmatprep.subr.bf16.mxu0 0
      %12117 = vmatpush1.bf16.msra.mxu0 %v12046
      %12118 = vmatprep.subr.bf16.mxu0 0
      %12119 = vmatpush1.bf16.msra.mxu0 %v12047
      %12120 = vmatprep.subr.bf16.mxu0 0
      %12121 = vmatpush1.bf16.msra.mxu0 %v12048
      %12122 = vmatprep.subr.bf16.mxu0 0
      %12123 = vmatpush1.bf16.msra.mxu0 %v12049
      %12124 = vmatprep.subr.bf16.mxu0 0
      %12125 = vmatpush1.bf16.msra.mxu0 %v12050
      %12126 = vmatprep.subr.bf16.mxu0 0
      %12127 = vmatpush1.bf16.msra.mxu0 %v12051
      %12128 = vmatprep.subr.bf16.mxu0 0
      %12129 = vmatpush1.bf16.msra.mxu0 %v12052
      %12130 = vmatprep.subr.bf16.mxu0 0
      %12131 = vmatpush1.bf16.msra.mxu0 %v12053
      %12132 = vmatprep.subr.bf16.mxu0 0
      %12133 = vmatpush1.bf16.msra.mxu0 %v12054
      %12134 = vmatprep.subr.bf16.mxu0 0
      %12135 = vmatpush1.bf16.msra.mxu0 %v12055
      %12136 = vmatprep.mubr.bf16.mxu0 %v11901
      %12137 = vmatmul.mubr.bf16.gmra.mrb[0].mxu0 %v11898
      %v12138 = vpop.f32.mrb[0].mxu0
      %v12139 = vadd.f32 0.0, %v12138
      %v12140 = vpop.f32.mrb[0].mxu0
      %v12141 = vpop.f32.mrb[0].mxu0
      %v12142 = vpop.f32.mrb[0].mxu0
      %12143 = vdwg.mxu0
      %12144 = vmatprep.subr.bf16.mxu0 0
      %12145 = vmatpush1.bf16.msra.mxu0 %v12056
      %12146 = vmatprep.subr.bf16.mxu0 0
      %12147 = vmatpush1.bf16.msra.mxu0 %v12057
      %12148 = vmatprep.subr.bf16.mxu0 0
      %12149 = vmatpush1.bf16.msra.mxu0 %v12058
      %12150 = vmatprep.subr.bf16.mxu0 0
      %12151 = vmatpush1.bf16.msra.mxu0 %v12059
      %12152 = vmatprep.subr.bf16.mxu0 0
      %12153 = vmatpush1.bf16.msra.mxu0 %v12060
      %12154 = vmatprep.subr.bf16.mxu0 0
      %12155 = vmatpush1.bf16.msra.mxu0 %v12061
      %12156 = vmatprep.subr.bf16.mxu0 0
      %12157 = vmatpush1.bf16.msra.mxu0 %v12062
      %12158 = vmatprep.subr.bf16.mxu0 0
      %12159 = vmatpush1.bf16.msra.mxu0 %v12063
      %12160 = vmatprep.subr.bf16.mxu0 0
      %12161 = vmatpush1.bf16.msra.mxu0 %v12064
      %12162 = vmatprep.subr.bf16.mxu0 0
      %12163 = vmatpush1.bf16.msra.mxu0 %v12065
      %12164 = vmatprep.subr.bf16.mxu0 0
      %12165 = vmatpush1.bf16.msra.mxu0 %v12066
      %12166 = vmatprep.subr.bf16.mxu0 0
      %12167 = vmatpush1.bf16.msra.mxu0 %v12067
      %12168 = vmatprep.subr.bf16.mxu0 0
      %12169 = vmatpush1.bf16.msra.mxu0 %v12068
      %12170 = vmatprep.subr.bf16.mxu0 0
      %12171 = vmatpush1.bf16.msra.mxu0 %v12069
      %12172 = vmatprep.subr.bf16.mxu0 0
      %12173 = vmatpush1.bf16.msra.mxu0 %v12070
      %12174 = vmatprep.subr.bf16.mxu0 0
      %12175 = vmatpush1.bf16.msra.mxu0 %v12071
      %12176 = vmatprep.mubr.bf16.mxu0 %v11907
      %12177 = vmatmul.mubr.bf16.gmra.mrb[0].mxu0 %v11904
      %v12178 = vpop.f32.mrb[0].mxu0
      %v12179 = vadd.f32 %v12139, %v12178
      %v12180 = vpop.f32.mrb[0].mxu0
      %v12181 = vpop.f32.mrb[0].mxu0
      %v12182 = vpop.f32.mrb[0].mxu0
      %12183 = vdwg.mxu0
      %v12184 = vadd.f32 %v11830, %v12179
      %s12185 = scalar_lea.vmem %s10, 2048
      %v12186 = vld [vmem:[%s12185] sm:$0xf]
      %v12187 = vld [vmem:[%s12185 + $0x4] sm:$0xf]
      %v12188 = vld [vmem:[%s12185 + $0x8] sm:$0xf]
      %v12189 = vld [vmem:[%s12185 + $0xc] sm:$0xf]
      %v12190 = vld [vmem:[%s12185 + $0x10] sm:$0xf]
      %v12191 = vld [vmem:[%s12185 + $0x14] sm:$0xf]
      %v12192 = vld [vmem:[%s12185 + $0x18] sm:$0xf]
      %v12193 = vld [vmem:[%s12185 + $0x1c] sm:$0xf]
      %v12194 = vld [vmem:[%s12185 + $0x20] sm:$0xf]
      %v12195 = vld [vmem:[%s12185 + $0x24] sm:$0xf]
      %v12196 = vld [vmem:[%s12185 + $0x28] sm:$0xf]
      %v12197 = vld [vmem:[%s12185 + $0x2c] sm:$0xf]
      %v12198 = vld [vmem:[%s12185 + $0x30] sm:$0xf]
      %v12199 = vld [vmem:[%s12185 + $0x34] sm:$0xf]
      %v12200 = vld [vmem:[%s12185 + $0x38] sm:$0xf]
      %v12201 = vld [vmem:[%s12185 + $0x3c] sm:$0xf]
      %v12202 = vld [vmem:[%s12185 + $0x40] sm:$0xf]
      %v12203 = vld [vmem:[%s12185 + $0x44] sm:$0xf]
      %v12204 = vld [vmem:[%s12185 + $0x48] sm:$0xf]
      %v12205 = vld [vmem:[%s12185 + $0x4c] sm:$0xf]
      %v12206 = vld [vmem:[%s12185 + $0x50] sm:$0xf]
      %v12207 = vld [vmem:[%s12185 + $0x54] sm:$0xf]
      %v12208 = vld [vmem:[%s12185 + $0x58] sm:$0xf]
      %v12209 = vld [vmem:[%s12185 + $0x5c] sm:$0xf]
      %v12210 = vld [vmem:[%s12185 + $0x60] sm:$0xf]
      %v12211 = vld [vmem:[%s12185 + $0x64] sm:$0xf]
      %v12212 = vld [vmem:[%s12185 + $0x68] sm:$0xf]
      %v12213 = vld [vmem:[%s12185 + $0x6c] sm:$0xf]
      %v12214 = vld [vmem:[%s12185 + $0x70] sm:$0xf]
      %v12215 = vld [vmem:[%s12185 + $0x74] sm:$0xf]
      %v12216 = vld [vmem:[%s12185 + $0x78] sm:$0xf]
      %v12217 = vld [vmem:[%s12185 + $0x7c] sm:$0xf]
      %v12218 = vld [vmem:[%s12185 + $0x80] sm:$0xf]
      %v12219 = vld [vmem:[%s12185 + $0x84] sm:$0xf]
      %v12220 = vld [vmem:[%s12185 + $0x88] sm:$0xf]
      %v12221 = vld [vmem:[%s12185 + $0x8c] sm:$0xf]
      %v12222 = vld [vmem:[%s12185 + $0x90] sm:$0xf]
      %v12223 = vld [vmem:[%s12185 + $0x94] sm:$0xf]
      %v12224 = vld [vmem:[%s12185 + $0x98] sm:$0xf]
      %v12225 = vld [vmem:[%s12185 + $0x9c] sm:$0xf]
      %v12226 = vld [vmem:[%s12185 + $0xa0] sm:$0xf]
      %v12227 = vld [vmem:[%s12185 + $0xa4] sm:$0xf]
      %v12228 = vld [vmem:[%s12185 + $0xa8] sm:$0xf]
      %v12229 = vld [vmem:[%s12185 + $0xac] sm:$0xf]
      %v12230 = vld [vmem:[%s12185 + $0xb0] sm:$0xf]
      %v12231 = vld [vmem:[%s12185 + $0xb4] sm:$0xf]
      %v12232 = vld [vmem:[%s12185 + $0xb8] sm:$0xf]
      %v12233 = vld [vmem:[%s12185 + $0xbc] sm:$0xf]
      %v12234 = vld [vmem:[%s12185 + $0xc0] sm:$0xf]
      %v12235 = vld [vmem:[%s12185 + $0xc4] sm:$0xf]
      %v12236 = vld [vmem:[%s12185 + $0xc8] sm:$0xf]
      %v12237 = vld [vmem:[%s12185 + $0xcc] sm:$0xf]
      %v12238 = vld [vmem:[%s12185 + $0xd0] sm:$0xf]
      %v12239 = vld [vmem:[%s12185 + $0xd4] sm:$0xf]
      %v12240 = vld [vmem:[%s12185 + $0xd8] sm:$0xf]
      %v12241 = vld [vmem:[%s12185 + $0xdc] sm:$0xf]
      %v12242 = vld [vmem:[%s12185 + $0xe0] sm:$0xf]
      %v12243 = vld [vmem:[%s12185 + $0xe4] sm:$0xf]
      %v12244 = vld [vmem:[%s12185 + $0xe8] sm:$0xf]
      %v12245 = vld [vmem:[%s12185 + $0xec] sm:$0xf]
      %v12246 = vld [vmem:[%s12185 + $0xf0] sm:$0xf]
      %v12247 = vld [vmem:[%s12185 + $0xf4] sm:$0xf]
      %v12248 = vld [vmem:[%s12185 + $0xf8] sm:$0xf]
      %v12249 = vld [vmem:[%s12185 + $0xfc] sm:$0xf]
      %v12250 = vrot.slane %v9380, 5
      %v12251 = vrot.slane %v9381, 5
      %v12252 = vrot.slane %v9382, 5
      %v12253 = vrot.slane %v9383, 5
      %v12322 = vunpack.c.l.b16 %v12186
      %v12323 = vunpack.c.l.b16 %v12187
      %v12324 = vunpack.c.l.b16 %v12188
      %v12325 = vunpack.c.l.b16 %v12189
      %v12326 = vunpack.c.l.b16 %v12190
      %v12327 = vunpack.c.l.b16 %v12191
      %v12328 = vunpack.c.l.b16 %v12192
      %v12329 = vunpack.c.l.b16 %v12193
      %v12330 = vunpack.c.l.b16 %v12194
      %v12331 = vunpack.c.l.b16 %v12195
      %v12332 = vunpack.c.l.b16 %v12196
      %v12333 = vunpack.c.l.b16 %v12197
      %v12334 = vunpack.c.l.b16 %v12198
      %v12335 = vunpack.c.l.b16 %v12199
      %v12336 = vunpack.c.l.b16 %v12200
      %v12337 = vunpack.c.l.b16 %v12201
      %v12338 = vunpack.c.l.b16 %v12202
      %v12339 = vunpack.c.l.b16 %v12203
      %v12340 = vunpack.c.l.b16 %v12204
      %v12341 = vunpack.c.l.b16 %v12205
      %v12342 = vunpack.c.l.b16 %v12206
      %v12343 = vunpack.c.l.b16 %v12207
      %v12344 = vunpack.c.l.b16 %v12208
      %v12345 = vunpack.c.l.b16 %v12209
      %v12346 = vunpack.c.l.b16 %v12210
      %v12347 = vunpack.c.l.b16 %v12211
      %v12348 = vunpack.c.l.b16 %v12212
      %v12349 = vunpack.c.l.b16 %v12213
      %v12350 = vunpack.c.l.b16 %v12214
      %v12351 = vunpack.c.l.b16 %v12215
      %v12352 = vunpack.c.l.b16 %v12216
      %v12353 = vunpack.c.l.b16 %v12217
      %v12354 = vunpack.c.l.b16 %v12218
      %v12355 = vunpack.c.l.b16 %v12219
      %v12356 = vunpack.c.l.b16 %v12220
      %v12357 = vunpack.c.l.b16 %v12221
      %v12358 = vunpack.c.l.b16 %v12222
      %v12359 = vunpack.c.l.b16 %v12223
      %v12360 = vunpack.c.l.b16 %v12224
      %v12361 = vunpack.c.l.b16 %v12225
      %v12362 = vunpack.c.l.b16 %v12226
      %v12363 = vunpack.c.l.b16 %v12227
      %v12364 = vunpack.c.l.b16 %v12228
      %v12365 = vunpack.c.l.b16 %v12229
      %v12366 = vunpack.c.l.b16 %v12230
      %v12367 = vunpack.c.l.b16 %v12231
      %v12368 = vunpack.c.l.b16 %v12232
      %v12369 = vunpack.c.l.b16 %v12233
      %v12370 = vunpack.c.l.b16 %v12234
      %v12371 = vunpack.c.l.b16 %v12235
      %v12372 = vunpack.c.l.b16 %v12236
      %v12373 = vunpack.c.l.b16 %v12237
      %v12374 = vunpack.c.l.b16 %v12238
      %v12375 = vunpack.c.l.b16 %v12239
      %v12376 = vunpack.c.l.b16 %v12240
      %v12377 = vunpack.c.l.b16 %v12241
      %v12378 = vunpack.c.l.b16 %v12242
      %v12379 = vunpack.c.l.b16 %v12243
      %v12380 = vunpack.c.l.b16 %v12244
      %v12381 = vunpack.c.l.b16 %v12245
      %v12382 = vunpack.c.l.b16 %v12246
      %v12383 = vunpack.c.l.b16 %v12247
      %v12384 = vunpack.c.l.b16 %v12248
      %v12385 = vunpack.c.l.b16 %v12249
      %v12386 = vpack.c.b16 %v12323, %v12322
      %v12387 = vpack.c.b16 %v12325, %v12324
      %v12388 = vpack.c.b16 %v12327, %v12326
      %v12389 = vpack.c.b16 %v12329, %v12328
      %v12390 = vpack.c.b16 %v12331, %v12330
      %v12391 = vpack.c.b16 %v12333, %v12332
      %v12392 = vpack.c.b16 %v12335, %v12334
      %v12393 = vpack.c.b16 %v12337, %v12336
      %v12394 = vpack.c.b16 %v12339, %v12338
      %v12395 = vpack.c.b16 %v12341, %v12340
      %v12396 = vpack.c.b16 %v12343, %v12342
      %v12397 = vpack.c.b16 %v12345, %v12344
      %v12398 = vpack.c.b16 %v12347, %v12346
      %v12399 = vpack.c.b16 %v12349, %v12348
      %v12400 = vpack.c.b16 %v12351, %v12350
      %v12401 = vpack.c.b16 %v12353, %v12352
      %v12402 = vpack.c.b16 %v12355, %v12354
      %v12403 = vpack.c.b16 %v12357, %v12356
      %v12404 = vpack.c.b16 %v12359, %v12358
      %v12405 = vpack.c.b16 %v12361, %v12360
      %v12406 = vpack.c.b16 %v12363, %v12362
      %v12407 = vpack.c.b16 %v12365, %v12364
      %v12408 = vpack.c.b16 %v12367, %v12366
      %v12409 = vpack.c.b16 %v12369, %v12368
      %v12410 = vpack.c.b16 %v12371, %v12370
      %v12411 = vpack.c.b16 %v12373, %v12372
      %v12412 = vpack.c.b16 %v12375, %v12374
      %v12413 = vpack.c.b16 %v12377, %v12376
      %v12414 = vpack.c.b16 %v12379, %v12378
      %v12415 = vpack.c.b16 %v12381, %v12380
      %v12416 = vpack.c.b16 %v12383, %v12382
      %v12417 = vpack.c.b16 %v12385, %v12384
      %12450 = vmatprep.subr.bf16.mxu0 0
      %12451 = vmatpush1.bf16.msra.mxu0 %v12386
      %12452 = vmatprep.subr.bf16.mxu0 0
      %12453 = vmatpush1.bf16.msra.mxu0 %v12387
      %12454 = vmatprep.subr.bf16.mxu0 0
      %12455 = vmatpush1.bf16.msra.mxu0 %v12388
      %12456 = vmatprep.subr.bf16.mxu0 0
      %12457 = vmatpush1.bf16.msra.mxu0 %v12389
      %12458 = vmatprep.subr.bf16.mxu0 0
      %12459 = vmatpush1.bf16.msra.mxu0 %v12390
      %12460 = vmatprep.subr.bf16.mxu0 0
      %12461 = vmatpush1.bf16.msra.mxu0 %v12391
      %12462 = vmatprep.subr.bf16.mxu0 0
      %12463 = vmatpush1.bf16.msra.mxu0 %v12392
      %12464 = vmatprep.subr.bf16.mxu0 0
      %12465 = vmatpush1.bf16.msra.mxu0 %v12393
      %12466 = vmatprep.subr.bf16.mxu0 0
      %12467 = vmatpush1.bf16.msra.mxu0 %v12394
      %12468 = vmatprep.subr.bf16.mxu0 0
      %12469 = vmatpush1.bf16.msra.mxu0 %v12395
      %12470 = vmatprep.subr.bf16.mxu0 0
      %12471 = vmatpush1.bf16.msra.mxu0 %v12396
      %12472 = vmatprep.subr.bf16.mxu0 0
      %12473 = vmatpush1.bf16.msra.mxu0 %v12397
      %12474 = vmatprep.subr.bf16.mxu0 0
      %12475 = vmatpush1.bf16.msra.mxu0 %v12398
      %12476 = vmatprep.subr.bf16.mxu0 0
      %12477 = vmatpush1.bf16.msra.mxu0 %v12399
      %12478 = vmatprep.subr.bf16.mxu0 0
      %12479 = vmatpush1.bf16.msra.mxu0 %v12400
      %12480 = vmatprep.subr.bf16.mxu0 0
      %12481 = vmatpush1.bf16.msra.mxu0 %v12401
      %12482 = vmatprep.mubr.bf16.mxu0 %v12251
      %12483 = vmatmul.mubr.bf16.gmra.mrb[0].mxu0 %v12250
      %v12484 = vpop.f32.mrb[0].mxu0
      %v12485 = vadd.f32 0.0, %v12484
      %v12486 = vpop.f32.mrb[0].mxu0
      %v12487 = vpop.f32.mrb[0].mxu0
      %v12488 = vpop.f32.mrb[0].mxu0
      %12489 = vdwg.mxu0
      %12490 = vmatprep.subr.bf16.mxu0 0
      %12491 = vmatpush1.bf16.msra.mxu0 %v12402
      %12492 = vmatprep.subr.bf16.mxu0 0
      %12493 = vmatpush1.bf16.msra.mxu0 %v12403
      %12494 = vmatprep.subr.bf16.mxu0 0
      %12495 = vmatpush1.bf16.msra.mxu0 %v12404
      %12496 = vmatprep.subr.bf16.mxu0 0
      %12497 = vmatpush1.bf16.msra.mxu0 %v12405
      %12498 = vmatprep.subr.bf16.mxu0 0
      %12499 = vmatpush1.bf16.msra.mxu0 %v12406
      %12500 = vmatprep.subr.bf16.mxu0 0
      %12501 = vmatpush1.bf16.msra.mxu0 %v12407
      %12502 = vmatprep.subr.bf16.mxu0 0
      %12503 = vmatpush1.bf16.msra.mxu0 %v12408
      %12504 = vmatprep.subr.bf16.mxu0 0
      %12505 = vmatpush1.bf16.msra.mxu0 %v12409
      %12506 = vmatprep.subr.bf16.mxu0 0
      %12507 = vmatpush1.bf16.msra.mxu0 %v12410
      %12508 = vmatprep.subr.bf16.mxu0 0
      %12509 = vmatpush1.bf16.msra.mxu0 %v12411
      %12510 = vmatprep.subr.bf16.mxu0 0
      %12511 = vmatpush1.bf16.msra.mxu0 %v12412
      %12512 = vmatprep.subr.bf16.mxu0 0
      %12513 = vmatpush1.bf16.msra.mxu0 %v12413
      %12514 = vmatprep.subr.bf16.mxu0 0
      %12515 = vmatpush1.bf16.msra.mxu0 %v12414
      %12516 = vmatprep.subr.bf16.mxu0 0
      %12517 = vmatpush1.bf16.msra.mxu0 %v12415
      %12518 = vmatprep.subr.bf16.mxu0 0
      %12519 = vmatpush1.bf16.msra.mxu0 %v12416
      %12520 = vmatprep.subr.bf16.mxu0 0
      %12521 = vmatpush1.bf16.msra.mxu0 %v12417
      %12522 = vmatprep.mubr.bf16.mxu0 %v12253
      %12523 = vmatmul.mubr.bf16.gmra.mrb[0].mxu0 %v12252
      %v12524 = vpop.f32.mrb[0].mxu0
      %v12525 = vadd.f32 %v12485, %v12524
      %v12526 = vpop.f32.mrb[0].mxu0
      %v12527 = vpop.f32.mrb[0].mxu0
      %v12528 = vpop.f32.mrb[0].mxu0
      %12529 = vdwg.mxu0
      %v12530 = vadd.f32 %v12184, %v12525
      %v12531 = vld [vmem:[%s11] sm:$0x1]
      %v12533 = vlaneseq
      %v12534 = vshrl.u32 %v12533, 7
      %v12535 = vsub.s32 0, %v12534
      %v12536 = vrot.slane %v12531, %v12535
      %v12538 = vadd.f32 %v12530, %v12536
      %v12539 = vsub.f32 0.0, %v12538
      %v12540 = vmul.f32 %v12539, 1.442695
      %v12541 = vpow.pop %v12540
      %v12542 = vadd.f32 %v12541, 1.0
      %v12543 = vrcp.pop %v12542
      %v12544 = vmul.f32 1.0, %v12543
      %12545 = vst [vmem:[%s411] sm:$0x3f] %v12544
      %p12546 = scmp.lt.s32.totalorder %s23, 1
      %s12547 = scalar_select %p12546, %s23, 1
      %s12548 = smul.addr %s12547, 8
      %s12549 = scalar_lea.vmem %s12, %s12548
      // Predicated region
      $region69: #{discriminator_forward.1} parent=67 // pred_check
        %p12550 = pneg %p298
      $region70: #{discriminator_forward.1} parent=67 // pred_check_branch
        %12552 = sbr.rel (%p12550) target = $region72
      $region71: #{discriminator_forward.1} parent=67 // pred_region
        _
      $region72: #{discriminator_forward.1} parent=67 // pred_fallthru
        _
    $region68: #{discriminator_forward.1} parent=5 // pred_fallthru
      _
    %p12553 = scmp.le.s32.totalorder 2, %s18
    // Predicated region
    $region73: #{discriminator_forward.1} parent=5 // pred_check
      %p12554 = pneg %p12553
    $region74: #{discriminator_forward.1} parent=5 // pred_check_branch
      %12556 = sbr.rel (%p12554) target = $region76
    $region75: #{discriminator_forward.1} parent=5 // pred_region
      %s12557 = ssub.s32 %s18, 2
      // Predicated region
      $region77: #{discriminator_forward.1} parent=75 // pred_check
        %p12558 = pneg %p304
      $region78: #{discriminator_forward.1} parent=75 // pred_check_branch
        %12560 = sbr.rel (%p12558) target = $region80
      $region79: #{discriminator_forward.1} parent=75 // pred_region
        %p12561 = scmp.lt.s32.totalorder %s24, 1
        %s12562 = scalar_select %p12561, %s24, 1
        %s12563 = smul.addr %s12562, 8
        %s12564 = scalar_lea.vmem %s12, %s12563
      $region80: #{discriminator_forward.1} parent=75 // pred_fallthru
        _
    $region76: #{discriminator_forward.1} parent=5 // pred_fallthru
      _
  $region6: #{discriminator_forward.1} parent=0 // loop_footer
    %s22 = sadd.s32 1, %s18
  $region7: #{discriminator_forward.1} parent=0 // loop_footer_branch
    %17 = sbr.rel target = $region3
  $region8: #{discriminator_forward.1} parent=0 // loop_exit
    _

</llo_original>
